<compile_context>
chip_gen: v7x
topology: tpu7x:2x2x1
jax: 0.10.0
libtpu: 0.0.40
codegen_flags: <defaults>
</compile_context>

<pallas_src>
import math

import jax
import jax.numpy as jnp
from jax.experimental import pallas as pl
from jax.experimental.pallas import tpu as pltpu

# --------------------------- model hyper-parameters ---------------------------
N_LAYERS = 2
VOCAB = 50
LANE = 128               # lane-dense slab width / padded vocab
VOCAB_PAD = LANE
D_MODEL = 32
D_FF = 64
NUM_HEAD = 4
DK = D_MODEL // NUM_HEAD
MAX_SEQ = 64
EPS = 1e-5

B = 2
T = 8          # decoder sequence length
T_ENC = 8      # encoder sequence length

# ---- weight-slab row offsets (relative to l * LAYER_W_ROWS) ----
W_QKV1, W_O1, W_Q2, W_KV2, W_O2, W_F1, W_F2 = 0, 32, 64, 96, 128, 160, 192
LAYER_W_ROWS = 256
W_OUT = N_LAYERS * LAYER_W_ROWS           # 512

# ---- bias-slab row indices (relative to l * LAYER_B_ROWS) ----
B_QKV1, B_O1, B_Q2, B_KV2, B_O2 = 0, 1, 2, 3, 4
B_LN1G, B_LN1B, B_LN2G, B_LN2B, B_LN3G, B_LN3B = 5, 6, 7, 8, 9, 10
B_F1, B_F2 = 11, 12
LAYER_B_ROWS = 13
B_OUT = N_LAYERS * LAYER_B_ROWS           # 26


# --------------------------------- fused kernel --------------------------------
def decoder_kernel(x_ref, enc_ref, w_ref, b_ref, o_ref):
    """Whole decoder forward in one grid step. x_ref: (B*T, D) f32,
    enc_ref: (B*T_ENC, D) f32, w_ref: (544, 128) f32 weight slab,
    b_ref: (27, 128) f32 bias/LN slab, o_ref: (B*T, VOCAB_PAD) f32."""
    f32 = jnp.float32

    def wm(off, r, c):                       # static weight-matrix slice (r, c)
        return w_ref[off:off + r, 0:c]

    def brow(row, c):                        # static bias row (1, c)
        return b_ref[row:row + 1, 0:c]

    def matmul(a, w, bias):
        return jnp.dot(a, w, preferred_element_type=f32) + bias

    def layernorm(z, g, beta):
        mu = jnp.mean(z, axis=-1, keepdims=True)
        zc = z - mu
        var = jnp.mean(zc * zc, axis=-1, keepdims=True)
        return zc * jax.lax.rsqrt(var + EPS) * g + beta

    def attention_core(q, k, v, t_q, t_k, mask_bias):
        """q: (B*t_q, D), k/v: (B*t_k, D) -> (B*t_q, D).
        Statically unrolled over (batch, head); scale already folded into q."""
        batch_rows = []
        for bi in range(B):
            q_b = q[bi * t_q:(bi + 1) * t_q]
            k_b = k[bi * t_k:(bi + 1) * t_k]
            v_b = v[bi * t_k:(bi + 1) * t_k]
            heads = []
            for h in range(NUM_HEAD):
                qh = q_b[:, h * DK:(h + 1) * DK]
                kh = k_b[:, h * DK:(h + 1) * DK]
                vh = v_b[:, h * DK:(h + 1) * DK]
                s = jax.lax.dot_general(qh, kh, (((1,), (1,)), ((), ())),
                                        preferred_element_type=f32)   # (t_q, t_k)
                if mask_bias is not None:
                    s = s + mask_bias
                m = jnp.max(s, axis=-1, keepdims=True)
                p = jnp.exp(s - m)
                p = p / jnp.sum(p, axis=-1, keepdims=True)             # exact softmax
                heads.append(jnp.dot(p, vh, preferred_element_type=f32))
            batch_rows.append(jnp.concatenate(heads, axis=1))          # (t_q, D)
        return jnp.concatenate(batch_rows, axis=0)                     # (B*t_q, D)

    x = x_ref[...]                         # (B*T, D) residual stream, f32
    enc = enc_ref[...]                     # (B*T_ENC, D)

    # Causal additive mask built in-kernel (0 = attend, -1e9 = masked).
    # TODO(synk): arbitrary (non-causal) user masks would need to be passed in.
    row_id = jax.lax.broadcasted_iota(jnp.int32, (T, T), 0)
    col_id = jax.lax.broadcasted_iota(jnp.int32, (T, T), 1)
    causal_bias = jnp.where(row_id >= col_id, 0.0, -1e9).astype(f32)

    for l in range(N_LAYERS):              # static unroll over layers
        wb = l * LAYER_W_ROWS
        bb = l * LAYER_B_ROWS

        # ---- masked self-attention + add & norm ----
        qkv = matmul(x, wm(wb + W_QKV1, D_MODEL, 3 * D_MODEL),
                     brow(bb + B_QKV1, 3 * D_MODEL))                   # (B*T, 96)
        q = qkv[:, 0:D_MODEL]
        k = qkv[:, D_MODEL:2 * D_MODEL]
        v = qkv[:, 2 * D_MODEL:3 * D_MODEL]
        ctx = attention_core(q, k, v, T, T, causal_bias)               # (B*T, D)
        a1 = matmul(ctx, wm(wb + W_O1, D_MODEL, D_MODEL), brow(bb + B_O1, D_MODEL))
        x = layernorm(x + a1, brow(bb + B_LN1G, D_MODEL), brow(bb + B_LN1B, D_MODEL))

        # ---- cross-attention (Q from x, K/V from encoder) + add & norm ----
        q2 = matmul(x, wm(wb + W_Q2, D_MODEL, D_MODEL), brow(bb + B_Q2, D_MODEL))
        kv2 = matmul(enc, wm(wb + W_KV2, D_MODEL, 2 * D_MODEL),
                     brow(bb + B_KV2, 2 * D_MODEL))                    # (B*T_enc, 64)
        k2 = kv2[:, 0:D_MODEL]
        v2 = kv2[:, D_MODEL:2 * D_MODEL]
        ctx2 = attention_core(q2, k2, v2, T, T_ENC, None)
        a2 = matmul(ctx2, wm(wb + W_O2, D_MODEL, D_MODEL), brow(bb + B_O2, D_MODEL))
        x = layernorm(x + a2, brow(bb + B_LN2G, D_MODEL), brow(bb + B_LN2B, D_MODEL))

        # ---- feed-forward + add & norm ----
        h1 = jnp.maximum(matmul(x, wm(wb + W_F1, D_MODEL, D_FF),
                                brow(bb + B_F1, D_FF)), 0.0)
        f = matmul(h1, wm(wb + W_F2, D_FF, D_MODEL), brow(bb + B_F2, D_MODEL))
        x = layernorm(x + f, brow(bb + B_LN3G, D_MODEL), brow(bb + B_LN3B, D_MODEL))

    # ---- output projection, lane-dense padded vocab ----
    o_ref[...] = matmul(x, wm(W_OUT, D_MODEL, VOCAB_PAD), brow(B_OUT, VOCAB_PAD))


# ------------------------------ pallas wrapper ----------------------------------
def decoder_forward(kp, x_ids, enc):
    Bx, Tx = x_ids.shape
    Te = enc.shape[1]
    assert (Bx, Tx, Te) == (B, T, T_ENC), "kernel compiled for fixed small shapes"

    # TODO(synk): embedding lookup is a gather -> one tiny plain-JAX op before the fused kernel.
    x_emb = (kp["tok_emb"][x_ids] + kp["pos_emb"][:Tx][None]).reshape(Bx * Tx, D_MODEL)
    x_emb = x_emb.astype(jnp.float32)
    enc_flat = enc.reshape(Bx * Te, D_MODEL).astype(jnp.float32)

    inputs = (x_emb, enc_flat, kp["wslab"], kp["bslab"])
    in_specs = [pl.BlockSpec(a.shape, lambda i: (0, 0)) for a in inputs]

    logits_flat = pl.pallas_call(
        decoder_kernel,
        out_shape=jax.ShapeDtypeStruct((Bx * Tx, VOCAB_PAD), jnp.float32),
        grid=(1,),                                   # single step: B folded into rows
        in_specs=in_specs,
        out_specs=pl.BlockSpec((Bx * Tx, VOCAB_PAD), lambda i: (0, 0)),
        compiler_params=pltpu.CompilerParams(dimension_semantics=("arbitrary",)),
    )(*inputs)

    return logits_flat.reshape(Bx, Tx, VOCAB_PAD)[:, :, :VOCAB]


# ----------------------------- parameter handling -------------------------------
def init_params(key):
    """Raw parameters mirroring the PyTorch module's layout (f32)."""
    def dense(k, din, dout):
        return (0.02 * jax.random.normal(k, (din, dout), jnp.float32),
                jnp.zeros((1, dout), jnp.float32))

    keys = jax.random.split(key, 3 + N_LAYERS)
    params = {
        "tok_emb": 0.02 * jax.random.normal(keys[0], (VOCAB, D_MODEL), jnp.float32),
        "pos_emb": 0.02 * jax.random.normal(keys[1], (MAX_SEQ, D_MODEL), jnp.float32),
        "blocks": [],
    }
    params["out_w"], params["out_b"] = dense(keys[2], D_MODEL, VOCAB)

    for li in range(N_LAYERS):
        bk = jax.random.split(keys[3 + li], 10)
        blk = {}
        for name, base in (("attn1", 0), ("attn2", 4)):
            blk[name] = tuple(x for i in range(4)
                              for x in dense(bk[base + i], D_MODEL, D_MODEL))
        blk["ffn"] = dense(bk[8], D_MODEL, D_FF) + dense(bk[9], D_FF, D_MODEL)
        for ln in ("ln1", "ln2", "ln3"):
            blk[ln + "_g"] = jnp.ones((1, D_MODEL), jnp.float32)
            blk[ln + "_b"] = jnp.zeros((1, D_MODEL), jnp.float32)
        params["blocks"].append(blk)
    return params


def prepare_params(params):
    """One-time wrapper-side packing: fused QKV / KV weights (1/sqrt(dk) folded
    into Wq, bq), everything f32, packed into two slabs:
       wslab (544, 128): row-stacked, lane-zero-padded matmul weights,
       bslab (27, 128):  one zero-padded bias / LN vector per row."""
    scale = 1.0 / math.sqrt(DK)
    f32 = jnp.float32

    def pad_w(w):
        w = w.astype(f32)
        return jnp.pad(w, ((0, 0), (0, LANE - w.shape[1])))

    def pad_b(b):
        b = b.reshape(-1).astype(f32)
        return jnp.pad(b, (0, LANE - b.shape[0]))

    w_rows, b_rows = [], []
    for blk in params["blocks"]:
        wq, bq, wk, bk, wv, bv, wo, bo = blk["attn1"]
        wq2, bq2, wk2, bk2, wv2, bv2, wo2, bo2 = blk["attn2"]
        fw1, fb1, fw2, fb2 = blk["ffn"]

        layer_ws = (jnp.concatenate([wq * scale, wk, wv], axis=1),   # W_QKV1 (32,96)
                    wo,                                              # W_O1   (32,32)
                    wq2 * scale,                                     # W_Q2   (32,32)
                    jnp.concatenate([wk2, wv2], axis=1),             # W_KV2  (32,64)
                    wo2,                                             # W_O2   (32,32)
                    fw1,                                             # W_F1   (32,64)
                    fw2)                                             # W_F2   (64,32)
        layer_bs = (jnp.concatenate([bq.reshape(-1) * scale,
                                     bk.reshape(-1), bv.reshape(-1)]),
                    bo, bq2 * scale,
                    jnp.concatenate([bk2.reshape(-1), bv2.reshape(-1)]),
                    bo2,
                    blk["ln1_g"], blk["ln1_b"], blk["ln2_g"], blk["ln2_b"],
                    blk["ln3_g"], blk["ln3_b"],
                    fb1, fb2)
        w_rows += [pad_w(w) for w in layer_ws]
        b_rows += [pad_b(b) for b in layer_bs]

    w_rows.append(pad_w(params["out_w"]))        # (32, 50) -> (32, 128)
    b_rows.append(pad_b(params["out_b"]))

    return {"tok_emb": params["tok_emb"],
            "pos_emb": params["pos_emb"],
            "wslab": jnp.concatenate(w_rows, axis=0),   # (544, 128) f32
            "bslab": jnp.stack(b_rows, axis=0)}          # (27, 128) f32


# --------------------------- pure-JAX reference (f32) ----------------------------
def decoder_reference(params, x_ids, enc, mask):
    Bx, Tx = x_ids.shape
    x = params["tok_emb"][x_ids] + params["pos_emb"][:Tx][None]

    def mha(q_in, k_in, v_in, wq, bq, wk, bk, wv, bv, wo, bo, msk):
        q, k, v = q_in @ wq + bq, k_in @ wk + bk, v_in @ wv + bv
        Bq, Tq, D = q.shape
        Tk = k.shape[1]
        qh = q.reshape(Bq, Tq, NUM_HEAD, DK).transpose(0, 2, 1, 3)
        kh = k.reshape(Bq, Tk, NUM_HEAD, DK).transpose(0, 2, 1, 3)
        vh = v.reshape(Bq, Tk, NUM_HEAD, DK).transpose(0, 2, 1, 3)
        s = jnp.einsum('bhqd,bhkd->bhqk', qh, kh) / math.sqrt(DK)
        if msk is not None:
            s = jnp.where(msk[None, None] > 0, s, -1e9)
        p = jax.nn.softmax(s, axis=-1)
        o = jnp.einsum('bhqk,bhkd->bhqd', p, vh).transpose(0, 2, 1, 3).reshape(Bq, Tq, D)
        return o @ wo + bo

    def ln(z, g, b):
        mu = z.mean(-1, keepdims=True)
        var = ((z - mu) ** 2).mean(-1, keepdims=True)
        return (z - mu) / jnp.sqrt(var + EPS) * g + b

    for blk in params["blocks"]:
        x = ln(x + mha(x, x, x, *blk["attn1"], mask), blk["ln1_g"], blk["ln1_b"])
        x = ln(x + mha(x, enc, enc, *blk["attn2"], None), blk["ln2_g"], blk["ln2_b"])
        w1, b1, w2, b2 = blk["ffn"]
        h = jnp.maximum(x @ w1 + b1, 0.0)
        x = ln(x + (h @ w2 + b2), blk["ln3_g"], blk["ln3_b"])
    return x @ params["out_w"] + params["out_b"]


# ------------------------------------ main ---------------------------------------
if __name__ == "__main__":
    key = jax.random.PRNGKey(0)
    k_par, k_ids, k_enc = jax.random.split(key, 3)

    params = init_params(k_par)
    kparams = prepare_params(params)

    x_ids = jax.random.randint(k_ids, (B, T), 0, VOCAB, dtype=jnp.int32)
    enc = jax.random.normal(k_enc, (B, T_ENC, D_MODEL), jnp.float32)

    fwd = jax.jit(decoder_forward)
    logits = jax.block_until_ready(fwd(kparams, x_ids, enc))

    assert logits.shape == (B, T, VOCAB)
    assert bool(jnp.all(jnp.isfinite(logits)))

    # Correctness vs. pure-JAX f32 reference (causal mask).
    causal_mask = jnp.tril(jnp.ones((T, T), jnp.float32))
    ref = decoder_reference(params, x_ids, enc, causal_mask)
    max_err = float(jnp.max(jnp.abs(logits - ref)))
    assert max_err < 2e-2, f"max abs error vs reference: {max_err}"

    print("KERNEL_OK")
</pallas_src>

<mosaic_0001>
module attributes {stable_mosaic.version = 11 : i64} {
  func.func @decoder_kernel(%arg0: i32, %arg1: memref<16x32xf32, #tpu.memory_space<vmem>>, %arg2: memref<16x32xf32, #tpu.memory_space<vmem>>, %arg3: memref<544x128xf32, #tpu.memory_space<vmem>>, %arg4: memref<27x128xf32, #tpu.memory_space<vmem>>, %arg5: memref<16x128xf32, #tpu.memory_space<vmem>>) attributes {dimension_semantics = [#tpu.dimension_semantics<arbitrary>], iteration_bounds = array<i64: 1>, scalar_prefetch = 0 : i64, scratch_operands = 0 : i64, tpu.core_type = #tpu.core_type<tc>, window_params = [{pipeline_mode = #tpu.pipeline_mode<synchronous>, transform_indices = @transform_0, window_bounds = array<i64: 16, 32>}, {pipeline_mode = #tpu.pipeline_mode<synchronous>, transform_indices = @transform_1, window_bounds = array<i64: 16, 32>}, {pipeline_mode = #tpu.pipeline_mode<synchronous>, transform_indices = @transform_2, window_bounds = array<i64: 544, 128>}, {pipeline_mode = #tpu.pipeline_mode<synchronous>, transform_indices = @transform_3, window_bounds = array<i64: 27, 128>}, {pipeline_mode = #tpu.pipeline_mode<synchronous>, transform_indices = @transform_4, window_bounds = array<i64: 16, 128>}]} {
    %c0 = arith.constant 0 : index
    %c0_0 = arith.constant 0 : index
    %0 = vector.load %arg1[%c0, %c0_0] : memref<16x32xf32, #tpu.memory_space<vmem>>, vector<16x32xf32>
    %c0_1 = arith.constant 0 : index
    %c0_2 = arith.constant 0 : index
    %1 = vector.load %arg2[%c0_1, %c0_2] : memref<16x32xf32, #tpu.memory_space<vmem>>, vector<16x32xf32>
    %2 = tpu.iota {dimensions = array<i32: 0>} : vector<8x8xi32>
    %3 = tpu.iota {dimensions = array<i32: 1>} : vector<8x8xi32>
    %4 = arith.cmpi sge, %2, %3 : vector<8x8xi32>
    %cst = arith.constant 0.000000e+00 : f32
    %cst_3 = arith.constant -1.000000e+09 : f32
    %5 = vector.broadcast %cst : f32 to vector<8x8xf32>
    %6 = vector.broadcast %cst_3 : f32 to vector<8x8xf32>
    %7 = arith.select %4, %5, %6 : vector<8x8xi1>, vector<8x8xf32>
    %c0_4 = arith.constant 0 : index
    %c0_5 = arith.constant 0 : index
    %8 = vector.load %arg3[%c0_4, %c0_5] : memref<544x128xf32, #tpu.memory_space<vmem>>, vector<32x96xf32>
    %c0_6 = arith.constant 0 : index
    %c0_7 = arith.constant 0 : index
    %9 = vector.load %arg4[%c0_6, %c0_7] : memref<27x128xf32, #tpu.memory_space<vmem>>, vector<1x96xf32>
    %cst_8 = arith.constant dense<0.000000e+00> : vector<16x96xf32>
    %10 = tpu.matmul %0, %8, %cst_8 {dimension_numbers = #tpu.dot_dimension_numbers<[1], [0], [0], [1], [0, 0, 1, 1], [], []>} : vector<16x32xf32>, vector<32x96xf32>, vector<16x96xf32> -> vector<16x96xf32>
    %11 = vector.broadcast %9 : vector<1x96xf32> to vector<16x96xf32>
    %12 = arith.addf %10, %11 : vector<16x96xf32>
    %13 = vector.extract_strided_slice %12 {offsets = [0, 0], sizes = [16, 32], strides = [1, 1]} : vector<16x96xf32> to vector<16x32xf32>
    %14 = vector.extract_strided_slice %12 {offsets = [0, 32], sizes = [16, 32], strides = [1, 1]} : vector<16x96xf32> to vector<16x32xf32>
    %15 = vector.extract_strided_slice %12 {offsets = [0, 64], sizes = [16, 32], strides = [1, 1]} : vector<16x96xf32> to vector<16x32xf32>
    %16 = vector.extract_strided_slice %13 {offsets = [0, 0], sizes = [8, 32], strides = [1, 1]} : vector<16x32xf32> to vector<8x32xf32>
    %17 = vector.extract_strided_slice %14 {offsets = [0, 0], sizes = [8, 32], strides = [1, 1]} : vector<16x32xf32> to vector<8x32xf32>
    %18 = vector.extract_strided_slice %15 {offsets = [0, 0], sizes = [8, 32], strides = [1, 1]} : vector<16x32xf32> to vector<8x32xf32>
    %19 = vector.extract_strided_slice %16 {offsets = [0, 0], sizes = [8, 8], strides = [1, 1]} : vector<8x32xf32> to vector<8x8xf32>
    %20 = vector.extract_strided_slice %17 {offsets = [0, 0], sizes = [8, 8], strides = [1, 1]} : vector<8x32xf32> to vector<8x8xf32>
    %21 = vector.extract_strided_slice %18 {offsets = [0, 0], sizes = [8, 8], strides = [1, 1]} : vector<8x32xf32> to vector<8x8xf32>
    %cst_9 = arith.constant dense<0.000000e+00> : vector<8x8xf32>
    %22 = tpu.matmul %19, %20, %cst_9 {dimension_numbers = #tpu.dot_dimension_numbers<[1], [1], [0], [0], [0, 0, 1, 0], [], []>} : vector<8x8xf32>, vector<8x8xf32>, vector<8x8xf32> -> vector<8x8xf32>
    %23 = arith.addf %22, %7 : vector<8x8xf32>
    %cst_10 = arith.constant dense<0xFF800000> : vector<8xf32>
    %24 = vector.multi_reduction <maximumf>, %23, %cst_10 [1] : vector<8x8xf32> to vector<8xf32>
    %25 = vector.shape_cast %24 : vector<8xf32> to vector<8x1xf32>
    %26 = vector.broadcast %25 : vector<8x1xf32> to vector<8x8xf32>
    %27 = arith.subf %23, %26 : vector<8x8xf32>
    %28 = math.exp %27 : vector<8x8xf32>
    %cst_11 = arith.constant dense<0.000000e+00> : vector<8xf32>
    %29 = vector.multi_reduction <add>, %28, %cst_11 [1] : vector<8x8xf32> to vector<8xf32>
    %30 = vector.shape_cast %29 : vector<8xf32> to vector<8x1xf32>
    %31 = vector.broadcast %30 : vector<8x1xf32> to vector<8x8xf32>
    %32 = arith.divf %28, %31 : vector<8x8xf32>
    %cst_12 = arith.constant dense<0.000000e+00> : vector<8x8xf32>
    %33 = tpu.matmul %32, %21, %cst_12 {dimension_numbers = #tpu.dot_dimension_numbers<[1], [0], [0], [1], [0, 0, 1, 1], [], []>} : vector<8x8xf32>, vector<8x8xf32>, vector<8x8xf32> -> vector<8x8xf32>
    %34 = vector.extract_strided_slice %16 {offsets = [0, 8], sizes = [8, 8], strides = [1, 1]} : vector<8x32xf32> to vector<8x8xf32>
    %35 = vector.extract_strided_slice %17 {offsets = [0, 8], sizes = [8, 8], strides = [1, 1]} : vector<8x32xf32> to vector<8x8xf32>
    %36 = vector.extract_strided_slice %18 {offsets = [0, 8], sizes = [8, 8], strides = [1, 1]} : vector<8x32xf32> to vector<8x8xf32>
    %cst_13 = arith.constant dense<0.000000e+00> : vector<8x8xf32>
    %37 = tpu.matmul %34, %35, %cst_13 {dimension_numbers = #tpu.dot_dimension_numbers<[1], [1], [0], [0], [0, 0, 1, 0], [], []>} : vector<8x8xf32>, vector<8x8xf32>, vector<8x8xf32> -> vector<8x8xf32>
    %38 = arith.addf %37, %7 : vector<8x8xf32>
    %cst_14 = arith.constant dense<0xFF800000> : vector<8xf32>
    %39 = vector.multi_reduction <maximumf>, %38, %cst_14 [1] : vector<8x8xf32> to vector<8xf32>
    %40 = vector.shape_cast %39 : vector<8xf32> to vector<8x1xf32>
    %41 = vector.broadcast %40 : vector<8x1xf32> to vector<8x8xf32>
    %42 = arith.subf %38, %41 : vector<8x8xf32>
    %43 = math.exp %42 : vector<8x8xf32>
    %cst_15 = arith.constant dense<0.000000e+00> : vector<8xf32>
    %44 = vector.multi_reduction <add>, %43, %cst_15 [1] : vector<8x8xf32> to vector<8xf32>
    %45 = vector.shape_cast %44 : vector<8xf32> to vector<8x1xf32>
    %46 = vector.broadcast %45 : vector<8x1xf32> to vector<8x8xf32>
    %47 = arith.divf %43, %46 : vector<8x8xf32>
    %cst_16 = arith.constant dense<0.000000e+00> : vector<8x8xf32>
    %48 = tpu.matmul %47, %36, %cst_16 {dimension_numbers = #tpu.dot_dimension_numbers<[1], [0], [0], [1], [0, 0, 1, 1], [], []>} : vector<8x8xf32>, vector<8x8xf32>, vector<8x8xf32> -> vector<8x8xf32>
    %49 = vector.extract_strided_slice %16 {offsets = [0, 16], sizes = [8, 8], strides = [1, 1]} : vector<8x32xf32> to vector<8x8xf32>
    %50 = vector.extract_strided_slice %17 {offsets = [0, 16], sizes = [8, 8], strides = [1, 1]} : vector<8x32xf32> to vector<8x8xf32>
    %51 = vector.extract_strided_slice %18 {offsets = [0, 16], sizes = [8, 8], strides = [1, 1]} : vector<8x32xf32> to vector<8x8xf32>
    %cst_17 = arith.constant dense<0.000000e+00> : vector<8x8xf32>
    %52 = tpu.matmul %49, %50, %cst_17 {dimension_numbers = #tpu.dot_dimension_numbers<[1], [1], [0], [0], [0, 0, 1, 0], [], []>} : vector<8x8xf32>, vector<8x8xf32>, vector<8x8xf32> -> vector<8x8xf32>
    %53 = arith.addf %52, %7 : vector<8x8xf32>
    %cst_18 = arith.constant dense<0xFF800000> : vector<8xf32>
    %54 = vector.multi_reduction <maximumf>, %53, %cst_18 [1] : vector<8x8xf32> to vector<8xf32>
    %55 = vector.shape_cast %54 : vector<8xf32> to vector<8x1xf32>
    %56 = vector.broadcast %55 : vector<8x1xf32> to vector<8x8xf32>
    %57 = arith.subf %53, %56 : vector<8x8xf32>
    %58 = math.exp %57 : vector<8x8xf32>
    %cst_19 = arith.constant dense<0.000000e+00> : vector<8xf32>
    %59 = vector.multi_reduction <add>, %58, %cst_19 [1] : vector<8x8xf32> to vector<8xf32>
    %60 = vector.shape_cast %59 : vector<8xf32> to vector<8x1xf32>
    %61 = vector.broadcast %60 : vector<8x1xf32> to vector<8x8xf32>
    %62 = arith.divf %58, %61 : vector<8x8xf32>
    %cst_20 = arith.constant dense<0.000000e+00> : vector<8x8xf32>
    %63 = tpu.matmul %62, %51, %cst_20 {dimension_numbers = #tpu.dot_dimension_numbers<[1], [0], [0], [1], [0, 0, 1, 1], [], []>} : vector<8x8xf32>, vector<8x8xf32>, vector<8x8xf32> -> vector<8x8xf32>
    %64 = vector.extract_strided_slice %16 {offsets = [0, 24], sizes = [8, 8], strides = [1, 1]} : vector<8x32xf32> to vector<8x8xf32>
    %65 = vector.extract_strided_slice %17 {offsets = [0, 24], sizes = [8, 8], strides = [1, 1]} : vector<8x32xf32> to vector<8x8xf32>
    %66 = vector.extract_strided_slice %18 {offsets = [0, 24], sizes = [8, 8], strides = [1, 1]} : vector<8x32xf32> to vector<8x8xf32>
    %cst_21 = arith.constant dense<0.000000e+00> : vector<8x8xf32>
    %67 = tpu.matmul %64, %65, %cst_21 {dimension_numbers = #tpu.dot_dimension_numbers<[1], [1], [0], [0], [0, 0, 1, 0], [], []>} : vector<8x8xf32>, vector<8x8xf32>, vector<8x8xf32> -> vector<8x8xf32>
    %68 = arith.addf %67, %7 : vector<8x8xf32>
    %cst_22 = arith.constant dense<0xFF800000> : vector<8xf32>
    %69 = vector.multi_reduction <maximumf>, %68, %cst_22 [1] : vector<8x8xf32> to vector<8xf32>
    %70 = vector.shape_cast %69 : vector<8xf32> to vector<8x1xf32>
    %71 = vector.broadcast %70 : vector<8x1xf32> to vector<8x8xf32>
    %72 = arith.subf %68, %71 : vector<8x8xf32>
    %73 = math.exp %72 : vector<8x8xf32>
    %cst_23 = arith.constant dense<0.000000e+00> : vector<8xf32>
    %74 = vector.multi_reduction <add>, %73, %cst_23 [1] : vector<8x8xf32> to vector<8xf32>
    %75 = vector.shape_cast %74 : vector<8xf32> to vector<8x1xf32>
    %76 = vector.broadcast %75 : vector<8x1xf32> to vector<8x8xf32>
    %77 = arith.divf %73, %76 : vector<8x8xf32>
    %cst_24 = arith.constant dense<0.000000e+00> : vector<8x8xf32>
    %78 = tpu.matmul %77, %66, %cst_24 {dimension_numbers = #tpu.dot_dimension_numbers<[1], [0], [0], [1], [0, 0, 1, 1], [], []>} : vector<8x8xf32>, vector<8x8xf32>, vector<8x8xf32> -> vector<8x8xf32>
    %79 = tpu.concatenate %33, %48, %63, %78 in 1 : vector<8x8xf32>, vector<8x8xf32>, vector<8x8xf32>, vector<8x8xf32> -> vector<8x32xf32>
    %80 = vector.extract_strided_slice %13 {offsets = [8, 0], sizes = [8, 32], strides = [1, 1]} : vector<16x32xf32> to vector<8x32xf32>
    %81 = vector.extract_strided_slice %14 {offsets = [8, 0], sizes = [8, 32], strides = [1, 1]} : vector<16x32xf32> to vector<8x32xf32>
    %82 = vector.extract_strided_slice %15 {offsets = [8, 0], sizes = [8, 32], strides = [1, 1]} : vector<16x32xf32> to vector<8x32xf32>
    %83 = vector.extract_strided_slice %80 {offsets = [0, 0], sizes = [8, 8], strides = [1, 1]} : vector<8x32xf32> to vector<8x8xf32>
    %84 = vector.extract_strided_slice %81 {offsets = [0, 0], sizes = [8, 8], strides = [1, 1]} : vector<8x32xf32> to vector<8x8xf32>
    %85 = vector.extract_strided_slice %82 {offsets = [0, 0], sizes = [8, 8], strides = [1, 1]} : vector<8x32xf32> to vector<8x8xf32>
    %cst_25 = arith.constant dense<0.000000e+00> : vector<8x8xf32>
    %86 = tpu.matmul %83, %84, %cst_25 {dimension_numbers = #tpu.dot_dimension_numbers<[1], [1], [0], [0], [0, 0, 1, 0], [], []>} : vector<8x8xf32>, vector<8x8xf32>, vector<8x8xf32> -> vector<8x8xf32>
    %87 = arith.addf %86, %7 : vector<8x8xf32>
    %cst_26 = arith.constant dense<0xFF800000> : vector<8xf32>
    %88 = vector.multi_reduction <maximumf>, %87, %cst_26 [1] : vector<8x8xf32> to vector<8xf32>
    %89 = vector.shape_cast %88 : vector<8xf32> to vector<8x1xf32>
    %90 = vector.broadcast %89 : vector<8x1xf32> to vector<8x8xf32>
    %91 = arith.subf %87, %90 : vector<8x8xf32>
    %92 = math.exp %91 : vector<8x8xf32>
    %cst_27 = arith.constant dense<0.000000e+00> : vector<8xf32>
    %93 = vector.multi_reduction <add>, %92, %cst_27 [1] : vector<8x8xf32> to vector<8xf32>
    %94 = vector.shape_cast %93 : vector<8xf32> to vector<8x1xf32>
    %95 = vector.broadcast %94 : vector<8x1xf32> to vector<8x8xf32>
    %96 = arith.divf %92, %95 : vector<8x8xf32>
    %cst_28 = arith.constant dense<0.000000e+00> : vector<8x8xf32>
    %97 = tpu.matmul %96, %85, %cst_28 {dimension_numbers = #tpu.dot_dimension_numbers<[1], [0], [0], [1], [0, 0, 1, 1], [], []>} : vector<8x8xf32>, vector<8x8xf32>, vector<8x8xf32> -> vector<8x8xf32>
    %98 = vector.extract_strided_slice %80 {offsets = [0, 8], sizes = [8, 8], strides = [1, 1]} : vector<8x32xf32> to vector<8x8xf32>
    %99 = vector.extract_strided_slice %81 {offsets = [0, 8], sizes = [8, 8], strides = [1, 1]} : vector<8x32xf32> to vector<8x8xf32>
    %100 = vector.extract_strided_slice %82 {offsets = [0, 8], sizes = [8, 8], strides = [1, 1]} : vector<8x32xf32> to vector<8x8xf32>
    %cst_29 = arith.constant dense<0.000000e+00> : vector<8x8xf32>
    %101 = tpu.matmul %98, %99, %cst_29 {dimension_numbers = #tpu.dot_dimension_numbers<[1], [1], [0], [0], [0, 0, 1, 0], [], []>} : vector<8x8xf32>, vector<8x8xf32>, vector<8x8xf32> -> vector<8x8xf32>
    %102 = arith.addf %101, %7 : vector<8x8xf32>
    %cst_30 = arith.constant dense<0xFF800000> : vector<8xf32>
    %103 = vector.multi_reduction <maximumf>, %102, %cst_30 [1] : vector<8x8xf32> to vector<8xf32>
    %104 = vector.shape_cast %103 : vector<8xf32> to vector<8x1xf32>
    %105 = vector.broadcast %104 : vector<8x1xf32> to vector<8x8xf32>
    %106 = arith.subf %102, %105 : vector<8x8xf32>
    %107 = math.exp %106 : vector<8x8xf32>
    %cst_31 = arith.constant dense<0.000000e+00> : vector<8xf32>
    %108 = vector.multi_reduction <add>, %107, %cst_31 [1] : vector<8x8xf32> to vector<8xf32>
    %109 = vector.shape_cast %108 : vector<8xf32> to vector<8x1xf32>
    %110 = vector.broadcast %109 : vector<8x1xf32> to vector<8x8xf32>
    %111 = arith.divf %107, %110 : vector<8x8xf32>
    %cst_32 = arith.constant dense<0.000000e+00> : vector<8x8xf32>
    %112 = tpu.matmul %111, %100, %cst_32 {dimension_numbers = #tpu.dot_dimension_numbers<[1], [0], [0], [1], [0, 0, 1, 1], [], []>} : vector<8x8xf32>, vector<8x8xf32>, vector<8x8xf32> -> vector<8x8xf32>
    %113 = vector.extract_strided_slice %80 {offsets = [0, 16], sizes = [8, 8], strides = [1, 1]} : vector<8x32xf32> to vector<8x8xf32>
    %114 = vector.extract_strided_slice %81 {offsets = [0, 16], sizes = [8, 8], strides = [1, 1]} : vector<8x32xf32> to vector<8x8xf32>
    %115 = vector.extract_strided_slice %82 {offsets = [0, 16], sizes = [8, 8], strides = [1, 1]} : vector<8x32xf32> to vector<8x8xf32>
    %cst_33 = arith.constant dense<0.000000e+00> : vector<8x8xf32>
    %116 = tpu.matmul %113, %114, %cst_33 {dimension_numbers = #tpu.dot_dimension_numbers<[1], [1], [0], [0], [0, 0, 1, 0], [], []>} : vector<8x8xf32>, vector<8x8xf32>, vector<8x8xf32> -> vector<8x8xf32>
    %117 = arith.addf %116, %7 : vector<8x8xf32>
    %cst_34 = arith.constant dense<0xFF800000> : vector<8xf32>
    %118 = vector.multi_reduction <maximumf>, %117, %cst_34 [1] : vector<8x8xf32> to vector<8xf32>
    %119 = vector.shape_cast %118 : vector<8xf32> to vector<8x1xf32>
    %120 = vector.broadcast %119 : vector<8x1xf32> to vector<8x8xf32>
    %121 = arith.subf %117, %120 : vector<8x8xf32>
    %122 = math.exp %121 : vector<8x8xf32>
    %cst_35 = arith.constant dense<0.000000e+00> : vector<8xf32>
    %123 = vector.multi_reduction <add>, %122, %cst_35 [1] : vector<8x8xf32> to vector<8xf32>
    %124 = vector.shape_cast %123 : vector<8xf32> to vector<8x1xf32>
    %125 = vector.broadcast %124 : vector<8x1xf32> to vector<8x8xf32>
    %126 = arith.divf %122, %125 : vector<8x8xf32>
    %cst_36 = arith.constant dense<0.000000e+00> : vector<8x8xf32>
    %127 = tpu.matmul %126, %115, %cst_36 {dimension_numbers = #tpu.dot_dimension_numbers<[1], [0], [0], [1], [0, 0, 1, 1], [], []>} : vector<8x8xf32>, vector<8x8xf32>, vector<8x8xf32> -> vector<8x8xf32>
    %128 = vector.extract_strided_slice %80 {offsets = [0, 24], sizes = [8, 8], strides = [1, 1]} : vector<8x32xf32> to vector<8x8xf32>
    %129 = vector.extract_strided_slice %81 {offsets = [0, 24], sizes = [8, 8], strides = [1, 1]} : vector<8x32xf32> to vector<8x8xf32>
    %130 = vector.extract_strided_slice %82 {offsets = [0, 24], sizes = [8, 8], strides = [1, 1]} : vector<8x32xf32> to vector<8x8xf32>
    %cst_37 = arith.constant dense<0.000000e+00> : vector<8x8xf32>
    %131 = tpu.matmul %128, %129, %cst_37 {dimension_numbers = #tpu.dot_dimension_numbers<[1], [1], [0], [0], [0, 0, 1, 0], [], []>} : vector<8x8xf32>, vector<8x8xf32>, vector<8x8xf32> -> vector<8x8xf32>
    %132 = arith.addf %131, %7 : vector<8x8xf32>
    %cst_38 = arith.constant dense<0xFF800000> : vector<8xf32>
    %133 = vector.multi_reduction <maximumf>, %132, %cst_38 [1] : vector<8x8xf32> to vector<8xf32>
    %134 = vector.shape_cast %133 : vector<8xf32> to vector<8x1xf32>
    %135 = vector.broadcast %134 : vector<8x1xf32> to vector<8x8xf32>
    %136 = arith.subf %132, %135 : vector<8x8xf32>
    %137 = math.exp %136 : vector<8x8xf32>
    %cst_39 = arith.constant dense<0.000000e+00> : vector<8xf32>
    %138 = vector.multi_reduction <add>, %137, %cst_39 [1] : vector<8x8xf32> to vector<8xf32>
    %139 = vector.shape_cast %138 : vector<8xf32> to vector<8x1xf32>
    %140 = vector.broadcast %139 : vector<8x1xf32> to vector<8x8xf32>
    %141 = arith.divf %137, %140 : vector<8x8xf32>
    %cst_40 = arith.constant dense<0.000000e+00> : vector<8x8xf32>
    %142 = tpu.matmul %141, %130, %cst_40 {dimension_numbers = #tpu.dot_dimension_numbers<[1], [0], [0], [1], [0, 0, 1, 1], [], []>} : vector<8x8xf32>, vector<8x8xf32>, vector<8x8xf32> -> vector<8x8xf32>
    %143 = tpu.concatenate %97, %112, %127, %142 in 1 : vector<8x8xf32>, vector<8x8xf32>, vector<8x8xf32>, vector<8x8xf32> -> vector<8x32xf32>
    %144 = tpu.concatenate %79, %143 in 0 : vector<8x32xf32>, vector<8x32xf32> -> vector<16x32xf32>
    %c32 = arith.constant 32 : index
    %c0_41 = arith.constant 0 : index
    %145 = vector.load %arg3[%c32, %c0_41] : memref<544x128xf32, #tpu.memory_space<vmem>>, vector<32x32xf32>
    %c1 = arith.constant 1 : index
    %c0_42 = arith.constant 0 : index
    %146 = vector.load %arg4[%c1, %c0_42] : memref<27x128xf32, #tpu.memory_space<vmem>>, vector<1x32xf32>
    %cst_43 = arith.constant dense<0.000000e+00> : vector<16x32xf32>
    %147 = tpu.matmul %144, %145, %cst_43 {dimension_numbers = #tpu.dot_dimension_numbers<[1], [0], [0], [1], [0, 0, 1, 1], [], []>} : vector<16x32xf32>, vector<32x32xf32>, vector<16x32xf32> -> vector<16x32xf32>
    %148 = vector.broadcast %146 : vector<1x32xf32> to vector<16x32xf32>
    %149 = arith.addf %147, %148 : vector<16x32xf32>
    %150 = arith.addf %0, %149 : vector<16x32xf32>
    %c5 = arith.constant 5 : index
    %c0_44 = arith.constant 0 : index
    %151 = vector.load %arg4[%c5, %c0_44] : memref<27x128xf32, #tpu.memory_space<vmem>>, vector<1x32xf32>
    %c6 = arith.constant 6 : index
    %c0_45 = arith.constant 0 : index
    %152 = vector.load %arg4[%c6, %c0_45] : memref<27x128xf32, #tpu.memory_space<vmem>>, vector<1x32xf32>
    %cst_46 = arith.constant dense<0.000000e+00> : vector<16xf32>
    %153 = vector.multi_reduction <add>, %150, %cst_46 [1] : vector<16x32xf32> to vector<16xf32>
    %154 = vector.shape_cast %153 : vector<16xf32> to vector<16x1xf32>
    %cst_47 = arith.constant 3.200000e+01 : f32
    %155 = vector.broadcast %cst_47 : f32 to vector<16x1xf32>
    %156 = arith.divf %154, %155 : vector<16x1xf32>
    %157 = vector.broadcast %156 : vector<16x1xf32> to vector<16x32xf32>
    %158 = arith.subf %150, %157 : vector<16x32xf32>
    %159 = arith.mulf %158, %158 : vector<16x32xf32>
    %cst_48 = arith.constant dense<0.000000e+00> : vector<16xf32>
    %160 = vector.multi_reduction <add>, %159, %cst_48 [1] : vector<16x32xf32> to vector<16xf32>
    %161 = vector.shape_cast %160 : vector<16xf32> to vector<16x1xf32>
    %cst_49 = arith.constant 3.200000e+01 : f32
    %162 = vector.broadcast %cst_49 : f32 to vector<16x1xf32>
    %163 = arith.divf %161, %162 : vector<16x1xf32>
    %cst_50 = arith.constant 9.99999974E-6 : f32
    %164 = vector.broadcast %cst_50 : f32 to vector<16x1xf32>
    %165 = arith.addf %163, %164 : vector<16x1xf32>
    %166 = math.rsqrt %165 : vector<16x1xf32>
    %167 = vector.broadcast %166 : vector<16x1xf32> to vector<16x32xf32>
    %168 = arith.mulf %158, %167 : vector<16x32xf32>
    %169 = vector.broadcast %151 : vector<1x32xf32> to vector<16x32xf32>
    %170 = arith.mulf %168, %169 : vector<16x32xf32>
    %171 = vector.broadcast %152 : vector<1x32xf32> to vector<16x32xf32>
    %172 = arith.addf %170, %171 : vector<16x32xf32>
    %c64 = arith.constant 64 : index
    %c0_51 = arith.constant 0 : index
    %173 = vector.load %arg3[%c64, %c0_51] : memref<544x128xf32, #tpu.memory_space<vmem>>, vector<32x32xf32>
    %c2 = arith.constant 2 : index
    %c0_52 = arith.constant 0 : index
    %174 = vector.load %arg4[%c2, %c0_52] : memref<27x128xf32, #tpu.memory_space<vmem>>, vector<1x32xf32>
    %cst_53 = arith.constant dense<0.000000e+00> : vector<16x32xf32>
    %175 = tpu.matmul %172, %173, %cst_53 {dimension_numbers = #tpu.dot_dimension_numbers<[1], [0], [0], [1], [0, 0, 1, 1], [], []>} : vector<16x32xf32>, vector<32x32xf32>, vector<16x32xf32> -> vector<16x32xf32>
    %176 = vector.broadcast %174 : vector<1x32xf32> to vector<16x32xf32>
    %177 = arith.addf %175, %176 : vector<16x32xf32>
    %c96 = arith.constant 96 : index
    %c0_54 = arith.constant 0 : index
    %178 = vector.load %arg3[%c96, %c0_54] : memref<544x128xf32, #tpu.memory_space<vmem>>, vector<32x64xf32>
    %c3 = arith.constant 3 : index
    %c0_55 = arith.constant 0 : index
    %179 = vector.load %arg4[%c3, %c0_55] : memref<27x128xf32, #tpu.memory_space<vmem>>, vector<1x64xf32>
    %cst_56 = arith.constant dense<0.000000e+00> : vector<16x64xf32>
    %180 = tpu.matmul %1, %178, %cst_56 {dimension_numbers = #tpu.dot_dimension_numbers<[1], [0], [0], [1], [0, 0, 1, 1], [], []>} : vector<16x32xf32>, vector<32x64xf32>, vector<16x64xf32> -> vector<16x64xf32>
    %181 = vector.broadcast %179 : vector<1x64xf32> to vector<16x64xf32>
    %182 = arith.addf %180, %181 : vector<16x64xf32>
    %183 = vector.extract_strided_slice %182 {offsets = [0, 0], sizes = [16, 32], strides = [1, 1]} : vector<16x64xf32> to vector<16x32xf32>
    %184 = vector.extract_strided_slice %182 {offsets = [0, 32], sizes = [16, 32], strides = [1, 1]} : vector<16x64xf32> to vector<16x32xf32>
    %185 = vector.extract_strided_slice %177 {offsets = [0, 0], sizes = [8, 32], strides = [1, 1]} : vector<16x32xf32> to vector<8x32xf32>
    %186 = vector.extract_strided_slice %183 {offsets = [0, 0], sizes = [8, 32], strides = [1, 1]} : vector<16x32xf32> to vector<8x32xf32>
    %187 = vector.extract_strided_slice %184 {offsets = [0, 0], sizes = [8, 32], strides = [1, 1]} : vector<16x32xf32> to vector<8x32xf32>
    %188 = vector.extract_strided_slice %185 {offsets = [0, 0], sizes = [8, 8], strides = [1, 1]} : vector<8x32xf32> to vector<8x8xf32>
    %189 = vector.extract_strided_slice %186 {offsets = [0, 0], sizes = [8, 8], strides = [1, 1]} : vector<8x32xf32> to vector<8x8xf32>
    %190 = vector.extract_strided_slice %187 {offsets = [0, 0], sizes = [8, 8], strides = [1, 1]} : vector<8x32xf32> to vector<8x8xf32>
    %cst_57 = arith.constant dense<0.000000e+00> : vector<8x8xf32>
    %191 = tpu.matmul %188, %189, %cst_57 {dimension_numbers = #tpu.dot_dimension_numbers<[1], [1], [0], [0], [0, 0, 1, 0], [], []>} : vector<8x8xf32>, vector<8x8xf32>, vector<8x8xf32> -> vector<8x8xf32>
    %cst_58 = arith.constant dense<0xFF800000> : vector<8xf32>
    %192 = vector.multi_reduction <maximumf>, %191, %cst_58 [1] : vector<8x8xf32> to vector<8xf32>
    %193 = vector.shape_cast %192 : vector<8xf32> to vector<8x1xf32>
    %194 = vector.broadcast %193 : vector<8x1xf32> to vector<8x8xf32>
    %195 = arith.subf %191, %194 : vector<8x8xf32>
    %196 = math.exp %195 : vector<8x8xf32>
    %cst_59 = arith.constant dense<0.000000e+00> : vector<8xf32>
    %197 = vector.multi_reduction <add>, %196, %cst_59 [1] : vector<8x8xf32> to vector<8xf32>
    %198 = vector.shape_cast %197 : vector<8xf32> to vector<8x1xf32>
    %199 = vector.broadcast %198 : vector<8x1xf32> to vector<8x8xf32>
    %200 = arith.divf %196, %199 : vector<8x8xf32>
    %cst_60 = arith.constant dense<0.000000e+00> : vector<8x8xf32>
    %201 = tpu.matmul %200, %190, %cst_60 {dimension_numbers = #tpu.dot_dimension_numbers<[1], [0], [0], [1], [0, 0, 1, 1], [], []>} : vector<8x8xf32>, vector<8x8xf32>, vector<8x8xf32> -> vector<8x8xf32>
    %202 = vector.extract_strided_slice %185 {offsets = [0, 8], sizes = [8, 8], strides = [1, 1]} : vector<8x32xf32> to vector<8x8xf32>
    %203 = vector.extract_strided_slice %186 {offsets = [0, 8], sizes = [8, 8], strides = [1, 1]} : vector<8x32xf32> to vector<8x8xf32>
    %204 = vector.extract_strided_slice %187 {offsets = [0, 8], sizes = [8, 8], strides = [1, 1]} : vector<8x32xf32> to vector<8x8xf32>
    %cst_61 = arith.constant dense<0.000000e+00> : vector<8x8xf32>
    %205 = tpu.matmul %202, %203, %cst_61 {dimension_numbers = #tpu.dot_dimension_numbers<[1], [1], [0], [0], [0, 0, 1, 0], [], []>} : vector<8x8xf32>, vector<8x8xf32>, vector<8x8xf32> -> vector<8x8xf32>
    %cst_62 = arith.constant dense<0xFF800000> : vector<8xf32>
    %206 = vector.multi_reduction <maximumf>, %205, %cst_62 [1] : vector<8x8xf32> to vector<8xf32>
    %207 = vector.shape_cast %206 : vector<8xf32> to vector<8x1xf32>
    %208 = vector.broadcast %207 : vector<8x1xf32> to vector<8x8xf32>
    %209 = arith.subf %205, %208 : vector<8x8xf32>
    %210 = math.exp %209 : vector<8x8xf32>
    %cst_63 = arith.constant dense<0.000000e+00> : vector<8xf32>
    %211 = vector.multi_reduction <add>, %210, %cst_63 [1] : vector<8x8xf32> to vector<8xf32>
    %212 = vector.shape_cast %211 : vector<8xf32> to vector<8x1xf32>
    %213 = vector.broadcast %212 : vector<8x1xf32> to vector<8x8xf32>
    %214 = arith.divf %210, %213 : vector<8x8xf32>
    %cst_64 = arith.constant dense<0.000000e+00> : vector<8x8xf32>
    %215 = tpu.matmul %214, %204, %cst_64 {dimension_numbers = #tpu.dot_dimension_numbers<[1], [0], [0], [1], [0, 0, 1, 1], [], []>} : vector<8x8xf32>, vector<8x8xf32>, vector<8x8xf32> -> vector<8x8xf32>
    %216 = vector.extract_strided_slice %185 {offsets = [0, 16], sizes = [8, 8], strides = [1, 1]} : vector<8x32xf32> to vector<8x8xf32>
    %217 = vector.extract_strided_slice %186 {offsets = [0, 16], sizes = [8, 8], strides = [1, 1]} : vector<8x32xf32> to vector<8x8xf32>
    %218 = vector.extract_strided_slice %187 {offsets = [0, 16], sizes = [8, 8], strides = [1, 1]} : vector<8x32xf32> to vector<8x8xf32>
    %cst_65 = arith.constant dense<0.000000e+00> : vector<8x8xf32>
    %219 = tpu.matmul %216, %217, %cst_65 {dimension_numbers = #tpu.dot_dimension_numbers<[1], [1], [0], [0], [0, 0, 1, 0], [], []>} : vector<8x8xf32>, vector<8x8xf32>, vector<8x8xf32> -> vector<8x8xf32>
    %cst_66 = arith.constant dense<0xFF800000> : vector<8xf32>
    %220 = vector.multi_reduction <maximumf>, %219, %cst_66 [1] : vector<8x8xf32> to vector<8xf32>
    %221 = vector.shape_cast %220 : vector<8xf32> to vector<8x1xf32>
    %222 = vector.broadcast %221 : vector<8x1xf32> to vector<8x8xf32>
    %223 = arith.subf %219, %222 : vector<8x8xf32>
    %224 = math.exp %223 : vector<8x8xf32>
    %cst_67 = arith.constant dense<0.000000e+00> : vector<8xf32>
    %225 = vector.multi_reduction <add>, %224, %cst_67 [1] : vector<8x8xf32> to vector<8xf32>
    %226 = vector.shape_cast %225 : vector<8xf32> to vector<8x1xf32>
    %227 = vector.broadcast %226 : vector<8x1xf32> to vector<8x8xf32>
    %228 = arith.divf %224, %227 : vector<8x8xf32>
    %cst_68 = arith.constant dense<0.000000e+00> : vector<8x8xf32>
    %229 = tpu.matmul %228, %218, %cst_68 {dimension_numbers = #tpu.dot_dimension_numbers<[1], [0], [0], [1], [0, 0, 1, 1], [], []>} : vector<8x8xf32>, vector<8x8xf32>, vector<8x8xf32> -> vector<8x8xf32>
    %230 = vector.extract_strided_slice %185 {offsets = [0, 24], sizes = [8, 8], strides = [1, 1]} : vector<8x32xf32> to vector<8x8xf32>
    %231 = vector.extract_strided_slice %186 {offsets = [0, 24], sizes = [8, 8], strides = [1, 1]} : vector<8x32xf32> to vector<8x8xf32>
    %232 = vector.extract_strided_slice %187 {offsets = [0, 24], sizes = [8, 8], strides = [1, 1]} : vector<8x32xf32> to vector<8x8xf32>
    %cst_69 = arith.constant dense<0.000000e+00> : vector<8x8xf32>
    %233 = tpu.matmul %230, %231, %cst_69 {dimension_numbers = #tpu.dot_dimension_numbers<[1], [1], [0], [0], [0, 0, 1, 0], [], []>} : vector<8x8xf32>, vector<8x8xf32>, vector<8x8xf32> -> vector<8x8xf32>
    %cst_70 = arith.constant dense<0xFF800000> : vector<8xf32>
    %234 = vector.multi_reduction <maximumf>, %233, %cst_70 [1] : vector<8x8xf32> to vector<8xf32>
    %235 = vector.shape_cast %234 : vector<8xf32> to vector<8x1xf32>
    %236 = vector.broadcast %235 : vector<8x1xf32> to vector<8x8xf32>
    %237 = arith.subf %233, %236 : vector<8x8xf32>
    %238 = math.exp %237 : vector<8x8xf32>
    %cst_71 = arith.constant dense<0.000000e+00> : vector<8xf32>
    %239 = vector.multi_reduction <add>, %238, %cst_71 [1] : vector<8x8xf32> to vector<8xf32>
    %240 = vector.shape_cast %239 : vector<8xf32> to vector<8x1xf32>
    %241 = vector.broadcast %240 : vector<8x1xf32> to vector<8x8xf32>
    %242 = arith.divf %238, %241 : vector<8x8xf32>
    %cst_72 = arith.constant dense<0.000000e+00> : vector<8x8xf32>
    %243 = tpu.matmul %242, %232, %cst_72 {dimension_numbers = #tpu.dot_dimension_numbers<[1], [0], [0], [1], [0, 0, 1, 1], [], []>} : vector<8x8xf32>, vector<8x8xf32>, vector<8x8xf32> -> vector<8x8xf32>
    %244 = tpu.concatenate %201, %215, %229, %243 in 1 : vector<8x8xf32>, vector<8x8xf32>, vector<8x8xf32>, vector<8x8xf32> -> vector<8x32xf32>
    %245 = vector.extract_strided_slice %177 {offsets = [8, 0], sizes = [8, 32], strides = [1, 1]} : vector<16x32xf32> to vector<8x32xf32>
    %246 = vector.extract_strided_slice %183 {offsets = [8, 0], sizes = [8, 32], strides = [1, 1]} : vector<16x32xf32> to vector<8x32xf32>
    %247 = vector.extract_strided_slice %184 {offsets = [8, 0], sizes = [8, 32], strides = [1, 1]} : vector<16x32xf32> to vector<8x32xf32>
    %248 = vector.extract_strided_slice %245 {offsets = [0, 0], sizes = [8, 8], strides = [1, 1]} : vector<8x32xf32> to vector<8x8xf32>
    %249 = vector.extract_strided_slice %246 {offsets = [0, 0], sizes = [8, 8], strides = [1, 1]} : vector<8x32xf32> to vector<8x8xf32>
    %250 = vector.extract_strided_slice %247 {offsets = [0, 0], sizes = [8, 8], strides = [1, 1]} : vector<8x32xf32> to vector<8x8xf32>
    %cst_73 = arith.constant dense<0.000000e+00> : vector<8x8xf32>
    %251 = tpu.matmul %248, %249, %cst_73 {dimension_numbers = #tpu.dot_dimension_numbers<[1], [1], [0], [0], [0, 0, 1, 0], [], []>} : vector<8x8xf32>, vector<8x8xf32>, vector<8x8xf32> -> vector<8x8xf32>
    %cst_74 = arith.constant dense<0xFF800000> : vector<8xf32>
    %252 = vector.multi_reduction <maximumf>, %251, %cst_74 [1] : vector<8x8xf32> to vector<8xf32>
    %253 = vector.shape_cast %252 : vector<8xf32> to vector<8x1xf32>
    %254 = vector.broadcast %253 : vector<8x1xf32> to vector<8x8xf32>
    %255 = arith.subf %251, %254 : vector<8x8xf32>
    %256 = math.exp %255 : vector<8x8xf32>
    %cst_75 = arith.constant dense<0.000000e+00> : vector<8xf32>
    %257 = vector.multi_reduction <add>, %256, %cst_75 [1] : vector<8x8xf32> to vector<8xf32>
    %258 = vector.shape_cast %257 : vector<8xf32> to vector<8x1xf32>
    %259 = vector.broadcast %258 : vector<8x1xf32> to vector<8x8xf32>
    %260 = arith.divf %256, %259 : vector<8x8xf32>
    %cst_76 = arith.constant dense<0.000000e+00> : vector<8x8xf32>
    %261 = tpu.matmul %260, %250, %cst_76 {dimension_numbers = #tpu.dot_dimension_numbers<[1], [0], [0], [1], [0, 0, 1, 1], [], []>} : vector<8x8xf32>, vector<8x8xf32>, vector<8x8xf32> -> vector<8x8xf32>
    %262 = vector.extract_strided_slice %245 {offsets = [0, 8], sizes = [8, 8], strides = [1, 1]} : vector<8x32xf32> to vector<8x8xf32>
    %263 = vector.extract_strided_slice %246 {offsets = [0, 8], sizes = [8, 8], strides = [1, 1]} : vector<8x32xf32> to vector<8x8xf32>
    %264 = vector.extract_strided_slice %247 {offsets = [0, 8], sizes = [8, 8], strides = [1, 1]} : vector<8x32xf32> to vector<8x8xf32>
    %cst_77 = arith.constant dense<0.000000e+00> : vector<8x8xf32>
    %265 = tpu.matmul %262, %263, %cst_77 {dimension_numbers = #tpu.dot_dimension_numbers<[1], [1], [0], [0], [0, 0, 1, 0], [], []>} : vector<8x8xf32>, vector<8x8xf32>, vector<8x8xf32> -> vector<8x8xf32>
    %cst_78 = arith.constant dense<0xFF800000> : vector<8xf32>
    %266 = vector.multi_reduction <maximumf>, %265, %cst_78 [1] : vector<8x8xf32> to vector<8xf32>
    %267 = vector.shape_cast %266 : vector<8xf32> to vector<8x1xf32>
    %268 = vector.broadcast %267 : vector<8x1xf32> to vector<8x8xf32>
    %269 = arith.subf %265, %268 : vector<8x8xf32>
    %270 = math.exp %269 : vector<8x8xf32>
    %cst_79 = arith.constant dense<0.000000e+00> : vector<8xf32>
    %271 = vector.multi_reduction <add>, %270, %cst_79 [1] : vector<8x8xf32> to vector<8xf32>
    %272 = vector.shape_cast %271 : vector<8xf32> to vector<8x1xf32>
    %273 = vector.broadcast %272 : vector<8x1xf32> to vector<8x8xf32>
    %274 = arith.divf %270, %273 : vector<8x8xf32>
    %cst_80 = arith.constant dense<0.000000e+00> : vector<8x8xf32>
    %275 = tpu.matmul %274, %264, %cst_80 {dimension_numbers = #tpu.dot_dimension_numbers<[1], [0], [0], [1], [0, 0, 1, 1], [], []>} : vector<8x8xf32>, vector<8x8xf32>, vector<8x8xf32> -> vector<8x8xf32>
    %276 = vector.extract_strided_slice %245 {offsets = [0, 16], sizes = [8, 8], strides = [1, 1]} : vector<8x32xf32> to vector<8x8xf32>
    %277 = vector.extract_strided_slice %246 {offsets = [0, 16], sizes = [8, 8], strides = [1, 1]} : vector<8x32xf32> to vector<8x8xf32>
    %278 = vector.extract_strided_slice %247 {offsets = [0, 16], sizes = [8, 8], strides = [1, 1]} : vector<8x32xf32> to vector<8x8xf32>
    %cst_81 = arith.constant dense<0.000000e+00> : vector<8x8xf32>
    %279 = tpu.matmul %276, %277, %cst_81 {dimension_numbers = #tpu.dot_dimension_numbers<[1], [1], [0], [0], [0, 0, 1, 0], [], []>} : vector<8x8xf32>, vector<8x8xf32>, vector<8x8xf32> -> vector<8x8xf32>
    %cst_82 = arith.constant dense<0xFF800000> : vector<8xf32>
    %280 = vector.multi_reduction <maximumf>, %279, %cst_82 [1] : vector<8x8xf32> to vector<8xf32>
    %281 = vector.shape_cast %280 : vector<8xf32> to vector<8x1xf32>
    %282 = vector.broadcast %281 : vector<8x1xf32> to vector<8x8xf32>
    %283 = arith.subf %279, %282 : vector<8x8xf32>
    %284 = math.exp %283 : vector<8x8xf32>
    %cst_83 = arith.constant dense<0.000000e+00> : vector<8xf32>
    %285 = vector.multi_reduction <add>, %284, %cst_83 [1] : vector<8x8xf32> to vector<8xf32>
    %286 = vector.shape_cast %285 : vector<8xf32> to vector<8x1xf32>
    %287 = vector.broadcast %286 : vector<8x1xf32> to vector<8x8xf32>
    %288 = arith.divf %284, %287 : vector<8x8xf32>
    %cst_84 = arith.constant dense<0.000000e+00> : vector<8x8xf32>
    %289 = tpu.matmul %288, %278, %cst_84 {dimension_numbers = #tpu.dot_dimension_numbers<[1], [0], [0], [1], [0, 0, 1, 1], [], []>} : vector<8x8xf32>, vector<8x8xf32>, vector<8x8xf32> -> vector<8x8xf32>
    %290 = vector.extract_strided_slice %245 {offsets = [0, 24], sizes = [8, 8], strides = [1, 1]} : vector<8x32xf32> to vector<8x8xf32>
    %291 = vector.extract_strided_slice %246 {offsets = [0, 24], sizes = [8, 8], strides = [1, 1]} : vector<8x32xf32> to vector<8x8xf32>
    %292 = vector.extract_strided_slice %247 {offsets = [0, 24], sizes = [8, 8], strides = [1, 1]} : vector<8x32xf32> to vector<8x8xf32>
    %cst_85 = arith.constant dense<0.000000e+00> : vector<8x8xf32>
    %293 = tpu.matmul %290, %291, %cst_85 {dimension_numbers = #tpu.dot_dimension_numbers<[1], [1], [0], [0], [0, 0, 1, 0], [], []>} : vector<8x8xf32>, vector<8x8xf32>, vector<8x8xf32> -> vector<8x8xf32>
    %cst_86 = arith.constant dense<0xFF800000> : vector<8xf32>
    %294 = vector.multi_reduction <maximumf>, %293, %cst_86 [1] : vector<8x8xf32> to vector<8xf32>
    %295 = vector.shape_cast %294 : vector<8xf32> to vector<8x1xf32>
    %296 = vector.broadcast %295 : vector<8x1xf32> to vector<8x8xf32>
    %297 = arith.subf %293, %296 : vector<8x8xf32>
    %298 = math.exp %297 : vector<8x8xf32>
    %cst_87 = arith.constant dense<0.000000e+00> : vector<8xf32>
    %299 = vector.multi_reduction <add>, %298, %cst_87 [1] : vector<8x8xf32> to vector<8xf32>
    %300 = vector.shape_cast %299 : vector<8xf32> to vector<8x1xf32>
    %301 = vector.broadcast %300 : vector<8x1xf32> to vector<8x8xf32>
    %302 = arith.divf %298, %301 : vector<8x8xf32>
    %cst_88 = arith.constant dense<0.000000e+00> : vector<8x8xf32>
    %303 = tpu.matmul %302, %292, %cst_88 {dimension_numbers = #tpu.dot_dimension_numbers<[1], [0], [0], [1], [0, 0, 1, 1], [], []>} : vector<8x8xf32>, vector<8x8xf32>, vector<8x8xf32> -> vector<8x8xf32>
    %304 = tpu.concatenate %261, %275, %289, %303 in 1 : vector<8x8xf32>, vector<8x8xf32>, vector<8x8xf32>, vector<8x8xf32> -> vector<8x32xf32>
    %305 = tpu.concatenate %244, %304 in 0 : vector<8x32xf32>, vector<8x32xf32> -> vector<16x32xf32>
    %c128 = arith.constant 128 : index
    %c0_89 = arith.constant 0 : index
    %306 = vector.load %arg3[%c128, %c0_89] : memref<544x128xf32, #tpu.memory_space<vmem>>, vector<32x32xf32>
    %c4 = arith.constant 4 : index
    %c0_90 = arith.constant 0 : index
    %307 = vector.load %arg4[%c4, %c0_90] : memref<27x128xf32, #tpu.memory_space<vmem>>, vector<1x32xf32>
    %cst_91 = arith.constant dense<0.000000e+00> : vector<16x32xf32>
    %308 = tpu.matmul %305, %306, %cst_91 {dimension_numbers = #tpu.dot_dimension_numbers<[1], [0], [0], [1], [0, 0, 1, 1], [], []>} : vector<16x32xf32>, vector<32x32xf32>, vector<16x32xf32> -> vector<16x32xf32>
    %309 = vector.broadcast %307 : vector<1x32xf32> to vector<16x32xf32>
    %310 = arith.addf %308, %309 : vector<16x32xf32>
    %311 = arith.addf %172, %310 : vector<16x32xf32>
    %c7 = arith.constant 7 : index
    %c0_92 = arith.constant 0 : index
    %312 = vector.load %arg4[%c7, %c0_92] : memref<27x128xf32, #tpu.memory_space<vmem>>, vector<1x32xf32>
    %c8 = arith.constant 8 : index
    %c0_93 = arith.constant 0 : index
    %313 = vector.load %arg4[%c8, %c0_93] : memref<27x128xf32, #tpu.memory_space<vmem>>, vector<1x32xf32>
    %cst_94 = arith.constant dense<0.000000e+00> : vector<16xf32>
    %314 = vector.multi_reduction <add>, %311, %cst_94 [1] : vector<16x32xf32> to vector<16xf32>
    %315 = vector.shape_cast %314 : vector<16xf32> to vector<16x1xf32>
    %cst_95 = arith.constant 3.200000e+01 : f32
    %316 = vector.broadcast %cst_95 : f32 to vector<16x1xf32>
    %317 = arith.divf %315, %316 : vector<16x1xf32>
    %318 = vector.broadcast %317 : vector<16x1xf32> to vector<16x32xf32>
    %319 = arith.subf %311, %318 : vector<16x32xf32>
    %320 = arith.mulf %319, %319 : vector<16x32xf32>
    %cst_96 = arith.constant dense<0.000000e+00> : vector<16xf32>
    %321 = vector.multi_reduction <add>, %320, %cst_96 [1] : vector<16x32xf32> to vector<16xf32>
    %322 = vector.shape_cast %321 : vector<16xf32> to vector<16x1xf32>
    %cst_97 = arith.constant 3.200000e+01 : f32
    %323 = vector.broadcast %cst_97 : f32 to vector<16x1xf32>
    %324 = arith.divf %322, %323 : vector<16x1xf32>
    %cst_98 = arith.constant 9.99999974E-6 : f32
    %325 = vector.broadcast %cst_98 : f32 to vector<16x1xf32>
    %326 = arith.addf %324, %325 : vector<16x1xf32>
    %327 = math.rsqrt %326 : vector<16x1xf32>
    %328 = vector.broadcast %327 : vector<16x1xf32> to vector<16x32xf32>
    %329 = arith.mulf %319, %328 : vector<16x32xf32>
    %330 = vector.broadcast %312 : vector<1x32xf32> to vector<16x32xf32>
    %331 = arith.mulf %329, %330 : vector<16x32xf32>
    %332 = vector.broadcast %313 : vector<1x32xf32> to vector<16x32xf32>
    %333 = arith.addf %331, %332 : vector<16x32xf32>
    %c160 = arith.constant 160 : index
    %c0_99 = arith.constant 0 : index
    %334 = vector.load %arg3[%c160, %c0_99] : memref<544x128xf32, #tpu.memory_space<vmem>>, vector<32x64xf32>
    %c11 = arith.constant 11 : index
    %c0_100 = arith.constant 0 : index
    %335 = vector.load %arg4[%c11, %c0_100] : memref<27x128xf32, #tpu.memory_space<vmem>>, vector<1x64xf32>
    %cst_101 = arith.constant dense<0.000000e+00> : vector<16x64xf32>
    %336 = tpu.matmul %333, %334, %cst_101 {dimension_numbers = #tpu.dot_dimension_numbers<[1], [0], [0], [1], [0, 0, 1, 1], [], []>} : vector<16x32xf32>, vector<32x64xf32>, vector<16x64xf32> -> vector<16x64xf32>
    %337 = vector.broadcast %335 : vector<1x64xf32> to vector<16x64xf32>
    %338 = arith.addf %336, %337 : vector<16x64xf32>
    %cst_102 = arith.constant 0.000000e+00 : f32
    %339 = vector.broadcast %cst_102 : f32 to vector<16x64xf32>
    %340 = arith.maximumf %338, %339 : vector<16x64xf32>
    %c192 = arith.constant 192 : index
    %c0_103 = arith.constant 0 : index
    %341 = vector.load %arg3[%c192, %c0_103] : memref<544x128xf32, #tpu.memory_space<vmem>>, vector<64x32xf32>
    %c12 = arith.constant 12 : index
    %c0_104 = arith.constant 0 : index
    %342 = vector.load %arg4[%c12, %c0_104] : memref<27x128xf32, #tpu.memory_space<vmem>>, vector<1x32xf32>
    %cst_105 = arith.constant dense<0.000000e+00> : vector<16x32xf32>
    %343 = tpu.matmul %340, %341, %cst_105 {dimension_numbers = #tpu.dot_dimension_numbers<[1], [0], [0], [1], [0, 0, 1, 1], [], []>} : vector<16x64xf32>, vector<64x32xf32>, vector<16x32xf32> -> vector<16x32xf32>
    %344 = vector.broadcast %342 : vector<1x32xf32> to vector<16x32xf32>
    %345 = arith.addf %343, %344 : vector<16x32xf32>
    %346 = arith.addf %333, %345 : vector<16x32xf32>
    %c9 = arith.constant 9 : index
    %c0_106 = arith.constant 0 : index
    %347 = vector.load %arg4[%c9, %c0_106] : memref<27x128xf32, #tpu.memory_space<vmem>>, vector<1x32xf32>
    %c10 = arith.constant 10 : index
    %c0_107 = arith.constant 0 : index
    %348 = vector.load %arg4[%c10, %c0_107] : memref<27x128xf32, #tpu.memory_space<vmem>>, vector<1x32xf32>
    %cst_108 = arith.constant dense<0.000000e+00> : vector<16xf32>
    %349 = vector.multi_reduction <add>, %346, %cst_108 [1] : vector<16x32xf32> to vector<16xf32>
    %350 = vector.shape_cast %349 : vector<16xf32> to vector<16x1xf32>
    %cst_109 = arith.constant 3.200000e+01 : f32
    %351 = vector.broadcast %cst_109 : f32 to vector<16x1xf32>
    %352 = arith.divf %350, %351 : vector<16x1xf32>
    %353 = vector.broadcast %352 : vector<16x1xf32> to vector<16x32xf32>
    %354 = arith.subf %346, %353 : vector<16x32xf32>
    %355 = arith.mulf %354, %354 : vector<16x32xf32>
    %cst_110 = arith.constant dense<0.000000e+00> : vector<16xf32>
    %356 = vector.multi_reduction <add>, %355, %cst_110 [1] : vector<16x32xf32> to vector<16xf32>
    %357 = vector.shape_cast %356 : vector<16xf32> to vector<16x1xf32>
    %cst_111 = arith.constant 3.200000e+01 : f32
    %358 = vector.broadcast %cst_111 : f32 to vector<16x1xf32>
    %359 = arith.divf %357, %358 : vector<16x1xf32>
    %cst_112 = arith.constant 9.99999974E-6 : f32
    %360 = vector.broadcast %cst_112 : f32 to vector<16x1xf32>
    %361 = arith.addf %359, %360 : vector<16x1xf32>
    %362 = math.rsqrt %361 : vector<16x1xf32>
    %363 = vector.broadcast %362 : vector<16x1xf32> to vector<16x32xf32>
    %364 = arith.mulf %354, %363 : vector<16x32xf32>
    %365 = vector.broadcast %347 : vector<1x32xf32> to vector<16x32xf32>
    %366 = arith.mulf %364, %365 : vector<16x32xf32>
    %367 = vector.broadcast %348 : vector<1x32xf32> to vector<16x32xf32>
    %368 = arith.addf %366, %367 : vector<16x32xf32>
    %c256 = arith.constant 256 : index
    %c0_113 = arith.constant 0 : index
    %369 = vector.load %arg3[%c256, %c0_113] : memref<544x128xf32, #tpu.memory_space<vmem>>, vector<32x96xf32>
    %c13 = arith.constant 13 : index
    %c0_114 = arith.constant 0 : index
    %370 = vector.load %arg4[%c13, %c0_114] : memref<27x128xf32, #tpu.memory_space<vmem>>, vector<1x96xf32>
    %cst_115 = arith.constant dense<0.000000e+00> : vector<16x96xf32>
    %371 = tpu.matmul %368, %369, %cst_115 {dimension_numbers = #tpu.dot_dimension_numbers<[1], [0], [0], [1], [0, 0, 1, 1], [], []>} : vector<16x32xf32>, vector<32x96xf32>, vector<16x96xf32> -> vector<16x96xf32>
    %372 = vector.broadcast %370 : vector<1x96xf32> to vector<16x96xf32>
    %373 = arith.addf %371, %372 : vector<16x96xf32>
    %374 = vector.extract_strided_slice %373 {offsets = [0, 0], sizes = [16, 32], strides = [1, 1]} : vector<16x96xf32> to vector<16x32xf32>
    %375 = vector.extract_strided_slice %373 {offsets = [0, 32], sizes = [16, 32], strides = [1, 1]} : vector<16x96xf32> to vector<16x32xf32>
    %376 = vector.extract_strided_slice %373 {offsets = [0, 64], sizes = [16, 32], strides = [1, 1]} : vector<16x96xf32> to vector<16x32xf32>
    %377 = vector.extract_strided_slice %374 {offsets = [0, 0], sizes = [8, 32], strides = [1, 1]} : vector<16x32xf32> to vector<8x32xf32>
    %378 = vector.extract_strided_slice %375 {offsets = [0, 0], sizes = [8, 32], strides = [1, 1]} : vector<16x32xf32> to vector<8x32xf32>
    %379 = vector.extract_strided_slice %376 {offsets = [0, 0], sizes = [8, 32], strides = [1, 1]} : vector<16x32xf32> to vector<8x32xf32>
    %380 = vector.extract_strided_slice %377 {offsets = [0, 0], sizes = [8, 8], strides = [1, 1]} : vector<8x32xf32> to vector<8x8xf32>
    %381 = vector.extract_strided_slice %378 {offsets = [0, 0], sizes = [8, 8], strides = [1, 1]} : vector<8x32xf32> to vector<8x8xf32>
    %382 = vector.extract_strided_slice %379 {offsets = [0, 0], sizes = [8, 8], strides = [1, 1]} : vector<8x32xf32> to vector<8x8xf32>
    %cst_116 = arith.constant dense<0.000000e+00> : vector<8x8xf32>
    %383 = tpu.matmul %380, %381, %cst_116 {dimension_numbers = #tpu.dot_dimension_numbers<[1], [1], [0], [0], [0, 0, 1, 0], [], []>} : vector<8x8xf32>, vector<8x8xf32>, vector<8x8xf32> -> vector<8x8xf32>
    %384 = arith.addf %383, %7 : vector<8x8xf32>
    %cst_117 = arith.constant dense<0xFF800000> : vector<8xf32>
    %385 = vector.multi_reduction <maximumf>, %384, %cst_117 [1] : vector<8x8xf32> to vector<8xf32>
    %386 = vector.shape_cast %385 : vector<8xf32> to vector<8x1xf32>
    %387 = vector.broadcast %386 : vector<8x1xf32> to vector<8x8xf32>
    %388 = arith.subf %384, %387 : vector<8x8xf32>
    %389 = math.exp %388 : vector<8x8xf32>
    %cst_118 = arith.constant dense<0.000000e+00> : vector<8xf32>
    %390 = vector.multi_reduction <add>, %389, %cst_118 [1] : vector<8x8xf32> to vector<8xf32>
    %391 = vector.shape_cast %390 : vector<8xf32> to vector<8x1xf32>
    %392 = vector.broadcast %391 : vector<8x1xf32> to vector<8x8xf32>
    %393 = arith.divf %389, %392 : vector<8x8xf32>
    %cst_119 = arith.constant dense<0.000000e+00> : vector<8x8xf32>
    %394 = tpu.matmul %393, %382, %cst_119 {dimension_numbers = #tpu.dot_dimension_numbers<[1], [0], [0], [1], [0, 0, 1, 1], [], []>} : vector<8x8xf32>, vector<8x8xf32>, vector<8x8xf32> -> vector<8x8xf32>
    %395 = vector.extract_strided_slice %377 {offsets = [0, 8], sizes = [8, 8], strides = [1, 1]} : vector<8x32xf32> to vector<8x8xf32>
    %396 = vector.extract_strided_slice %378 {offsets = [0, 8], sizes = [8, 8], strides = [1, 1]} : vector<8x32xf32> to vector<8x8xf32>
    %397 = vector.extract_strided_slice %379 {offsets = [0, 8], sizes = [8, 8], strides = [1, 1]} : vector<8x32xf32> to vector<8x8xf32>
    %cst_120 = arith.constant dense<0.000000e+00> : vector<8x8xf32>
    %398 = tpu.matmul %395, %396, %cst_120 {dimension_numbers = #tpu.dot_dimension_numbers<[1], [1], [0], [0], [0, 0, 1, 0], [], []>} : vector<8x8xf32>, vector<8x8xf32>, vector<8x8xf32> -> vector<8x8xf32>
    %399 = arith.addf %398, %7 : vector<8x8xf32>
    %cst_121 = arith.constant dense<0xFF800000> : vector<8xf32>
    %400 = vector.multi_reduction <maximumf>, %399, %cst_121 [1] : vector<8x8xf32> to vector<8xf32>
    %401 = vector.shape_cast %400 : vector<8xf32> to vector<8x1xf32>
    %402 = vector.broadcast %401 : vector<8x1xf32> to vector<8x8xf32>
    %403 = arith.subf %399, %402 : vector<8x8xf32>
    %404 = math.exp %403 : vector<8x8xf32>
    %cst_122 = arith.constant dense<0.000000e+00> : vector<8xf32>
    %405 = vector.multi_reduction <add>, %404, %cst_122 [1] : vector<8x8xf32> to vector<8xf32>
    %406 = vector.shape_cast %405 : vector<8xf32> to vector<8x1xf32>
    %407 = vector.broadcast %406 : vector<8x1xf32> to vector<8x8xf32>
    %408 = arith.divf %404, %407 : vector<8x8xf32>
    %cst_123 = arith.constant dense<0.000000e+00> : vector<8x8xf32>
    %409 = tpu.matmul %408, %397, %cst_123 {dimension_numbers = #tpu.dot_dimension_numbers<[1], [0], [0], [1], [0, 0, 1, 1], [], []>} : vector<8x8xf32>, vector<8x8xf32>, vector<8x8xf32> -> vector<8x8xf32>
    %410 = vector.extract_strided_slice %377 {offsets = [0, 16], sizes = [8, 8], strides = [1, 1]} : vector<8x32xf32> to vector<8x8xf32>
    %411 = vector.extract_strided_slice %378 {offsets = [0, 16], sizes = [8, 8], strides = [1, 1]} : vector<8x32xf32> to vector<8x8xf32>
    %412 = vector.extract_strided_slice %379 {offsets = [0, 16], sizes = [8, 8], strides = [1, 1]} : vector<8x32xf32> to vector<8x8xf32>
    %cst_124 = arith.constant dense<0.000000e+00> : vector<8x8xf32>
    %413 = tpu.matmul %410, %411, %cst_124 {dimension_numbers = #tpu.dot_dimension_numbers<[1], [1], [0], [0], [0, 0, 1, 0], [], []>} : vector<8x8xf32>, vector<8x8xf32>, vector<8x8xf32> -> vector<8x8xf32>
    %414 = arith.addf %413, %7 : vector<8x8xf32>
    %cst_125 = arith.constant dense<0xFF800000> : vector<8xf32>
    %415 = vector.multi_reduction <maximumf>, %414, %cst_125 [1] : vector<8x8xf32> to vector<8xf32>
    %416 = vector.shape_cast %415 : vector<8xf32> to vector<8x1xf32>
    %417 = vector.broadcast %416 : vector<8x1xf32> to vector<8x8xf32>
    %418 = arith.subf %414, %417 : vector<8x8xf32>
    %419 = math.exp %418 : vector<8x8xf32>
    %cst_126 = arith.constant dense<0.000000e+00> : vector<8xf32>
    %420 = vector.multi_reduction <add>, %419, %cst_126 [1] : vector<8x8xf32> to vector<8xf32>
    %421 = vector.shape_cast %420 : vector<8xf32> to vector<8x1xf32>
    %422 = vector.broadcast %421 : vector<8x1xf32> to vector<8x8xf32>
    %423 = arith.divf %419, %422 : vector<8x8xf32>
    %cst_127 = arith.constant dense<0.000000e+00> : vector<8x8xf32>
    %424 = tpu.matmul %423, %412, %cst_127 {dimension_numbers = #tpu.dot_dimension_numbers<[1], [0], [0], [1], [0, 0, 1, 1], [], []>} : vector<8x8xf32>, vector<8x8xf32>, vector<8x8xf32> -> vector<8x8xf32>
    %425 = vector.extract_strided_slice %377 {offsets = [0, 24], sizes = [8, 8], strides = [1, 1]} : vector<8x32xf32> to vector<8x8xf32>
    %426 = vector.extract_strided_slice %378 {offsets = [0, 24], sizes = [8, 8], strides = [1, 1]} : vector<8x32xf32> to vector<8x8xf32>
    %427 = vector.extract_strided_slice %379 {offsets = [0, 24], sizes = [8, 8], strides = [1, 1]} : vector<8x32xf32> to vector<8x8xf32>
    %cst_128 = arith.constant dense<0.000000e+00> : vector<8x8xf32>
    %428 = tpu.matmul %425, %426, %cst_128 {dimension_numbers = #tpu.dot_dimension_numbers<[1], [1], [0], [0], [0, 0, 1, 0], [], []>} : vector<8x8xf32>, vector<8x8xf32>, vector<8x8xf32> -> vector<8x8xf32>
    %429 = arith.addf %428, %7 : vector<8x8xf32>
    %cst_129 = arith.constant dense<0xFF800000> : vector<8xf32>
    %430 = vector.multi_reduction <maximumf>, %429, %cst_129 [1] : vector<8x8xf32> to vector<8xf32>
    %431 = vector.shape_cast %430 : vector<8xf32> to vector<8x1xf32>
    %432 = vector.broadcast %431 : vector<8x1xf32> to vector<8x8xf32>
    %433 = arith.subf %429, %432 : vector<8x8xf32>
    %434 = math.exp %433 : vector<8x8xf32>
    %cst_130 = arith.constant dense<0.000000e+00> : vector<8xf32>
    %435 = vector.multi_reduction <add>, %434, %cst_130 [1] : vector<8x8xf32> to vector<8xf32>
    %436 = vector.shape_cast %435 : vector<8xf32> to vector<8x1xf32>
    %437 = vector.broadcast %436 : vector<8x1xf32> to vector<8x8xf32>
    %438 = arith.divf %434, %437 : vector<8x8xf32>
    %cst_131 = arith.constant dense<0.000000e+00> : vector<8x8xf32>
    %439 = tpu.matmul %438, %427, %cst_131 {dimension_numbers = #tpu.dot_dimension_numbers<[1], [0], [0], [1], [0, 0, 1, 1], [], []>} : vector<8x8xf32>, vector<8x8xf32>, vector<8x8xf32> -> vector<8x8xf32>
    %440 = tpu.concatenate %394, %409, %424, %439 in 1 : vector<8x8xf32>, vector<8x8xf32>, vector<8x8xf32>, vector<8x8xf32> -> vector<8x32xf32>
    %441 = vector.extract_strided_slice %374 {offsets = [8, 0], sizes = [8, 32], strides = [1, 1]} : vector<16x32xf32> to vector<8x32xf32>
    %442 = vector.extract_strided_slice %375 {offsets = [8, 0], sizes = [8, 32], strides = [1, 1]} : vector<16x32xf32> to vector<8x32xf32>
    %443 = vector.extract_strided_slice %376 {offsets = [8, 0], sizes = [8, 32], strides = [1, 1]} : vector<16x32xf32> to vector<8x32xf32>
    %444 = vector.extract_strided_slice %441 {offsets = [0, 0], sizes = [8, 8], strides = [1, 1]} : vector<8x32xf32> to vector<8x8xf32>
    %445 = vector.extract_strided_slice %442 {offsets = [0, 0], sizes = [8, 8], strides = [1, 1]} : vector<8x32xf32> to vector<8x8xf32>
    %446 = vector.extract_strided_slice %443 {offsets = [0, 0], sizes = [8, 8], strides = [1, 1]} : vector<8x32xf32> to vector<8x8xf32>
    %cst_132 = arith.constant dense<0.000000e+00> : vector<8x8xf32>
    %447 = tpu.matmul %444, %445, %cst_132 {dimension_numbers = #tpu.dot_dimension_numbers<[1], [1], [0], [0], [0, 0, 1, 0], [], []>} : vector<8x8xf32>, vector<8x8xf32>, vector<8x8xf32> -> vector<8x8xf32>
    %448 = arith.addf %447, %7 : vector<8x8xf32>
    %cst_133 = arith.constant dense<0xFF800000> : vector<8xf32>
    %449 = vector.multi_reduction <maximumf>, %448, %cst_133 [1] : vector<8x8xf32> to vector<8xf32>
    %450 = vector.shape_cast %449 : vector<8xf32> to vector<8x1xf32>
    %451 = vector.broadcast %450 : vector<8x1xf32> to vector<8x8xf32>
    %452 = arith.subf %448, %451 : vector<8x8xf32>
    %453 = math.exp %452 : vector<8x8xf32>
    %cst_134 = arith.constant dense<0.000000e+00> : vector<8xf32>
    %454 = vector.multi_reduction <add>, %453, %cst_134 [1] : vector<8x8xf32> to vector<8xf32>
    %455 = vector.shape_cast %454 : vector<8xf32> to vector<8x1xf32>
    %456 = vector.broadcast %455 : vector<8x1xf32> to vector<8x8xf32>
    %457 = arith.divf %453, %456 : vector<8x8xf32>
    %cst_135 = arith.constant dense<0.000000e+00> : vector<8x8xf32>
    %458 = tpu.matmul %457, %446, %cst_135 {dimension_numbers = #tpu.dot_dimension_numbers<[1], [0], [0], [1], [0, 0, 1, 1], [], []>} : vector<8x8xf32>, vector<8x8xf32>, vector<8x8xf32> -> vector<8x8xf32>
    %459 = vector.extract_strided_slice %441 {offsets = [0, 8], sizes = [8, 8], strides = [1, 1]} : vector<8x32xf32> to vector<8x8xf32>
    %460 = vector.extract_strided_slice %442 {offsets = [0, 8], sizes = [8, 8], strides = [1, 1]} : vector<8x32xf32> to vector<8x8xf32>
    %461 = vector.extract_strided_slice %443 {offsets = [0, 8], sizes = [8, 8], strides = [1, 1]} : vector<8x32xf32> to vector<8x8xf32>
    %cst_136 = arith.constant dense<0.000000e+00> : vector<8x8xf32>
    %462 = tpu.matmul %459, %460, %cst_136 {dimension_numbers = #tpu.dot_dimension_numbers<[1], [1], [0], [0], [0, 0, 1, 0], [], []>} : vector<8x8xf32>, vector<8x8xf32>, vector<8x8xf32> -> vector<8x8xf32>
    %463 = arith.addf %462, %7 : vector<8x8xf32>
    %cst_137 = arith.constant dense<0xFF800000> : vector<8xf32>
    %464 = vector.multi_reduction <maximumf>, %463, %cst_137 [1] : vector<8x8xf32> to vector<8xf32>
    %465 = vector.shape_cast %464 : vector<8xf32> to vector<8x1xf32>
    %466 = vector.broadcast %465 : vector<8x1xf32> to vector<8x8xf32>
    %467 = arith.subf %463, %466 : vector<8x8xf32>
    %468 = math.exp %467 : vector<8x8xf32>
    %cst_138 = arith.constant dense<0.000000e+00> : vector<8xf32>
    %469 = vector.multi_reduction <add>, %468, %cst_138 [1] : vector<8x8xf32> to vector<8xf32>
    %470 = vector.shape_cast %469 : vector<8xf32> to vector<8x1xf32>
    %471 = vector.broadcast %470 : vector<8x1xf32> to vector<8x8xf32>
    %472 = arith.divf %468, %471 : vector<8x8xf32>
    %cst_139 = arith.constant dense<0.000000e+00> : vector<8x8xf32>
    %473 = tpu.matmul %472, %461, %cst_139 {dimension_numbers = #tpu.dot_dimension_numbers<[1], [0], [0], [1], [0, 0, 1, 1], [], []>} : vector<8x8xf32>, vector<8x8xf32>, vector<8x8xf32> -> vector<8x8xf32>
    %474 = vector.extract_strided_slice %441 {offsets = [0, 16], sizes = [8, 8], strides = [1, 1]} : vector<8x32xf32> to vector<8x8xf32>
    %475 = vector.extract_strided_slice %442 {offsets = [0, 16], sizes = [8, 8], strides = [1, 1]} : vector<8x32xf32> to vector<8x8xf32>
    %476 = vector.extract_strided_slice %443 {offsets = [0, 16], sizes = [8, 8], strides = [1, 1]} : vector<8x32xf32> to vector<8x8xf32>
    %cst_140 = arith.constant dense<0.000000e+00> : vector<8x8xf32>
    %477 = tpu.matmul %474, %475, %cst_140 {dimension_numbers = #tpu.dot_dimension_numbers<[1], [1], [0], [0], [0, 0, 1, 0], [], []>} : vector<8x8xf32>, vector<8x8xf32>, vector<8x8xf32> -> vector<8x8xf32>
    %478 = arith.addf %477, %7 : vector<8x8xf32>
    %cst_141 = arith.constant dense<0xFF800000> : vector<8xf32>
    %479 = vector.multi_reduction <maximumf>, %478, %cst_141 [1] : vector<8x8xf32> to vector<8xf32>
    %480 = vector.shape_cast %479 : vector<8xf32> to vector<8x1xf32>
    %481 = vector.broadcast %480 : vector<8x1xf32> to vector<8x8xf32>
    %482 = arith.subf %478, %481 : vector<8x8xf32>
    %483 = math.exp %482 : vector<8x8xf32>
    %cst_142 = arith.constant dense<0.000000e+00> : vector<8xf32>
    %484 = vector.multi_reduction <add>, %483, %cst_142 [1] : vector<8x8xf32> to vector<8xf32>
    %485 = vector.shape_cast %484 : vector<8xf32> to vector<8x1xf32>
    %486 = vector.broadcast %485 : vector<8x1xf32> to vector<8x8xf32>
    %487 = arith.divf %483, %486 : vector<8x8xf32>
    %cst_143 = arith.constant dense<0.000000e+00> : vector<8x8xf32>
    %488 = tpu.matmul %487, %476, %cst_143 {dimension_numbers = #tpu.dot_dimension_numbers<[1], [0], [0], [1], [0, 0, 1, 1], [], []>} : vector<8x8xf32>, vector<8x8xf32>, vector<8x8xf32> -> vector<8x8xf32>
    %489 = vector.extract_strided_slice %441 {offsets = [0, 24], sizes = [8, 8], strides = [1, 1]} : vector<8x32xf32> to vector<8x8xf32>
    %490 = vector.extract_strided_slice %442 {offsets = [0, 24], sizes = [8, 8], strides = [1, 1]} : vector<8x32xf32> to vector<8x8xf32>
    %491 = vector.extract_strided_slice %443 {offsets = [0, 24], sizes = [8, 8], strides = [1, 1]} : vector<8x32xf32> to vector<8x8xf32>
    %cst_144 = arith.constant dense<0.000000e+00> : vector<8x8xf32>
    %492 = tpu.matmul %489, %490, %cst_144 {dimension_numbers = #tpu.dot_dimension_numbers<[1], [1], [0], [0], [0, 0, 1, 0], [], []>} : vector<8x8xf32>, vector<8x8xf32>, vector<8x8xf32> -> vector<8x8xf32>
    %493 = arith.addf %492, %7 : vector<8x8xf32>
    %cst_145 = arith.constant dense<0xFF800000> : vector<8xf32>
    %494 = vector.multi_reduction <maximumf>, %493, %cst_145 [1] : vector<8x8xf32> to vector<8xf32>
    %495 = vector.shape_cast %494 : vector<8xf32> to vector<8x1xf32>
    %496 = vector.broadcast %495 : vector<8x1xf32> to vector<8x8xf32>
    %497 = arith.subf %493, %496 : vector<8x8xf32>
    %498 = math.exp %497 : vector<8x8xf32>
    %cst_146 = arith.constant dense<0.000000e+00> : vector<8xf32>
    %499 = vector.multi_reduction <add>, %498, %cst_146 [1] : vector<8x8xf32> to vector<8xf32>
    %500 = vector.shape_cast %499 : vector<8xf32> to vector<8x1xf32>
    %501 = vector.broadcast %500 : vector<8x1xf32> to vector<8x8xf32>
    %502 = arith.divf %498, %501 : vector<8x8xf32>
    %cst_147 = arith.constant dense<0.000000e+00> : vector<8x8xf32>
    %503 = tpu.matmul %502, %491, %cst_147 {dimension_numbers = #tpu.dot_dimension_numbers<[1], [0], [0], [1], [0, 0, 1, 1], [], []>} : vector<8x8xf32>, vector<8x8xf32>, vector<8x8xf32> -> vector<8x8xf32>
    %504 = tpu.concatenate %458, %473, %488, %503 in 1 : vector<8x8xf32>, vector<8x8xf32>, vector<8x8xf32>, vector<8x8xf32> -> vector<8x32xf32>
    %505 = tpu.concatenate %440, %504 in 0 : vector<8x32xf32>, vector<8x32xf32> -> vector<16x32xf32>
    %c288 = arith.constant 288 : index
    %c0_148 = arith.constant 0 : index
    %506 = vector.load %arg3[%c288, %c0_148] : memref<544x128xf32, #tpu.memory_space<vmem>>, vector<32x32xf32>
    %c14 = arith.constant 14 : index
    %c0_149 = arith.constant 0 : index
    %507 = vector.load %arg4[%c14, %c0_149] : memref<27x128xf32, #tpu.memory_space<vmem>>, vector<1x32xf32>
    %cst_150 = arith.constant dense<0.000000e+00> : vector<16x32xf32>
    %508 = tpu.matmul %505, %506, %cst_150 {dimension_numbers = #tpu.dot_dimension_numbers<[1], [0], [0], [1], [0, 0, 1, 1], [], []>} : vector<16x32xf32>, vector<32x32xf32>, vector<16x32xf32> -> vector<16x32xf32>
    %509 = vector.broadcast %507 : vector<1x32xf32> to vector<16x32xf32>
    %510 = arith.addf %508, %509 : vector<16x32xf32>
    %511 = arith.addf %368, %510 : vector<16x32xf32>
    %c18 = arith.constant 18 : index
    %c0_151 = arith.constant 0 : index
    %512 = vector.load %arg4[%c18, %c0_151] : memref<27x128xf32, #tpu.memory_space<vmem>>, vector<1x32xf32>
    %c19 = arith.constant 19 : index
    %c0_152 = arith.constant 0 : index
    %513 = vector.load %arg4[%c19, %c0_152] : memref<27x128xf32, #tpu.memory_space<vmem>>, vector<1x32xf32>
    %cst_153 = arith.constant dense<0.000000e+00> : vector<16xf32>
    %514 = vector.multi_reduction <add>, %511, %cst_153 [1] : vector<16x32xf32> to vector<16xf32>
    %515 = vector.shape_cast %514 : vector<16xf32> to vector<16x1xf32>
    %cst_154 = arith.constant 3.200000e+01 : f32
    %516 = vector.broadcast %cst_154 : f32 to vector<16x1xf32>
    %517 = arith.divf %515, %516 : vector<16x1xf32>
    %518 = vector.broadcast %517 : vector<16x1xf32> to vector<16x32xf32>
    %519 = arith.subf %511, %518 : vector<16x32xf32>
    %520 = arith.mulf %519, %519 : vector<16x32xf32>
    %cst_155 = arith.constant dense<0.000000e+00> : vector<16xf32>
    %521 = vector.multi_reduction <add>, %520, %cst_155 [1] : vector<16x32xf32> to vector<16xf32>
    %522 = vector.shape_cast %521 : vector<16xf32> to vector<16x1xf32>
    %cst_156 = arith.constant 3.200000e+01 : f32
    %523 = vector.broadcast %cst_156 : f32 to vector<16x1xf32>
    %524 = arith.divf %522, %523 : vector<16x1xf32>
    %cst_157 = arith.constant 9.99999974E-6 : f32
    %525 = vector.broadcast %cst_157 : f32 to vector<16x1xf32>
    %526 = arith.addf %524, %525 : vector<16x1xf32>
    %527 = math.rsqrt %526 : vector<16x1xf32>
    %528 = vector.broadcast %527 : vector<16x1xf32> to vector<16x32xf32>
    %529 = arith.mulf %519, %528 : vector<16x32xf32>
    %530 = vector.broadcast %512 : vector<1x32xf32> to vector<16x32xf32>
    %531 = arith.mulf %529, %530 : vector<16x32xf32>
    %532 = vector.broadcast %513 : vector<1x32xf32> to vector<16x32xf32>
    %533 = arith.addf %531, %532 : vector<16x32xf32>
    %c320 = arith.constant 320 : index
    %c0_158 = arith.constant 0 : index
    %534 = vector.load %arg3[%c320, %c0_158] : memref<544x128xf32, #tpu.memory_space<vmem>>, vector<32x32xf32>
    %c15 = arith.constant 15 : index
    %c0_159 = arith.constant 0 : index
    %535 = vector.load %arg4[%c15, %c0_159] : memref<27x128xf32, #tpu.memory_space<vmem>>, vector<1x32xf32>
    %cst_160 = arith.constant dense<0.000000e+00> : vector<16x32xf32>
    %536 = tpu.matmul %533, %534, %cst_160 {dimension_numbers = #tpu.dot_dimension_numbers<[1], [0], [0], [1], [0, 0, 1, 1], [], []>} : vector<16x32xf32>, vector<32x32xf32>, vector<16x32xf32> -> vector<16x32xf32>
    %537 = vector.broadcast %535 : vector<1x32xf32> to vector<16x32xf32>
    %538 = arith.addf %536, %537 : vector<16x32xf32>
    %c352 = arith.constant 352 : index
    %c0_161 = arith.constant 0 : index
    %539 = vector.load %arg3[%c352, %c0_161] : memref<544x128xf32, #tpu.memory_space<vmem>>, vector<32x64xf32>
    %c16 = arith.constant 16 : index
    %c0_162 = arith.constant 0 : index
    %540 = vector.load %arg4[%c16, %c0_162] : memref<27x128xf32, #tpu.memory_space<vmem>>, vector<1x64xf32>
    %cst_163 = arith.constant dense<0.000000e+00> : vector<16x64xf32>
    %541 = tpu.matmul %1, %539, %cst_163 {dimension_numbers = #tpu.dot_dimension_numbers<[1], [0], [0], [1], [0, 0, 1, 1], [], []>} : vector<16x32xf32>, vector<32x64xf32>, vector<16x64xf32> -> vector<16x64xf32>
    %542 = vector.broadcast %540 : vector<1x64xf32> to vector<16x64xf32>
    %543 = arith.addf %541, %542 : vector<16x64xf32>
    %544 = vector.extract_strided_slice %543 {offsets = [0, 0], sizes = [16, 32], strides = [1, 1]} : vector<16x64xf32> to vector<16x32xf32>
    %545 = vector.extract_strided_slice %543 {offsets = [0, 32], sizes = [16, 32], strides = [1, 1]} : vector<16x64xf32> to vector<16x32xf32>
    %546 = vector.extract_strided_slice %538 {offsets = [0, 0], sizes = [8, 32], strides = [1, 1]} : vector<16x32xf32> to vector<8x32xf32>
    %547 = vector.extract_strided_slice %544 {offsets = [0, 0], sizes = [8, 32], strides = [1, 1]} : vector<16x32xf32> to vector<8x32xf32>
    %548 = vector.extract_strided_slice %545 {offsets = [0, 0], sizes = [8, 32], strides = [1, 1]} : vector<16x32xf32> to vector<8x32xf32>
    %549 = vector.extract_strided_slice %546 {offsets = [0, 0], sizes = [8, 8], strides = [1, 1]} : vector<8x32xf32> to vector<8x8xf32>
    %550 = vector.extract_strided_slice %547 {offsets = [0, 0], sizes = [8, 8], strides = [1, 1]} : vector<8x32xf32> to vector<8x8xf32>
    %551 = vector.extract_strided_slice %548 {offsets = [0, 0], sizes = [8, 8], strides = [1, 1]} : vector<8x32xf32> to vector<8x8xf32>
    %cst_164 = arith.constant dense<0.000000e+00> : vector<8x8xf32>
    %552 = tpu.matmul %549, %550, %cst_164 {dimension_numbers = #tpu.dot_dimension_numbers<[1], [1], [0], [0], [0, 0, 1, 0], [], []>} : vector<8x8xf32>, vector<8x8xf32>, vector<8x8xf32> -> vector<8x8xf32>
    %cst_165 = arith.constant dense<0xFF800000> : vector<8xf32>
    %553 = vector.multi_reduction <maximumf>, %552, %cst_165 [1] : vector<8x8xf32> to vector<8xf32>
    %554 = vector.shape_cast %553 : vector<8xf32> to vector<8x1xf32>
    %555 = vector.broadcast %554 : vector<8x1xf32> to vector<8x8xf32>
    %556 = arith.subf %552, %555 : vector<8x8xf32>
    %557 = math.exp %556 : vector<8x8xf32>
    %cst_166 = arith.constant dense<0.000000e+00> : vector<8xf32>
    %558 = vector.multi_reduction <add>, %557, %cst_166 [1] : vector<8x8xf32> to vector<8xf32>
    %559 = vector.shape_cast %558 : vector<8xf32> to vector<8x1xf32>
    %560 = vector.broadcast %559 : vector<8x1xf32> to vector<8x8xf32>
    %561 = arith.divf %557, %560 : vector<8x8xf32>
    %cst_167 = arith.constant dense<0.000000e+00> : vector<8x8xf32>
    %562 = tpu.matmul %561, %551, %cst_167 {dimension_numbers = #tpu.dot_dimension_numbers<[1], [0], [0], [1], [0, 0, 1, 1], [], []>} : vector<8x8xf32>, vector<8x8xf32>, vector<8x8xf32> -> vector<8x8xf32>
    %563 = vector.extract_strided_slice %546 {offsets = [0, 8], sizes = [8, 8], strides = [1, 1]} : vector<8x32xf32> to vector<8x8xf32>
    %564 = vector.extract_strided_slice %547 {offsets = [0, 8], sizes = [8, 8], strides = [1, 1]} : vector<8x32xf32> to vector<8x8xf32>
    %565 = vector.extract_strided_slice %548 {offsets = [0, 8], sizes = [8, 8], strides = [1, 1]} : vector<8x32xf32> to vector<8x8xf32>
    %cst_168 = arith.constant dense<0.000000e+00> : vector<8x8xf32>
    %566 = tpu.matmul %563, %564, %cst_168 {dimension_numbers = #tpu.dot_dimension_numbers<[1], [1], [0], [0], [0, 0, 1, 0], [], []>} : vector<8x8xf32>, vector<8x8xf32>, vector<8x8xf32> -> vector<8x8xf32>
    %cst_169 = arith.constant dense<0xFF800000> : vector<8xf32>
    %567 = vector.multi_reduction <maximumf>, %566, %cst_169 [1] : vector<8x8xf32> to vector<8xf32>
    %568 = vector.shape_cast %567 : vector<8xf32> to vector<8x1xf32>
    %569 = vector.broadcast %568 : vector<8x1xf32> to vector<8x8xf32>
    %570 = arith.subf %566, %569 : vector<8x8xf32>
    %571 = math.exp %570 : vector<8x8xf32>
    %cst_170 = arith.constant dense<0.000000e+00> : vector<8xf32>
    %572 = vector.multi_reduction <add>, %571, %cst_170 [1] : vector<8x8xf32> to vector<8xf32>
    %573 = vector.shape_cast %572 : vector<8xf32> to vector<8x1xf32>
    %574 = vector.broadcast %573 : vector<8x1xf32> to vector<8x8xf32>
    %575 = arith.divf %571, %574 : vector<8x8xf32>
    %cst_171 = arith.constant dense<0.000000e+00> : vector<8x8xf32>
    %576 = tpu.matmul %575, %565, %cst_171 {dimension_numbers = #tpu.dot_dimension_numbers<[1], [0], [0], [1], [0, 0, 1, 1], [], []>} : vector<8x8xf32>, vector<8x8xf32>, vector<8x8xf32> -> vector<8x8xf32>
    %577 = vector.extract_strided_slice %546 {offsets = [0, 16], sizes = [8, 8], strides = [1, 1]} : vector<8x32xf32> to vector<8x8xf32>
    %578 = vector.extract_strided_slice %547 {offsets = [0, 16], sizes = [8, 8], strides = [1, 1]} : vector<8x32xf32> to vector<8x8xf32>
    %579 = vector.extract_strided_slice %548 {offsets = [0, 16], sizes = [8, 8], strides = [1, 1]} : vector<8x32xf32> to vector<8x8xf32>
    %cst_172 = arith.constant dense<0.000000e+00> : vector<8x8xf32>
    %580 = tpu.matmul %577, %578, %cst_172 {dimension_numbers = #tpu.dot_dimension_numbers<[1], [1], [0], [0], [0, 0, 1, 0], [], []>} : vector<8x8xf32>, vector<8x8xf32>, vector<8x8xf32> -> vector<8x8xf32>
    %cst_173 = arith.constant dense<0xFF800000> : vector<8xf32>
    %581 = vector.multi_reduction <maximumf>, %580, %cst_173 [1] : vector<8x8xf32> to vector<8xf32>
    %582 = vector.shape_cast %581 : vector<8xf32> to vector<8x1xf32>
    %583 = vector.broadcast %582 : vector<8x1xf32> to vector<8x8xf32>
    %584 = arith.subf %580, %583 : vector<8x8xf32>
    %585 = math.exp %584 : vector<8x8xf32>
    %cst_174 = arith.constant dense<0.000000e+00> : vector<8xf32>
    %586 = vector.multi_reduction <add>, %585, %cst_174 [1] : vector<8x8xf32> to vector<8xf32>
    %587 = vector.shape_cast %586 : vector<8xf32> to vector<8x1xf32>
    %588 = vector.broadcast %587 : vector<8x1xf32> to vector<8x8xf32>
    %589 = arith.divf %585, %588 : vector<8x8xf32>
    %cst_175 = arith.constant dense<0.000000e+00> : vector<8x8xf32>
    %590 = tpu.matmul %589, %579, %cst_175 {dimension_numbers = #tpu.dot_dimension_numbers<[1], [0], [0], [1], [0, 0, 1, 1], [], []>} : vector<8x8xf32>, vector<8x8xf32>, vector<8x8xf32> -> vector<8x8xf32>
    %591 = vector.extract_strided_slice %546 {offsets = [0, 24], sizes = [8, 8], strides = [1, 1]} : vector<8x32xf32> to vector<8x8xf32>
    %592 = vector.extract_strided_slice %547 {offsets = [0, 24], sizes = [8, 8], strides = [1, 1]} : vector<8x32xf32> to vector<8x8xf32>
    %593 = vector.extract_strided_slice %548 {offsets = [0, 24], sizes = [8, 8], strides = [1, 1]} : vector<8x32xf32> to vector<8x8xf32>
    %cst_176 = arith.constant dense<0.000000e+00> : vector<8x8xf32>
    %594 = tpu.matmul %591, %592, %cst_176 {dimension_numbers = #tpu.dot_dimension_numbers<[1], [1], [0], [0], [0, 0, 1, 0], [], []>} : vector<8x8xf32>, vector<8x8xf32>, vector<8x8xf32> -> vector<8x8xf32>
    %cst_177 = arith.constant dense<0xFF800000> : vector<8xf32>
    %595 = vector.multi_reduction <maximumf>, %594, %cst_177 [1] : vector<8x8xf32> to vector<8xf32>
    %596 = vector.shape_cast %595 : vector<8xf32> to vector<8x1xf32>
    %597 = vector.broadcast %596 : vector<8x1xf32> to vector<8x8xf32>
    %598 = arith.subf %594, %597 : vector<8x8xf32>
    %599 = math.exp %598 : vector<8x8xf32>
    %cst_178 = arith.constant dense<0.000000e+00> : vector<8xf32>
    %600 = vector.multi_reduction <add>, %599, %cst_178 [1] : vector<8x8xf32> to vector<8xf32>
    %601 = vector.shape_cast %600 : vector<8xf32> to vector<8x1xf32>
    %602 = vector.broadcast %601 : vector<8x1xf32> to vector<8x8xf32>
    %603 = arith.divf %599, %602 : vector<8x8xf32>
    %cst_179 = arith.constant dense<0.000000e+00> : vector<8x8xf32>
    %604 = tpu.matmul %603, %593, %cst_179 {dimension_numbers = #tpu.dot_dimension_numbers<[1], [0], [0], [1], [0, 0, 1, 1], [], []>} : vector<8x8xf32>, vector<8x8xf32>, vector<8x8xf32> -> vector<8x8xf32>
    %605 = tpu.concatenate %562, %576, %590, %604 in 1 : vector<8x8xf32>, vector<8x8xf32>, vector<8x8xf32>, vector<8x8xf32> -> vector<8x32xf32>
    %606 = vector.extract_strided_slice %538 {offsets = [8, 0], sizes = [8, 32], strides = [1, 1]} : vector<16x32xf32> to vector<8x32xf32>
    %607 = vector.extract_strided_slice %544 {offsets = [8, 0], sizes = [8, 32], strides = [1, 1]} : vector<16x32xf32> to vector<8x32xf32>
    %608 = vector.extract_strided_slice %545 {offsets = [8, 0], sizes = [8, 32], strides = [1, 1]} : vector<16x32xf32> to vector<8x32xf32>
    %609 = vector.extract_strided_slice %606 {offsets = [0, 0], sizes = [8, 8], strides = [1, 1]} : vector<8x32xf32> to vector<8x8xf32>
    %610 = vector.extract_strided_slice %607 {offsets = [0, 0], sizes = [8, 8], strides = [1, 1]} : vector<8x32xf32> to vector<8x8xf32>
    %611 = vector.extract_strided_slice %608 {offsets = [0, 0], sizes = [8, 8], strides = [1, 1]} : vector<8x32xf32> to vector<8x8xf32>
    %cst_180 = arith.constant dense<0.000000e+00> : vector<8x8xf32>
    %612 = tpu.matmul %609, %610, %cst_180 {dimension_numbers = #tpu.dot_dimension_numbers<[1], [1], [0], [0], [0, 0, 1, 0], [], []>} : vector<8x8xf32>, vector<8x8xf32>, vector<8x8xf32> -> vector<8x8xf32>
    %cst_181 = arith.constant dense<0xFF800000> : vector<8xf32>
    %613 = vector.multi_reduction <maximumf>, %612, %cst_181 [1] : vector<8x8xf32> to vector<8xf32>
    %614 = vector.shape_cast %613 : vector<8xf32> to vector<8x1xf32>
    %615 = vector.broadcast %614 : vector<8x1xf32> to vector<8x8xf32>
    %616 = arith.subf %612, %615 : vector<8x8xf32>
    %617 = math.exp %616 : vector<8x8xf32>
    %cst_182 = arith.constant dense<0.000000e+00> : vector<8xf32>
    %618 = vector.multi_reduction <add>, %617, %cst_182 [1] : vector<8x8xf32> to vector<8xf32>
    %619 = vector.shape_cast %618 : vector<8xf32> to vector<8x1xf32>
    %620 = vector.broadcast %619 : vector<8x1xf32> to vector<8x8xf32>
    %621 = arith.divf %617, %620 : vector<8x8xf32>
    %cst_183 = arith.constant dense<0.000000e+00> : vector<8x8xf32>
    %622 = tpu.matmul %621, %611, %cst_183 {dimension_numbers = #tpu.dot_dimension_numbers<[1], [0], [0], [1], [0, 0, 1, 1], [], []>} : vector<8x8xf32>, vector<8x8xf32>, vector<8x8xf32> -> vector<8x8xf32>
    %623 = vector.extract_strided_slice %606 {offsets = [0, 8], sizes = [8, 8], strides = [1, 1]} : vector<8x32xf32> to vector<8x8xf32>
    %624 = vector.extract_strided_slice %607 {offsets = [0, 8], sizes = [8, 8], strides = [1, 1]} : vector<8x32xf32> to vector<8x8xf32>
    %625 = vector.extract_strided_slice %608 {offsets = [0, 8], sizes = [8, 8], strides = [1, 1]} : vector<8x32xf32> to vector<8x8xf32>
    %cst_184 = arith.constant dense<0.000000e+00> : vector<8x8xf32>
    %626 = tpu.matmul %623, %624, %cst_184 {dimension_numbers = #tpu.dot_dimension_numbers<[1], [1], [0], [0], [0, 0, 1, 0], [], []>} : vector<8x8xf32>, vector<8x8xf32>, vector<8x8xf32> -> vector<8x8xf32>
    %cst_185 = arith.constant dense<0xFF800000> : vector<8xf32>
    %627 = vector.multi_reduction <maximumf>, %626, %cst_185 [1] : vector<8x8xf32> to vector<8xf32>
    %628 = vector.shape_cast %627 : vector<8xf32> to vector<8x1xf32>
    %629 = vector.broadcast %628 : vector<8x1xf32> to vector<8x8xf32>
    %630 = arith.subf %626, %629 : vector<8x8xf32>
    %631 = math.exp %630 : vector<8x8xf32>
    %cst_186 = arith.constant dense<0.000000e+00> : vector<8xf32>
    %632 = vector.multi_reduction <add>, %631, %cst_186 [1] : vector<8x8xf32> to vector<8xf32>
    %633 = vector.shape_cast %632 : vector<8xf32> to vector<8x1xf32>
    %634 = vector.broadcast %633 : vector<8x1xf32> to vector<8x8xf32>
    %635 = arith.divf %631, %634 : vector<8x8xf32>
    %cst_187 = arith.constant dense<0.000000e+00> : vector<8x8xf32>
    %636 = tpu.matmul %635, %625, %cst_187 {dimension_numbers = #tpu.dot_dimension_numbers<[1], [0], [0], [1], [0, 0, 1, 1], [], []>} : vector<8x8xf32>, vector<8x8xf32>, vector<8x8xf32> -> vector<8x8xf32>
    %637 = vector.extract_strided_slice %606 {offsets = [0, 16], sizes = [8, 8], strides = [1, 1]} : vector<8x32xf32> to vector<8x8xf32>
    %638 = vector.extract_strided_slice %607 {offsets = [0, 16], sizes = [8, 8], strides = [1, 1]} : vector<8x32xf32> to vector<8x8xf32>
    %639 = vector.extract_strided_slice %608 {offsets = [0, 16], sizes = [8, 8], strides = [1, 1]} : vector<8x32xf32> to vector<8x8xf32>
    %cst_188 = arith.constant dense<0.000000e+00> : vector<8x8xf32>
    %640 = tpu.matmul %637, %638, %cst_188 {dimension_numbers = #tpu.dot_dimension_numbers<[1], [1], [0], [0], [0, 0, 1, 0], [], []>} : vector<8x8xf32>, vector<8x8xf32>, vector<8x8xf32> -> vector<8x8xf32>
    %cst_189 = arith.constant dense<0xFF800000> : vector<8xf32>
    %641 = vector.multi_reduction <maximumf>, %640, %cst_189 [1] : vector<8x8xf32> to vector<8xf32>
    %642 = vector.shape_cast %641 : vector<8xf32> to vector<8x1xf32>
    %643 = vector.broadcast %642 : vector<8x1xf32> to vector<8x8xf32>
    %644 = arith.subf %640, %643 : vector<8x8xf32>
    %645 = math.exp %644 : vector<8x8xf32>
    %cst_190 = arith.constant dense<0.000000e+00> : vector<8xf32>
    %646 = vector.multi_reduction <add>, %645, %cst_190 [1] : vector<8x8xf32> to vector<8xf32>
    %647 = vector.shape_cast %646 : vector<8xf32> to vector<8x1xf32>
    %648 = vector.broadcast %647 : vector<8x1xf32> to vector<8x8xf32>
    %649 = arith.divf %645, %648 : vector<8x8xf32>
    %cst_191 = arith.constant dense<0.000000e+00> : vector<8x8xf32>
    %650 = tpu.matmul %649, %639, %cst_191 {dimension_numbers = #tpu.dot_dimension_numbers<[1], [0], [0], [1], [0, 0, 1, 1], [], []>} : vector<8x8xf32>, vector<8x8xf32>, vector<8x8xf32> -> vector<8x8xf32>
    %651 = vector.extract_strided_slice %606 {offsets = [0, 24], sizes = [8, 8], strides = [1, 1]} : vector<8x32xf32> to vector<8x8xf32>
    %652 = vector.extract_strided_slice %607 {offsets = [0, 24], sizes = [8, 8], strides = [1, 1]} : vector<8x32xf32> to vector<8x8xf32>
    %653 = vector.extract_strided_slice %608 {offsets = [0, 24], sizes = [8, 8], strides = [1, 1]} : vector<8x32xf32> to vector<8x8xf32>
    %cst_192 = arith.constant dense<0.000000e+00> : vector<8x8xf32>
    %654 = tpu.matmul %651, %652, %cst_192 {dimension_numbers = #tpu.dot_dimension_numbers<[1], [1], [0], [0], [0, 0, 1, 0], [], []>} : vector<8x8xf32>, vector<8x8xf32>, vector<8x8xf32> -> vector<8x8xf32>
    %cst_193 = arith.constant dense<0xFF800000> : vector<8xf32>
    %655 = vector.multi_reduction <maximumf>, %654, %cst_193 [1] : vector<8x8xf32> to vector<8xf32>
    %656 = vector.shape_cast %655 : vector<8xf32> to vector<8x1xf32>
    %657 = vector.broadcast %656 : vector<8x1xf32> to vector<8x8xf32>
    %658 = arith.subf %654, %657 : vector<8x8xf32>
    %659 = math.exp %658 : vector<8x8xf32>
    %cst_194 = arith.constant dense<0.000000e+00> : vector<8xf32>
    %660 = vector.multi_reduction <add>, %659, %cst_194 [1] : vector<8x8xf32> to vector<8xf32>
    %661 = vector.shape_cast %660 : vector<8xf32> to vector<8x1xf32>
    %662 = vector.broadcast %661 : vector<8x1xf32> to vector<8x8xf32>
    %663 = arith.divf %659, %662 : vector<8x8xf32>
    %cst_195 = arith.constant dense<0.000000e+00> : vector<8x8xf32>
    %664 = tpu.matmul %663, %653, %cst_195 {dimension_numbers = #tpu.dot_dimension_numbers<[1], [0], [0], [1], [0, 0, 1, 1], [], []>} : vector<8x8xf32>, vector<8x8xf32>, vector<8x8xf32> -> vector<8x8xf32>
    %665 = tpu.concatenate %622, %636, %650, %664 in 1 : vector<8x8xf32>, vector<8x8xf32>, vector<8x8xf32>, vector<8x8xf32> -> vector<8x32xf32>
    %666 = tpu.concatenate %605, %665 in 0 : vector<8x32xf32>, vector<8x32xf32> -> vector<16x32xf32>
    %c384 = arith.constant 384 : index
    %c0_196 = arith.constant 0 : index
    %667 = vector.load %arg3[%c384, %c0_196] : memref<544x128xf32, #tpu.memory_space<vmem>>, vector<32x32xf32>
    %c17 = arith.constant 17 : index
    %c0_197 = arith.constant 0 : index
    %668 = vector.load %arg4[%c17, %c0_197] : memref<27x128xf32, #tpu.memory_space<vmem>>, vector<1x32xf32>
    %cst_198 = arith.constant dense<0.000000e+00> : vector<16x32xf32>
    %669 = tpu.matmul %666, %667, %cst_198 {dimension_numbers = #tpu.dot_dimension_numbers<[1], [0], [0], [1], [0, 0, 1, 1], [], []>} : vector<16x32xf32>, vector<32x32xf32>, vector<16x32xf32> -> vector<16x32xf32>
    %670 = vector.broadcast %668 : vector<1x32xf32> to vector<16x32xf32>
    %671 = arith.addf %669, %670 : vector<16x32xf32>
    %672 = arith.addf %533, %671 : vector<16x32xf32>
    %c20 = arith.constant 20 : index
    %c0_199 = arith.constant 0 : index
    %673 = vector.load %arg4[%c20, %c0_199] : memref<27x128xf32, #tpu.memory_space<vmem>>, vector<1x32xf32>
    %c21 = arith.constant 21 : index
    %c0_200 = arith.constant 0 : index
    %674 = vector.load %arg4[%c21, %c0_200] : memref<27x128xf32, #tpu.memory_space<vmem>>, vector<1x32xf32>
    %cst_201 = arith.constant dense<0.000000e+00> : vector<16xf32>
    %675 = vector.multi_reduction <add>, %672, %cst_201 [1] : vector<16x32xf32> to vector<16xf32>
    %676 = vector.shape_cast %675 : vector<16xf32> to vector<16x1xf32>
    %cst_202 = arith.constant 3.200000e+01 : f32
    %677 = vector.broadcast %cst_202 : f32 to vector<16x1xf32>
    %678 = arith.divf %676, %677 : vector<16x1xf32>
    %679 = vector.broadcast %678 : vector<16x1xf32> to vector<16x32xf32>
    %680 = arith.subf %672, %679 : vector<16x32xf32>
    %681 = arith.mulf %680, %680 : vector<16x32xf32>
    %cst_203 = arith.constant dense<0.000000e+00> : vector<16xf32>
    %682 = vector.multi_reduction <add>, %681, %cst_203 [1] : vector<16x32xf32> to vector<16xf32>
    %683 = vector.shape_cast %682 : vector<16xf32> to vector<16x1xf32>
    %cst_204 = arith.constant 3.200000e+01 : f32
    %684 = vector.broadcast %cst_204 : f32 to vector<16x1xf32>
    %685 = arith.divf %683, %684 : vector<16x1xf32>
    %cst_205 = arith.constant 9.99999974E-6 : f32
    %686 = vector.broadcast %cst_205 : f32 to vector<16x1xf32>
    %687 = arith.addf %685, %686 : vector<16x1xf32>
    %688 = math.rsqrt %687 : vector<16x1xf32>
    %689 = vector.broadcast %688 : vector<16x1xf32> to vector<16x32xf32>
    %690 = arith.mulf %680, %689 : vector<16x32xf32>
    %691 = vector.broadcast %673 : vector<1x32xf32> to vector<16x32xf32>
    %692 = arith.mulf %690, %691 : vector<16x32xf32>
    %693 = vector.broadcast %674 : vector<1x32xf32> to vector<16x32xf32>
    %694 = arith.addf %692, %693 : vector<16x32xf32>
    %c416 = arith.constant 416 : index
    %c0_206 = arith.constant 0 : index
    %695 = vector.load %arg3[%c416, %c0_206] : memref<544x128xf32, #tpu.memory_space<vmem>>, vector<32x64xf32>
    %c24 = arith.constant 24 : index
    %c0_207 = arith.constant 0 : index
    %696 = vector.load %arg4[%c24, %c0_207] : memref<27x128xf32, #tpu.memory_space<vmem>>, vector<1x64xf32>
    %cst_208 = arith.constant dense<0.000000e+00> : vector<16x64xf32>
    %697 = tpu.matmul %694, %695, %cst_208 {dimension_numbers = #tpu.dot_dimension_numbers<[1], [0], [0], [1], [0, 0, 1, 1], [], []>} : vector<16x32xf32>, vector<32x64xf32>, vector<16x64xf32> -> vector<16x64xf32>
    %698 = vector.broadcast %696 : vector<1x64xf32> to vector<16x64xf32>
    %699 = arith.addf %697, %698 : vector<16x64xf32>
    %cst_209 = arith.constant 0.000000e+00 : f32
    %700 = vector.broadcast %cst_209 : f32 to vector<16x64xf32>
    %701 = arith.maximumf %699, %700 : vector<16x64xf32>
    %c448 = arith.constant 448 : index
    %c0_210 = arith.constant 0 : index
    %702 = vector.load %arg3[%c448, %c0_210] : memref<544x128xf32, #tpu.memory_space<vmem>>, vector<64x32xf32>
    %c25 = arith.constant 25 : index
    %c0_211 = arith.constant 0 : index
    %703 = vector.load %arg4[%c25, %c0_211] : memref<27x128xf32, #tpu.memory_space<vmem>>, vector<1x32xf32>
    %cst_212 = arith.constant dense<0.000000e+00> : vector<16x32xf32>
    %704 = tpu.matmul %701, %702, %cst_212 {dimension_numbers = #tpu.dot_dimension_numbers<[1], [0], [0], [1], [0, 0, 1, 1], [], []>} : vector<16x64xf32>, vector<64x32xf32>, vector<16x32xf32> -> vector<16x32xf32>
    %705 = vector.broadcast %703 : vector<1x32xf32> to vector<16x32xf32>
    %706 = arith.addf %704, %705 : vector<16x32xf32>
    %707 = arith.addf %694, %706 : vector<16x32xf32>
    %c22 = arith.constant 22 : index
    %c0_213 = arith.constant 0 : index
    %708 = vector.load %arg4[%c22, %c0_213] : memref<27x128xf32, #tpu.memory_space<vmem>>, vector<1x32xf32>
    %c23 = arith.constant 23 : index
    %c0_214 = arith.constant 0 : index
    %709 = vector.load %arg4[%c23, %c0_214] : memref<27x128xf32, #tpu.memory_space<vmem>>, vector<1x32xf32>
    %cst_215 = arith.constant dense<0.000000e+00> : vector<16xf32>
    %710 = vector.multi_reduction <add>, %707, %cst_215 [1] : vector<16x32xf32> to vector<16xf32>
    %711 = vector.shape_cast %710 : vector<16xf32> to vector<16x1xf32>
    %cst_216 = arith.constant 3.200000e+01 : f32
    %712 = vector.broadcast %cst_216 : f32 to vector<16x1xf32>
    %713 = arith.divf %711, %712 : vector<16x1xf32>
    %714 = vector.broadcast %713 : vector<16x1xf32> to vector<16x32xf32>
    %715 = arith.subf %707, %714 : vector<16x32xf32>
    %716 = arith.mulf %715, %715 : vector<16x32xf32>
    %cst_217 = arith.constant dense<0.000000e+00> : vector<16xf32>
    %717 = vector.multi_reduction <add>, %716, %cst_217 [1] : vector<16x32xf32> to vector<16xf32>
    %718 = vector.shape_cast %717 : vector<16xf32> to vector<16x1xf32>
    %cst_218 = arith.constant 3.200000e+01 : f32
    %719 = vector.broadcast %cst_218 : f32 to vector<16x1xf32>
    %720 = arith.divf %718, %719 : vector<16x1xf32>
    %cst_219 = arith.constant 9.99999974E-6 : f32
    %721 = vector.broadcast %cst_219 : f32 to vector<16x1xf32>
    %722 = arith.addf %720, %721 : vector<16x1xf32>
    %723 = math.rsqrt %722 : vector<16x1xf32>
    %724 = vector.broadcast %723 : vector<16x1xf32> to vector<16x32xf32>
    %725 = arith.mulf %715, %724 : vector<16x32xf32>
    %726 = vector.broadcast %708 : vector<1x32xf32> to vector<16x32xf32>
    %727 = arith.mulf %725, %726 : vector<16x32xf32>
    %728 = vector.broadcast %709 : vector<1x32xf32> to vector<16x32xf32>
    %729 = arith.addf %727, %728 : vector<16x32xf32>
    %c512 = arith.constant 512 : index
    %c0_220 = arith.constant 0 : index
    %730 = vector.load %arg3[%c512, %c0_220] : memref<544x128xf32, #tpu.memory_space<vmem>>, vector<32x128xf32>
    %c26 = arith.constant 26 : index
    %c0_221 = arith.constant 0 : index
    %731 = vector.load %arg4[%c26, %c0_221] : memref<27x128xf32, #tpu.memory_space<vmem>>, vector<1x128xf32>
    %cst_222 = arith.constant dense<0.000000e+00> : vector<16x128xf32>
    %732 = tpu.matmul %729, %730, %cst_222 {dimension_numbers = #tpu.dot_dimension_numbers<[1], [0], [0], [1], [0, 0, 1, 1], [], []>} : vector<16x32xf32>, vector<32x128xf32>, vector<16x128xf32> -> vector<16x128xf32>
    %733 = vector.broadcast %731 : vector<1x128xf32> to vector<16x128xf32>
    %734 = arith.addf %732, %733 : vector<16x128xf32>
    %c0_223 = arith.constant 0 : index
    %c0_224 = arith.constant 0 : index
    %735 = vector.load %arg5[%c0_223, %c0_224] : memref<16x128xf32, #tpu.memory_space<vmem>>, vector<16x128xf32>
    tpu.vector_store %arg5[%c0_223, %c0_224], %734 {strides = array<i32>} : memref<16x128xf32, #tpu.memory_space<vmem>>, vector<16x128xf32>,
    return
  }
  func.func @transform_0(%arg0: i32) -> (i32, i32) {
    %c0_i32 = arith.constant 0 : i32
    %c0_i32_0 = arith.constant 0 : i32
    %c0_i32_1 = arith.constant 0 : i32
    return %c0_i32, %c0_i32_0 : i32, i32
  }
  func.func @transform_1(%arg0: i32) -> (i32, i32) {
    %c0_i32 = arith.constant 0 : i32
    %c0_i32_0 = arith.constant 0 : i32
    %c0_i32_1 = arith.constant 0 : i32
    return %c0_i32, %c0_i32_0 : i32, i32
  }
  func.func @transform_2(%arg0: i32) -> (i32, i32) {
    %c0_i32 = arith.constant 0 : i32
    %c0_i32_0 = arith.constant 0 : i32
    %c0_i32_1 = arith.constant 0 : i32
    return %c0_i32, %c0_i32_0 : i32, i32
  }
  func.func @transform_3(%arg0: i32) -> (i32, i32) {
    %c0_i32 = arith.constant 0 : i32
    %c0_i32_0 = arith.constant 0 : i32
    %c0_i32_1 = arith.constant 0 : i32
    return %c0_i32, %c0_i32_0 : i32, i32
  }
  func.func @transform_4(%arg0: i32) -> (i32, i32) {
    %c0_i32 = arith.constant 0 : i32
    %c0_i32_0 = arith.constant 0 : i32
    %c0_i32_1 = arith.constant 0 : i32
    return %c0_i32, %c0_i32_0 : i32, i32
  }
}

</mosaic_0001>

<llo_original>
// kernel: decoder_forward.1
$region0: #{decoder_forward.1}
  #allocation0 [shape = 'u32[]', space=smem, size = 0x4, offset = 0x4, fixed_abs, tag = 'smem constant byte address 0x4 - core index']
  #allocation1 [shape = 'u32[144,128]{1,0:T(1,128)}', space=vmem, size = 0x12000, scoped, tag = 'internal scratch']
  %s0 = inlined_call_operand.vmem [shape: f32[16,32], index: 0, kind: input, shape index: {}]
  %s1 = inlined_call_operand.vmem [shape: f32[16,32], index: 1, kind: input, shape index: {}]
  %s2 = inlined_call_operand.hbm [shape: f32[544,128], index: 2, kind: input, shape index: {}]
  %s3 = inlined_call_operand.vmem [shape: f32[27,128], index: 3, kind: input, shape index: {}]
  %s4 = inlined_call_operand.hbm [shape: f32[16,128], index: 4, kind: output, shape index: {}]
  %s5 = sld [smem:[#allocation0]]
  $region30: #{decoder_forward.1} parent=0
    _
  %s7 = ssub.s32 1, %s5
  %s8 = scalar_select 0, %s7, %s5
  $region1: #{decoder_forward.1} parent=0
    #allocation2 [shape = 'u8[278528]{0}', space=vmem, size = 0x44000, scoped, tag = 'input window, operand 2, single buffered']
    #allocation3 [shape = 's32[1]{0}', space=sflag, size = 0x4, scoped, tag = 'scoped memory for decoder_forward.1']
    #allocation4 [shape = 's32[1]{0}', space=sflag, size = 0x4, scoped, tag = 'scoped memory for decoder_forward.1']
    #allocation5 [shape = 'u8[8192]{0}', space=vmem, size = 0x2000, scoped, tag = 'output window, operand 0, single buffered']
    %9 = vsyncpa [#allocation3], 0
    %10 = vsyncpa [#allocation4], 0
    // Predicated region
    $region2: #{decoder_forward.1} parent=1 // pred_check
      _
    $region3: #{decoder_forward.1} parent=1 // pred_check_branch
      %12 = sbr.rel (0) target = $region5
    $region4: #{decoder_forward.1} parent=1 // pred_region
      _
    $region5: #{decoder_forward.1} parent=1 // pred_fallthru
      _
    // Predicated region
    $region6: #{decoder_forward.1} parent=1 // pred_check
      _
    $region7: #{decoder_forward.1} parent=1 // pred_check_branch
      %14 = sbr.rel (0) target = $region9
    $region8: #{decoder_forward.1} parent=1 // pred_region
      _
    $region9: #{decoder_forward.1} parent=1 // pred_fallthru
      _
    // Predicated region
    $region10: #{decoder_forward.1} parent=1 // pred_check
      _
    $region11: #{decoder_forward.1} parent=1 // pred_check_branch
      %16 = sbr.rel (0) target = $region13
    $region12: #{decoder_forward.1} parent=1 // pred_region
      %s18 = ssub.s32 8704, 8704
      %19 = vsyncadd [#allocation3], %s18
      %s20 = sshll.u32 [#allocation2], 4
      %s21 = int_to_ptr.vmem [resolvable:$true] %s20
      %26 = dma.hbm_to_vmem [thread:$0]  %s2, 8704, %s21, [#allocation3], 128, 128, 8
    $region13: #{decoder_forward.1} parent=1 // pred_fallthru
      _
    // Predicated region
    $region14: #{decoder_forward.1} parent=1 // pred_check
      _
    $region15: #{decoder_forward.1} parent=1 // pred_check_branch
      %28 = sbr.rel (0) target = $region17
    $region16: #{decoder_forward.1} parent=1 // pred_region
      _
    $region17: #{decoder_forward.1} parent=1 // pred_fallthru
      _
    // Predicated region
    $region18: #{decoder_forward.1} parent=1 // pred_check
      _
    $region19: #{decoder_forward.1} parent=1 // pred_check_branch
      %30 = sbr.rel (0) target = $region21
    $region20: #{decoder_forward.1} parent=1 // pred_region
      %31 = dma.done [#allocation3], 8704
    $region21: #{decoder_forward.1} parent=1 // pred_fallthru
      _
    %v32 = vld [vmem:[%s0] sm:$0xff]
    %v33 = vld [vmem:[%s0 + $0x8] sm:$0xff]
    %v34 = vld [vmem:[%s1] sm:$0xff]
    %v35 = vld [vmem:[%s1 + $0x8] sm:$0xff]
    %v36 = vlaneseq
    %v37 = vshrl.u32 %v36, 7
    %v38 = vlaneseq
    %v39 = vand.u32 %v38, 127
    %vm40 = vcmp.ge.s32.totalorder %v37, %v39
    %v41 = vsel %vm40, 0.0, -1e+09
    %v42 = vld [vmem:[#allocation2] sm:$0xff]
    %v43 = vld [vmem:[#allocation2 + $0x8] sm:$0xff]
    %v44 = vld [vmem:[#allocation2 + $0x10] sm:$0xff]
    %v45 = vld [vmem:[#allocation2 + $0x18] sm:$0xff]
    %v46 = vld [vmem:[%s3] sm:$0x1]
    %v47 = vlaneseq
    %v48 = vshrl.u32 %v47, 7
    %v49 = vsub.s32 0, %v48
    %v50 = vrot.slane %v46, %v49
    %vm51 = vcmask 261120
    %v53 = vsel %vm51, %v32, 0
    %v56 = vsel %vm51, %v33, 0
    %58 = vmatprep.subr.mxu0 0.0
    %59 = vmatpush1.msra.mxu0 %v42
    %60 = vmatprep.subr.mxu0 0.0
    %61 = vmatpush1.msra.mxu0 %v43
    %62 = vmatprep.subr.mxu0 0.0
    %63 = vmatpush1.msra.mxu0 %v44
    %64 = vmatprep.subr.mxu0 0.0
    %65 = vmatpush1.msra.mxu0 %v45
    %66 = vmatprep.subr.mxu0 0.0
    %67 = vmatpush1.msra.mxu0 0.0
    %68 = vmatprep.subr.mxu0 0.0
    %69 = vmatpush1.msra.mxu0 0.0
    %70 = vmatprep.subr.mxu0 0.0
    %71 = vmatpush1.msra.mxu0 0.0
    %72 = vmatprep.subr.mxu0 0.0
    %73 = vmatpush1.msra.mxu0 0.0
    %74 = vmatprep.subr.mxu0 0.0
    %75 = vmatpush1.msra.mxu0 0.0
    %76 = vmatprep.subr.mxu0 0.0
    %77 = vmatpush1.msra.mxu0 0.0
    %78 = vmatprep.subr.mxu0 0.0
    %79 = vmatpush1.msra.mxu0 0.0
    %80 = vmatprep.subr.mxu0 0.0
    %81 = vmatpush1.msra.mxu0 0.0
    %82 = vmatprep.subr.mxu0 0.0
    %83 = vmatpush1.msra.mxu0 0.0
    %84 = vmatprep.subr.mxu0 0.0
    %85 = vmatpush1.msra.mxu0 0.0
    %86 = vmatprep.subr.mxu0 0.0
    %87 = vmatpush1.msra.mxu0 0.0
    %88 = vmatprep.subr.mxu0 0.0
    %89 = vmatpush1.msra.mxu0 0.0
    %90 = vmatprep.subr.mxu0 0.0
    %91 = vmatpush1.msra.mxu0 0.0
    %92 = vmatprep.subr.mxu0 0.0
    %93 = vmatpush1.msra.mxu0 0.0
    %94 = vmatprep.subr.mxu0 0.0
    %95 = vmatpush1.msra.mxu0 0.0
    %96 = vmatprep.subr.mxu0 0.0
    %97 = vmatpush1.msra.mxu0 0.0
    %98 = vmatprep.subr.mxu0 0.0
    %99 = vmatpush1.msra.mxu0 0.0
    %100 = vmatprep.subr.mxu0 0.0
    %101 = vmatpush1.msra.mxu0 0.0
    %102 = vmatprep.subr.mxu0 0.0
    %103 = vmatpush1.msra.mxu0 0.0
    %104 = vmatprep.subr.mxu0 0.0
    %105 = vmatpush1.msra.mxu0 0.0
    %106 = vmatprep.subr.mxu0 0.0
    %107 = vmatpush1.msra.mxu0 0.0
    %108 = vmatprep.subr.mxu0 0.0
    %109 = vmatpush1.msra.mxu0 0.0
    %110 = vmatprep.subr.mxu0 0.0
    %111 = vmatpush1.msra.mxu0 0.0
    %112 = vmatprep.subr.mxu0 0.0
    %113 = vmatpush1.msra.mxu0 0.0
    %114 = vmatprep.subr.mxu0 0.0
    %115 = vmatpush1.msra.mxu0 0.0
    %116 = vmatprep.subr.mxu0 0.0
    %117 = vmatpush1.msra.mxu0 0.0
    %118 = vmatprep.subr.mxu0 0.0
    %119 = vmatpush1.msra.mxu0 0.0
    %120 = vmatprep.subr.mxu0 0.0
    %121 = vmatpush1.msra.mxu0 0.0
    %122 = vmatprep.mubr.f32.mxu0 0.0
    %123 = vmatmul.mubr.f32.gmra.mrb[0].mxu0 %v53
    %v124 = vpop.f32.mrb[0].mxu0
    %v125 = vadd.f32 %v50, %v124
    %v126 = vpop.f32.mrb[0].mxu0
    %127 = vmatprep.mubr.f32.mxu0 0.0
    %128 = vmatmul.mubr.f32.gmra.mrb[0].mxu0 %v56
    %v129 = vpop.f32.mrb[0].mxu0
    %v130 = vadd.f32 %v50, %v129
    %v131 = vpop.f32.mrb[0].mxu0
    %132 = vdwg.mxu0
    %134 = vrot.lane.b32.xlu0 %v125, 96
    %v135 = vpop.permute.xlu0 %134
    %vm136 = vcmask 64512
    %v137 = vsel %vm136, %v125, 0
    %v139 = vsel %vm136, %v135, 0
    %141 = vmatprep.subr.mxu0 0.0
    %142 = vmatpush1.xpose.msra.mxu0 %v139
    %143 = vmatprep.subr.mxu0 0.0
    %144 = vmatpush1.xpose.msra.mxu0 0.0
    %145 = vmatprep.subr.mxu0 0.0
    %146 = vmatpush1.xpose.msra.mxu0 0.0
    %147 = vmatprep.subr.mxu0 0.0
    %148 = vmatpush1.xpose.msra.mxu0 0.0
    %149 = vmatprep.subr.mxu0 0.0
    %150 = vmatpush1.xpose.msra.mxu0 0.0
    %151 = vmatprep.subr.mxu0 0.0
    %152 = vmatpush1.xpose.msra.mxu0 0.0
    %153 = vmatprep.subr.mxu0 0.0
    %154 = vmatpush1.xpose.msra.mxu0 0.0
    %155 = vmatprep.subr.mxu0 0.0
    %156 = vmatpush1.xpose.msra.mxu0 0.0
    %157 = vmatprep.subr.mxu0 0.0
    %158 = vmatpush1.xpose.msra.mxu0 0.0
    %159 = vmatprep.subr.mxu0 0.0
    %160 = vmatpush1.xpose.msra.mxu0 0.0
    %161 = vmatprep.subr.mxu0 0.0
    %162 = vmatpush1.xpose.msra.mxu0 0.0
    %163 = vmatprep.subr.mxu0 0.0
    %164 = vmatpush1.xpose.msra.mxu0 0.0
    %165 = vmatprep.subr.mxu0 0.0
    %166 = vmatpush1.xpose.msra.mxu0 0.0
    %167 = vmatprep.subr.mxu0 0.0
    %168 = vmatpush1.xpose.msra.mxu0 0.0
    %169 = vmatprep.subr.mxu0 0.0
    %170 = vmatpush1.xpose.msra.mxu0 0.0
    %171 = vmatprep.subr.mxu0 0.0
    %172 = vmatpush1.xpose.msra.mxu0 0.0
    %173 = vmatprep.subr.mxu0 0.0
    %174 = vmatpush1.xpose.msra.mxu0 0.0
    %175 = vmatprep.subr.mxu0 0.0
    %176 = vmatpush1.xpose.msra.mxu0 0.0
    %177 = vmatprep.subr.mxu0 0.0
    %178 = vmatpush1.xpose.msra.mxu0 0.0
    %179 = vmatprep.subr.mxu0 0.0
    %180 = vmatpush1.xpose.msra.mxu0 0.0
    %181 = vmatprep.subr.mxu0 0.0
    %182 = vmatpush1.xpose.msra.mxu0 0.0
    %183 = vmatprep.subr.mxu0 0.0
    %184 = vmatpush1.xpose.msra.mxu0 0.0
    %185 = vmatprep.subr.mxu0 0.0
    %186 = vmatpush1.xpose.msra.mxu0 0.0
    %187 = vmatprep.subr.mxu0 0.0
    %188 = vmatpush1.xpose.msra.mxu0 0.0
    %189 = vmatprep.subr.mxu0 0.0
    %190 = vmatpush1.xpose.msra.mxu0 0.0
    %191 = vmatprep.subr.mxu0 0.0
    %192 = vmatpush1.xpose.msra.mxu0 0.0
    %193 = vmatprep.subr.mxu0 0.0
    %194 = vmatpush1.xpose.msra.mxu0 0.0
    %195 = vmatprep.subr.mxu0 0.0
    %196 = vmatpush1.xpose.msra.mxu0 0.0
    %197 = vmatprep.subr.mxu0 0.0
    %198 = vmatpush1.xpose.msra.mxu0 0.0
    %199 = vmatprep.subr.mxu0 0.0
    %200 = vmatpush1.xpose.msra.mxu0 0.0
    %201 = vmatprep.subr.mxu0 0.0
    %202 = vmatpush1.xpose.msra.mxu0 0.0
    %203 = vmatprep.subr.mxu0 0.0
    %204 = vmatpush1.xpose.msra.mxu0 0.0
    %205 = vmatprep.mubr.f32.mxu0 0.0
    %206 = vmatmul.mubr.f32.gmra.mrb[0].mxu0 %v137
    %v207 = vpop.f32.mrb[0].mxu0
    %v208 = vadd.f32 %v41, %v207
    %v209 = vpop.f32.mrb[0].mxu0
    %210 = vdwg.mxu0
    %v211 = vsel %vm136, %v208, -inf
    %212 = vmax.xlane.f32.xlu0 %v211
    %v213 = vpop.xlane.xlu0 %212
    %v214 = vsub.f32 %v208, %v213
    %v215 = vmul.f32 %v214, 1.442695
    %v216 = vpow.pop %v215
    %v217 = vsel %vm136, %v216, 0.0
    %218 = vadd.xlane.f32.xlu0 %v217
    %v219 = vpop.xlane.xlu0 %218
    %v220 = vrcp.pop %v219
    %v221 = vmul.f32 %v216, %v220
    %222 = vrot.lane.b32.xlu0 %v125, 64
    %v223 = vpop.permute.xlu0 %222
    %v226 = vsel %vm136, %v221, 0
    %228 = vmatprep.subr.mxu0 0.0
    %229 = vmatpush1.msra.mxu0 %v223
    %230 = vmatprep.subr.mxu0 0.0
    %231 = vmatpush1.msra.mxu0 0.0
    %232 = vmatprep.subr.mxu0 0.0
    %233 = vmatpush1.msra.mxu0 0.0
    %234 = vmatprep.subr.mxu0 0.0
    %235 = vmatpush1.msra.mxu0 0.0
    %236 = vmatprep.subr.mxu0 0.0
    %237 = vmatpush1.msra.mxu0 0.0
    %238 = vmatprep.subr.mxu0 0.0
    %239 = vmatpush1.msra.mxu0 0.0
    %240 = vmatprep.subr.mxu0 0.0
    %241 = vmatpush1.msra.mxu0 0.0
    %242 = vmatprep.subr.mxu0 0.0
    %243 = vmatpush1.msra.mxu0 0.0
    %244 = vmatprep.subr.mxu0 0.0
    %245 = vmatpush1.msra.mxu0 0.0
    %246 = vmatprep.subr.mxu0 0.0
    %247 = vmatpush1.msra.mxu0 0.0
    %248 = vmatprep.subr.mxu0 0.0
    %249 = vmatpush1.msra.mxu0 0.0
    %250 = vmatprep.subr.mxu0 0.0
    %251 = vmatpush1.msra.mxu0 0.0
    %252 = vmatprep.subr.mxu0 0.0
    %253 = vmatpush1.msra.mxu0 0.0
    %254 = vmatprep.subr.mxu0 0.0
    %255 = vmatpush1.msra.mxu0 0.0
    %256 = vmatprep.subr.mxu0 0.0
    %257 = vmatpush1.msra.mxu0 0.0
    %258 = vmatprep.subr.mxu0 0.0
    %259 = vmatpush1.msra.mxu0 0.0
    %260 = vmatprep.subr.mxu0 0.0
    %261 = vmatpush1.msra.mxu0 0.0
    %262 = vmatprep.subr.mxu0 0.0
    %263 = vmatpush1.msra.mxu0 0.0
    %264 = vmatprep.subr.mxu0 0.0
    %265 = vmatpush1.msra.mxu0 0.0
    %266 = vmatprep.subr.mxu0 0.0
    %267 = vmatpush1.msra.mxu0 0.0
    %268 = vmatprep.subr.mxu0 0.0
    %269 = vmatpush1.msra.mxu0 0.0
    %270 = vmatprep.subr.mxu0 0.0
    %271 = vmatpush1.msra.mxu0 0.0
    %272 = vmatprep.subr.mxu0 0.0
    %273 = vmatpush1.msra.mxu0 0.0
    %274 = vmatprep.subr.mxu0 0.0
    %275 = vmatpush1.msra.mxu0 0.0
    %276 = vmatprep.subr.mxu0 0.0
    %277 = vmatpush1.msra.mxu0 0.0
    %278 = vmatprep.subr.mxu0 0.0
    %279 = vmatpush1.msra.mxu0 0.0
    %280 = vmatprep.subr.mxu0 0.0
    %281 = vmatpush1.msra.mxu0 0.0
    %282 = vmatprep.subr.mxu0 0.0
    %283 = vmatpush1.msra.mxu0 0.0
    %284 = vmatprep.subr.mxu0 0.0
    %285 = vmatpush1.msra.mxu0 0.0
    %286 = vmatprep.subr.mxu0 0.0
    %287 = vmatpush1.msra.mxu0 0.0
    %288 = vmatprep.subr.mxu0 0.0
    %289 = vmatpush1.msra.mxu0 0.0
    %290 = vmatprep.subr.mxu0 0.0
    %291 = vmatpush1.msra.mxu0 0.0
    %292 = vmatprep.mubr.f32.mxu0 0.0
    %293 = vmatmul.mubr.f32.gmra.mrb[0].mxu0 %v226
    %v294 = vpop.f32.mrb[0].mxu0
    %v295 = vadd.f32 0.0, %v294
    %v296 = vpop.f32.mrb[0].mxu0
    %297 = vdwg.mxu0
    %298 = vrot.lane.b32.xlu0 %v125, 120
    %v299 = vpop.permute.xlu0 %298
    %300 = vrot.lane.b32.xlu0 %v125, 88
    %v301 = vpop.permute.xlu0 %300
    %v302 = vsel %vm136, %v299, 0
    %v304 = vsel %vm136, %v301, 0
    %306 = vmatprep.subr.mxu0 0.0
    %307 = vmatpush1.xpose.msra.mxu0 %v304
    %308 = vmatprep.subr.mxu0 0.0
    %309 = vmatpush1.xpose.msra.mxu0 0.0
    %310 = vmatprep.subr.mxu0 0.0
    %311 = vmatpush1.xpose.msra.mxu0 0.0
    %312 = vmatprep.subr.mxu0 0.0
    %313 = vmatpush1.xpose.msra.mxu0 0.0
    %314 = vmatprep.subr.mxu0 0.0
    %315 = vmatpush1.xpose.msra.mxu0 0.0
    %316 = vmatprep.subr.mxu0 0.0
    %317 = vmatpush1.xpose.msra.mxu0 0.0
    %318 = vmatprep.subr.mxu0 0.0
    %319 = vmatpush1.xpose.msra.mxu0 0.0
    %320 = vmatprep.subr.mxu0 0.0
    %321 = vmatpush1.xpose.msra.mxu0 0.0
    %322 = vmatprep.subr.mxu0 0.0
    %323 = vmatpush1.xpose.msra.mxu0 0.0
    %324 = vmatprep.subr.mxu0 0.0
    %325 = vmatpush1.xpose.msra.mxu0 0.0
    %326 = vmatprep.subr.mxu0 0.0
    %327 = vmatpush1.xpose.msra.mxu0 0.0
    %328 = vmatprep.subr.mxu0 0.0
    %329 = vmatpush1.xpose.msra.mxu0 0.0
    %330 = vmatprep.subr.mxu0 0.0
    %331 = vmatpush1.xpose.msra.mxu0 0.0
    %332 = vmatprep.subr.mxu0 0.0
    %333 = vmatpush1.xpose.msra.mxu0 0.0
    %334 = vmatprep.subr.mxu0 0.0
    %335 = vmatpush1.xpose.msra.mxu0 0.0
    %336 = vmatprep.subr.mxu0 0.0
    %337 = vmatpush1.xpose.msra.mxu0 0.0
    %338 = vmatprep.subr.mxu0 0.0
    %339 = vmatpush1.xpose.msra.mxu0 0.0
    %340 = vmatprep.subr.mxu0 0.0
    %341 = vmatpush1.xpose.msra.mxu0 0.0
    %342 = vmatprep.subr.mxu0 0.0
    %343 = vmatpush1.xpose.msra.mxu0 0.0
    %344 = vmatprep.subr.mxu0 0.0
    %345 = vmatpush1.xpose.msra.mxu0 0.0
    %346 = vmatprep.subr.mxu0 0.0
    %347 = vmatpush1.xpose.msra.mxu0 0.0
    %348 = vmatprep.subr.mxu0 0.0
    %349 = vmatpush1.xpose.msra.mxu0 0.0
    %350 = vmatprep.subr.mxu0 0.0
    %351 = vmatpush1.xpose.msra.mxu0 0.0
    %352 = vmatprep.subr.mxu0 0.0
    %353 = vmatpush1.xpose.msra.mxu0 0.0
    %354 = vmatprep.subr.mxu0 0.0
    %355 = vmatpush1.xpose.msra.mxu0 0.0
    %356 = vmatprep.subr.mxu0 0.0
    %357 = vmatpush1.xpose.msra.mxu0 0.0
    %358 = vmatprep.subr.mxu0 0.0
    %359 = vmatpush1.xpose.msra.mxu0 0.0
    %360 = vmatprep.subr.mxu0 0.0
    %361 = vmatpush1.xpose.msra.mxu0 0.0
    %362 = vmatprep.subr.mxu0 0.0
    %363 = vmatpush1.xpose.msra.mxu0 0.0
    %364 = vmatprep.subr.mxu0 0.0
    %365 = vmatpush1.xpose.msra.mxu0 0.0
    %366 = vmatprep.subr.mxu0 0.0
    %367 = vmatpush1.xpose.msra.mxu0 0.0
    %368 = vmatprep.subr.mxu0 0.0
    %369 = vmatpush1.xpose.msra.mxu0 0.0
    %370 = vmatprep.mubr.f32.mxu0 0.0
    %371 = vmatmul.mubr.f32.gmra.mrb[0].mxu0 %v302
    %v372 = vpop.f32.mrb[0].mxu0
    %v373 = vadd.f32 %v41, %v372
    %v374 = vpop.f32.mrb[0].mxu0
    %375 = vdwg.mxu0
    %v376 = vsel %vm136, %v373, -inf
    %377 = vmax.xlane.f32.xlu0 %v376
    %v378 = vpop.xlane.xlu0 %377
    %v379 = vsub.f32 %v373, %v378
    %v380 = vmul.f32 %v379, 1.442695
    %v381 = vpow.pop %v380
    %v382 = vsel %vm136, %v381, 0.0
    %383 = vadd.xlane.f32.xlu0 %v382
    %v384 = vpop.xlane.xlu0 %383
    %v385 = vrcp.pop %v384
    %v386 = vmul.f32 %v381, %v385
    %387 = vrot.lane.b32.xlu0 %v125, 56
    %v388 = vpop.permute.xlu0 %387
    %v391 = vsel %vm136, %v386, 0
    %393 = vmatprep.subr.mxu0 0.0
    %394 = vmatpush1.msra.mxu0 %v388
    %395 = vmatprep.subr.mxu0 0.0
    %396 = vmatpush1.msra.mxu0 0.0
    %397 = vmatprep.subr.mxu0 0.0
    %398 = vmatpush1.msra.mxu0 0.0
    %399 = vmatprep.subr.mxu0 0.0
    %400 = vmatpush1.msra.mxu0 0.0
    %401 = vmatprep.subr.mxu0 0.0
    %402 = vmatpush1.msra.mxu0 0.0
    %403 = vmatprep.subr.mxu0 0.0
    %404 = vmatpush1.msra.mxu0 0.0
    %405 = vmatprep.subr.mxu0 0.0
    %406 = vmatpush1.msra.mxu0 0.0
    %407 = vmatprep.subr.mxu0 0.0
    %408 = vmatpush1.msra.mxu0 0.0
    %409 = vmatprep.subr.mxu0 0.0
    %410 = vmatpush1.msra.mxu0 0.0
    %411 = vmatprep.subr.mxu0 0.0
    %412 = vmatpush1.msra.mxu0 0.0
    %413 = vmatprep.subr.mxu0 0.0
    %414 = vmatpush1.msra.mxu0 0.0
    %415 = vmatprep.subr.mxu0 0.0
    %416 = vmatpush1.msra.mxu0 0.0
    %417 = vmatprep.subr.mxu0 0.0
    %418 = vmatpush1.msra.mxu0 0.0
    %419 = vmatprep.subr.mxu0 0.0
    %420 = vmatpush1.msra.mxu0 0.0
    %421 = vmatprep.subr.mxu0 0.0
    %422 = vmatpush1.msra.mxu0 0.0
    %423 = vmatprep.subr.mxu0 0.0
    %424 = vmatpush1.msra.mxu0 0.0
    %425 = vmatprep.subr.mxu0 0.0
    %426 = vmatpush1.msra.mxu0 0.0
    %427 = vmatprep.subr.mxu0 0.0
    %428 = vmatpush1.msra.mxu0 0.0
    %429 = vmatprep.subr.mxu0 0.0
    %430 = vmatpush1.msra.mxu0 0.0
    %431 = vmatprep.subr.mxu0 0.0
    %432 = vmatpush1.msra.mxu0 0.0
    %433 = vmatprep.subr.mxu0 0.0
    %434 = vmatpush1.msra.mxu0 0.0
    %435 = vmatprep.subr.mxu0 0.0
    %436 = vmatpush1.msra.mxu0 0.0
    %437 = vmatprep.subr.mxu0 0.0
    %438 = vmatpush1.msra.mxu0 0.0
    %439 = vmatprep.subr.mxu0 0.0
    %440 = vmatpush1.msra.mxu0 0.0
    %441 = vmatprep.subr.mxu0 0.0
    %442 = vmatpush1.msra.mxu0 0.0
    %443 = vmatprep.subr.mxu0 0.0
    %444 = vmatpush1.msra.mxu0 0.0
    %445 = vmatprep.subr.mxu0 0.0
    %446 = vmatpush1.msra.mxu0 0.0
    %447 = vmatprep.subr.mxu0 0.0
    %448 = vmatpush1.msra.mxu0 0.0
    %449 = vmatprep.subr.mxu0 0.0
    %450 = vmatpush1.msra.mxu0 0.0
    %451 = vmatprep.subr.mxu0 0.0
    %452 = vmatpush1.msra.mxu0 0.0
    %453 = vmatprep.subr.mxu0 0.0
    %454 = vmatpush1.msra.mxu0 0.0
    %455 = vmatprep.subr.mxu0 0.0
    %456 = vmatpush1.msra.mxu0 0.0
    %457 = vmatprep.mubr.f32.mxu0 0.0
    %458 = vmatmul.mubr.f32.gmra.mrb[0].mxu0 %v391
    %v459 = vpop.f32.mrb[0].mxu0
    %v460 = vadd.f32 0.0, %v459
    %v461 = vpop.f32.mrb[0].mxu0
    %462 = vdwg.mxu0
    %463 = vrot.lane.b32.xlu0 %v125, 112
    %v464 = vpop.permute.xlu0 %463
    %465 = vrot.lane.b32.xlu0 %v125, 80
    %v466 = vpop.permute.xlu0 %465
    %v467 = vsel %vm136, %v464, 0
    %v469 = vsel %vm136, %v466, 0
    %471 = vmatprep.subr.mxu0 0.0
    %472 = vmatpush1.xpose.msra.mxu0 %v469
    %473 = vmatprep.subr.mxu0 0.0
    %474 = vmatpush1.xpose.msra.mxu0 0.0
    %475 = vmatprep.subr.mxu0 0.0
    %476 = vmatpush1.xpose.msra.mxu0 0.0
    %477 = vmatprep.subr.mxu0 0.0
    %478 = vmatpush1.xpose.msra.mxu0 0.0
    %479 = vmatprep.subr.mxu0 0.0
    %480 = vmatpush1.xpose.msra.mxu0 0.0
    %481 = vmatprep.subr.mxu0 0.0
    %482 = vmatpush1.xpose.msra.mxu0 0.0
    %483 = vmatprep.subr.mxu0 0.0
    %484 = vmatpush1.xpose.msra.mxu0 0.0
    %485 = vmatprep.subr.mxu0 0.0
    %486 = vmatpush1.xpose.msra.mxu0 0.0
    %487 = vmatprep.subr.mxu0 0.0
    %488 = vmatpush1.xpose.msra.mxu0 0.0
    %489 = vmatprep.subr.mxu0 0.0
    %490 = vmatpush1.xpose.msra.mxu0 0.0
    %491 = vmatprep.subr.mxu0 0.0
    %492 = vmatpush1.xpose.msra.mxu0 0.0
    %493 = vmatprep.subr.mxu0 0.0
    %494 = vmatpush1.xpose.msra.mxu0 0.0
    %495 = vmatprep.subr.mxu0 0.0
    %496 = vmatpush1.xpose.msra.mxu0 0.0
    %497 = vmatprep.subr.mxu0 0.0
    %498 = vmatpush1.xpose.msra.mxu0 0.0
    %499 = vmatprep.subr.mxu0 0.0
    %500 = vmatpush1.xpose.msra.mxu0 0.0
    %501 = vmatprep.subr.mxu0 0.0
    %502 = vmatpush1.xpose.msra.mxu0 0.0
    %503 = vmatprep.subr.mxu0 0.0
    %504 = vmatpush1.xpose.msra.mxu0 0.0
    %505 = vmatprep.subr.mxu0 0.0
    %506 = vmatpush1.xpose.msra.mxu0 0.0
    %507 = vmatprep.subr.mxu0 0.0
    %508 = vmatpush1.xpose.msra.mxu0 0.0
    %509 = vmatprep.subr.mxu0 0.0
    %510 = vmatpush1.xpose.msra.mxu0 0.0
    %511 = vmatprep.subr.mxu0 0.0
    %512 = vmatpush1.xpose.msra.mxu0 0.0
    %513 = vmatprep.subr.mxu0 0.0
    %514 = vmatpush1.xpose.msra.mxu0 0.0
    %515 = vmatprep.subr.mxu0 0.0
    %516 = vmatpush1.xpose.msra.mxu0 0.0
    %517 = vmatprep.subr.mxu0 0.0
    %518 = vmatpush1.xpose.msra.mxu0 0.0
    %519 = vmatprep.subr.mxu0 0.0
    %520 = vmatpush1.xpose.msra.mxu0 0.0
    %521 = vmatprep.subr.mxu0 0.0
    %522 = vmatpush1.xpose.msra.mxu0 0.0
    %523 = vmatprep.subr.mxu0 0.0
    %524 = vmatpush1.xpose.msra.mxu0 0.0
    %525 = vmatprep.subr.mxu0 0.0
    %526 = vmatpush1.xpose.msra.mxu0 0.0
    %527 = vmatprep.subr.mxu0 0.0
    %528 = vmatpush1.xpose.msra.mxu0 0.0
    %529 = vmatprep.subr.mxu0 0.0
    %530 = vmatpush1.xpose.msra.mxu0 0.0
    %531 = vmatprep.subr.mxu0 0.0
    %532 = vmatpush1.xpose.msra.mxu0 0.0
    %533 = vmatprep.subr.mxu0 0.0
    %534 = vmatpush1.xpose.msra.mxu0 0.0
    %535 = vmatprep.mubr.f32.mxu0 0.0
    %536 = vmatmul.mubr.f32.gmra.mrb[0].mxu0 %v467
    %v537 = vpop.f32.mrb[0].mxu0
    %v538 = vadd.f32 %v41, %v537
    %v539 = vpop.f32.mrb[0].mxu0
    %540 = vdwg.mxu0
    %v541 = vsel %vm136, %v538, -inf
    %542 = vmax.xlane.f32.xlu0 %v541
    %v543 = vpop.xlane.xlu0 %542
    %v544 = vsub.f32 %v538, %v543
    %v545 = vmul.f32 %v544, 1.442695
    %v546 = vpow.pop %v545
    %v547 = vsel %vm136, %v546, 0.0
    %548 = vadd.xlane.f32.xlu0 %v547
    %v549 = vpop.xlane.xlu0 %548
    %v550 = vrcp.pop %v549
    %v551 = vmul.f32 %v546, %v550
    %552 = vrot.lane.b32.xlu0 %v125, 48
    %v553 = vpop.permute.xlu0 %552
    %v556 = vsel %vm136, %v551, 0
    %558 = vmatprep.subr.mxu0 0.0
    %559 = vmatpush1.msra.mxu0 %v553
    %560 = vmatprep.subr.mxu0 0.0
    %561 = vmatpush1.msra.mxu0 0.0
    %562 = vmatprep.subr.mxu0 0.0
    %563 = vmatpush1.msra.mxu0 0.0
    %564 = vmatprep.subr.mxu0 0.0
    %565 = vmatpush1.msra.mxu0 0.0
    %566 = vmatprep.subr.mxu0 0.0
    %567 = vmatpush1.msra.mxu0 0.0
    %568 = vmatprep.subr.mxu0 0.0
    %569 = vmatpush1.msra.mxu0 0.0
    %570 = vmatprep.subr.mxu0 0.0
    %571 = vmatpush1.msra.mxu0 0.0
    %572 = vmatprep.subr.mxu0 0.0
    %573 = vmatpush1.msra.mxu0 0.0
    %574 = vmatprep.subr.mxu0 0.0
    %575 = vmatpush1.msra.mxu0 0.0
    %576 = vmatprep.subr.mxu0 0.0
    %577 = vmatpush1.msra.mxu0 0.0
    %578 = vmatprep.subr.mxu0 0.0
    %579 = vmatpush1.msra.mxu0 0.0
    %580 = vmatprep.subr.mxu0 0.0
    %581 = vmatpush1.msra.mxu0 0.0
    %582 = vmatprep.subr.mxu0 0.0
    %583 = vmatpush1.msra.mxu0 0.0
    %584 = vmatprep.subr.mxu0 0.0
    %585 = vmatpush1.msra.mxu0 0.0
    %586 = vmatprep.subr.mxu0 0.0
    %587 = vmatpush1.msra.mxu0 0.0
    %588 = vmatprep.subr.mxu0 0.0
    %589 = vmatpush1.msra.mxu0 0.0
    %590 = vmatprep.subr.mxu0 0.0
    %591 = vmatpush1.msra.mxu0 0.0
    %592 = vmatprep.subr.mxu0 0.0
    %593 = vmatpush1.msra.mxu0 0.0
    %594 = vmatprep.subr.mxu0 0.0
    %595 = vmatpush1.msra.mxu0 0.0
    %596 = vmatprep.subr.mxu0 0.0
    %597 = vmatpush1.msra.mxu0 0.0
    %598 = vmatprep.subr.mxu0 0.0
    %599 = vmatpush1.msra.mxu0 0.0
    %600 = vmatprep.subr.mxu0 0.0
    %601 = vmatpush1.msra.mxu0 0.0
    %602 = vmatprep.subr.mxu0 0.0
    %603 = vmatpush1.msra.mxu0 0.0
    %604 = vmatprep.subr.mxu0 0.0
    %605 = vmatpush1.msra.mxu0 0.0
    %606 = vmatprep.subr.mxu0 0.0
    %607 = vmatpush1.msra.mxu0 0.0
    %608 = vmatprep.subr.mxu0 0.0
    %609 = vmatpush1.msra.mxu0 0.0
    %610 = vmatprep.subr.mxu0 0.0
    %611 = vmatpush1.msra.mxu0 0.0
    %612 = vmatprep.subr.mxu0 0.0
    %613 = vmatpush1.msra.mxu0 0.0
    %614 = vmatprep.subr.mxu0 0.0
    %615 = vmatpush1.msra.mxu0 0.0
    %616 = vmatprep.subr.mxu0 0.0
    %617 = vmatpush1.msra.mxu0 0.0
    %618 = vmatprep.subr.mxu0 0.0
    %619 = vmatpush1.msra.mxu0 0.0
    %620 = vmatprep.subr.mxu0 0.0
    %621 = vmatpush1.msra.mxu0 0.0
    %622 = vmatprep.mubr.f32.mxu0 0.0
    %623 = vmatmul.mubr.f32.gmra.mrb[0].mxu0 %v556
    %v624 = vpop.f32.mrb[0].mxu0
    %v625 = vadd.f32 0.0, %v624
    %v626 = vpop.f32.mrb[0].mxu0
    %627 = vdwg.mxu0
    %628 = vrot.lane.b32.xlu0 %v125, 104
    %v629 = vpop.permute.xlu0 %628
    %630 = vrot.lane.b32.xlu0 %v125, 72
    %v631 = vpop.permute.xlu0 %630
    %v632 = vsel %vm136, %v629, 0
    %v634 = vsel %vm136, %v631, 0
    %636 = vmatprep.subr.mxu0 0.0
    %637 = vmatpush1.xpose.msra.mxu0 %v634
    %638 = vmatprep.subr.mxu0 0.0
    %639 = vmatpush1.xpose.msra.mxu0 0.0
    %640 = vmatprep.subr.mxu0 0.0
    %641 = vmatpush1.xpose.msra.mxu0 0.0
    %642 = vmatprep.subr.mxu0 0.0
    %643 = vmatpush1.xpose.msra.mxu0 0.0
    %644 = vmatprep.subr.mxu0 0.0
    %645 = vmatpush1.xpose.msra.mxu0 0.0
    %646 = vmatprep.subr.mxu0 0.0
    %647 = vmatpush1.xpose.msra.mxu0 0.0
    %648 = vmatprep.subr.mxu0 0.0
    %649 = vmatpush1.xpose.msra.mxu0 0.0
    %650 = vmatprep.subr.mxu0 0.0
    %651 = vmatpush1.xpose.msra.mxu0 0.0
    %652 = vmatprep.subr.mxu0 0.0
    %653 = vmatpush1.xpose.msra.mxu0 0.0
    %654 = vmatprep.subr.mxu0 0.0
    %655 = vmatpush1.xpose.msra.mxu0 0.0
    %656 = vmatprep.subr.mxu0 0.0
    %657 = vmatpush1.xpose.msra.mxu0 0.0
    %658 = vmatprep.subr.mxu0 0.0
    %659 = vmatpush1.xpose.msra.mxu0 0.0
    %660 = vmatprep.subr.mxu0 0.0
    %661 = vmatpush1.xpose.msra.mxu0 0.0
    %662 = vmatprep.subr.mxu0 0.0
    %663 = vmatpush1.xpose.msra.mxu0 0.0
    %664 = vmatprep.subr.mxu0 0.0
    %665 = vmatpush1.xpose.msra.mxu0 0.0
    %666 = vmatprep.subr.mxu0 0.0
    %667 = vmatpush1.xpose.msra.mxu0 0.0
    %668 = vmatprep.subr.mxu0 0.0
    %669 = vmatpush1.xpose.msra.mxu0 0.0
    %670 = vmatprep.subr.mxu0 0.0
    %671 = vmatpush1.xpose.msra.mxu0 0.0
    %672 = vmatprep.subr.mxu0 0.0
    %673 = vmatpush1.xpose.msra.mxu0 0.0
    %674 = vmatprep.subr.mxu0 0.0
    %675 = vmatpush1.xpose.msra.mxu0 0.0
    %676 = vmatprep.subr.mxu0 0.0
    %677 = vmatpush1.xpose.msra.mxu0 0.0
    %678 = vmatprep.subr.mxu0 0.0
    %679 = vmatpush1.xpose.msra.mxu0 0.0
    %680 = vmatprep.subr.mxu0 0.0
    %681 = vmatpush1.xpose.msra.mxu0 0.0
    %682 = vmatprep.subr.mxu0 0.0
    %683 = vmatpush1.xpose.msra.mxu0 0.0
    %684 = vmatprep.subr.mxu0 0.0
    %685 = vmatpush1.xpose.msra.mxu0 0.0
    %686 = vmatprep.subr.mxu0 0.0
    %687 = vmatpush1.xpose.msra.mxu0 0.0
    %688 = vmatprep.subr.mxu0 0.0
    %689 = vmatpush1.xpose.msra.mxu0 0.0
    %690 = vmatprep.subr.mxu0 0.0
    %691 = vmatpush1.xpose.msra.mxu0 0.0
    %692 = vmatprep.subr.mxu0 0.0
    %693 = vmatpush1.xpose.msra.mxu0 0.0
    %694 = vmatprep.subr.mxu0 0.0
    %695 = vmatpush1.xpose.msra.mxu0 0.0
    %696 = vmatprep.subr.mxu0 0.0
    %697 = vmatpush1.xpose.msra.mxu0 0.0
    %698 = vmatprep.subr.mxu0 0.0
    %699 = vmatpush1.xpose.msra.mxu0 0.0
    %700 = vmatprep.mubr.f32.mxu0 0.0
    %701 = vmatmul.mubr.f32.gmra.mrb[0].mxu0 %v632
    %v702 = vpop.f32.mrb[0].mxu0
    %v703 = vadd.f32 %v41, %v702
    %v704 = vpop.f32.mrb[0].mxu0
    %705 = vdwg.mxu0
    %v706 = vsel %vm136, %v703, -inf
    %707 = vmax.xlane.f32.xlu0 %v706
    %v708 = vpop.xlane.xlu0 %707
    %v709 = vsub.f32 %v703, %v708
    %v710 = vmul.f32 %v709, 1.442695
    %v711 = vpow.pop %v710
    %v712 = vsel %vm136, %v711, 0.0
    %713 = vadd.xlane.f32.xlu0 %v712
    %v714 = vpop.xlane.xlu0 %713
    %v715 = vrcp.pop %v714
    %v716 = vmul.f32 %v711, %v715
    %717 = vrot.lane.b32.xlu0 %v125, 40
    %v718 = vpop.permute.xlu0 %717
    %v721 = vsel %vm136, %v716, 0
    %723 = vmatprep.subr.mxu0 0.0
    %724 = vmatpush1.msra.mxu0 %v718
    %725 = vmatprep.subr.mxu0 0.0
    %726 = vmatpush1.msra.mxu0 0.0
    %727 = vmatprep.subr.mxu0 0.0
    %728 = vmatpush1.msra.mxu0 0.0
    %729 = vmatprep.subr.mxu0 0.0
    %730 = vmatpush1.msra.mxu0 0.0
    %731 = vmatprep.subr.mxu0 0.0
    %732 = vmatpush1.msra.mxu0 0.0
    %733 = vmatprep.subr.mxu0 0.0
    %734 = vmatpush1.msra.mxu0 0.0
    %735 = vmatprep.subr.mxu0 0.0
    %736 = vmatpush1.msra.mxu0 0.0
    %737 = vmatprep.subr.mxu0 0.0
    %738 = vmatpush1.msra.mxu0 0.0
    %739 = vmatprep.subr.mxu0 0.0
    %740 = vmatpush1.msra.mxu0 0.0
    %741 = vmatprep.subr.mxu0 0.0
    %742 = vmatpush1.msra.mxu0 0.0
    %743 = vmatprep.subr.mxu0 0.0
    %744 = vmatpush1.msra.mxu0 0.0
    %745 = vmatprep.subr.mxu0 0.0
    %746 = vmatpush1.msra.mxu0 0.0
    %747 = vmatprep.subr.mxu0 0.0
    %748 = vmatpush1.msra.mxu0 0.0
    %749 = vmatprep.subr.mxu0 0.0
    %750 = vmatpush1.msra.mxu0 0.0
    %751 = vmatprep.subr.mxu0 0.0
    %752 = vmatpush1.msra.mxu0 0.0
    %753 = vmatprep.subr.mxu0 0.0
    %754 = vmatpush1.msra.mxu0 0.0
    %755 = vmatprep.subr.mxu0 0.0
    %756 = vmatpush1.msra.mxu0 0.0
    %757 = vmatprep.subr.mxu0 0.0
    %758 = vmatpush1.msra.mxu0 0.0
    %759 = vmatprep.subr.mxu0 0.0
    %760 = vmatpush1.msra.mxu0 0.0
    %761 = vmatprep.subr.mxu0 0.0
    %762 = vmatpush1.msra.mxu0 0.0
    %763 = vmatprep.subr.mxu0 0.0
    %764 = vmatpush1.msra.mxu0 0.0
    %765 = vmatprep.subr.mxu0 0.0
    %766 = vmatpush1.msra.mxu0 0.0
    %767 = vmatprep.subr.mxu0 0.0
    %768 = vmatpush1.msra.mxu0 0.0
    %769 = vmatprep.subr.mxu0 0.0
    %770 = vmatpush1.msra.mxu0 0.0
    %771 = vmatprep.subr.mxu0 0.0
    %772 = vmatpush1.msra.mxu0 0.0
    %773 = vmatprep.subr.mxu0 0.0
    %774 = vmatpush1.msra.mxu0 0.0
    %775 = vmatprep.subr.mxu0 0.0
    %776 = vmatpush1.msra.mxu0 0.0
    %777 = vmatprep.subr.mxu0 0.0
    %778 = vmatpush1.msra.mxu0 0.0
    %779 = vmatprep.subr.mxu0 0.0
    %780 = vmatpush1.msra.mxu0 0.0
    %781 = vmatprep.subr.mxu0 0.0
    %782 = vmatpush1.msra.mxu0 0.0
    %783 = vmatprep.subr.mxu0 0.0
    %784 = vmatpush1.msra.mxu0 0.0
    %785 = vmatprep.subr.mxu0 0.0
    %786 = vmatpush1.msra.mxu0 0.0
    %787 = vmatprep.mubr.f32.mxu0 0.0
    %788 = vmatmul.mubr.f32.gmra.mrb[0].mxu0 %v721
    %v789 = vpop.f32.mrb[0].mxu0
    %v790 = vadd.f32 0.0, %v789
    %v791 = vpop.f32.mrb[0].mxu0
    %792 = vdwg.mxu0
    %794 = vrot.lane.b32.xlu0 %v460, 8
    %v795 = vpop.permute.xlu0 %794
    %798 = vrot.lane.b32.xlu0 %v625, 16
    %v799 = vpop.permute.xlu0 %798
    %802 = vrot.lane.b32.xlu0 %v790, 24
    %v803 = vpop.permute.xlu0 %802
    %v805 = vsel %vm136, %v295, %v795
    %vm806 = vcmask 130048
    %v807 = vsel %vm806, %v805, %v799
    %vm808 = vcmask 195584
    %v809 = vsel %vm808, %v807, %v803
    %811 = vrot.lane.b32.xlu0 %v130, 96
    %v812 = vpop.permute.xlu0 %811
    %v813 = vsel %vm136, %v130, 0
    %v815 = vsel %vm136, %v812, 0
    %817 = vmatprep.subr.mxu0 0.0
    %818 = vmatpush1.xpose.msra.mxu0 %v815
    %819 = vmatprep.subr.mxu0 0.0
    %820 = vmatpush1.xpose.msra.mxu0 0.0
    %821 = vmatprep.subr.mxu0 0.0
    %822 = vmatpush1.xpose.msra.mxu0 0.0
    %823 = vmatprep.subr.mxu0 0.0
    %824 = vmatpush1.xpose.msra.mxu0 0.0
    %825 = vmatprep.subr.mxu0 0.0
    %826 = vmatpush1.xpose.msra.mxu0 0.0
    %827 = vmatprep.subr.mxu0 0.0
    %828 = vmatpush1.xpose.msra.mxu0 0.0
    %829 = vmatprep.subr.mxu0 0.0
    %830 = vmatpush1.xpose.msra.mxu0 0.0
    %831 = vmatprep.subr.mxu0 0.0
    %832 = vmatpush1.xpose.msra.mxu0 0.0
    %833 = vmatprep.subr.mxu0 0.0
    %834 = vmatpush1.xpose.msra.mxu0 0.0
    %835 = vmatprep.subr.mxu0 0.0
    %836 = vmatpush1.xpose.msra.mxu0 0.0
    %837 = vmatprep.subr.mxu0 0.0
    %838 = vmatpush1.xpose.msra.mxu0 0.0
    %839 = vmatprep.subr.mxu0 0.0
    %840 = vmatpush1.xpose.msra.mxu0 0.0
    %841 = vmatprep.subr.mxu0 0.0
    %842 = vmatpush1.xpose.msra.mxu0 0.0
    %843 = vmatprep.subr.mxu0 0.0
    %844 = vmatpush1.xpose.msra.mxu0 0.0
    %845 = vmatprep.subr.mxu0 0.0
    %846 = vmatpush1.xpose.msra.mxu0 0.0
    %847 = vmatprep.subr.mxu0 0.0
    %848 = vmatpush1.xpose.msra.mxu0 0.0
    %849 = vmatprep.subr.mxu0 0.0
    %850 = vmatpush1.xpose.msra.mxu0 0.0
    %851 = vmatprep.subr.mxu0 0.0
    %852 = vmatpush1.xpose.msra.mxu0 0.0
    %853 = vmatprep.subr.mxu0 0.0
    %854 = vmatpush1.xpose.msra.mxu0 0.0
    %855 = vmatprep.subr.mxu0 0.0
    %856 = vmatpush1.xpose.msra.mxu0 0.0
    %857 = vmatprep.subr.mxu0 0.0
    %858 = vmatpush1.xpose.msra.mxu0 0.0
    %859 = vmatprep.subr.mxu0 0.0
    %860 = vmatpush1.xpose.msra.mxu0 0.0
    %861 = vmatprep.subr.mxu0 0.0
    %862 = vmatpush1.xpose.msra.mxu0 0.0
    %863 = vmatprep.subr.mxu0 0.0
    %864 = vmatpush1.xpose.msra.mxu0 0.0
    %865 = vmatprep.subr.mxu0 0.0
    %866 = vmatpush1.xpose.msra.mxu0 0.0
    %867 = vmatprep.subr.mxu0 0.0
    %868 = vmatpush1.xpose.msra.mxu0 0.0
    %869 = vmatprep.subr.mxu0 0.0
    %870 = vmatpush1.xpose.msra.mxu0 0.0
    %871 = vmatprep.subr.mxu0 0.0
    %872 = vmatpush1.xpose.msra.mxu0 0.0
    %873 = vmatprep.subr.mxu0 0.0
    %874 = vmatpush1.xpose.msra.mxu0 0.0
    %875 = vmatprep.subr.mxu0 0.0
    %876 = vmatpush1.xpose.msra.mxu0 0.0
    %877 = vmatprep.subr.mxu0 0.0
    %878 = vmatpush1.xpose.msra.mxu0 0.0
    %879 = vmatprep.subr.mxu0 0.0
    %880 = vmatpush1.xpose.msra.mxu0 0.0
    %881 = vmatprep.mubr.f32.mxu0 0.0
    %882 = vmatmul.mubr.f32.gmra.mrb[0].mxu0 %v813
    %v883 = vpop.f32.mrb[0].mxu0
    %v884 = vadd.f32 %v41, %v883
    %v885 = vpop.f32.mrb[0].mxu0
    %886 = vdwg.mxu0
    %v887 = vsel %vm136, %v884, -inf
    %888 = vmax.xlane.f32.xlu0 %v887
    %v889 = vpop.xlane.xlu0 %888
    %v890 = vsub.f32 %v884, %v889
    %v891 = vmul.f32 %v890, 1.442695
    %v892 = vpow.pop %v891
    %v893 = vsel %vm136, %v892, 0.0
    %894 = vadd.xlane.f32.xlu0 %v893
    %v895 = vpop.xlane.xlu0 %894
    %v896 = vrcp.pop %v895
    %v897 = vmul.f32 %v892, %v896
    %898 = vrot.lane.b32.xlu0 %v130, 64
    %v899 = vpop.permute.xlu0 %898
    %v902 = vsel %vm136, %v897, 0
    %904 = vmatprep.subr.mxu0 0.0
    %905 = vmatpush1.msra.mxu0 %v899
    %906 = vmatprep.subr.mxu0 0.0
    %907 = vmatpush1.msra.mxu0 0.0
    %908 = vmatprep.subr.mxu0 0.0
    %909 = vmatpush1.msra.mxu0 0.0
    %910 = vmatprep.subr.mxu0 0.0
    %911 = vmatpush1.msra.mxu0 0.0
    %912 = vmatprep.subr.mxu0 0.0
    %913 = vmatpush1.msra.mxu0 0.0
    %914 = vmatprep.subr.mxu0 0.0
    %915 = vmatpush1.msra.mxu0 0.0
    %916 = vmatprep.subr.mxu0 0.0
    %917 = vmatpush1.msra.mxu0 0.0
    %918 = vmatprep.subr.mxu0 0.0
    %919 = vmatpush1.msra.mxu0 0.0
    %920 = vmatprep.subr.mxu0 0.0
    %921 = vmatpush1.msra.mxu0 0.0
    %922 = vmatprep.subr.mxu0 0.0
    %923 = vmatpush1.msra.mxu0 0.0
    %924 = vmatprep.subr.mxu0 0.0
    %925 = vmatpush1.msra.mxu0 0.0
    %926 = vmatprep.subr.mxu0 0.0
    %927 = vmatpush1.msra.mxu0 0.0
    %928 = vmatprep.subr.mxu0 0.0
    %929 = vmatpush1.msra.mxu0 0.0
    %930 = vmatprep.subr.mxu0 0.0
    %931 = vmatpush1.msra.mxu0 0.0
    %932 = vmatprep.subr.mxu0 0.0
    %933 = vmatpush1.msra.mxu0 0.0
    %934 = vmatprep.subr.mxu0 0.0
    %935 = vmatpush1.msra.mxu0 0.0
    %936 = vmatprep.subr.mxu0 0.0
    %937 = vmatpush1.msra.mxu0 0.0
    %938 = vmatprep.subr.mxu0 0.0
    %939 = vmatpush1.msra.mxu0 0.0
    %940 = vmatprep.subr.mxu0 0.0
    %941 = vmatpush1.msra.mxu0 0.0
    %942 = vmatprep.subr.mxu0 0.0
    %943 = vmatpush1.msra.mxu0 0.0
    %944 = vmatprep.subr.mxu0 0.0
    %945 = vmatpush1.msra.mxu0 0.0
    %946 = vmatprep.subr.mxu0 0.0
    %947 = vmatpush1.msra.mxu0 0.0
    %948 = vmatprep.subr.mxu0 0.0
    %949 = vmatpush1.msra.mxu0 0.0
    %950 = vmatprep.subr.mxu0 0.0
    %951 = vmatpush1.msra.mxu0 0.0
    %952 = vmatprep.subr.mxu0 0.0
    %953 = vmatpush1.msra.mxu0 0.0
    %954 = vmatprep.subr.mxu0 0.0
    %955 = vmatpush1.msra.mxu0 0.0
    %956 = vmatprep.subr.mxu0 0.0
    %957 = vmatpush1.msra.mxu0 0.0
    %958 = vmatprep.subr.mxu0 0.0
    %959 = vmatpush1.msra.mxu0 0.0
    %960 = vmatprep.subr.mxu0 0.0
    %961 = vmatpush1.msra.mxu0 0.0
    %962 = vmatprep.subr.mxu0 0.0
    %963 = vmatpush1.msra.mxu0 0.0
    %964 = vmatprep.subr.mxu0 0.0
    %965 = vmatpush1.msra.mxu0 0.0
    %966 = vmatprep.subr.mxu0 0.0
    %967 = vmatpush1.msra.mxu0 0.0
    %968 = vmatprep.mubr.f32.mxu0 0.0
    %969 = vmatmul.mubr.f32.gmra.mrb[0].mxu0 %v902
    %v970 = vpop.f32.mrb[0].mxu0
    %v971 = vadd.f32 0.0, %v970
    %v972 = vpop.f32.mrb[0].mxu0
    %973 = vdwg.mxu0
    %974 = vrot.lane.b32.xlu0 %v130, 120
    %v975 = vpop.permute.xlu0 %974
    %976 = vrot.lane.b32.xlu0 %v130, 88
    %v977 = vpop.permute.xlu0 %976
    %v978 = vsel %vm136, %v975, 0
    %v980 = vsel %vm136, %v977, 0
    %982 = vmatprep.subr.mxu0 0.0
    %983 = vmatpush1.xpose.msra.mxu0 %v980
    %984 = vmatprep.subr.mxu0 0.0
    %985 = vmatpush1.xpose.msra.mxu0 0.0
    %986 = vmatprep.subr.mxu0 0.0
    %987 = vmatpush1.xpose.msra.mxu0 0.0
    %988 = vmatprep.subr.mxu0 0.0
    %989 = vmatpush1.xpose.msra.mxu0 0.0
    %990 = vmatprep.subr.mxu0 0.0
    %991 = vmatpush1.xpose.msra.mxu0 0.0
    %992 = vmatprep.subr.mxu0 0.0
    %993 = vmatpush1.xpose.msra.mxu0 0.0
    %994 = vmatprep.subr.mxu0 0.0
    %995 = vmatpush1.xpose.msra.mxu0 0.0
    %996 = vmatprep.subr.mxu0 0.0
    %997 = vmatpush1.xpose.msra.mxu0 0.0
    %998 = vmatprep.subr.mxu0 0.0
    %999 = vmatpush1.xpose.msra.mxu0 0.0
    %1000 = vmatprep.subr.mxu0 0.0
    %1001 = vmatpush1.xpose.msra.mxu0 0.0
    %1002 = vmatprep.subr.mxu0 0.0
    %1003 = vmatpush1.xpose.msra.mxu0 0.0
    %1004 = vmatprep.subr.mxu0 0.0
    %1005 = vmatpush1.xpose.msra.mxu0 0.0
    %1006 = vmatprep.subr.mxu0 0.0
    %1007 = vmatpush1.xpose.msra.mxu0 0.0
    %1008 = vmatprep.subr.mxu0 0.0
    %1009 = vmatpush1.xpose.msra.mxu0 0.0
    %1010 = vmatprep.subr.mxu0 0.0
    %1011 = vmatpush1.xpose.msra.mxu0 0.0
    %1012 = vmatprep.subr.mxu0 0.0
    %1013 = vmatpush1.xpose.msra.mxu0 0.0
    %1014 = vmatprep.subr.mxu0 0.0
    %1015 = vmatpush1.xpose.msra.mxu0 0.0
    %1016 = vmatprep.subr.mxu0 0.0
    %1017 = vmatpush1.xpose.msra.mxu0 0.0
    %1018 = vmatprep.subr.mxu0 0.0
    %1019 = vmatpush1.xpose.msra.mxu0 0.0
    %1020 = vmatprep.subr.mxu0 0.0
    %1021 = vmatpush1.xpose.msra.mxu0 0.0
    %1022 = vmatprep.subr.mxu0 0.0
    %1023 = vmatpush1.xpose.msra.mxu0 0.0
    %1024 = vmatprep.subr.mxu0 0.0
    %1025 = vmatpush1.xpose.msra.mxu0 0.0
    %1026 = vmatprep.subr.mxu0 0.0
    %1027 = vmatpush1.xpose.msra.mxu0 0.0
    %1028 = vmatprep.subr.mxu0 0.0
    %1029 = vmatpush1.xpose.msra.mxu0 0.0
    %1030 = vmatprep.subr.mxu0 0.0
    %1031 = vmatpush1.xpose.msra.mxu0 0.0
    %1032 = vmatprep.subr.mxu0 0.0
    %1033 = vmatpush1.xpose.msra.mxu0 0.0
    %1034 = vmatprep.subr.mxu0 0.0
    %1035 = vmatpush1.xpose.msra.mxu0 0.0
    %1036 = vmatprep.subr.mxu0 0.0
    %1037 = vmatpush1.xpose.msra.mxu0 0.0
    %1038 = vmatprep.subr.mxu0 0.0
    %1039 = vmatpush1.xpose.msra.mxu0 0.0
    %1040 = vmatprep.subr.mxu0 0.0
    %1041 = vmatpush1.xpose.msra.mxu0 0.0
    %1042 = vmatprep.subr.mxu0 0.0
    %1043 = vmatpush1.xpose.msra.mxu0 0.0
    %1044 = vmatprep.subr.mxu0 0.0
    %1045 = vmatpush1.xpose.msra.mxu0 0.0
    %1046 = vmatprep.mubr.f32.mxu0 0.0
    %1047 = vmatmul.mubr.f32.gmra.mrb[0].mxu0 %v978
    %v1048 = vpop.f32.mrb[0].mxu0
    %v1049 = vadd.f32 %v41, %v1048
    %v1050 = vpop.f32.mrb[0].mxu0
    %1051 = vdwg.mxu0
    %v1052 = vsel %vm136, %v1049, -inf
    %1053 = vmax.xlane.f32.xlu0 %v1052
    %v1054 = vpop.xlane.xlu0 %1053
    %v1055 = vsub.f32 %v1049, %v1054
    %v1056 = vmul.f32 %v1055, 1.442695
    %v1057 = vpow.pop %v1056
    %v1058 = vsel %vm136, %v1057, 0.0
    %1059 = vadd.xlane.f32.xlu0 %v1058
    %v1060 = vpop.xlane.xlu0 %1059
    %v1061 = vrcp.pop %v1060
    %v1062 = vmul.f32 %v1057, %v1061
    %1063 = vrot.lane.b32.xlu0 %v130, 56
    %v1064 = vpop.permute.xlu0 %1063
    %v1067 = vsel %vm136, %v1062, 0
    %1069 = vmatprep.subr.mxu0 0.0
    %1070 = vmatpush1.msra.mxu0 %v1064
    %1071 = vmatprep.subr.mxu0 0.0
    %1072 = vmatpush1.msra.mxu0 0.0
    %1073 = vmatprep.subr.mxu0 0.0
    %1074 = vmatpush1.msra.mxu0 0.0
    %1075 = vmatprep.subr.mxu0 0.0
    %1076 = vmatpush1.msra.mxu0 0.0
    %1077 = vmatprep.subr.mxu0 0.0
    %1078 = vmatpush1.msra.mxu0 0.0
    %1079 = vmatprep.subr.mxu0 0.0
    %1080 = vmatpush1.msra.mxu0 0.0
    %1081 = vmatprep.subr.mxu0 0.0
    %1082 = vmatpush1.msra.mxu0 0.0
    %1083 = vmatprep.subr.mxu0 0.0
    %1084 = vmatpush1.msra.mxu0 0.0
    %1085 = vmatprep.subr.mxu0 0.0
    %1086 = vmatpush1.msra.mxu0 0.0
    %1087 = vmatprep.subr.mxu0 0.0
    %1088 = vmatpush1.msra.mxu0 0.0
    %1089 = vmatprep.subr.mxu0 0.0
    %1090 = vmatpush1.msra.mxu0 0.0
    %1091 = vmatprep.subr.mxu0 0.0
    %1092 = vmatpush1.msra.mxu0 0.0
    %1093 = vmatprep.subr.mxu0 0.0
    %1094 = vmatpush1.msra.mxu0 0.0
    %1095 = vmatprep.subr.mxu0 0.0
    %1096 = vmatpush1.msra.mxu0 0.0
    %1097 = vmatprep.subr.mxu0 0.0
    %1098 = vmatpush1.msra.mxu0 0.0
    %1099 = vmatprep.subr.mxu0 0.0
    %1100 = vmatpush1.msra.mxu0 0.0
    %1101 = vmatprep.subr.mxu0 0.0
    %1102 = vmatpush1.msra.mxu0 0.0
    %1103 = vmatprep.subr.mxu0 0.0
    %1104 = vmatpush1.msra.mxu0 0.0
    %1105 = vmatprep.subr.mxu0 0.0
    %1106 = vmatpush1.msra.mxu0 0.0
    %1107 = vmatprep.subr.mxu0 0.0
    %1108 = vmatpush1.msra.mxu0 0.0
    %1109 = vmatprep.subr.mxu0 0.0
    %1110 = vmatpush1.msra.mxu0 0.0
    %1111 = vmatprep.subr.mxu0 0.0
    %1112 = vmatpush1.msra.mxu0 0.0
    %1113 = vmatprep.subr.mxu0 0.0
    %1114 = vmatpush1.msra.mxu0 0.0
    %1115 = vmatprep.subr.mxu0 0.0
    %1116 = vmatpush1.msra.mxu0 0.0
    %1117 = vmatprep.subr.mxu0 0.0
    %1118 = vmatpush1.msra.mxu0 0.0
    %1119 = vmatprep.subr.mxu0 0.0
    %1120 = vmatpush1.msra.mxu0 0.0
    %1121 = vmatprep.subr.mxu0 0.0
    %1122 = vmatpush1.msra.mxu0 0.0
    %1123 = vmatprep.subr.mxu0 0.0
    %1124 = vmatpush1.msra.mxu0 0.0
    %1125 = vmatprep.subr.mxu0 0.0
    %1126 = vmatpush1.msra.mxu0 0.0
    %1127 = vmatprep.subr.mxu0 0.0
    %1128 = vmatpush1.msra.mxu0 0.0
    %1129 = vmatprep.subr.mxu0 0.0
    %1130 = vmatpush1.msra.mxu0 0.0
    %1131 = vmatprep.subr.mxu0 0.0
    %1132 = vmatpush1.msra.mxu0 0.0
    %1133 = vmatprep.mubr.f32.mxu0 0.0
    %1134 = vmatmul.mubr.f32.gmra.mrb[0].mxu0 %v1067
    %v1135 = vpop.f32.mrb[0].mxu0
    %v1136 = vadd.f32 0.0, %v1135
    %v1137 = vpop.f32.mrb[0].mxu0
    %1138 = vdwg.mxu0
    %1139 = vrot.lane.b32.xlu0 %v130, 112
    %v1140 = vpop.permute.xlu0 %1139
    %1141 = vrot.lane.b32.xlu0 %v130, 80
    %v1142 = vpop.permute.xlu0 %1141
    %v1143 = vsel %vm136, %v1140, 0
    %v1145 = vsel %vm136, %v1142, 0
    %1147 = vmatprep.subr.mxu0 0.0
    %1148 = vmatpush1.xpose.msra.mxu0 %v1145
    %1149 = vmatprep.subr.mxu0 0.0
    %1150 = vmatpush1.xpose.msra.mxu0 0.0
    %1151 = vmatprep.subr.mxu0 0.0
    %1152 = vmatpush1.xpose.msra.mxu0 0.0
    %1153 = vmatprep.subr.mxu0 0.0
    %1154 = vmatpush1.xpose.msra.mxu0 0.0
    %1155 = vmatprep.subr.mxu0 0.0
    %1156 = vmatpush1.xpose.msra.mxu0 0.0
    %1157 = vmatprep.subr.mxu0 0.0
    %1158 = vmatpush1.xpose.msra.mxu0 0.0
    %1159 = vmatprep.subr.mxu0 0.0
    %1160 = vmatpush1.xpose.msra.mxu0 0.0
    %1161 = vmatprep.subr.mxu0 0.0
    %1162 = vmatpush1.xpose.msra.mxu0 0.0
    %1163 = vmatprep.subr.mxu0 0.0
    %1164 = vmatpush1.xpose.msra.mxu0 0.0
    %1165 = vmatprep.subr.mxu0 0.0
    %1166 = vmatpush1.xpose.msra.mxu0 0.0
    %1167 = vmatprep.subr.mxu0 0.0
    %1168 = vmatpush1.xpose.msra.mxu0 0.0
    %1169 = vmatprep.subr.mxu0 0.0
    %1170 = vmatpush1.xpose.msra.mxu0 0.0
    %1171 = vmatprep.subr.mxu0 0.0
    %1172 = vmatpush1.xpose.msra.mxu0 0.0
    %1173 = vmatprep.subr.mxu0 0.0
    %1174 = vmatpush1.xpose.msra.mxu0 0.0
    %1175 = vmatprep.subr.mxu0 0.0
    %1176 = vmatpush1.xpose.msra.mxu0 0.0
    %1177 = vmatprep.subr.mxu0 0.0
    %1178 = vmatpush1.xpose.msra.mxu0 0.0
    %1179 = vmatprep.subr.mxu0 0.0
    %1180 = vmatpush1.xpose.msra.mxu0 0.0
    %1181 = vmatprep.subr.mxu0 0.0
    %1182 = vmatpush1.xpose.msra.mxu0 0.0
    %1183 = vmatprep.subr.mxu0 0.0
    %1184 = vmatpush1.xpose.msra.mxu0 0.0
    %1185 = vmatprep.subr.mxu0 0.0
    %1186 = vmatpush1.xpose.msra.mxu0 0.0
    %1187 = vmatprep.subr.mxu0 0.0
    %1188 = vmatpush1.xpose.msra.mxu0 0.0
    %1189 = vmatprep.subr.mxu0 0.0
    %1190 = vmatpush1.xpose.msra.mxu0 0.0
    %1191 = vmatprep.subr.mxu0 0.0
    %1192 = vmatpush1.xpose.msra.mxu0 0.0
    %1193 = vmatprep.subr.mxu0 0.0
    %1194 = vmatpush1.xpose.msra.mxu0 0.0
    %1195 = vmatprep.subr.mxu0 0.0
    %1196 = vmatpush1.xpose.msra.mxu0 0.0
    %1197 = vmatprep.subr.mxu0 0.0
    %1198 = vmatpush1.xpose.msra.mxu0 0.0
    %1199 = vmatprep.subr.mxu0 0.0
    %1200 = vmatpush1.xpose.msra.mxu0 0.0
    %1201 = vmatprep.subr.mxu0 0.0
    %1202 = vmatpush1.xpose.msra.mxu0 0.0
    %1203 = vmatprep.subr.mxu0 0.0
    %1204 = vmatpush1.xpose.msra.mxu0 0.0
    %1205 = vmatprep.subr.mxu0 0.0
    %1206 = vmatpush1.xpose.msra.mxu0 0.0
    %1207 = vmatprep.subr.mxu0 0.0
    %1208 = vmatpush1.xpose.msra.mxu0 0.0
    %1209 = vmatprep.subr.mxu0 0.0
    %1210 = vmatpush1.xpose.msra.mxu0 0.0
    %1211 = vmatprep.mubr.f32.mxu0 0.0
    %1212 = vmatmul.mubr.f32.gmra.mrb[0].mxu0 %v1143
    %v1213 = vpop.f32.mrb[0].mxu0
    %v1214 = vadd.f32 %v41, %v1213
    %v1215 = vpop.f32.mrb[0].mxu0
    %1216 = vdwg.mxu0
    %v1217 = vsel %vm136, %v1214, -inf
    %1218 = vmax.xlane.f32.xlu0 %v1217
    %v1219 = vpop.xlane.xlu0 %1218
    %v1220 = vsub.f32 %v1214, %v1219
    %v1221 = vmul.f32 %v1220, 1.442695
    %v1222 = vpow.pop %v1221
    %v1223 = vsel %vm136, %v1222, 0.0
    %1224 = vadd.xlane.f32.xlu0 %v1223
    %v1225 = vpop.xlane.xlu0 %1224
    %v1226 = vrcp.pop %v1225
    %v1227 = vmul.f32 %v1222, %v1226
    %1228 = vrot.lane.b32.xlu0 %v130, 48
    %v1229 = vpop.permute.xlu0 %1228
    %v1232 = vsel %vm136, %v1227, 0
    %1234 = vmatprep.subr.mxu0 0.0
    %1235 = vmatpush1.msra.mxu0 %v1229
    %1236 = vmatprep.subr.mxu0 0.0
    %1237 = vmatpush1.msra.mxu0 0.0
    %1238 = vmatprep.subr.mxu0 0.0
    %1239 = vmatpush1.msra.mxu0 0.0
    %1240 = vmatprep.subr.mxu0 0.0
    %1241 = vmatpush1.msra.mxu0 0.0
    %1242 = vmatprep.subr.mxu0 0.0
    %1243 = vmatpush1.msra.mxu0 0.0
    %1244 = vmatprep.subr.mxu0 0.0
    %1245 = vmatpush1.msra.mxu0 0.0
    %1246 = vmatprep.subr.mxu0 0.0
    %1247 = vmatpush1.msra.mxu0 0.0
    %1248 = vmatprep.subr.mxu0 0.0
    %1249 = vmatpush1.msra.mxu0 0.0
    %1250 = vmatprep.subr.mxu0 0.0
    %1251 = vmatpush1.msra.mxu0 0.0
    %1252 = vmatprep.subr.mxu0 0.0
    %1253 = vmatpush1.msra.mxu0 0.0
    %1254 = vmatprep.subr.mxu0 0.0
    %1255 = vmatpush1.msra.mxu0 0.0
    %1256 = vmatprep.subr.mxu0 0.0
    %1257 = vmatpush1.msra.mxu0 0.0
    %1258 = vmatprep.subr.mxu0 0.0
    %1259 = vmatpush1.msra.mxu0 0.0
    %1260 = vmatprep.subr.mxu0 0.0
    %1261 = vmatpush1.msra.mxu0 0.0
    %1262 = vmatprep.subr.mxu0 0.0
    %1263 = vmatpush1.msra.mxu0 0.0
    %1264 = vmatprep.subr.mxu0 0.0
    %1265 = vmatpush1.msra.mxu0 0.0
    %1266 = vmatprep.subr.mxu0 0.0
    %1267 = vmatpush1.msra.mxu0 0.0
    %1268 = vmatprep.subr.mxu0 0.0
    %1269 = vmatpush1.msra.mxu0 0.0
    %1270 = vmatprep.subr.mxu0 0.0
    %1271 = vmatpush1.msra.mxu0 0.0
    %1272 = vmatprep.subr.mxu0 0.0
    %1273 = vmatpush1.msra.mxu0 0.0
    %1274 = vmatprep.subr.mxu0 0.0
    %1275 = vmatpush1.msra.mxu0 0.0
    %1276 = vmatprep.subr.mxu0 0.0
    %1277 = vmatpush1.msra.mxu0 0.0
    %1278 = vmatprep.subr.mxu0 0.0
    %1279 = vmatpush1.msra.mxu0 0.0
    %1280 = vmatprep.subr.mxu0 0.0
    %1281 = vmatpush1.msra.mxu0 0.0
    %1282 = vmatprep.subr.mxu0 0.0
    %1283 = vmatpush1.msra.mxu0 0.0
    %1284 = vmatprep.subr.mxu0 0.0
    %1285 = vmatpush1.msra.mxu0 0.0
    %1286 = vmatprep.subr.mxu0 0.0
    %1287 = vmatpush1.msra.mxu0 0.0
    %1288 = vmatprep.subr.mxu0 0.0
    %1289 = vmatpush1.msra.mxu0 0.0
    %1290 = vmatprep.subr.mxu0 0.0
    %1291 = vmatpush1.msra.mxu0 0.0
    %1292 = vmatprep.subr.mxu0 0.0
    %1293 = vmatpush1.msra.mxu0 0.0
    %1294 = vmatprep.subr.mxu0 0.0
    %1295 = vmatpush1.msra.mxu0 0.0
    %1296 = vmatprep.subr.mxu0 0.0
    %1297 = vmatpush1.msra.mxu0 0.0
    %1298 = vmatprep.mubr.f32.mxu0 0.0
    %1299 = vmatmul.mubr.f32.gmra.mrb[0].mxu0 %v1232
    %v1300 = vpop.f32.mrb[0].mxu0
    %v1301 = vadd.f32 0.0, %v1300
    %v1302 = vpop.f32.mrb[0].mxu0
    %1303 = vdwg.mxu0
    %1304 = vrot.lane.b32.xlu0 %v130, 104
    %v1305 = vpop.permute.xlu0 %1304
    %1306 = vrot.lane.b32.xlu0 %v130, 72
    %v1307 = vpop.permute.xlu0 %1306
    %v1308 = vsel %vm136, %v1305, 0
    %v1310 = vsel %vm136, %v1307, 0
    %1312 = vmatprep.subr.mxu0 0.0
    %1313 = vmatpush1.xpose.msra.mxu0 %v1310
    %1314 = vmatprep.subr.mxu0 0.0
    %1315 = vmatpush1.xpose.msra.mxu0 0.0
    %1316 = vmatprep.subr.mxu0 0.0
    %1317 = vmatpush1.xpose.msra.mxu0 0.0
    %1318 = vmatprep.subr.mxu0 0.0
    %1319 = vmatpush1.xpose.msra.mxu0 0.0
    %1320 = vmatprep.subr.mxu0 0.0
    %1321 = vmatpush1.xpose.msra.mxu0 0.0
    %1322 = vmatprep.subr.mxu0 0.0
    %1323 = vmatpush1.xpose.msra.mxu0 0.0
    %1324 = vmatprep.subr.mxu0 0.0
    %1325 = vmatpush1.xpose.msra.mxu0 0.0
    %1326 = vmatprep.subr.mxu0 0.0
    %1327 = vmatpush1.xpose.msra.mxu0 0.0
    %1328 = vmatprep.subr.mxu0 0.0
    %1329 = vmatpush1.xpose.msra.mxu0 0.0
    %1330 = vmatprep.subr.mxu0 0.0
    %1331 = vmatpush1.xpose.msra.mxu0 0.0
    %1332 = vmatprep.subr.mxu0 0.0
    %1333 = vmatpush1.xpose.msra.mxu0 0.0
    %1334 = vmatprep.subr.mxu0 0.0
    %1335 = vmatpush1.xpose.msra.mxu0 0.0
    %1336 = vmatprep.subr.mxu0 0.0
    %1337 = vmatpush1.xpose.msra.mxu0 0.0
    %1338 = vmatprep.subr.mxu0 0.0
    %1339 = vmatpush1.xpose.msra.mxu0 0.0
    %1340 = vmatprep.subr.mxu0 0.0
    %1341 = vmatpush1.xpose.msra.mxu0 0.0
    %1342 = vmatprep.subr.mxu0 0.0
    %1343 = vmatpush1.xpose.msra.mxu0 0.0
    %1344 = vmatprep.subr.mxu0 0.0
    %1345 = vmatpush1.xpose.msra.mxu0 0.0
    %1346 = vmatprep.subr.mxu0 0.0
    %1347 = vmatpush1.xpose.msra.mxu0 0.0
    %1348 = vmatprep.subr.mxu0 0.0
    %1349 = vmatpush1.xpose.msra.mxu0 0.0
    %1350 = vmatprep.subr.mxu0 0.0
    %1351 = vmatpush1.xpose.msra.mxu0 0.0
    %1352 = vmatprep.subr.mxu0 0.0
    %1353 = vmatpush1.xpose.msra.mxu0 0.0
    %1354 = vmatprep.subr.mxu0 0.0
    %1355 = vmatpush1.xpose.msra.mxu0 0.0
    %1356 = vmatprep.subr.mxu0 0.0
    %1357 = vmatpush1.xpose.msra.mxu0 0.0
    %1358 = vmatprep.subr.mxu0 0.0
    %1359 = vmatpush1.xpose.msra.mxu0 0.0
    %1360 = vmatprep.subr.mxu0 0.0
    %1361 = vmatpush1.xpose.msra.mxu0 0.0
    %1362 = vmatprep.subr.mxu0 0.0
    %1363 = vmatpush1.xpose.msra.mxu0 0.0
    %1364 = vmatprep.subr.mxu0 0.0
    %1365 = vmatpush1.xpose.msra.mxu0 0.0
    %1366 = vmatprep.subr.mxu0 0.0
    %1367 = vmatpush1.xpose.msra.mxu0 0.0
    %1368 = vmatprep.subr.mxu0 0.0
    %1369 = vmatpush1.xpose.msra.mxu0 0.0
    %1370 = vmatprep.subr.mxu0 0.0
    %1371 = vmatpush1.xpose.msra.mxu0 0.0
    %1372 = vmatprep.subr.mxu0 0.0
    %1373 = vmatpush1.xpose.msra.mxu0 0.0
    %1374 = vmatprep.subr.mxu0 0.0
    %1375 = vmatpush1.xpose.msra.mxu0 0.0
    %1376 = vmatprep.mubr.f32.mxu0 0.0
    %1377 = vmatmul.mubr.f32.gmra.mrb[0].mxu0 %v1308
    %v1378 = vpop.f32.mrb[0].mxu0
    %v1379 = vadd.f32 %v41, %v1378
    %v1380 = vpop.f32.mrb[0].mxu0
    %1381 = vdwg.mxu0
    %v1382 = vsel %vm136, %v1379, -inf
    %1383 = vmax.xlane.f32.xlu0 %v1382
    %v1384 = vpop.xlane.xlu0 %1383
    %v1385 = vsub.f32 %v1379, %v1384
    %v1386 = vmul.f32 %v1385, 1.442695
    %v1387 = vpow.pop %v1386
    %v1388 = vsel %vm136, %v1387, 0.0
    %1389 = vadd.xlane.f32.xlu0 %v1388
    %v1390 = vpop.xlane.xlu0 %1389
    %v1391 = vrcp.pop %v1390
    %v1392 = vmul.f32 %v1387, %v1391
    %1393 = vrot.lane.b32.xlu0 %v130, 40
    %v1394 = vpop.permute.xlu0 %1393
    %v1397 = vsel %vm136, %v1392, 0
    %1399 = vmatprep.subr.mxu0 0.0
    %1400 = vmatpush1.msra.mxu0 %v1394
    %1401 = vmatprep.subr.mxu0 0.0
    %1402 = vmatpush1.msra.mxu0 0.0
    %1403 = vmatprep.subr.mxu0 0.0
    %1404 = vmatpush1.msra.mxu0 0.0
    %1405 = vmatprep.subr.mxu0 0.0
    %1406 = vmatpush1.msra.mxu0 0.0
    %1407 = vmatprep.subr.mxu0 0.0
    %1408 = vmatpush1.msra.mxu0 0.0
    %1409 = vmatprep.subr.mxu0 0.0
    %1410 = vmatpush1.msra.mxu0 0.0
    %1411 = vmatprep.subr.mxu0 0.0
    %1412 = vmatpush1.msra.mxu0 0.0
    %1413 = vmatprep.subr.mxu0 0.0
    %1414 = vmatpush1.msra.mxu0 0.0
    %1415 = vmatprep.subr.mxu0 0.0
    %1416 = vmatpush1.msra.mxu0 0.0
    %1417 = vmatprep.subr.mxu0 0.0
    %1418 = vmatpush1.msra.mxu0 0.0
    %1419 = vmatprep.subr.mxu0 0.0
    %1420 = vmatpush1.msra.mxu0 0.0
    %1421 = vmatprep.subr.mxu0 0.0
    %1422 = vmatpush1.msra.mxu0 0.0
    %1423 = vmatprep.subr.mxu0 0.0
    %1424 = vmatpush1.msra.mxu0 0.0
    %1425 = vmatprep.subr.mxu0 0.0
    %1426 = vmatpush1.msra.mxu0 0.0
    %1427 = vmatprep.subr.mxu0 0.0
    %1428 = vmatpush1.msra.mxu0 0.0
    %1429 = vmatprep.subr.mxu0 0.0
    %1430 = vmatpush1.msra.mxu0 0.0
    %1431 = vmatprep.subr.mxu0 0.0
    %1432 = vmatpush1.msra.mxu0 0.0
    %1433 = vmatprep.subr.mxu0 0.0
    %1434 = vmatpush1.msra.mxu0 0.0
    %1435 = vmatprep.subr.mxu0 0.0
    %1436 = vmatpush1.msra.mxu0 0.0
    %1437 = vmatprep.subr.mxu0 0.0
    %1438 = vmatpush1.msra.mxu0 0.0
    %1439 = vmatprep.subr.mxu0 0.0
    %1440 = vmatpush1.msra.mxu0 0.0
    %1441 = vmatprep.subr.mxu0 0.0
    %1442 = vmatpush1.msra.mxu0 0.0
    %1443 = vmatprep.subr.mxu0 0.0
    %1444 = vmatpush1.msra.mxu0 0.0
    %1445 = vmatprep.subr.mxu0 0.0
    %1446 = vmatpush1.msra.mxu0 0.0
    %1447 = vmatprep.subr.mxu0 0.0
    %1448 = vmatpush1.msra.mxu0 0.0
    %1449 = vmatprep.subr.mxu0 0.0
    %1450 = vmatpush1.msra.mxu0 0.0
    %1451 = vmatprep.subr.mxu0 0.0
    %1452 = vmatpush1.msra.mxu0 0.0
    %1453 = vmatprep.subr.mxu0 0.0
    %1454 = vmatpush1.msra.mxu0 0.0
    %1455 = vmatprep.subr.mxu0 0.0
    %1456 = vmatpush1.msra.mxu0 0.0
    %1457 = vmatprep.subr.mxu0 0.0
    %1458 = vmatpush1.msra.mxu0 0.0
    %1459 = vmatprep.subr.mxu0 0.0
    %1460 = vmatpush1.msra.mxu0 0.0
    %1461 = vmatprep.subr.mxu0 0.0
    %1462 = vmatpush1.msra.mxu0 0.0
    %1463 = vmatprep.mubr.f32.mxu0 0.0
    %1464 = vmatmul.mubr.f32.gmra.mrb[0].mxu0 %v1397
    %v1465 = vpop.f32.mrb[0].mxu0
    %v1466 = vadd.f32 0.0, %v1465
    %v1467 = vpop.f32.mrb[0].mxu0
    %1468 = vdwg.mxu0
    %1470 = vrot.lane.b32.xlu0 %v1136, 8
    %v1471 = vpop.permute.xlu0 %1470
    %1474 = vrot.lane.b32.xlu0 %v1301, 16
    %v1475 = vpop.permute.xlu0 %1474
    %1478 = vrot.lane.b32.xlu0 %v1466, 24
    %v1479 = vpop.permute.xlu0 %1478
    %v1481 = vsel %vm136, %v971, %v1471
    %v1482 = vsel %vm806, %v1481, %v1475
    %v1483 = vsel %vm808, %v1482, %v1479
    %v1484 = vld [vmem:[#allocation2 + $0x20] sm:$0xff]
    %v1485 = vld [vmem:[#allocation2 + $0x28] sm:$0xff]
    %v1486 = vld [vmem:[#allocation2 + $0x30] sm:$0xff]
    %v1487 = vld [vmem:[#allocation2 + $0x38] sm:$0xff]
    %v1488 = vld [vmem:[%s3 + $0x1] sm:$0x1]
    %v1489 = vlaneseq
    %v1490 = vshrl.u32 %v1489, 7
    %v1491 = vsub.s32 0, %v1490
    %v1492 = vrot.slane %v1488, %v1491
    %v1494 = vsel %vm51, %v809, 0
    %v1497 = vsel %vm51, %v1483, 0
    %1499 = vmatprep.subr.mxu0 0.0
    %1500 = vmatpush1.msra.mxu0 %v1484
    %1501 = vmatprep.subr.mxu0 0.0
    %1502 = vmatpush1.msra.mxu0 %v1485
    %1503 = vmatprep.subr.mxu0 0.0
    %1504 = vmatpush1.msra.mxu0 %v1486
    %1505 = vmatprep.subr.mxu0 0.0
    %1506 = vmatpush1.msra.mxu0 %v1487
    %1507 = vmatprep.subr.mxu0 0.0
    %1508 = vmatpush1.msra.mxu0 0.0
    %1509 = vmatprep.subr.mxu0 0.0
    %1510 = vmatpush1.msra.mxu0 0.0
    %1511 = vmatprep.subr.mxu0 0.0
    %1512 = vmatpush1.msra.mxu0 0.0
    %1513 = vmatprep.subr.mxu0 0.0
    %1514 = vmatpush1.msra.mxu0 0.0
    %1515 = vmatprep.subr.mxu0 0.0
    %1516 = vmatpush1.msra.mxu0 0.0
    %1517 = vmatprep.subr.mxu0 0.0
    %1518 = vmatpush1.msra.mxu0 0.0
    %1519 = vmatprep.subr.mxu0 0.0
    %1520 = vmatpush1.msra.mxu0 0.0
    %1521 = vmatprep.subr.mxu0 0.0
    %1522 = vmatpush1.msra.mxu0 0.0
    %1523 = vmatprep.subr.mxu0 0.0
    %1524 = vmatpush1.msra.mxu0 0.0
    %1525 = vmatprep.subr.mxu0 0.0
    %1526 = vmatpush1.msra.mxu0 0.0
    %1527 = vmatprep.subr.mxu0 0.0
    %1528 = vmatpush1.msra.mxu0 0.0
    %1529 = vmatprep.subr.mxu0 0.0
    %1530 = vmatpush1.msra.mxu0 0.0
    %1531 = vmatprep.subr.mxu0 0.0
    %1532 = vmatpush1.msra.mxu0 0.0
    %1533 = vmatprep.subr.mxu0 0.0
    %1534 = vmatpush1.msra.mxu0 0.0
    %1535 = vmatprep.subr.mxu0 0.0
    %1536 = vmatpush1.msra.mxu0 0.0
    %1537 = vmatprep.subr.mxu0 0.0
    %1538 = vmatpush1.msra.mxu0 0.0
    %1539 = vmatprep.subr.mxu0 0.0
    %1540 = vmatpush1.msra.mxu0 0.0
    %1541 = vmatprep.subr.mxu0 0.0
    %1542 = vmatpush1.msra.mxu0 0.0
    %1543 = vmatprep.subr.mxu0 0.0
    %1544 = vmatpush1.msra.mxu0 0.0
    %1545 = vmatprep.subr.mxu0 0.0
    %1546 = vmatpush1.msra.mxu0 0.0
    %1547 = vmatprep.subr.mxu0 0.0
    %1548 = vmatpush1.msra.mxu0 0.0
    %1549 = vmatprep.subr.mxu0 0.0
    %1550 = vmatpush1.msra.mxu0 0.0
    %1551 = vmatprep.subr.mxu0 0.0
    %1552 = vmatpush1.msra.mxu0 0.0
    %1553 = vmatprep.subr.mxu0 0.0
    %1554 = vmatpush1.msra.mxu0 0.0
    %1555 = vmatprep.subr.mxu0 0.0
    %1556 = vmatpush1.msra.mxu0 0.0
    %1557 = vmatprep.subr.mxu0 0.0
    %1558 = vmatpush1.msra.mxu0 0.0
    %1559 = vmatprep.subr.mxu0 0.0
    %1560 = vmatpush1.msra.mxu0 0.0
    %1561 = vmatprep.subr.mxu0 0.0
    %1562 = vmatpush1.msra.mxu0 0.0
    %1563 = vmatprep.mubr.f32.mxu0 0.0
    %1564 = vmatmul.mubr.f32.gmra.mrb[0].mxu0 %v1494
    %v1565 = vpop.f32.mrb[0].mxu0
    %v1566 = vadd.f32 %v1492, %v1565
    %v1567 = vpop.f32.mrb[0].mxu0
    %1568 = vmatprep.mubr.f32.mxu0 0.0
    %1569 = vmatmul.mubr.f32.gmra.mrb[0].mxu0 %v1497
    %v1570 = vpop.f32.mrb[0].mxu0
    %v1571 = vadd.f32 %v1492, %v1570
    %v1572 = vpop.f32.mrb[0].mxu0
    %1573 = vdwg.mxu0
    %v1574 = vadd.f32 %v32, %v1566
    %v1575 = vadd.f32 %v33, %v1571
    %v1576 = vld [vmem:[%s3 + $0x5] sm:$0x1]
    %v1577 = vld [vmem:[%s3 + $0x6] sm:$0x1]
    %v1578 = vsel %vm51, %v1574, 0.0
    %1579 = vadd.xlane.f32.xlu0 %v1578
    %v1580 = vpop.xlane.xlu0 %1579
    %v1581 = vsel %vm51, %v1575, 0.0
    %1582 = vadd.xlane.f32.xlu0 %v1581
    %v1583 = vpop.xlane.xlu0 %1582
    %v1584 = vrcp.pop 32.0
    %v1585 = vmul.f32 %v1580, %v1584
    %v1586 = vmul.f32 %v1583, %v1584
    %v1587 = vsub.f32 %v1574, %v1585
    %v1588 = vsub.f32 %v1575, %v1586
    %v1589 = vmul.f32 %v1587, %v1587
    %v1590 = vmul.f32 %v1588, %v1588
    %v1591 = vsel %vm51, %v1589, 0.0
    %1592 = vadd.xlane.f32.xlu0 %v1591
    %v1593 = vpop.xlane.xlu0 %1592
    %v1594 = vsel %vm51, %v1590, 0.0
    %1595 = vadd.xlane.f32.xlu0 %v1594
    %v1596 = vpop.xlane.xlu0 %1595
    %v1597 = vmul.f32 %v1593, %v1584
    %v1598 = vmul.f32 %v1596, %v1584
    %v1599 = vadd.f32 %v1597, 1e-05
    %v1600 = vadd.f32 %v1598, 1e-05
    %v1601 = vrsqrt.pop %v1599
    %v1602 = vrsqrt.pop %v1600
    %v1603 = vmul.f32 %v1587, %v1601
    %v1604 = vmul.f32 %v1588, %v1602
    %v1605 = vlaneseq
    %v1606 = vshrl.u32 %v1605, 7
    %v1607 = vsub.s32 0, %v1606
    %v1608 = vrot.slane %v1576, %v1607
    %v1609 = vmul.f32 %v1603, %v1608
    %v1610 = vmul.f32 %v1604, %v1608
    %v1611 = vlaneseq
    %v1612 = vshrl.u32 %v1611, 7
    %v1613 = vsub.s32 0, %v1612
    %v1614 = vrot.slane %v1577, %v1613
    %v1615 = vadd.f32 %v1609, %v1614
    %v1616 = vadd.f32 %v1610, %v1614
    %v1617 = vld [vmem:[#allocation2 + $0x40] sm:$0xff]
    %v1618 = vld [vmem:[#allocation2 + $0x48] sm:$0xff]
    %v1619 = vld [vmem:[#allocation2 + $0x50] sm:$0xff]
    %v1620 = vld [vmem:[#allocation2 + $0x58] sm:$0xff]
    %v1621 = vld [vmem:[%s3 + $0x2] sm:$0x1]
    %v1622 = vlaneseq
    %v1623 = vshrl.u32 %v1622, 7
    %v1624 = vsub.s32 0, %v1623
    %v1625 = vrot.slane %v1621, %v1624
    %v1627 = vsel %vm51, %v1615, 0
    %v1630 = vsel %vm51, %v1616, 0
    %1632 = vmatprep.subr.mxu0 0.0
    %1633 = vmatpush1.msra.mxu0 %v1617
    %1634 = vmatprep.subr.mxu0 0.0
    %1635 = vmatpush1.msra.mxu0 %v1618
    %1636 = vmatprep.subr.mxu0 0.0
    %1637 = vmatpush1.msra.mxu0 %v1619
    %1638 = vmatprep.subr.mxu0 0.0
    %1639 = vmatpush1.msra.mxu0 %v1620
    %1640 = vmatprep.subr.mxu0 0.0
    %1641 = vmatpush1.msra.mxu0 0.0
    %1642 = vmatprep.subr.mxu0 0.0
    %1643 = vmatpush1.msra.mxu0 0.0
    %1644 = vmatprep.subr.mxu0 0.0
    %1645 = vmatpush1.msra.mxu0 0.0
    %1646 = vmatprep.subr.mxu0 0.0
    %1647 = vmatpush1.msra.mxu0 0.0
    %1648 = vmatprep.subr.mxu0 0.0
    %1649 = vmatpush1.msra.mxu0 0.0
    %1650 = vmatprep.subr.mxu0 0.0
    %1651 = vmatpush1.msra.mxu0 0.0
    %1652 = vmatprep.subr.mxu0 0.0
    %1653 = vmatpush1.msra.mxu0 0.0
    %1654 = vmatprep.subr.mxu0 0.0
    %1655 = vmatpush1.msra.mxu0 0.0
    %1656 = vmatprep.subr.mxu0 0.0
    %1657 = vmatpush1.msra.mxu0 0.0
    %1658 = vmatprep.subr.mxu0 0.0
    %1659 = vmatpush1.msra.mxu0 0.0
    %1660 = vmatprep.subr.mxu0 0.0
    %1661 = vmatpush1.msra.mxu0 0.0
    %1662 = vmatprep.subr.mxu0 0.0
    %1663 = vmatpush1.msra.mxu0 0.0
    %1664 = vmatprep.subr.mxu0 0.0
    %1665 = vmatpush1.msra.mxu0 0.0
    %1666 = vmatprep.subr.mxu0 0.0
    %1667 = vmatpush1.msra.mxu0 0.0
    %1668 = vmatprep.subr.mxu0 0.0
    %1669 = vmatpush1.msra.mxu0 0.0
    %1670 = vmatprep.subr.mxu0 0.0
    %1671 = vmatpush1.msra.mxu0 0.0
    %1672 = vmatprep.subr.mxu0 0.0
    %1673 = vmatpush1.msra.mxu0 0.0
    %1674 = vmatprep.subr.mxu0 0.0
    %1675 = vmatpush1.msra.mxu0 0.0
    %1676 = vmatprep.subr.mxu0 0.0
    %1677 = vmatpush1.msra.mxu0 0.0
    %1678 = vmatprep.subr.mxu0 0.0
    %1679 = vmatpush1.msra.mxu0 0.0
    %1680 = vmatprep.subr.mxu0 0.0
    %1681 = vmatpush1.msra.mxu0 0.0
    %1682 = vmatprep.subr.mxu0 0.0
    %1683 = vmatpush1.msra.mxu0 0.0
    %1684 = vmatprep.subr.mxu0 0.0
    %1685 = vmatpush1.msra.mxu0 0.0
    %1686 = vmatprep.subr.mxu0 0.0
    %1687 = vmatpush1.msra.mxu0 0.0
    %1688 = vmatprep.subr.mxu0 0.0
    %1689 = vmatpush1.msra.mxu0 0.0
    %1690 = vmatprep.subr.mxu0 0.0
    %1691 = vmatpush1.msra.mxu0 0.0
    %1692 = vmatprep.subr.mxu0 0.0
    %1693 = vmatpush1.msra.mxu0 0.0
    %1694 = vmatprep.subr.mxu0 0.0
    %1695 = vmatpush1.msra.mxu0 0.0
    %1696 = vmatprep.mubr.f32.mxu0 0.0
    %1697 = vmatmul.mubr.f32.gmra.mrb[0].mxu0 %v1627
    %v1698 = vpop.f32.mrb[0].mxu0
    %v1699 = vadd.f32 %v1625, %v1698
    %v1700 = vpop.f32.mrb[0].mxu0
    %1701 = vmatprep.mubr.f32.mxu0 0.0
    %1702 = vmatmul.mubr.f32.gmra.mrb[0].mxu0 %v1630
    %v1703 = vpop.f32.mrb[0].mxu0
    %v1704 = vadd.f32 %v1625, %v1703
    %v1705 = vpop.f32.mrb[0].mxu0
    %1706 = vdwg.mxu0
    %v1707 = vld [vmem:[#allocation2 + $0x60] sm:$0xff]
    %v1708 = vld [vmem:[#allocation2 + $0x68] sm:$0xff]
    %v1709 = vld [vmem:[#allocation2 + $0x70] sm:$0xff]
    %v1710 = vld [vmem:[#allocation2 + $0x78] sm:$0xff]
    %v1711 = vld [vmem:[%s3 + $0x3] sm:$0x1]
    %v1712 = vlaneseq
    %v1713 = vshrl.u32 %v1712, 7
    %v1714 = vsub.s32 0, %v1713
    %v1715 = vrot.slane %v1711, %v1714
    %v1717 = vsel %vm51, %v34, 0
    %v1720 = vsel %vm51, %v35, 0
    %1722 = vmatprep.subr.mxu0 0.0
    %1723 = vmatpush1.msra.mxu0 %v1707
    %1724 = vmatprep.subr.mxu0 0.0
    %1725 = vmatpush1.msra.mxu0 %v1708
    %1726 = vmatprep.subr.mxu0 0.0
    %1727 = vmatpush1.msra.mxu0 %v1709
    %1728 = vmatprep.subr.mxu0 0.0
    %1729 = vmatpush1.msra.mxu0 %v1710
    %1730 = vmatprep.subr.mxu0 0.0
    %1731 = vmatpush1.msra.mxu0 0.0
    %1732 = vmatprep.subr.mxu0 0.0
    %1733 = vmatpush1.msra.mxu0 0.0
    %1734 = vmatprep.subr.mxu0 0.0
    %1735 = vmatpush1.msra.mxu0 0.0
    %1736 = vmatprep.subr.mxu0 0.0
    %1737 = vmatpush1.msra.mxu0 0.0
    %1738 = vmatprep.subr.mxu0 0.0
    %1739 = vmatpush1.msra.mxu0 0.0
    %1740 = vmatprep.subr.mxu0 0.0
    %1741 = vmatpush1.msra.mxu0 0.0
    %1742 = vmatprep.subr.mxu0 0.0
    %1743 = vmatpush1.msra.mxu0 0.0
    %1744 = vmatprep.subr.mxu0 0.0
    %1745 = vmatpush1.msra.mxu0 0.0
    %1746 = vmatprep.subr.mxu0 0.0
    %1747 = vmatpush1.msra.mxu0 0.0
    %1748 = vmatprep.subr.mxu0 0.0
    %1749 = vmatpush1.msra.mxu0 0.0
    %1750 = vmatprep.subr.mxu0 0.0
    %1751 = vmatpush1.msra.mxu0 0.0
    %1752 = vmatprep.subr.mxu0 0.0
    %1753 = vmatpush1.msra.mxu0 0.0
    %1754 = vmatprep.subr.mxu0 0.0
    %1755 = vmatpush1.msra.mxu0 0.0
    %1756 = vmatprep.subr.mxu0 0.0
    %1757 = vmatpush1.msra.mxu0 0.0
    %1758 = vmatprep.subr.mxu0 0.0
    %1759 = vmatpush1.msra.mxu0 0.0
    %1760 = vmatprep.subr.mxu0 0.0
    %1761 = vmatpush1.msra.mxu0 0.0
    %1762 = vmatprep.subr.mxu0 0.0
    %1763 = vmatpush1.msra.mxu0 0.0
    %1764 = vmatprep.subr.mxu0 0.0
    %1765 = vmatpush1.msra.mxu0 0.0
    %1766 = vmatprep.subr.mxu0 0.0
    %1767 = vmatpush1.msra.mxu0 0.0
    %1768 = vmatprep.subr.mxu0 0.0
    %1769 = vmatpush1.msra.mxu0 0.0
    %1770 = vmatprep.subr.mxu0 0.0
    %1771 = vmatpush1.msra.mxu0 0.0
    %1772 = vmatprep.subr.mxu0 0.0
    %1773 = vmatpush1.msra.mxu0 0.0
    %1774 = vmatprep.subr.mxu0 0.0
    %1775 = vmatpush1.msra.mxu0 0.0
    %1776 = vmatprep.subr.mxu0 0.0
    %1777 = vmatpush1.msra.mxu0 0.0
    %1778 = vmatprep.subr.mxu0 0.0
    %1779 = vmatpush1.msra.mxu0 0.0
    %1780 = vmatprep.subr.mxu0 0.0
    %1781 = vmatpush1.msra.mxu0 0.0
    %1782 = vmatprep.subr.mxu0 0.0
    %1783 = vmatpush1.msra.mxu0 0.0
    %1784 = vmatprep.subr.mxu0 0.0
    %1785 = vmatpush1.msra.mxu0 0.0
    %1786 = vmatprep.mubr.f32.mxu0 0.0
    %1787 = vmatmul.mubr.f32.gmra.mrb[0].mxu0 %v1717
    %v1788 = vpop.f32.mrb[0].mxu0
    %v1789 = vadd.f32 %v1715, %v1788
    %v1790 = vpop.f32.mrb[0].mxu0
    %1791 = vmatprep.mubr.f32.mxu0 0.0
    %1792 = vmatmul.mubr.f32.gmra.mrb[0].mxu0 %v1720
    %v1793 = vpop.f32.mrb[0].mxu0
    %v1794 = vadd.f32 %v1715, %v1793
    %v1795 = vpop.f32.mrb[0].mxu0
    %1796 = vdwg.mxu0
    %v1798 = vsel %vm136, %v1699, 0
    %v1801 = vsel %vm136, %v1789, 0
    %1803 = vmatprep.subr.mxu0 0.0
    %1804 = vmatpush1.xpose.msra.mxu0 %v1801
    %1805 = vmatprep.subr.mxu0 0.0
    %1806 = vmatpush1.xpose.msra.mxu0 0.0
    %1807 = vmatprep.subr.mxu0 0.0
    %1808 = vmatpush1.xpose.msra.mxu0 0.0
    %1809 = vmatprep.subr.mxu0 0.0
    %1810 = vmatpush1.xpose.msra.mxu0 0.0
    %1811 = vmatprep.subr.mxu0 0.0
    %1812 = vmatpush1.xpose.msra.mxu0 0.0
    %1813 = vmatprep.subr.mxu0 0.0
    %1814 = vmatpush1.xpose.msra.mxu0 0.0
    %1815 = vmatprep.subr.mxu0 0.0
    %1816 = vmatpush1.xpose.msra.mxu0 0.0
    %1817 = vmatprep.subr.mxu0 0.0
    %1818 = vmatpush1.xpose.msra.mxu0 0.0
    %1819 = vmatprep.subr.mxu0 0.0
    %1820 = vmatpush1.xpose.msra.mxu0 0.0
    %1821 = vmatprep.subr.mxu0 0.0
    %1822 = vmatpush1.xpose.msra.mxu0 0.0
    %1823 = vmatprep.subr.mxu0 0.0
    %1824 = vmatpush1.xpose.msra.mxu0 0.0
    %1825 = vmatprep.subr.mxu0 0.0
    %1826 = vmatpush1.xpose.msra.mxu0 0.0
    %1827 = vmatprep.subr.mxu0 0.0
    %1828 = vmatpush1.xpose.msra.mxu0 0.0
    %1829 = vmatprep.subr.mxu0 0.0
    %1830 = vmatpush1.xpose.msra.mxu0 0.0
    %1831 = vmatprep.subr.mxu0 0.0
    %1832 = vmatpush1.xpose.msra.mxu0 0.0
    %1833 = vmatprep.subr.mxu0 0.0
    %1834 = vmatpush1.xpose.msra.mxu0 0.0
    %1835 = vmatprep.subr.mxu0 0.0
    %1836 = vmatpush1.xpose.msra.mxu0 0.0
    %1837 = vmatprep.subr.mxu0 0.0
    %1838 = vmatpush1.xpose.msra.mxu0 0.0
    %1839 = vmatprep.subr.mxu0 0.0
    %1840 = vmatpush1.xpose.msra.mxu0 0.0
    %1841 = vmatprep.subr.mxu0 0.0
    %1842 = vmatpush1.xpose.msra.mxu0 0.0
    %1843 = vmatprep.subr.mxu0 0.0
    %1844 = vmatpush1.xpose.msra.mxu0 0.0
    %1845 = vmatprep.subr.mxu0 0.0
    %1846 = vmatpush1.xpose.msra.mxu0 0.0
    %1847 = vmatprep.subr.mxu0 0.0
    %1848 = vmatpush1.xpose.msra.mxu0 0.0
    %1849 = vmatprep.subr.mxu0 0.0
    %1850 = vmatpush1.xpose.msra.mxu0 0.0
    %1851 = vmatprep.subr.mxu0 0.0
    %1852 = vmatpush1.xpose.msra.mxu0 0.0
    %1853 = vmatprep.subr.mxu0 0.0
    %1854 = vmatpush1.xpose.msra.mxu0 0.0
    %1855 = vmatprep.subr.mxu0 0.0
    %1856 = vmatpush1.xpose.msra.mxu0 0.0
    %1857 = vmatprep.subr.mxu0 0.0
    %1858 = vmatpush1.xpose.msra.mxu0 0.0
    %1859 = vmatprep.subr.mxu0 0.0
    %1860 = vmatpush1.xpose.msra.mxu0 0.0
    %1861 = vmatprep.subr.mxu0 0.0
    %1862 = vmatpush1.xpose.msra.mxu0 0.0
    %1863 = vmatprep.subr.mxu0 0.0
    %1864 = vmatpush1.xpose.msra.mxu0 0.0
    %1865 = vmatprep.subr.mxu0 0.0
    %1866 = vmatpush1.xpose.msra.mxu0 0.0
    %1867 = vmatprep.mubr.f32.mxu0 0.0
    %1868 = vmatmul.mubr.f32.gmra.mrb[0].mxu0 %v1798
    %v1869 = vpop.f32.mrb[0].mxu0
    %v1870 = vadd.f32 0.0, %v1869
    %v1871 = vpop.f32.mrb[0].mxu0
    %1872 = vdwg.mxu0
    %v1873 = vsel %vm136, %v1870, -inf
    %1874 = vmax.xlane.f32.xlu0 %v1873
    %v1875 = vpop.xlane.xlu0 %1874
    %v1876 = vsub.f32 %v1870, %v1875
    %v1877 = vmul.f32 %v1876, 1.442695
    %v1878 = vpow.pop %v1877
    %v1879 = vsel %vm136, %v1878, 0.0
    %1880 = vadd.xlane.f32.xlu0 %v1879
    %v1881 = vpop.xlane.xlu0 %1880
    %v1882 = vrcp.pop %v1881
    %v1883 = vmul.f32 %v1878, %v1882
    %1884 = vrot.lane.b32.xlu0 %v1789, 96
    %v1885 = vpop.permute.xlu0 %1884
    %v1888 = vsel %vm136, %v1883, 0
    %1890 = vmatprep.subr.mxu0 0.0
    %1891 = vmatpush1.msra.mxu0 %v1885
    %1892 = vmatprep.subr.mxu0 0.0
    %1893 = vmatpush1.msra.mxu0 0.0
    %1894 = vmatprep.subr.mxu0 0.0
    %1895 = vmatpush1.msra.mxu0 0.0
    %1896 = vmatprep.subr.mxu0 0.0
    %1897 = vmatpush1.msra.mxu0 0.0
    %1898 = vmatprep.subr.mxu0 0.0
    %1899 = vmatpush1.msra.mxu0 0.0
    %1900 = vmatprep.subr.mxu0 0.0
    %1901 = vmatpush1.msra.mxu0 0.0
    %1902 = vmatprep.subr.mxu0 0.0
    %1903 = vmatpush1.msra.mxu0 0.0
    %1904 = vmatprep.subr.mxu0 0.0
    %1905 = vmatpush1.msra.mxu0 0.0
    %1906 = vmatprep.subr.mxu0 0.0
    %1907 = vmatpush1.msra.mxu0 0.0
    %1908 = vmatprep.subr.mxu0 0.0
    %1909 = vmatpush1.msra.mxu0 0.0
    %1910 = vmatprep.subr.mxu0 0.0
    %1911 = vmatpush1.msra.mxu0 0.0
    %1912 = vmatprep.subr.mxu0 0.0
    %1913 = vmatpush1.msra.mxu0 0.0
    %1914 = vmatprep.subr.mxu0 0.0
    %1915 = vmatpush1.msra.mxu0 0.0
    %1916 = vmatprep.subr.mxu0 0.0
    %1917 = vmatpush1.msra.mxu0 0.0
    %1918 = vmatprep.subr.mxu0 0.0
    %1919 = vmatpush1.msra.mxu0 0.0
    %1920 = vmatprep.subr.mxu0 0.0
    %1921 = vmatpush1.msra.mxu0 0.0
    %1922 = vmatprep.subr.mxu0 0.0
    %1923 = vmatpush1.msra.mxu0 0.0
    %1924 = vmatprep.subr.mxu0 0.0
    %1925 = vmatpush1.msra.mxu0 0.0
    %1926 = vmatprep.subr.mxu0 0.0
    %1927 = vmatpush1.msra.mxu0 0.0
    %1928 = vmatprep.subr.mxu0 0.0
    %1929 = vmatpush1.msra.mxu0 0.0
    %1930 = vmatprep.subr.mxu0 0.0
    %1931 = vmatpush1.msra.mxu0 0.0
    %1932 = vmatprep.subr.mxu0 0.0
    %1933 = vmatpush1.msra.mxu0 0.0
    %1934 = vmatprep.subr.mxu0 0.0
    %1935 = vmatpush1.msra.mxu0 0.0
    %1936 = vmatprep.subr.mxu0 0.0
    %1937 = vmatpush1.msra.mxu0 0.0
    %1938 = vmatprep.subr.mxu0 0.0
    %1939 = vmatpush1.msra.mxu0 0.0
    %1940 = vmatprep.subr.mxu0 0.0
    %1941 = vmatpush1.msra.mxu0 0.0
    %1942 = vmatprep.subr.mxu0 0.0
    %1943 = vmatpush1.msra.mxu0 0.0
    %1944 = vmatprep.subr.mxu0 0.0
    %1945 = vmatpush1.msra.mxu0 0.0
    %1946 = vmatprep.subr.mxu0 0.0
    %1947 = vmatpush1.msra.mxu0 0.0
    %1948 = vmatprep.subr.mxu0 0.0
    %1949 = vmatpush1.msra.mxu0 0.0
    %1950 = vmatprep.subr.mxu0 0.0
    %1951 = vmatpush1.msra.mxu0 0.0
    %1952 = vmatprep.subr.mxu0 0.0
    %1953 = vmatpush1.msra.mxu0 0.0
    %1954 = vmatprep.mubr.f32.mxu0 0.0
    %1955 = vmatmul.mubr.f32.gmra.mrb[0].mxu0 %v1888
    %v1956 = vpop.f32.mrb[0].mxu0
    %v1957 = vadd.f32 0.0, %v1956
    %v1958 = vpop.f32.mrb[0].mxu0
    %1959 = vdwg.mxu0
    %1960 = vrot.lane.b32.xlu0 %v1699, 120
    %v1961 = vpop.permute.xlu0 %1960
    %1962 = vrot.lane.b32.xlu0 %v1789, 120
    %v1963 = vpop.permute.xlu0 %1962
    %v1964 = vsel %vm136, %v1961, 0
    %v1966 = vsel %vm136, %v1963, 0
    %1968 = vmatprep.subr.mxu0 0.0
    %1969 = vmatpush1.xpose.msra.mxu0 %v1966
    %1970 = vmatprep.subr.mxu0 0.0
    %1971 = vmatpush1.xpose.msra.mxu0 0.0
    %1972 = vmatprep.subr.mxu0 0.0
    %1973 = vmatpush1.xpose.msra.mxu0 0.0
    %1974 = vmatprep.subr.mxu0 0.0
    %1975 = vmatpush1.xpose.msra.mxu0 0.0
    %1976 = vmatprep.subr.mxu0 0.0
    %1977 = vmatpush1.xpose.msra.mxu0 0.0
    %1978 = vmatprep.subr.mxu0 0.0
    %1979 = vmatpush1.xpose.msra.mxu0 0.0
    %1980 = vmatprep.subr.mxu0 0.0
    %1981 = vmatpush1.xpose.msra.mxu0 0.0
    %1982 = vmatprep.subr.mxu0 0.0
    %1983 = vmatpush1.xpose.msra.mxu0 0.0
    %1984 = vmatprep.subr.mxu0 0.0
    %1985 = vmatpush1.xpose.msra.mxu0 0.0
    %1986 = vmatprep.subr.mxu0 0.0
    %1987 = vmatpush1.xpose.msra.mxu0 0.0
    %1988 = vmatprep.subr.mxu0 0.0
    %1989 = vmatpush1.xpose.msra.mxu0 0.0
    %1990 = vmatprep.subr.mxu0 0.0
    %1991 = vmatpush1.xpose.msra.mxu0 0.0
    %1992 = vmatprep.subr.mxu0 0.0
    %1993 = vmatpush1.xpose.msra.mxu0 0.0
    %1994 = vmatprep.subr.mxu0 0.0
    %1995 = vmatpush1.xpose.msra.mxu0 0.0
    %1996 = vmatprep.subr.mxu0 0.0
    %1997 = vmatpush1.xpose.msra.mxu0 0.0
    %1998 = vmatprep.subr.mxu0 0.0
    %1999 = vmatpush1.xpose.msra.mxu0 0.0
    %2000 = vmatprep.subr.mxu0 0.0
    %2001 = vmatpush1.xpose.msra.mxu0 0.0
    %2002 = vmatprep.subr.mxu0 0.0
    %2003 = vmatpush1.xpose.msra.mxu0 0.0
    %2004 = vmatprep.subr.mxu0 0.0
    %2005 = vmatpush1.xpose.msra.mxu0 0.0
    %2006 = vmatprep.subr.mxu0 0.0
    %2007 = vmatpush1.xpose.msra.mxu0 0.0
    %2008 = vmatprep.subr.mxu0 0.0
    %2009 = vmatpush1.xpose.msra.mxu0 0.0
    %2010 = vmatprep.subr.mxu0 0.0
    %2011 = vmatpush1.xpose.msra.mxu0 0.0
    %2012 = vmatprep.subr.mxu0 0.0
    %2013 = vmatpush1.xpose.msra.mxu0 0.0
    %2014 = vmatprep.subr.mxu0 0.0
    %2015 = vmatpush1.xpose.msra.mxu0 0.0
    %2016 = vmatprep.subr.mxu0 0.0
    %2017 = vmatpush1.xpose.msra.mxu0 0.0
    %2018 = vmatprep.subr.mxu0 0.0
    %2019 = vmatpush1.xpose.msra.mxu0 0.0
    %2020 = vmatprep.subr.mxu0 0.0
    %2021 = vmatpush1.xpose.msra.mxu0 0.0
    %2022 = vmatprep.subr.mxu0 0.0
    %2023 = vmatpush1.xpose.msra.mxu0 0.0
    %2024 = vmatprep.subr.mxu0 0.0
    %2025 = vmatpush1.xpose.msra.mxu0 0.0
    %2026 = vmatprep.subr.mxu0 0.0
    %2027 = vmatpush1.xpose.msra.mxu0 0.0
    %2028 = vmatprep.subr.mxu0 0.0
    %2029 = vmatpush1.xpose.msra.mxu0 0.0
    %2030 = vmatprep.subr.mxu0 0.0
    %2031 = vmatpush1.xpose.msra.mxu0 0.0
    %2032 = vmatprep.mubr.f32.mxu0 0.0
    %2033 = vmatmul.mubr.f32.gmra.mrb[0].mxu0 %v1964
    %v2034 = vpop.f32.mrb[0].mxu0
    %v2035 = vadd.f32 0.0, %v2034
    %v2036 = vpop.f32.mrb[0].mxu0
    %2037 = vdwg.mxu0
    %v2038 = vsel %vm136, %v2035, -inf
    %2039 = vmax.xlane.f32.xlu0 %v2038
    %v2040 = vpop.xlane.xlu0 %2039
    %v2041 = vsub.f32 %v2035, %v2040
    %v2042 = vmul.f32 %v2041, 1.442695
    %v2043 = vpow.pop %v2042
    %v2044 = vsel %vm136, %v2043, 0.0
    %2045 = vadd.xlane.f32.xlu0 %v2044
    %v2046 = vpop.xlane.xlu0 %2045
    %v2047 = vrcp.pop %v2046
    %v2048 = vmul.f32 %v2043, %v2047
    %2049 = vrot.lane.b32.xlu0 %v1789, 88
    %v2050 = vpop.permute.xlu0 %2049
    %v2053 = vsel %vm136, %v2048, 0
    %2055 = vmatprep.subr.mxu0 0.0
    %2056 = vmatpush1.msra.mxu0 %v2050
    %2057 = vmatprep.subr.mxu0 0.0
    %2058 = vmatpush1.msra.mxu0 0.0
    %2059 = vmatprep.subr.mxu0 0.0
    %2060 = vmatpush1.msra.mxu0 0.0
    %2061 = vmatprep.subr.mxu0 0.0
    %2062 = vmatpush1.msra.mxu0 0.0
    %2063 = vmatprep.subr.mxu0 0.0
    %2064 = vmatpush1.msra.mxu0 0.0
    %2065 = vmatprep.subr.mxu0 0.0
    %2066 = vmatpush1.msra.mxu0 0.0
    %2067 = vmatprep.subr.mxu0 0.0
    %2068 = vmatpush1.msra.mxu0 0.0
    %2069 = vmatprep.subr.mxu0 0.0
    %2070 = vmatpush1.msra.mxu0 0.0
    %2071 = vmatprep.subr.mxu0 0.0
    %2072 = vmatpush1.msra.mxu0 0.0
    %2073 = vmatprep.subr.mxu0 0.0
    %2074 = vmatpush1.msra.mxu0 0.0
    %2075 = vmatprep.subr.mxu0 0.0
    %2076 = vmatpush1.msra.mxu0 0.0
    %2077 = vmatprep.subr.mxu0 0.0
    %2078 = vmatpush1.msra.mxu0 0.0
    %2079 = vmatprep.subr.mxu0 0.0
    %2080 = vmatpush1.msra.mxu0 0.0
    %2081 = vmatprep.subr.mxu0 0.0
    %2082 = vmatpush1.msra.mxu0 0.0
    %2083 = vmatprep.subr.mxu0 0.0
    %2084 = vmatpush1.msra.mxu0 0.0
    %2085 = vmatprep.subr.mxu0 0.0
    %2086 = vmatpush1.msra.mxu0 0.0
    %2087 = vmatprep.subr.mxu0 0.0
    %2088 = vmatpush1.msra.mxu0 0.0
    %2089 = vmatprep.subr.mxu0 0.0
    %2090 = vmatpush1.msra.mxu0 0.0
    %2091 = vmatprep.subr.mxu0 0.0
    %2092 = vmatpush1.msra.mxu0 0.0
    %2093 = vmatprep.subr.mxu0 0.0
    %2094 = vmatpush1.msra.mxu0 0.0
    %2095 = vmatprep.subr.mxu0 0.0
    %2096 = vmatpush1.msra.mxu0 0.0
    %2097 = vmatprep.subr.mxu0 0.0
    %2098 = vmatpush1.msra.mxu0 0.0
    %2099 = vmatprep.subr.mxu0 0.0
    %2100 = vmatpush1.msra.mxu0 0.0
    %2101 = vmatprep.subr.mxu0 0.0
    %2102 = vmatpush1.msra.mxu0 0.0
    %2103 = vmatprep.subr.mxu0 0.0
    %2104 = vmatpush1.msra.mxu0 0.0
    %2105 = vmatprep.subr.mxu0 0.0
    %2106 = vmatpush1.msra.mxu0 0.0
    %2107 = vmatprep.subr.mxu0 0.0
    %2108 = vmatpush1.msra.mxu0 0.0
    %2109 = vmatprep.subr.mxu0 0.0
    %2110 = vmatpush1.msra.mxu0 0.0
    %2111 = vmatprep.subr.mxu0 0.0
    %2112 = vmatpush1.msra.mxu0 0.0
    %2113 = vmatprep.subr.mxu0 0.0
    %2114 = vmatpush1.msra.mxu0 0.0
    %2115 = vmatprep.subr.mxu0 0.0
    %2116 = vmatpush1.msra.mxu0 0.0
    %2117 = vmatprep.subr.mxu0 0.0
    %2118 = vmatpush1.msra.mxu0 0.0
    %2119 = vmatprep.mubr.f32.mxu0 0.0
    %2120 = vmatmul.mubr.f32.gmra.mrb[0].mxu0 %v2053
    %v2121 = vpop.f32.mrb[0].mxu0
    %v2122 = vadd.f32 0.0, %v2121
    %v2123 = vpop.f32.mrb[0].mxu0
    %2124 = vdwg.mxu0
    %2125 = vrot.lane.b32.xlu0 %v1699, 112
    %v2126 = vpop.permute.xlu0 %2125
    %2127 = vrot.lane.b32.xlu0 %v1789, 112
    %v2128 = vpop.permute.xlu0 %2127
    %v2129 = vsel %vm136, %v2126, 0
    %v2131 = vsel %vm136, %v2128, 0
    %2133 = vmatprep.subr.mxu0 0.0
    %2134 = vmatpush1.xpose.msra.mxu0 %v2131
    %2135 = vmatprep.subr.mxu0 0.0
    %2136 = vmatpush1.xpose.msra.mxu0 0.0
    %2137 = vmatprep.subr.mxu0 0.0
    %2138 = vmatpush1.xpose.msra.mxu0 0.0
    %2139 = vmatprep.subr.mxu0 0.0
    %2140 = vmatpush1.xpose.msra.mxu0 0.0
    %2141 = vmatprep.subr.mxu0 0.0
    %2142 = vmatpush1.xpose.msra.mxu0 0.0
    %2143 = vmatprep.subr.mxu0 0.0
    %2144 = vmatpush1.xpose.msra.mxu0 0.0
    %2145 = vmatprep.subr.mxu0 0.0
    %2146 = vmatpush1.xpose.msra.mxu0 0.0
    %2147 = vmatprep.subr.mxu0 0.0
    %2148 = vmatpush1.xpose.msra.mxu0 0.0
    %2149 = vmatprep.subr.mxu0 0.0
    %2150 = vmatpush1.xpose.msra.mxu0 0.0
    %2151 = vmatprep.subr.mxu0 0.0
    %2152 = vmatpush1.xpose.msra.mxu0 0.0
    %2153 = vmatprep.subr.mxu0 0.0
    %2154 = vmatpush1.xpose.msra.mxu0 0.0
    %2155 = vmatprep.subr.mxu0 0.0
    %2156 = vmatpush1.xpose.msra.mxu0 0.0
    %2157 = vmatprep.subr.mxu0 0.0
    %2158 = vmatpush1.xpose.msra.mxu0 0.0
    %2159 = vmatprep.subr.mxu0 0.0
    %2160 = vmatpush1.xpose.msra.mxu0 0.0
    %2161 = vmatprep.subr.mxu0 0.0
    %2162 = vmatpush1.xpose.msra.mxu0 0.0
    %2163 = vmatprep.subr.mxu0 0.0
    %2164 = vmatpush1.xpose.msra.mxu0 0.0
    %2165 = vmatprep.subr.mxu0 0.0
    %2166 = vmatpush1.xpose.msra.mxu0 0.0
    %2167 = vmatprep.subr.mxu0 0.0
    %2168 = vmatpush1.xpose.msra.mxu0 0.0
    %2169 = vmatprep.subr.mxu0 0.0
    %2170 = vmatpush1.xpose.msra.mxu0 0.0
    %2171 = vmatprep.subr.mxu0 0.0
    %2172 = vmatpush1.xpose.msra.mxu0 0.0
    %2173 = vmatprep.subr.mxu0 0.0
    %2174 = vmatpush1.xpose.msra.mxu0 0.0
    %2175 = vmatprep.subr.mxu0 0.0
    %2176 = vmatpush1.xpose.msra.mxu0 0.0
    %2177 = vmatprep.subr.mxu0 0.0
    %2178 = vmatpush1.xpose.msra.mxu0 0.0
    %2179 = vmatprep.subr.mxu0 0.0
    %2180 = vmatpush1.xpose.msra.mxu0 0.0
    %2181 = vmatprep.subr.mxu0 0.0
    %2182 = vmatpush1.xpose.msra.mxu0 0.0
    %2183 = vmatprep.subr.mxu0 0.0
    %2184 = vmatpush1.xpose.msra.mxu0 0.0
    %2185 = vmatprep.subr.mxu0 0.0
    %2186 = vmatpush1.xpose.msra.mxu0 0.0
    %2187 = vmatprep.subr.mxu0 0.0
    %2188 = vmatpush1.xpose.msra.mxu0 0.0
    %2189 = vmatprep.subr.mxu0 0.0
    %2190 = vmatpush1.xpose.msra.mxu0 0.0
    %2191 = vmatprep.subr.mxu0 0.0
    %2192 = vmatpush1.xpose.msra.mxu0 0.0
    %2193 = vmatprep.subr.mxu0 0.0
    %2194 = vmatpush1.xpose.msra.mxu0 0.0
    %2195 = vmatprep.subr.mxu0 0.0
    %2196 = vmatpush1.xpose.msra.mxu0 0.0
    %2197 = vmatprep.mubr.f32.mxu0 0.0
    %2198 = vmatmul.mubr.f32.gmra.mrb[0].mxu0 %v2129
    %v2199 = vpop.f32.mrb[0].mxu0
    %v2200 = vadd.f32 0.0, %v2199
    %v2201 = vpop.f32.mrb[0].mxu0
    %2202 = vdwg.mxu0
    %v2203 = vsel %vm136, %v2200, -inf
    %2204 = vmax.xlane.f32.xlu0 %v2203
    %v2205 = vpop.xlane.xlu0 %2204
    %v2206 = vsub.f32 %v2200, %v2205
    %v2207 = vmul.f32 %v2206, 1.442695
    %v2208 = vpow.pop %v2207
    %v2209 = vsel %vm136, %v2208, 0.0
    %2210 = vadd.xlane.f32.xlu0 %v2209
    %v2211 = vpop.xlane.xlu0 %2210
    %v2212 = vrcp.pop %v2211
    %v2213 = vmul.f32 %v2208, %v2212
    %2214 = vrot.lane.b32.xlu0 %v1789, 80
    %v2215 = vpop.permute.xlu0 %2214
    %v2218 = vsel %vm136, %v2213, 0
    %2220 = vmatprep.subr.mxu0 0.0
    %2221 = vmatpush1.msra.mxu0 %v2215
    %2222 = vmatprep.subr.mxu0 0.0
    %2223 = vmatpush1.msra.mxu0 0.0
    %2224 = vmatprep.subr.mxu0 0.0
    %2225 = vmatpush1.msra.mxu0 0.0
    %2226 = vmatprep.subr.mxu0 0.0
    %2227 = vmatpush1.msra.mxu0 0.0
    %2228 = vmatprep.subr.mxu0 0.0
    %2229 = vmatpush1.msra.mxu0 0.0
    %2230 = vmatprep.subr.mxu0 0.0
    %2231 = vmatpush1.msra.mxu0 0.0
    %2232 = vmatprep.subr.mxu0 0.0
    %2233 = vmatpush1.msra.mxu0 0.0
    %2234 = vmatprep.subr.mxu0 0.0
    %2235 = vmatpush1.msra.mxu0 0.0
    %2236 = vmatprep.subr.mxu0 0.0
    %2237 = vmatpush1.msra.mxu0 0.0
    %2238 = vmatprep.subr.mxu0 0.0
    %2239 = vmatpush1.msra.mxu0 0.0
    %2240 = vmatprep.subr.mxu0 0.0
    %2241 = vmatpush1.msra.mxu0 0.0
    %2242 = vmatprep.subr.mxu0 0.0
    %2243 = vmatpush1.msra.mxu0 0.0
    %2244 = vmatprep.subr.mxu0 0.0
    %2245 = vmatpush1.msra.mxu0 0.0
    %2246 = vmatprep.subr.mxu0 0.0
    %2247 = vmatpush1.msra.mxu0 0.0
    %2248 = vmatprep.subr.mxu0 0.0
    %2249 = vmatpush1.msra.mxu0 0.0
    %2250 = vmatprep.subr.mxu0 0.0
    %2251 = vmatpush1.msra.mxu0 0.0
    %2252 = vmatprep.subr.mxu0 0.0
    %2253 = vmatpush1.msra.mxu0 0.0
    %2254 = vmatprep.subr.mxu0 0.0
    %2255 = vmatpush1.msra.mxu0 0.0
    %2256 = vmatprep.subr.mxu0 0.0
    %2257 = vmatpush1.msra.mxu0 0.0
    %2258 = vmatprep.subr.mxu0 0.0
    %2259 = vmatpush1.msra.mxu0 0.0
    %2260 = vmatprep.subr.mxu0 0.0
    %2261 = vmatpush1.msra.mxu0 0.0
    %2262 = vmatprep.subr.mxu0 0.0
    %2263 = vmatpush1.msra.mxu0 0.0
    %2264 = vmatprep.subr.mxu0 0.0
    %2265 = vmatpush1.msra.mxu0 0.0
    %2266 = vmatprep.subr.mxu0 0.0
    %2267 = vmatpush1.msra.mxu0 0.0
    %2268 = vmatprep.subr.mxu0 0.0
    %2269 = vmatpush1.msra.mxu0 0.0
    %2270 = vmatprep.subr.mxu0 0.0
    %2271 = vmatpush1.msra.mxu0 0.0
    %2272 = vmatprep.subr.mxu0 0.0
    %2273 = vmatpush1.msra.mxu0 0.0
    %2274 = vmatprep.subr.mxu0 0.0
    %2275 = vmatpush1.msra.mxu0 0.0
    %2276 = vmatprep.subr.mxu0 0.0
    %2277 = vmatpush1.msra.mxu0 0.0
    %2278 = vmatprep.subr.mxu0 0.0
    %2279 = vmatpush1.msra.mxu0 0.0
    %2280 = vmatprep.subr.mxu0 0.0
    %2281 = vmatpush1.msra.mxu0 0.0
    %2282 = vmatprep.subr.mxu0 0.0
    %2283 = vmatpush1.msra.mxu0 0.0
    %2284 = vmatprep.mubr.f32.mxu0 0.0
    %2285 = vmatmul.mubr.f32.gmra.mrb[0].mxu0 %v2218
    %v2286 = vpop.f32.mrb[0].mxu0
    %v2287 = vadd.f32 0.0, %v2286
    %v2288 = vpop.f32.mrb[0].mxu0
    %2289 = vdwg.mxu0
    %2290 = vrot.lane.b32.xlu0 %v1699, 104
    %v2291 = vpop.permute.xlu0 %2290
    %2292 = vrot.lane.b32.xlu0 %v1789, 104
    %v2293 = vpop.permute.xlu0 %2292
    %v2294 = vsel %vm136, %v2291, 0
    %v2296 = vsel %vm136, %v2293, 0
    %2298 = vmatprep.subr.mxu0 0.0
    %2299 = vmatpush1.xpose.msra.mxu0 %v2296
    %2300 = vmatprep.subr.mxu0 0.0
    %2301 = vmatpush1.xpose.msra.mxu0 0.0
    %2302 = vmatprep.subr.mxu0 0.0
    %2303 = vmatpush1.xpose.msra.mxu0 0.0
    %2304 = vmatprep.subr.mxu0 0.0
    %2305 = vmatpush1.xpose.msra.mxu0 0.0
    %2306 = vmatprep.subr.mxu0 0.0
    %2307 = vmatpush1.xpose.msra.mxu0 0.0
    %2308 = vmatprep.subr.mxu0 0.0
    %2309 = vmatpush1.xpose.msra.mxu0 0.0
    %2310 = vmatprep.subr.mxu0 0.0
    %2311 = vmatpush1.xpose.msra.mxu0 0.0
    %2312 = vmatprep.subr.mxu0 0.0
    %2313 = vmatpush1.xpose.msra.mxu0 0.0
    %2314 = vmatprep.subr.mxu0 0.0
    %2315 = vmatpush1.xpose.msra.mxu0 0.0
    %2316 = vmatprep.subr.mxu0 0.0
    %2317 = vmatpush1.xpose.msra.mxu0 0.0
    %2318 = vmatprep.subr.mxu0 0.0
    %2319 = vmatpush1.xpose.msra.mxu0 0.0
    %2320 = vmatprep.subr.mxu0 0.0
    %2321 = vmatpush1.xpose.msra.mxu0 0.0
    %2322 = vmatprep.subr.mxu0 0.0
    %2323 = vmatpush1.xpose.msra.mxu0 0.0
    %2324 = vmatprep.subr.mxu0 0.0
    %2325 = vmatpush1.xpose.msra.mxu0 0.0
    %2326 = vmatprep.subr.mxu0 0.0
    %2327 = vmatpush1.xpose.msra.mxu0 0.0
    %2328 = vmatprep.subr.mxu0 0.0
    %2329 = vmatpush1.xpose.msra.mxu0 0.0
    %2330 = vmatprep.subr.mxu0 0.0
    %2331 = vmatpush1.xpose.msra.mxu0 0.0
    %2332 = vmatprep.subr.mxu0 0.0
    %2333 = vmatpush1.xpose.msra.mxu0 0.0
    %2334 = vmatprep.subr.mxu0 0.0
    %2335 = vmatpush1.xpose.msra.mxu0 0.0
    %2336 = vmatprep.subr.mxu0 0.0
    %2337 = vmatpush1.xpose.msra.mxu0 0.0
    %2338 = vmatprep.subr.mxu0 0.0
    %2339 = vmatpush1.xpose.msra.mxu0 0.0
    %2340 = vmatprep.subr.mxu0 0.0
    %2341 = vmatpush1.xpose.msra.mxu0 0.0
    %2342 = vmatprep.subr.mxu0 0.0
    %2343 = vmatpush1.xpose.msra.mxu0 0.0
    %2344 = vmatprep.subr.mxu0 0.0
    %2345 = vmatpush1.xpose.msra.mxu0 0.0
    %2346 = vmatprep.subr.mxu0 0.0
    %2347 = vmatpush1.xpose.msra.mxu0 0.0
    %2348 = vmatprep.subr.mxu0 0.0
    %2349 = vmatpush1.xpose.msra.mxu0 0.0
    %2350 = vmatprep.subr.mxu0 0.0
    %2351 = vmatpush1.xpose.msra.mxu0 0.0
    %2352 = vmatprep.subr.mxu0 0.0
    %2353 = vmatpush1.xpose.msra.mxu0 0.0
    %2354 = vmatprep.subr.mxu0 0.0
    %2355 = vmatpush1.xpose.msra.mxu0 0.0
    %2356 = vmatprep.subr.mxu0 0.0
    %2357 = vmatpush1.xpose.msra.mxu0 0.0
    %2358 = vmatprep.subr.mxu0 0.0
    %2359 = vmatpush1.xpose.msra.mxu0 0.0
    %2360 = vmatprep.subr.mxu0 0.0
    %2361 = vmatpush1.xpose.msra.mxu0 0.0
    %2362 = vmatprep.mubr.f32.mxu0 0.0
    %2363 = vmatmul.mubr.f32.gmra.mrb[0].mxu0 %v2294
    %v2364 = vpop.f32.mrb[0].mxu0
    %v2365 = vadd.f32 0.0, %v2364
    %v2366 = vpop.f32.mrb[0].mxu0
    %2367 = vdwg.mxu0
    %v2368 = vsel %vm136, %v2365, -inf
    %2369 = vmax.xlane.f32.xlu0 %v2368
    %v2370 = vpop.xlane.xlu0 %2369
    %v2371 = vsub.f32 %v2365, %v2370
    %v2372 = vmul.f32 %v2371, 1.442695
    %v2373 = vpow.pop %v2372
    %v2374 = vsel %vm136, %v2373, 0.0
    %2375 = vadd.xlane.f32.xlu0 %v2374
    %v2376 = vpop.xlane.xlu0 %2375
    %v2377 = vrcp.pop %v2376
    %v2378 = vmul.f32 %v2373, %v2377
    %2379 = vrot.lane.b32.xlu0 %v1789, 72
    %v2380 = vpop.permute.xlu0 %2379
    %v2383 = vsel %vm136, %v2378, 0
    %2385 = vmatprep.subr.mxu0 0.0
    %2386 = vmatpush1.msra.mxu0 %v2380
    %2387 = vmatprep.subr.mxu0 0.0
    %2388 = vmatpush1.msra.mxu0 0.0
    %2389 = vmatprep.subr.mxu0 0.0
    %2390 = vmatpush1.msra.mxu0 0.0
    %2391 = vmatprep.subr.mxu0 0.0
    %2392 = vmatpush1.msra.mxu0 0.0
    %2393 = vmatprep.subr.mxu0 0.0
    %2394 = vmatpush1.msra.mxu0 0.0
    %2395 = vmatprep.subr.mxu0 0.0
    %2396 = vmatpush1.msra.mxu0 0.0
    %2397 = vmatprep.subr.mxu0 0.0
    %2398 = vmatpush1.msra.mxu0 0.0
    %2399 = vmatprep.subr.mxu0 0.0
    %2400 = vmatpush1.msra.mxu0 0.0
    %2401 = vmatprep.subr.mxu0 0.0
    %2402 = vmatpush1.msra.mxu0 0.0
    %2403 = vmatprep.subr.mxu0 0.0
    %2404 = vmatpush1.msra.mxu0 0.0
    %2405 = vmatprep.subr.mxu0 0.0
    %2406 = vmatpush1.msra.mxu0 0.0
    %2407 = vmatprep.subr.mxu0 0.0
    %2408 = vmatpush1.msra.mxu0 0.0
    %2409 = vmatprep.subr.mxu0 0.0
    %2410 = vmatpush1.msra.mxu0 0.0
    %2411 = vmatprep.subr.mxu0 0.0
    %2412 = vmatpush1.msra.mxu0 0.0
    %2413 = vmatprep.subr.mxu0 0.0
    %2414 = vmatpush1.msra.mxu0 0.0
    %2415 = vmatprep.subr.mxu0 0.0
    %2416 = vmatpush1.msra.mxu0 0.0
    %2417 = vmatprep.subr.mxu0 0.0
    %2418 = vmatpush1.msra.mxu0 0.0
    %2419 = vmatprep.subr.mxu0 0.0
    %2420 = vmatpush1.msra.mxu0 0.0
    %2421 = vmatprep.subr.mxu0 0.0
    %2422 = vmatpush1.msra.mxu0 0.0
    %2423 = vmatprep.subr.mxu0 0.0
    %2424 = vmatpush1.msra.mxu0 0.0
    %2425 = vmatprep.subr.mxu0 0.0
    %2426 = vmatpush1.msra.mxu0 0.0
    %2427 = vmatprep.subr.mxu0 0.0
    %2428 = vmatpush1.msra.mxu0 0.0
    %2429 = vmatprep.subr.mxu0 0.0
    %2430 = vmatpush1.msra.mxu0 0.0
    %2431 = vmatprep.subr.mxu0 0.0
    %2432 = vmatpush1.msra.mxu0 0.0
    %2433 = vmatprep.subr.mxu0 0.0
    %2434 = vmatpush1.msra.mxu0 0.0
    %2435 = vmatprep.subr.mxu0 0.0
    %2436 = vmatpush1.msra.mxu0 0.0
    %2437 = vmatprep.subr.mxu0 0.0
    %2438 = vmatpush1.msra.mxu0 0.0
    %2439 = vmatprep.subr.mxu0 0.0
    %2440 = vmatpush1.msra.mxu0 0.0
    %2441 = vmatprep.subr.mxu0 0.0
    %2442 = vmatpush1.msra.mxu0 0.0
    %2443 = vmatprep.subr.mxu0 0.0
    %2444 = vmatpush1.msra.mxu0 0.0
    %2445 = vmatprep.subr.mxu0 0.0
    %2446 = vmatpush1.msra.mxu0 0.0
    %2447 = vmatprep.subr.mxu0 0.0
    %2448 = vmatpush1.msra.mxu0 0.0
    %2449 = vmatprep.mubr.f32.mxu0 0.0
    %2450 = vmatmul.mubr.f32.gmra.mrb[0].mxu0 %v2383
    %v2451 = vpop.f32.mrb[0].mxu0
    %v2452 = vadd.f32 0.0, %v2451
    %v2453 = vpop.f32.mrb[0].mxu0
    %2454 = vdwg.mxu0
    %2456 = vrot.lane.b32.xlu0 %v2122, 8
    %v2457 = vpop.permute.xlu0 %2456
    %2460 = vrot.lane.b32.xlu0 %v2287, 16
    %v2461 = vpop.permute.xlu0 %2460
    %2464 = vrot.lane.b32.xlu0 %v2452, 24
    %v2465 = vpop.permute.xlu0 %2464
    %v2467 = vsel %vm136, %v1957, %v2457
    %v2468 = vsel %vm806, %v2467, %v2461
    %v2469 = vsel %vm808, %v2468, %v2465
    %v2471 = vsel %vm136, %v1704, 0
    %v2474 = vsel %vm136, %v1794, 0
    %2476 = vmatprep.subr.mxu0 0.0
    %2477 = vmatpush1.xpose.msra.mxu0 %v2474
    %2478 = vmatprep.subr.mxu0 0.0
    %2479 = vmatpush1.xpose.msra.mxu0 0.0
    %2480 = vmatprep.subr.mxu0 0.0
    %2481 = vmatpush1.xpose.msra.mxu0 0.0
    %2482 = vmatprep.subr.mxu0 0.0
    %2483 = vmatpush1.xpose.msra.mxu0 0.0
    %2484 = vmatprep.subr.mxu0 0.0
    %2485 = vmatpush1.xpose.msra.mxu0 0.0
    %2486 = vmatprep.subr.mxu0 0.0
    %2487 = vmatpush1.xpose.msra.mxu0 0.0
    %2488 = vmatprep.subr.mxu0 0.0
    %2489 = vmatpush1.xpose.msra.mxu0 0.0
    %2490 = vmatprep.subr.mxu0 0.0
    %2491 = vmatpush1.xpose.msra.mxu0 0.0
    %2492 = vmatprep.subr.mxu0 0.0
    %2493 = vmatpush1.xpose.msra.mxu0 0.0
    %2494 = vmatprep.subr.mxu0 0.0
    %2495 = vmatpush1.xpose.msra.mxu0 0.0
    %2496 = vmatprep.subr.mxu0 0.0
    %2497 = vmatpush1.xpose.msra.mxu0 0.0
    %2498 = vmatprep.subr.mxu0 0.0
    %2499 = vmatpush1.xpose.msra.mxu0 0.0
    %2500 = vmatprep.subr.mxu0 0.0
    %2501 = vmatpush1.xpose.msra.mxu0 0.0
    %2502 = vmatprep.subr.mxu0 0.0
    %2503 = vmatpush1.xpose.msra.mxu0 0.0
    %2504 = vmatprep.subr.mxu0 0.0
    %2505 = vmatpush1.xpose.msra.mxu0 0.0
    %2506 = vmatprep.subr.mxu0 0.0
    %2507 = vmatpush1.xpose.msra.mxu0 0.0
    %2508 = vmatprep.subr.mxu0 0.0
    %2509 = vmatpush1.xpose.msra.mxu0 0.0
    %2510 = vmatprep.subr.mxu0 0.0
    %2511 = vmatpush1.xpose.msra.mxu0 0.0
    %2512 = vmatprep.subr.mxu0 0.0
    %2513 = vmatpush1.xpose.msra.mxu0 0.0
    %2514 = vmatprep.subr.mxu0 0.0
    %2515 = vmatpush1.xpose.msra.mxu0 0.0
    %2516 = vmatprep.subr.mxu0 0.0
    %2517 = vmatpush1.xpose.msra.mxu0 0.0
    %2518 = vmatprep.subr.mxu0 0.0
    %2519 = vmatpush1.xpose.msra.mxu0 0.0
    %2520 = vmatprep.subr.mxu0 0.0
    %2521 = vmatpush1.xpose.msra.mxu0 0.0
    %2522 = vmatprep.subr.mxu0 0.0
    %2523 = vmatpush1.xpose.msra.mxu0 0.0
    %2524 = vmatprep.subr.mxu0 0.0
    %2525 = vmatpush1.xpose.msra.mxu0 0.0
    %2526 = vmatprep.subr.mxu0 0.0
    %2527 = vmatpush1.xpose.msra.mxu0 0.0
    %2528 = vmatprep.subr.mxu0 0.0
    %2529 = vmatpush1.xpose.msra.mxu0 0.0
    %2530 = vmatprep.subr.mxu0 0.0
    %2531 = vmatpush1.xpose.msra.mxu0 0.0
    %2532 = vmatprep.subr.mxu0 0.0
    %2533 = vmatpush1.xpose.msra.mxu0 0.0
    %2534 = vmatprep.subr.mxu0 0.0
    %2535 = vmatpush1.xpose.msra.mxu0 0.0
    %2536 = vmatprep.subr.mxu0 0.0
    %2537 = vmatpush1.xpose.msra.mxu0 0.0
    %2538 = vmatprep.subr.mxu0 0.0
    %2539 = vmatpush1.xpose.msra.mxu0 0.0
    %2540 = vmatprep.mubr.f32.mxu0 0.0
    %2541 = vmatmul.mubr.f32.gmra.mrb[0].mxu0 %v2471
    %v2542 = vpop.f32.mrb[0].mxu0
    %v2543 = vadd.f32 0.0, %v2542
    %v2544 = vpop.f32.mrb[0].mxu0
    %2545 = vdwg.mxu0
    %v2546 = vsel %vm136, %v2543, -inf
    %2547 = vmax.xlane.f32.xlu0 %v2546
    %v2548 = vpop.xlane.xlu0 %2547
    %v2549 = vsub.f32 %v2543, %v2548
    %v2550 = vmul.f32 %v2549, 1.442695
    %v2551 = vpow.pop %v2550
    %v2552 = vsel %vm136, %v2551, 0.0
    %2553 = vadd.xlane.f32.xlu0 %v2552
    %v2554 = vpop.xlane.xlu0 %2553
    %v2555 = vrcp.pop %v2554
    %v2556 = vmul.f32 %v2551, %v2555
    %2557 = vrot.lane.b32.xlu0 %v1794, 96
    %v2558 = vpop.permute.xlu0 %2557
    %v2561 = vsel %vm136, %v2556, 0
    %2563 = vmatprep.subr.mxu0 0.0
    %2564 = vmatpush1.msra.mxu0 %v2558
    %2565 = vmatprep.subr.mxu0 0.0
    %2566 = vmatpush1.msra.mxu0 0.0
    %2567 = vmatprep.subr.mxu0 0.0
    %2568 = vmatpush1.msra.mxu0 0.0
    %2569 = vmatprep.subr.mxu0 0.0
    %2570 = vmatpush1.msra.mxu0 0.0
    %2571 = vmatprep.subr.mxu0 0.0
    %2572 = vmatpush1.msra.mxu0 0.0
    %2573 = vmatprep.subr.mxu0 0.0
    %2574 = vmatpush1.msra.mxu0 0.0
    %2575 = vmatprep.subr.mxu0 0.0
    %2576 = vmatpush1.msra.mxu0 0.0
    %2577 = vmatprep.subr.mxu0 0.0
    %2578 = vmatpush1.msra.mxu0 0.0
    %2579 = vmatprep.subr.mxu0 0.0
    %2580 = vmatpush1.msra.mxu0 0.0
    %2581 = vmatprep.subr.mxu0 0.0
    %2582 = vmatpush1.msra.mxu0 0.0
    %2583 = vmatprep.subr.mxu0 0.0
    %2584 = vmatpush1.msra.mxu0 0.0
    %2585 = vmatprep.subr.mxu0 0.0
    %2586 = vmatpush1.msra.mxu0 0.0
    %2587 = vmatprep.subr.mxu0 0.0
    %2588 = vmatpush1.msra.mxu0 0.0
    %2589 = vmatprep.subr.mxu0 0.0
    %2590 = vmatpush1.msra.mxu0 0.0
    %2591 = vmatprep.subr.mxu0 0.0
    %2592 = vmatpush1.msra.mxu0 0.0
    %2593 = vmatprep.subr.mxu0 0.0
    %2594 = vmatpush1.msra.mxu0 0.0
    %2595 = vmatprep.subr.mxu0 0.0
    %2596 = vmatpush1.msra.mxu0 0.0
    %2597 = vmatprep.subr.mxu0 0.0
    %2598 = vmatpush1.msra.mxu0 0.0
    %2599 = vmatprep.subr.mxu0 0.0
    %2600 = vmatpush1.msra.mxu0 0.0
    %2601 = vmatprep.subr.mxu0 0.0
    %2602 = vmatpush1.msra.mxu0 0.0
    %2603 = vmatprep.subr.mxu0 0.0
    %2604 = vmatpush1.msra.mxu0 0.0
    %2605 = vmatprep.subr.mxu0 0.0
    %2606 = vmatpush1.msra.mxu0 0.0
    %2607 = vmatprep.subr.mxu0 0.0
    %2608 = vmatpush1.msra.mxu0 0.0
    %2609 = vmatprep.subr.mxu0 0.0
    %2610 = vmatpush1.msra.mxu0 0.0
    %2611 = vmatprep.subr.mxu0 0.0
    %2612 = vmatpush1.msra.mxu0 0.0
    %2613 = vmatprep.subr.mxu0 0.0
    %2614 = vmatpush1.msra.mxu0 0.0
    %2615 = vmatprep.subr.mxu0 0.0
    %2616 = vmatpush1.msra.mxu0 0.0
    %2617 = vmatprep.subr.mxu0 0.0
    %2618 = vmatpush1.msra.mxu0 0.0
    %2619 = vmatprep.subr.mxu0 0.0
    %2620 = vmatpush1.msra.mxu0 0.0
    %2621 = vmatprep.subr.mxu0 0.0
    %2622 = vmatpush1.msra.mxu0 0.0
    %2623 = vmatprep.subr.mxu0 0.0
    %2624 = vmatpush1.msra.mxu0 0.0
    %2625 = vmatprep.subr.mxu0 0.0
    %2626 = vmatpush1.msra.mxu0 0.0
    %2627 = vmatprep.mubr.f32.mxu0 0.0
    %2628 = vmatmul.mubr.f32.gmra.mrb[0].mxu0 %v2561
    %v2629 = vpop.f32.mrb[0].mxu0
    %v2630 = vadd.f32 0.0, %v2629
    %v2631 = vpop.f32.mrb[0].mxu0
    %2632 = vdwg.mxu0
    %2633 = vrot.lane.b32.xlu0 %v1704, 120
    %v2634 = vpop.permute.xlu0 %2633
    %2635 = vrot.lane.b32.xlu0 %v1794, 120
    %v2636 = vpop.permute.xlu0 %2635
    %v2637 = vsel %vm136, %v2634, 0
    %v2639 = vsel %vm136, %v2636, 0
    %2641 = vmatprep.subr.mxu0 0.0
    %2642 = vmatpush1.xpose.msra.mxu0 %v2639
    %2643 = vmatprep.subr.mxu0 0.0
    %2644 = vmatpush1.xpose.msra.mxu0 0.0
    %2645 = vmatprep.subr.mxu0 0.0
    %2646 = vmatpush1.xpose.msra.mxu0 0.0
    %2647 = vmatprep.subr.mxu0 0.0
    %2648 = vmatpush1.xpose.msra.mxu0 0.0
    %2649 = vmatprep.subr.mxu0 0.0
    %2650 = vmatpush1.xpose.msra.mxu0 0.0
    %2651 = vmatprep.subr.mxu0 0.0
    %2652 = vmatpush1.xpose.msra.mxu0 0.0
    %2653 = vmatprep.subr.mxu0 0.0
    %2654 = vmatpush1.xpose.msra.mxu0 0.0
    %2655 = vmatprep.subr.mxu0 0.0
    %2656 = vmatpush1.xpose.msra.mxu0 0.0
    %2657 = vmatprep.subr.mxu0 0.0
    %2658 = vmatpush1.xpose.msra.mxu0 0.0
    %2659 = vmatprep.subr.mxu0 0.0
    %2660 = vmatpush1.xpose.msra.mxu0 0.0
    %2661 = vmatprep.subr.mxu0 0.0
    %2662 = vmatpush1.xpose.msra.mxu0 0.0
    %2663 = vmatprep.subr.mxu0 0.0
    %2664 = vmatpush1.xpose.msra.mxu0 0.0
    %2665 = vmatprep.subr.mxu0 0.0
    %2666 = vmatpush1.xpose.msra.mxu0 0.0
    %2667 = vmatprep.subr.mxu0 0.0
    %2668 = vmatpush1.xpose.msra.mxu0 0.0
    %2669 = vmatprep.subr.mxu0 0.0
    %2670 = vmatpush1.xpose.msra.mxu0 0.0
    %2671 = vmatprep.subr.mxu0 0.0
    %2672 = vmatpush1.xpose.msra.mxu0 0.0
    %2673 = vmatprep.subr.mxu0 0.0
    %2674 = vmatpush1.xpose.msra.mxu0 0.0
    %2675 = vmatprep.subr.mxu0 0.0
    %2676 = vmatpush1.xpose.msra.mxu0 0.0
    %2677 = vmatprep.subr.mxu0 0.0
    %2678 = vmatpush1.xpose.msra.mxu0 0.0
    %2679 = vmatprep.subr.mxu0 0.0
    %2680 = vmatpush1.xpose.msra.mxu0 0.0
    %2681 = vmatprep.subr.mxu0 0.0
    %2682 = vmatpush1.xpose.msra.mxu0 0.0
    %2683 = vmatprep.subr.mxu0 0.0
    %2684 = vmatpush1.xpose.msra.mxu0 0.0
    %2685 = vmatprep.subr.mxu0 0.0
    %2686 = vmatpush1.xpose.msra.mxu0 0.0
    %2687 = vmatprep.subr.mxu0 0.0
    %2688 = vmatpush1.xpose.msra.mxu0 0.0
    %2689 = vmatprep.subr.mxu0 0.0
    %2690 = vmatpush1.xpose.msra.mxu0 0.0
    %2691 = vmatprep.subr.mxu0 0.0
    %2692 = vmatpush1.xpose.msra.mxu0 0.0
    %2693 = vmatprep.subr.mxu0 0.0
    %2694 = vmatpush1.xpose.msra.mxu0 0.0
    %2695 = vmatprep.subr.mxu0 0.0
    %2696 = vmatpush1.xpose.msra.mxu0 0.0
    %2697 = vmatprep.subr.mxu0 0.0
    %2698 = vmatpush1.xpose.msra.mxu0 0.0
    %2699 = vmatprep.subr.mxu0 0.0
    %2700 = vmatpush1.xpose.msra.mxu0 0.0
    %2701 = vmatprep.subr.mxu0 0.0
    %2702 = vmatpush1.xpose.msra.mxu0 0.0
    %2703 = vmatprep.subr.mxu0 0.0
    %2704 = vmatpush1.xpose.msra.mxu0 0.0
    %2705 = vmatprep.mubr.f32.mxu0 0.0
    %2706 = vmatmul.mubr.f32.gmra.mrb[0].mxu0 %v2637
    %v2707 = vpop.f32.mrb[0].mxu0
    %v2708 = vadd.f32 0.0, %v2707
    %v2709 = vpop.f32.mrb[0].mxu0
    %2710 = vdwg.mxu0
    %v2711 = vsel %vm136, %v2708, -inf
    %2712 = vmax.xlane.f32.xlu0 %v2711
    %v2713 = vpop.xlane.xlu0 %2712
    %v2714 = vsub.f32 %v2708, %v2713
    %v2715 = vmul.f32 %v2714, 1.442695
    %v2716 = vpow.pop %v2715
    %v2717 = vsel %vm136, %v2716, 0.0
    %2718 = vadd.xlane.f32.xlu0 %v2717
    %v2719 = vpop.xlane.xlu0 %2718
    %v2720 = vrcp.pop %v2719
    %v2721 = vmul.f32 %v2716, %v2720
    %2722 = vrot.lane.b32.xlu0 %v1794, 88
    %v2723 = vpop.permute.xlu0 %2722
    %v2726 = vsel %vm136, %v2721, 0
    %2728 = vmatprep.subr.mxu0 0.0
    %2729 = vmatpush1.msra.mxu0 %v2723
    %2730 = vmatprep.subr.mxu0 0.0
    %2731 = vmatpush1.msra.mxu0 0.0
    %2732 = vmatprep.subr.mxu0 0.0
    %2733 = vmatpush1.msra.mxu0 0.0
    %2734 = vmatprep.subr.mxu0 0.0
    %2735 = vmatpush1.msra.mxu0 0.0
    %2736 = vmatprep.subr.mxu0 0.0
    %2737 = vmatpush1.msra.mxu0 0.0
    %2738 = vmatprep.subr.mxu0 0.0
    %2739 = vmatpush1.msra.mxu0 0.0
    %2740 = vmatprep.subr.mxu0 0.0
    %2741 = vmatpush1.msra.mxu0 0.0
    %2742 = vmatprep.subr.mxu0 0.0
    %2743 = vmatpush1.msra.mxu0 0.0
    %2744 = vmatprep.subr.mxu0 0.0
    %2745 = vmatpush1.msra.mxu0 0.0
    %2746 = vmatprep.subr.mxu0 0.0
    %2747 = vmatpush1.msra.mxu0 0.0
    %2748 = vmatprep.subr.mxu0 0.0
    %2749 = vmatpush1.msra.mxu0 0.0
    %2750 = vmatprep.subr.mxu0 0.0
    %2751 = vmatpush1.msra.mxu0 0.0
    %2752 = vmatprep.subr.mxu0 0.0
    %2753 = vmatpush1.msra.mxu0 0.0
    %2754 = vmatprep.subr.mxu0 0.0
    %2755 = vmatpush1.msra.mxu0 0.0
    %2756 = vmatprep.subr.mxu0 0.0
    %2757 = vmatpush1.msra.mxu0 0.0
    %2758 = vmatprep.subr.mxu0 0.0
    %2759 = vmatpush1.msra.mxu0 0.0
    %2760 = vmatprep.subr.mxu0 0.0
    %2761 = vmatpush1.msra.mxu0 0.0
    %2762 = vmatprep.subr.mxu0 0.0
    %2763 = vmatpush1.msra.mxu0 0.0
    %2764 = vmatprep.subr.mxu0 0.0
    %2765 = vmatpush1.msra.mxu0 0.0
    %2766 = vmatprep.subr.mxu0 0.0
    %2767 = vmatpush1.msra.mxu0 0.0
    %2768 = vmatprep.subr.mxu0 0.0
    %2769 = vmatpush1.msra.mxu0 0.0
    %2770 = vmatprep.subr.mxu0 0.0
    %2771 = vmatpush1.msra.mxu0 0.0
    %2772 = vmatprep.subr.mxu0 0.0
    %2773 = vmatpush1.msra.mxu0 0.0
    %2774 = vmatprep.subr.mxu0 0.0
    %2775 = vmatpush1.msra.mxu0 0.0
    %2776 = vmatprep.subr.mxu0 0.0
    %2777 = vmatpush1.msra.mxu0 0.0
    %2778 = vmatprep.subr.mxu0 0.0
    %2779 = vmatpush1.msra.mxu0 0.0
    %2780 = vmatprep.subr.mxu0 0.0
    %2781 = vmatpush1.msra.mxu0 0.0
    %2782 = vmatprep.subr.mxu0 0.0
    %2783 = vmatpush1.msra.mxu0 0.0
    %2784 = vmatprep.subr.mxu0 0.0
    %2785 = vmatpush1.msra.mxu0 0.0
    %2786 = vmatprep.subr.mxu0 0.0
    %2787 = vmatpush1.msra.mxu0 0.0
    %2788 = vmatprep.subr.mxu0 0.0
    %2789 = vmatpush1.msra.mxu0 0.0
    %2790 = vmatprep.subr.mxu0 0.0
    %2791 = vmatpush1.msra.mxu0 0.0
    %2792 = vmatprep.mubr.f32.mxu0 0.0
    %2793 = vmatmul.mubr.f32.gmra.mrb[0].mxu0 %v2726
    %v2794 = vpop.f32.mrb[0].mxu0
    %v2795 = vadd.f32 0.0, %v2794
    %v2796 = vpop.f32.mrb[0].mxu0
    %2797 = vdwg.mxu0
    %2798 = vrot.lane.b32.xlu0 %v1704, 112
    %v2799 = vpop.permute.xlu0 %2798
    %2800 = vrot.lane.b32.xlu0 %v1794, 112
    %v2801 = vpop.permute.xlu0 %2800
    %v2802 = vsel %vm136, %v2799, 0
    %v2804 = vsel %vm136, %v2801, 0
    %2806 = vmatprep.subr.mxu0 0.0
    %2807 = vmatpush1.xpose.msra.mxu0 %v2804
    %2808 = vmatprep.subr.mxu0 0.0
    %2809 = vmatpush1.xpose.msra.mxu0 0.0
    %2810 = vmatprep.subr.mxu0 0.0
    %2811 = vmatpush1.xpose.msra.mxu0 0.0
    %2812 = vmatprep.subr.mxu0 0.0
    %2813 = vmatpush1.xpose.msra.mxu0 0.0
    %2814 = vmatprep.subr.mxu0 0.0
    %2815 = vmatpush1.xpose.msra.mxu0 0.0
    %2816 = vmatprep.subr.mxu0 0.0
    %2817 = vmatpush1.xpose.msra.mxu0 0.0
    %2818 = vmatprep.subr.mxu0 0.0
    %2819 = vmatpush1.xpose.msra.mxu0 0.0
    %2820 = vmatprep.subr.mxu0 0.0
    %2821 = vmatpush1.xpose.msra.mxu0 0.0
    %2822 = vmatprep.subr.mxu0 0.0
    %2823 = vmatpush1.xpose.msra.mxu0 0.0
    %2824 = vmatprep.subr.mxu0 0.0
    %2825 = vmatpush1.xpose.msra.mxu0 0.0
    %2826 = vmatprep.subr.mxu0 0.0
    %2827 = vmatpush1.xpose.msra.mxu0 0.0
    %2828 = vmatprep.subr.mxu0 0.0
    %2829 = vmatpush1.xpose.msra.mxu0 0.0
    %2830 = vmatprep.subr.mxu0 0.0
    %2831 = vmatpush1.xpose.msra.mxu0 0.0
    %2832 = vmatprep.subr.mxu0 0.0
    %2833 = vmatpush1.xpose.msra.mxu0 0.0
    %2834 = vmatprep.subr.mxu0 0.0
    %2835 = vmatpush1.xpose.msra.mxu0 0.0
    %2836 = vmatprep.subr.mxu0 0.0
    %2837 = vmatpush1.xpose.msra.mxu0 0.0
    %2838 = vmatprep.subr.mxu0 0.0
    %2839 = vmatpush1.xpose.msra.mxu0 0.0
    %2840 = vmatprep.subr.mxu0 0.0
    %2841 = vmatpush1.xpose.msra.mxu0 0.0
    %2842 = vmatprep.subr.mxu0 0.0
    %2843 = vmatpush1.xpose.msra.mxu0 0.0
    %2844 = vmatprep.subr.mxu0 0.0
    %2845 = vmatpush1.xpose.msra.mxu0 0.0
    %2846 = vmatprep.subr.mxu0 0.0
    %2847 = vmatpush1.xpose.msra.mxu0 0.0
    %2848 = vmatprep.subr.mxu0 0.0
    %2849 = vmatpush1.xpose.msra.mxu0 0.0
    %2850 = vmatprep.subr.mxu0 0.0
    %2851 = vmatpush1.xpose.msra.mxu0 0.0
    %2852 = vmatprep.subr.mxu0 0.0
    %2853 = vmatpush1.xpose.msra.mxu0 0.0
    %2854 = vmatprep.subr.mxu0 0.0
    %2855 = vmatpush1.xpose.msra.mxu0 0.0
    %2856 = vmatprep.subr.mxu0 0.0
    %2857 = vmatpush1.xpose.msra.mxu0 0.0
    %2858 = vmatprep.subr.mxu0 0.0
    %2859 = vmatpush1.xpose.msra.mxu0 0.0
    %2860 = vmatprep.subr.mxu0 0.0
    %2861 = vmatpush1.xpose.msra.mxu0 0.0
    %2862 = vmatprep.subr.mxu0 0.0
    %2863 = vmatpush1.xpose.msra.mxu0 0.0
    %2864 = vmatprep.subr.mxu0 0.0
    %2865 = vmatpush1.xpose.msra.mxu0 0.0
    %2866 = vmatprep.subr.mxu0 0.0
    %2867 = vmatpush1.xpose.msra.mxu0 0.0
    %2868 = vmatprep.subr.mxu0 0.0
    %2869 = vmatpush1.xpose.msra.mxu0 0.0
    %2870 = vmatprep.mubr.f32.mxu0 0.0
    %2871 = vmatmul.mubr.f32.gmra.mrb[0].mxu0 %v2802
    %v2872 = vpop.f32.mrb[0].mxu0
    %v2873 = vadd.f32 0.0, %v2872
    %v2874 = vpop.f32.mrb[0].mxu0
    %2875 = vdwg.mxu0
    %v2876 = vsel %vm136, %v2873, -inf
    %2877 = vmax.xlane.f32.xlu0 %v2876
    %v2878 = vpop.xlane.xlu0 %2877
    %v2879 = vsub.f32 %v2873, %v2878
    %v2880 = vmul.f32 %v2879, 1.442695
    %v2881 = vpow.pop %v2880
    %v2882 = vsel %vm136, %v2881, 0.0
    %2883 = vadd.xlane.f32.xlu0 %v2882
    %v2884 = vpop.xlane.xlu0 %2883
    %v2885 = vrcp.pop %v2884
    %v2886 = vmul.f32 %v2881, %v2885
    %2887 = vrot.lane.b32.xlu0 %v1794, 80
    %v2888 = vpop.permute.xlu0 %2887
    %v2891 = vsel %vm136, %v2886, 0
    %2893 = vmatprep.subr.mxu0 0.0
    %2894 = vmatpush1.msra.mxu0 %v2888
    %2895 = vmatprep.subr.mxu0 0.0
    %2896 = vmatpush1.msra.mxu0 0.0
    %2897 = vmatprep.subr.mxu0 0.0
    %2898 = vmatpush1.msra.mxu0 0.0
    %2899 = vmatprep.subr.mxu0 0.0
    %2900 = vmatpush1.msra.mxu0 0.0
    %2901 = vmatprep.subr.mxu0 0.0
    %2902 = vmatpush1.msra.mxu0 0.0
    %2903 = vmatprep.subr.mxu0 0.0
    %2904 = vmatpush1.msra.mxu0 0.0
    %2905 = vmatprep.subr.mxu0 0.0
    %2906 = vmatpush1.msra.mxu0 0.0
    %2907 = vmatprep.subr.mxu0 0.0
    %2908 = vmatpush1.msra.mxu0 0.0
    %2909 = vmatprep.subr.mxu0 0.0
    %2910 = vmatpush1.msra.mxu0 0.0
    %2911 = vmatprep.subr.mxu0 0.0
    %2912 = vmatpush1.msra.mxu0 0.0
    %2913 = vmatprep.subr.mxu0 0.0
    %2914 = vmatpush1.msra.mxu0 0.0
    %2915 = vmatprep.subr.mxu0 0.0
    %2916 = vmatpush1.msra.mxu0 0.0
    %2917 = vmatprep.subr.mxu0 0.0
    %2918 = vmatpush1.msra.mxu0 0.0
    %2919 = vmatprep.subr.mxu0 0.0
    %2920 = vmatpush1.msra.mxu0 0.0
    %2921 = vmatprep.subr.mxu0 0.0
    %2922 = vmatpush1.msra.mxu0 0.0
    %2923 = vmatprep.subr.mxu0 0.0
    %2924 = vmatpush1.msra.mxu0 0.0
    %2925 = vmatprep.subr.mxu0 0.0
    %2926 = vmatpush1.msra.mxu0 0.0
    %2927 = vmatprep.subr.mxu0 0.0
    %2928 = vmatpush1.msra.mxu0 0.0
    %2929 = vmatprep.subr.mxu0 0.0
    %2930 = vmatpush1.msra.mxu0 0.0
    %2931 = vmatprep.subr.mxu0 0.0
    %2932 = vmatpush1.msra.mxu0 0.0
    %2933 = vmatprep.subr.mxu0 0.0
    %2934 = vmatpush1.msra.mxu0 0.0
    %2935 = vmatprep.subr.mxu0 0.0
    %2936 = vmatpush1.msra.mxu0 0.0
    %2937 = vmatprep.subr.mxu0 0.0
    %2938 = vmatpush1.msra.mxu0 0.0
    %2939 = vmatprep.subr.mxu0 0.0
    %2940 = vmatpush1.msra.mxu0 0.0
    %2941 = vmatprep.subr.mxu0 0.0
    %2942 = vmatpush1.msra.mxu0 0.0
    %2943 = vmatprep.subr.mxu0 0.0
    %2944 = vmatpush1.msra.mxu0 0.0
    %2945 = vmatprep.subr.mxu0 0.0
    %2946 = vmatpush1.msra.mxu0 0.0
    %2947 = vmatprep.subr.mxu0 0.0
    %2948 = vmatpush1.msra.mxu0 0.0
    %2949 = vmatprep.subr.mxu0 0.0
    %2950 = vmatpush1.msra.mxu0 0.0
    %2951 = vmatprep.subr.mxu0 0.0
    %2952 = vmatpush1.msra.mxu0 0.0
    %2953 = vmatprep.subr.mxu0 0.0
    %2954 = vmatpush1.msra.mxu0 0.0
    %2955 = vmatprep.subr.mxu0 0.0
    %2956 = vmatpush1.msra.mxu0 0.0
    %2957 = vmatprep.mubr.f32.mxu0 0.0
    %2958 = vmatmul.mubr.f32.gmra.mrb[0].mxu0 %v2891
    %v2959 = vpop.f32.mrb[0].mxu0
    %v2960 = vadd.f32 0.0, %v2959
    %v2961 = vpop.f32.mrb[0].mxu0
    %2962 = vdwg.mxu0
    %2963 = vrot.lane.b32.xlu0 %v1704, 104
    %v2964 = vpop.permute.xlu0 %2963
    %2965 = vrot.lane.b32.xlu0 %v1794, 104
    %v2966 = vpop.permute.xlu0 %2965
    %v2967 = vsel %vm136, %v2964, 0
    %v2969 = vsel %vm136, %v2966, 0
    %2971 = vmatprep.subr.mxu0 0.0
    %2972 = vmatpush1.xpose.msra.mxu0 %v2969
    %2973 = vmatprep.subr.mxu0 0.0
    %2974 = vmatpush1.xpose.msra.mxu0 0.0
    %2975 = vmatprep.subr.mxu0 0.0
    %2976 = vmatpush1.xpose.msra.mxu0 0.0
    %2977 = vmatprep.subr.mxu0 0.0
    %2978 = vmatpush1.xpose.msra.mxu0 0.0
    %2979 = vmatprep.subr.mxu0 0.0
    %2980 = vmatpush1.xpose.msra.mxu0 0.0
    %2981 = vmatprep.subr.mxu0 0.0
    %2982 = vmatpush1.xpose.msra.mxu0 0.0
    %2983 = vmatprep.subr.mxu0 0.0
    %2984 = vmatpush1.xpose.msra.mxu0 0.0
    %2985 = vmatprep.subr.mxu0 0.0
    %2986 = vmatpush1.xpose.msra.mxu0 0.0
    %2987 = vmatprep.subr.mxu0 0.0
    %2988 = vmatpush1.xpose.msra.mxu0 0.0
    %2989 = vmatprep.subr.mxu0 0.0
    %2990 = vmatpush1.xpose.msra.mxu0 0.0
    %2991 = vmatprep.subr.mxu0 0.0
    %2992 = vmatpush1.xpose.msra.mxu0 0.0
    %2993 = vmatprep.subr.mxu0 0.0
    %2994 = vmatpush1.xpose.msra.mxu0 0.0
    %2995 = vmatprep.subr.mxu0 0.0
    %2996 = vmatpush1.xpose.msra.mxu0 0.0
    %2997 = vmatprep.subr.mxu0 0.0
    %2998 = vmatpush1.xpose.msra.mxu0 0.0
    %2999 = vmatprep.subr.mxu0 0.0
    %3000 = vmatpush1.xpose.msra.mxu0 0.0
    %3001 = vmatprep.subr.mxu0 0.0
    %3002 = vmatpush1.xpose.msra.mxu0 0.0
    %3003 = vmatprep.subr.mxu0 0.0
    %3004 = vmatpush1.xpose.msra.mxu0 0.0
    %3005 = vmatprep.subr.mxu0 0.0
    %3006 = vmatpush1.xpose.msra.mxu0 0.0
    %3007 = vmatprep.subr.mxu0 0.0
    %3008 = vmatpush1.xpose.msra.mxu0 0.0
    %3009 = vmatprep.subr.mxu0 0.0
    %3010 = vmatpush1.xpose.msra.mxu0 0.0
    %3011 = vmatprep.subr.mxu0 0.0
    %3012 = vmatpush1.xpose.msra.mxu0 0.0
    %3013 = vmatprep.subr.mxu0 0.0
    %3014 = vmatpush1.xpose.msra.mxu0 0.0
    %3015 = vmatprep.subr.mxu0 0.0
    %3016 = vmatpush1.xpose.msra.mxu0 0.0
    %3017 = vmatprep.subr.mxu0 0.0
    %3018 = vmatpush1.xpose.msra.mxu0 0.0
    %3019 = vmatprep.subr.mxu0 0.0
    %3020 = vmatpush1.xpose.msra.mxu0 0.0
    %3021 = vmatprep.subr.mxu0 0.0
    %3022 = vmatpush1.xpose.msra.mxu0 0.0
    %3023 = vmatprep.subr.mxu0 0.0
    %3024 = vmatpush1.xpose.msra.mxu0 0.0
    %3025 = vmatprep.subr.mxu0 0.0
    %3026 = vmatpush1.xpose.msra.mxu0 0.0
    %3027 = vmatprep.subr.mxu0 0.0
    %3028 = vmatpush1.xpose.msra.mxu0 0.0
    %3029 = vmatprep.subr.mxu0 0.0
    %3030 = vmatpush1.xpose.msra.mxu0 0.0
    %3031 = vmatprep.subr.mxu0 0.0
    %3032 = vmatpush1.xpose.msra.mxu0 0.0
    %3033 = vmatprep.subr.mxu0 0.0
    %3034 = vmatpush1.xpose.msra.mxu0 0.0
    %3035 = vmatprep.mubr.f32.mxu0 0.0
    %3036 = vmatmul.mubr.f32.gmra.mrb[0].mxu0 %v2967
    %v3037 = vpop.f32.mrb[0].mxu0
    %v3038 = vadd.f32 0.0, %v3037
    %v3039 = vpop.f32.mrb[0].mxu0
    %3040 = vdwg.mxu0
    %v3041 = vsel %vm136, %v3038, -inf
    %3042 = vmax.xlane.f32.xlu0 %v3041
    %v3043 = vpop.xlane.xlu0 %3042
    %v3044 = vsub.f32 %v3038, %v3043
    %v3045 = vmul.f32 %v3044, 1.442695
    %v3046 = vpow.pop %v3045
    %v3047 = vsel %vm136, %v3046, 0.0
    %3048 = vadd.xlane.f32.xlu0 %v3047
    %v3049 = vpop.xlane.xlu0 %3048
    %v3050 = vrcp.pop %v3049
    %v3051 = vmul.f32 %v3046, %v3050
    %3052 = vrot.lane.b32.xlu0 %v1794, 72
    %v3053 = vpop.permute.xlu0 %3052
    %v3056 = vsel %vm136, %v3051, 0
    %3058 = vmatprep.subr.mxu0 0.0
    %3059 = vmatpush1.msra.mxu0 %v3053
    %3060 = vmatprep.subr.mxu0 0.0
    %3061 = vmatpush1.msra.mxu0 0.0
    %3062 = vmatprep.subr.mxu0 0.0
    %3063 = vmatpush1.msra.mxu0 0.0
    %3064 = vmatprep.subr.mxu0 0.0
    %3065 = vmatpush1.msra.mxu0 0.0
    %3066 = vmatprep.subr.mxu0 0.0
    %3067 = vmatpush1.msra.mxu0 0.0
    %3068 = vmatprep.subr.mxu0 0.0
    %3069 = vmatpush1.msra.mxu0 0.0
    %3070 = vmatprep.subr.mxu0 0.0
    %3071 = vmatpush1.msra.mxu0 0.0
    %3072 = vmatprep.subr.mxu0 0.0
    %3073 = vmatpush1.msra.mxu0 0.0
    %3074 = vmatprep.subr.mxu0 0.0
    %3075 = vmatpush1.msra.mxu0 0.0
    %3076 = vmatprep.subr.mxu0 0.0
    %3077 = vmatpush1.msra.mxu0 0.0
    %3078 = vmatprep.subr.mxu0 0.0
    %3079 = vmatpush1.msra.mxu0 0.0
    %3080 = vmatprep.subr.mxu0 0.0
    %3081 = vmatpush1.msra.mxu0 0.0
    %3082 = vmatprep.subr.mxu0 0.0
    %3083 = vmatpush1.msra.mxu0 0.0
    %3084 = vmatprep.subr.mxu0 0.0
    %3085 = vmatpush1.msra.mxu0 0.0
    %3086 = vmatprep.subr.mxu0 0.0
    %3087 = vmatpush1.msra.mxu0 0.0
    %3088 = vmatprep.subr.mxu0 0.0
    %3089 = vmatpush1.msra.mxu0 0.0
    %3090 = vmatprep.subr.mxu0 0.0
    %3091 = vmatpush1.msra.mxu0 0.0
    %3092 = vmatprep.subr.mxu0 0.0
    %3093 = vmatpush1.msra.mxu0 0.0
    %3094 = vmatprep.subr.mxu0 0.0
    %3095 = vmatpush1.msra.mxu0 0.0
    %3096 = vmatprep.subr.mxu0 0.0
    %3097 = vmatpush1.msra.mxu0 0.0
    %3098 = vmatprep.subr.mxu0 0.0
    %3099 = vmatpush1.msra.mxu0 0.0
    %3100 = vmatprep.subr.mxu0 0.0
    %3101 = vmatpush1.msra.mxu0 0.0
    %3102 = vmatprep.subr.mxu0 0.0
    %3103 = vmatpush1.msra.mxu0 0.0
    %3104 = vmatprep.subr.mxu0 0.0
    %3105 = vmatpush1.msra.mxu0 0.0
    %3106 = vmatprep.subr.mxu0 0.0
    %3107 = vmatpush1.msra.mxu0 0.0
    %3108 = vmatprep.subr.mxu0 0.0
    %3109 = vmatpush1.msra.mxu0 0.0
    %3110 = vmatprep.subr.mxu0 0.0
    %3111 = vmatpush1.msra.mxu0 0.0
    %3112 = vmatprep.subr.mxu0 0.0
    %3113 = vmatpush1.msra.mxu0 0.0
    %3114 = vmatprep.subr.mxu0 0.0
    %3115 = vmatpush1.msra.mxu0 0.0
    %3116 = vmatprep.subr.mxu0 0.0
    %3117 = vmatpush1.msra.mxu0 0.0
    %3118 = vmatprep.subr.mxu0 0.0
    %3119 = vmatpush1.msra.mxu0 0.0
    %3120 = vmatprep.subr.mxu0 0.0
    %3121 = vmatpush1.msra.mxu0 0.0
    %3122 = vmatprep.mubr.f32.mxu0 0.0
    %3123 = vmatmul.mubr.f32.gmra.mrb[0].mxu0 %v3056
    %v3124 = vpop.f32.mrb[0].mxu0
    %v3125 = vadd.f32 0.0, %v3124
    %v3126 = vpop.f32.mrb[0].mxu0
    %3127 = vdwg.mxu0
    %3129 = vrot.lane.b32.xlu0 %v2795, 8
    %v3130 = vpop.permute.xlu0 %3129
    %3133 = vrot.lane.b32.xlu0 %v2960, 16
    %v3134 = vpop.permute.xlu0 %3133
    %3137 = vrot.lane.b32.xlu0 %v3125, 24
    %v3138 = vpop.permute.xlu0 %3137
    %v3140 = vsel %vm136, %v2630, %v3130
    %v3141 = vsel %vm806, %v3140, %v3134
    %v3142 = vsel %vm808, %v3141, %v3138
    %v3143 = vld [vmem:[#allocation2 + $0x80] sm:$0xff]
    %v3144 = vld [vmem:[#allocation2 + $0x88] sm:$0xff]
    %v3145 = vld [vmem:[#allocation2 + $0x90] sm:$0xff]
    %v3146 = vld [vmem:[#allocation2 + $0x98] sm:$0xff]
    %v3147 = vld [vmem:[%s3 + $0x4] sm:$0x1]
    %v3148 = vlaneseq
    %v3149 = vshrl.u32 %v3148, 7
    %v3150 = vsub.s32 0, %v3149
    %v3151 = vrot.slane %v3147, %v3150
    %v3153 = vsel %vm51, %v2469, 0
    %v3156 = vsel %vm51, %v3142, 0
    %3158 = vmatprep.subr.mxu0 0.0
    %3159 = vmatpush1.msra.mxu0 %v3143
    %3160 = vmatprep.subr.mxu0 0.0
    %3161 = vmatpush1.msra.mxu0 %v3144
    %3162 = vmatprep.subr.mxu0 0.0
    %3163 = vmatpush1.msra.mxu0 %v3145
    %3164 = vmatprep.subr.mxu0 0.0
    %3165 = vmatpush1.msra.mxu0 %v3146
    %3166 = vmatprep.subr.mxu0 0.0
    %3167 = vmatpush1.msra.mxu0 0.0
    %3168 = vmatprep.subr.mxu0 0.0
    %3169 = vmatpush1.msra.mxu0 0.0
    %3170 = vmatprep.subr.mxu0 0.0
    %3171 = vmatpush1.msra.mxu0 0.0
    %3172 = vmatprep.subr.mxu0 0.0
    %3173 = vmatpush1.msra.mxu0 0.0
    %3174 = vmatprep.subr.mxu0 0.0
    %3175 = vmatpush1.msra.mxu0 0.0
    %3176 = vmatprep.subr.mxu0 0.0
    %3177 = vmatpush1.msra.mxu0 0.0
    %3178 = vmatprep.subr.mxu0 0.0
    %3179 = vmatpush1.msra.mxu0 0.0
    %3180 = vmatprep.subr.mxu0 0.0
    %3181 = vmatpush1.msra.mxu0 0.0
    %3182 = vmatprep.subr.mxu0 0.0
    %3183 = vmatpush1.msra.mxu0 0.0
    %3184 = vmatprep.subr.mxu0 0.0
    %3185 = vmatpush1.msra.mxu0 0.0
    %3186 = vmatprep.subr.mxu0 0.0
    %3187 = vmatpush1.msra.mxu0 0.0
    %3188 = vmatprep.subr.mxu0 0.0
    %3189 = vmatpush1.msra.mxu0 0.0
    %3190 = vmatprep.subr.mxu0 0.0
    %3191 = vmatpush1.msra.mxu0 0.0
    %3192 = vmatprep.subr.mxu0 0.0
    %3193 = vmatpush1.msra.mxu0 0.0
    %3194 = vmatprep.subr.mxu0 0.0
    %3195 = vmatpush1.msra.mxu0 0.0
    %3196 = vmatprep.subr.mxu0 0.0
    %3197 = vmatpush1.msra.mxu0 0.0
    %3198 = vmatprep.subr.mxu0 0.0
    %3199 = vmatpush1.msra.mxu0 0.0
    %3200 = vmatprep.subr.mxu0 0.0
    %3201 = vmatpush1.msra.mxu0 0.0
    %3202 = vmatprep.subr.mxu0 0.0
    %3203 = vmatpush1.msra.mxu0 0.0
    %3204 = vmatprep.subr.mxu0 0.0
    %3205 = vmatpush1.msra.mxu0 0.0
    %3206 = vmatprep.subr.mxu0 0.0
    %3207 = vmatpush1.msra.mxu0 0.0
    %3208 = vmatprep.subr.mxu0 0.0
    %3209 = vmatpush1.msra.mxu0 0.0
    %3210 = vmatprep.subr.mxu0 0.0
    %3211 = vmatpush1.msra.mxu0 0.0
    %3212 = vmatprep.subr.mxu0 0.0
    %3213 = vmatpush1.msra.mxu0 0.0
    %3214 = vmatprep.subr.mxu0 0.0
    %3215 = vmatpush1.msra.mxu0 0.0
    %3216 = vmatprep.subr.mxu0 0.0
    %3217 = vmatpush1.msra.mxu0 0.0
    %3218 = vmatprep.subr.mxu0 0.0
    %3219 = vmatpush1.msra.mxu0 0.0
    %3220 = vmatprep.subr.mxu0 0.0
    %3221 = vmatpush1.msra.mxu0 0.0
    %3222 = vmatprep.mubr.f32.mxu0 0.0
    %3223 = vmatmul.mubr.f32.gmra.mrb[0].mxu0 %v3153
    %v3224 = vpop.f32.mrb[0].mxu0
    %v3225 = vadd.f32 %v3151, %v3224
    %v3226 = vpop.f32.mrb[0].mxu0
    %3227 = vmatprep.mubr.f32.mxu0 0.0
    %3228 = vmatmul.mubr.f32.gmra.mrb[0].mxu0 %v3156
    %v3229 = vpop.f32.mrb[0].mxu0
    %v3230 = vadd.f32 %v3151, %v3229
    %v3231 = vpop.f32.mrb[0].mxu0
    %3232 = vdwg.mxu0
    %v3233 = vadd.f32 %v1615, %v3225
    %v3234 = vadd.f32 %v1616, %v3230
    %v3235 = vld [vmem:[%s3 + $0x7] sm:$0x1]
    %v3236 = vld [vmem:[%s3 + $0x8] sm:$0x1]
    %v3237 = vsel %vm51, %v3233, 0.0
    %3238 = vadd.xlane.f32.xlu0 %v3237
    %v3239 = vpop.xlane.xlu0 %3238
    %v3240 = vsel %vm51, %v3234, 0.0
    %3241 = vadd.xlane.f32.xlu0 %v3240
    %v3242 = vpop.xlane.xlu0 %3241
    %v3243 = vmul.f32 %v3239, %v1584
    %v3244 = vmul.f32 %v3242, %v1584
    %v3245 = vsub.f32 %v3233, %v3243
    %v3246 = vsub.f32 %v3234, %v3244
    %v3247 = vmul.f32 %v3245, %v3245
    %v3248 = vmul.f32 %v3246, %v3246
    %v3249 = vsel %vm51, %v3247, 0.0
    %3250 = vadd.xlane.f32.xlu0 %v3249
    %v3251 = vpop.xlane.xlu0 %3250
    %v3252 = vsel %vm51, %v3248, 0.0
    %3253 = vadd.xlane.f32.xlu0 %v3252
    %v3254 = vpop.xlane.xlu0 %3253
    %v3255 = vmul.f32 %v3251, %v1584
    %v3256 = vmul.f32 %v3254, %v1584
    %v3257 = vadd.f32 %v3255, 1e-05
    %v3258 = vadd.f32 %v3256, 1e-05
    %v3259 = vrsqrt.pop %v3257
    %v3260 = vrsqrt.pop %v3258
    %v3261 = vmul.f32 %v3245, %v3259
    %v3262 = vmul.f32 %v3246, %v3260
    %v3263 = vlaneseq
    %v3264 = vshrl.u32 %v3263, 7
    %v3265 = vsub.s32 0, %v3264
    %v3266 = vrot.slane %v3235, %v3265
    %v3267 = vmul.f32 %v3261, %v3266
    %v3268 = vmul.f32 %v3262, %v3266
    %v3269 = vlaneseq
    %v3270 = vshrl.u32 %v3269, 7
    %v3271 = vsub.s32 0, %v3270
    %v3272 = vrot.slane %v3236, %v3271
    %v3273 = vadd.f32 %v3267, %v3272
    %v3274 = vadd.f32 %v3268, %v3272
    %v3275 = vld [vmem:[#allocation2 + $0xa0] sm:$0xff]
    %v3276 = vld [vmem:[#allocation2 + $0xa8] sm:$0xff]
    %v3277 = vld [vmem:[#allocation2 + $0xb0] sm:$0xff]
    %v3278 = vld [vmem:[#allocation2 + $0xb8] sm:$0xff]
    %v3279 = vld [vmem:[%s3 + $0xb] sm:$0x1]
    %v3280 = vlaneseq
    %v3281 = vshrl.u32 %v3280, 7
    %v3282 = vsub.s32 0, %v3281
    %v3283 = vrot.slane %v3279, %v3282
    %v3285 = vsel %vm51, %v3273, 0
    %v3288 = vsel %vm51, %v3274, 0
    %3290 = vmatprep.subr.mxu0 0.0
    %3291 = vmatpush1.msra.mxu0 %v3275
    %3292 = vmatprep.subr.mxu0 0.0
    %3293 = vmatpush1.msra.mxu0 %v3276
    %3294 = vmatprep.subr.mxu0 0.0
    %3295 = vmatpush1.msra.mxu0 %v3277
    %3296 = vmatprep.subr.mxu0 0.0
    %3297 = vmatpush1.msra.mxu0 %v3278
    %3298 = vmatprep.subr.mxu0 0.0
    %3299 = vmatpush1.msra.mxu0 0.0
    %3300 = vmatprep.subr.mxu0 0.0
    %3301 = vmatpush1.msra.mxu0 0.0
    %3302 = vmatprep.subr.mxu0 0.0
    %3303 = vmatpush1.msra.mxu0 0.0
    %3304 = vmatprep.subr.mxu0 0.0
    %3305 = vmatpush1.msra.mxu0 0.0
    %3306 = vmatprep.subr.mxu0 0.0
    %3307 = vmatpush1.msra.mxu0 0.0
    %3308 = vmatprep.subr.mxu0 0.0
    %3309 = vmatpush1.msra.mxu0 0.0
    %3310 = vmatprep.subr.mxu0 0.0
    %3311 = vmatpush1.msra.mxu0 0.0
    %3312 = vmatprep.subr.mxu0 0.0
    %3313 = vmatpush1.msra.mxu0 0.0
    %3314 = vmatprep.subr.mxu0 0.0
    %3315 = vmatpush1.msra.mxu0 0.0
    %3316 = vmatprep.subr.mxu0 0.0
    %3317 = vmatpush1.msra.mxu0 0.0
    %3318 = vmatprep.subr.mxu0 0.0
    %3319 = vmatpush1.msra.mxu0 0.0
    %3320 = vmatprep.subr.mxu0 0.0
    %3321 = vmatpush1.msra.mxu0 0.0
    %3322 = vmatprep.subr.mxu0 0.0
    %3323 = vmatpush1.msra.mxu0 0.0
    %3324 = vmatprep.subr.mxu0 0.0
    %3325 = vmatpush1.msra.mxu0 0.0
    %3326 = vmatprep.subr.mxu0 0.0
    %3327 = vmatpush1.msra.mxu0 0.0
    %3328 = vmatprep.subr.mxu0 0.0
    %3329 = vmatpush1.msra.mxu0 0.0
    %3330 = vmatprep.subr.mxu0 0.0
    %3331 = vmatpush1.msra.mxu0 0.0
    %3332 = vmatprep.subr.mxu0 0.0
    %3333 = vmatpush1.msra.mxu0 0.0
    %3334 = vmatprep.subr.mxu0 0.0
    %3335 = vmatpush1.msra.mxu0 0.0
    %3336 = vmatprep.subr.mxu0 0.0
    %3337 = vmatpush1.msra.mxu0 0.0
    %3338 = vmatprep.subr.mxu0 0.0
    %3339 = vmatpush1.msra.mxu0 0.0
    %3340 = vmatprep.subr.mxu0 0.0
    %3341 = vmatpush1.msra.mxu0 0.0
    %3342 = vmatprep.subr.mxu0 0.0
    %3343 = vmatpush1.msra.mxu0 0.0
    %3344 = vmatprep.subr.mxu0 0.0
    %3345 = vmatpush1.msra.mxu0 0.0
    %3346 = vmatprep.subr.mxu0 0.0
    %3347 = vmatpush1.msra.mxu0 0.0
    %3348 = vmatprep.subr.mxu0 0.0
    %3349 = vmatpush1.msra.mxu0 0.0
    %3350 = vmatprep.subr.mxu0 0.0
    %3351 = vmatpush1.msra.mxu0 0.0
    %3352 = vmatprep.subr.mxu0 0.0
    %3353 = vmatpush1.msra.mxu0 0.0
    %3354 = vmatprep.mubr.f32.mxu0 0.0
    %3355 = vmatmul.mubr.f32.gmra.mrb[0].mxu0 %v3285
    %v3356 = vpop.f32.mrb[0].mxu0
    %v3357 = vadd.f32 %v3283, %v3356
    %v3358 = vpop.f32.mrb[0].mxu0
    %3359 = vmatprep.mubr.f32.mxu0 0.0
    %3360 = vmatmul.mubr.f32.gmra.mrb[0].mxu0 %v3288
    %v3361 = vpop.f32.mrb[0].mxu0
    %v3362 = vadd.f32 %v3283, %v3361
    %v3363 = vpop.f32.mrb[0].mxu0
    %3364 = vdwg.mxu0
    %v3365 = vmax.f32 %v3357, 0.0
    %v3366 = vmax.f32 %v3362, 0.0
    %v3367 = vld [vmem:[#allocation2 + $0xc0] sm:$0xff]
    %v3368 = vld [vmem:[#allocation2 + $0xc8] sm:$0xff]
    %v3369 = vld [vmem:[#allocation2 + $0xd0] sm:$0xff]
    %v3370 = vld [vmem:[#allocation2 + $0xd8] sm:$0xff]
    %v3371 = vld [vmem:[#allocation2 + $0xe0] sm:$0xff]
    %v3372 = vld [vmem:[#allocation2 + $0xe8] sm:$0xff]
    %v3373 = vld [vmem:[#allocation2 + $0xf0] sm:$0xff]
    %v3374 = vld [vmem:[#allocation2 + $0xf8] sm:$0xff]
    %v3375 = vld [vmem:[%s3 + $0xc] sm:$0x1]
    %v3376 = vlaneseq
    %v3377 = vshrl.u32 %v3376, 7
    %v3378 = vsub.s32 0, %v3377
    %v3379 = vrot.slane %v3375, %v3378
    %vm3380 = vcmask 523264
    %v3382 = vsel %vm3380, %v3365, 0
    %v3385 = vsel %vm3380, %v3366, 0
    %3387 = vmatprep.subr.mxu0 0.0
    %3388 = vmatpush1.msra.mxu0 %v3367
    %3389 = vmatprep.subr.mxu0 0.0
    %3390 = vmatpush1.msra.mxu0 %v3368
    %3391 = vmatprep.subr.mxu0 0.0
    %3392 = vmatpush1.msra.mxu0 %v3369
    %3393 = vmatprep.subr.mxu0 0.0
    %3394 = vmatpush1.msra.mxu0 %v3370
    %3395 = vmatprep.subr.mxu0 0.0
    %3396 = vmatpush1.msra.mxu0 %v3371
    %3397 = vmatprep.subr.mxu0 0.0
    %3398 = vmatpush1.msra.mxu0 %v3372
    %3399 = vmatprep.subr.mxu0 0.0
    %3400 = vmatpush1.msra.mxu0 %v3373
    %3401 = vmatprep.subr.mxu0 0.0
    %3402 = vmatpush1.msra.mxu0 %v3374
    %3403 = vmatprep.subr.mxu0 0.0
    %3404 = vmatpush1.msra.mxu0 0.0
    %3405 = vmatprep.subr.mxu0 0.0
    %3406 = vmatpush1.msra.mxu0 0.0
    %3407 = vmatprep.subr.mxu0 0.0
    %3408 = vmatpush1.msra.mxu0 0.0
    %3409 = vmatprep.subr.mxu0 0.0
    %3410 = vmatpush1.msra.mxu0 0.0
    %3411 = vmatprep.subr.mxu0 0.0
    %3412 = vmatpush1.msra.mxu0 0.0
    %3413 = vmatprep.subr.mxu0 0.0
    %3414 = vmatpush1.msra.mxu0 0.0
    %3415 = vmatprep.subr.mxu0 0.0
    %3416 = vmatpush1.msra.mxu0 0.0
    %3417 = vmatprep.subr.mxu0 0.0
    %3418 = vmatpush1.msra.mxu0 0.0
    %3419 = vmatprep.subr.mxu0 0.0
    %3420 = vmatpush1.msra.mxu0 0.0
    %3421 = vmatprep.subr.mxu0 0.0
    %3422 = vmatpush1.msra.mxu0 0.0
    %3423 = vmatprep.subr.mxu0 0.0
    %3424 = vmatpush1.msra.mxu0 0.0
    %3425 = vmatprep.subr.mxu0 0.0
    %3426 = vmatpush1.msra.mxu0 0.0
    %3427 = vmatprep.subr.mxu0 0.0
    %3428 = vmatpush1.msra.mxu0 0.0
    %3429 = vmatprep.subr.mxu0 0.0
    %3430 = vmatpush1.msra.mxu0 0.0
    %3431 = vmatprep.subr.mxu0 0.0
    %3432 = vmatpush1.msra.mxu0 0.0
    %3433 = vmatprep.subr.mxu0 0.0
    %3434 = vmatpush1.msra.mxu0 0.0
    %3435 = vmatprep.subr.mxu0 0.0
    %3436 = vmatpush1.msra.mxu0 0.0
    %3437 = vmatprep.subr.mxu0 0.0
    %3438 = vmatpush1.msra.mxu0 0.0
    %3439 = vmatprep.subr.mxu0 0.0
    %3440 = vmatpush1.msra.mxu0 0.0
    %3441 = vmatprep.subr.mxu0 0.0
    %3442 = vmatpush1.msra.mxu0 0.0
    %3443 = vmatprep.subr.mxu0 0.0
    %3444 = vmatpush1.msra.mxu0 0.0
    %3445 = vmatprep.subr.mxu0 0.0
    %3446 = vmatpush1.msra.mxu0 0.0
    %3447 = vmatprep.subr.mxu0 0.0
    %3448 = vmatpush1.msra.mxu0 0.0
    %3449 = vmatprep.subr.mxu0 0.0
    %3450 = vmatpush1.msra.mxu0 0.0
    %3451 = vmatprep.mubr.f32.mxu0 0.0
    %3452 = vmatmul.mubr.f32.gmra.mrb[0].mxu0 %v3382
    %v3453 = vpop.f32.mrb[0].mxu0
    %v3454 = vadd.f32 %v3379, %v3453
    %v3455 = vpop.f32.mrb[0].mxu0
    %3456 = vmatprep.mubr.f32.mxu0 0.0
    %3457 = vmatmul.mubr.f32.gmra.mrb[0].mxu0 %v3385
    %v3458 = vpop.f32.mrb[0].mxu0
    %v3459 = vadd.f32 %v3379, %v3458
    %v3460 = vpop.f32.mrb[0].mxu0
    %3461 = vdwg.mxu0
    %v3462 = vadd.f32 %v3273, %v3454
    %v3463 = vadd.f32 %v3274, %v3459
    %v3464 = vld [vmem:[%s3 + $0x9] sm:$0x1]
    %v3465 = vld [vmem:[%s3 + $0xa] sm:$0x1]
    %v3466 = vsel %vm51, %v3462, 0.0
    %3467 = vadd.xlane.f32.xlu0 %v3466
    %v3468 = vpop.xlane.xlu0 %3467
    %v3469 = vsel %vm51, %v3463, 0.0
    %3470 = vadd.xlane.f32.xlu0 %v3469
    %v3471 = vpop.xlane.xlu0 %3470
    %v3472 = vmul.f32 %v3468, %v1584
    %v3473 = vmul.f32 %v3471, %v1584
    %v3474 = vsub.f32 %v3462, %v3472
    %v3475 = vsub.f32 %v3463, %v3473
    %v3476 = vmul.f32 %v3474, %v3474
    %v3477 = vmul.f32 %v3475, %v3475
    %v3478 = vsel %vm51, %v3476, 0.0
    %3479 = vadd.xlane.f32.xlu0 %v3478
    %v3480 = vpop.xlane.xlu0 %3479
    %v3481 = vsel %vm51, %v3477, 0.0
    %3482 = vadd.xlane.f32.xlu0 %v3481
    %v3483 = vpop.xlane.xlu0 %3482
    %v3484 = vmul.f32 %v3480, %v1584
    %v3485 = vmul.f32 %v3483, %v1584
    %v3486 = vadd.f32 %v3484, 1e-05
    %v3487 = vadd.f32 %v3485, 1e-05
    %v3488 = vrsqrt.pop %v3486
    %v3489 = vrsqrt.pop %v3487
    %v3490 = vmul.f32 %v3474, %v3488
    %v3491 = vmul.f32 %v3475, %v3489
    %v3492 = vlaneseq
    %v3493 = vshrl.u32 %v3492, 7
    %v3494 = vsub.s32 0, %v3493
    %v3495 = vrot.slane %v3464, %v3494
    %v3496 = vmul.f32 %v3490, %v3495
    %v3497 = vmul.f32 %v3491, %v3495
    %v3498 = vlaneseq
    %v3499 = vshrl.u32 %v3498, 7
    %v3500 = vsub.s32 0, %v3499
    %v3501 = vrot.slane %v3465, %v3500
    %v3502 = vadd.f32 %v3496, %v3501
    %v3503 = vadd.f32 %v3497, %v3501
    %v3504 = vld [vmem:[#allocation2 + $0x100] sm:$0xff]
    %v3505 = vld [vmem:[#allocation2 + $0x108] sm:$0xff]
    %v3506 = vld [vmem:[#allocation2 + $0x110] sm:$0xff]
    %v3507 = vld [vmem:[#allocation2 + $0x118] sm:$0xff]
    %v3508 = vld [vmem:[%s3 + $0xd] sm:$0x1]
    %v3509 = vlaneseq
    %v3510 = vshrl.u32 %v3509, 7
    %v3511 = vsub.s32 0, %v3510
    %v3512 = vrot.slane %v3508, %v3511
    %v3514 = vsel %vm51, %v3502, 0
    %v3517 = vsel %vm51, %v3503, 0
    %3519 = vmatprep.subr.mxu0 0.0
    %3520 = vmatpush1.msra.mxu0 %v3504
    %3521 = vmatprep.subr.mxu0 0.0
    %3522 = vmatpush1.msra.mxu0 %v3505
    %3523 = vmatprep.subr.mxu0 0.0
    %3524 = vmatpush1.msra.mxu0 %v3506
    %3525 = vmatprep.subr.mxu0 0.0
    %3526 = vmatpush1.msra.mxu0 %v3507
    %3527 = vmatprep.subr.mxu0 0.0
    %3528 = vmatpush1.msra.mxu0 0.0
    %3529 = vmatprep.subr.mxu0 0.0
    %3530 = vmatpush1.msra.mxu0 0.0
    %3531 = vmatprep.subr.mxu0 0.0
    %3532 = vmatpush1.msra.mxu0 0.0
    %3533 = vmatprep.subr.mxu0 0.0
    %3534 = vmatpush1.msra.mxu0 0.0
    %3535 = vmatprep.subr.mxu0 0.0
    %3536 = vmatpush1.msra.mxu0 0.0
    %3537 = vmatprep.subr.mxu0 0.0
    %3538 = vmatpush1.msra.mxu0 0.0
    %3539 = vmatprep.subr.mxu0 0.0
    %3540 = vmatpush1.msra.mxu0 0.0
    %3541 = vmatprep.subr.mxu0 0.0
    %3542 = vmatpush1.msra.mxu0 0.0
    %3543 = vmatprep.subr.mxu0 0.0
    %3544 = vmatpush1.msra.mxu0 0.0
    %3545 = vmatprep.subr.mxu0 0.0
    %3546 = vmatpush1.msra.mxu0 0.0
    %3547 = vmatprep.subr.mxu0 0.0
    %3548 = vmatpush1.msra.mxu0 0.0
    %3549 = vmatprep.subr.mxu0 0.0
    %3550 = vmatpush1.msra.mxu0 0.0
    %3551 = vmatprep.subr.mxu0 0.0
    %3552 = vmatpush1.msra.mxu0 0.0
    %3553 = vmatprep.subr.mxu0 0.0
    %3554 = vmatpush1.msra.mxu0 0.0
    %3555 = vmatprep.subr.mxu0 0.0
    %3556 = vmatpush1.msra.mxu0 0.0
    %3557 = vmatprep.subr.mxu0 0.0
    %3558 = vmatpush1.msra.mxu0 0.0
    %3559 = vmatprep.subr.mxu0 0.0
    %3560 = vmatpush1.msra.mxu0 0.0
    %3561 = vmatprep.subr.mxu0 0.0
    %3562 = vmatpush1.msra.mxu0 0.0
    %3563 = vmatprep.subr.mxu0 0.0
    %3564 = vmatpush1.msra.mxu0 0.0
    %3565 = vmatprep.subr.mxu0 0.0
    %3566 = vmatpush1.msra.mxu0 0.0
    %3567 = vmatprep.subr.mxu0 0.0
    %3568 = vmatpush1.msra.mxu0 0.0
    %3569 = vmatprep.subr.mxu0 0.0
    %3570 = vmatpush1.msra.mxu0 0.0
    %3571 = vmatprep.subr.mxu0 0.0
    %3572 = vmatpush1.msra.mxu0 0.0
    %3573 = vmatprep.subr.mxu0 0.0
    %3574 = vmatpush1.msra.mxu0 0.0
    %3575 = vmatprep.subr.mxu0 0.0
    %3576 = vmatpush1.msra.mxu0 0.0
    %3577 = vmatprep.subr.mxu0 0.0
    %3578 = vmatpush1.msra.mxu0 0.0
    %3579 = vmatprep.subr.mxu0 0.0
    %3580 = vmatpush1.msra.mxu0 0.0
    %3581 = vmatprep.subr.mxu0 0.0
    %3582 = vmatpush1.msra.mxu0 0.0
    %3583 = vmatprep.mubr.f32.mxu0 0.0
    %3584 = vmatmul.mubr.f32.gmra.mrb[0].mxu0 %v3514
    %v3585 = vpop.f32.mrb[0].mxu0
    %v3586 = vadd.f32 %v3512, %v3585
    %v3587 = vpop.f32.mrb[0].mxu0
    %3588 = vmatprep.mubr.f32.mxu0 0.0
    %3589 = vmatmul.mubr.f32.gmra.mrb[0].mxu0 %v3517
    %v3590 = vpop.f32.mrb[0].mxu0
    %v3591 = vadd.f32 %v3512, %v3590
    %v3592 = vpop.f32.mrb[0].mxu0
    %3593 = vdwg.mxu0
    %3595 = vrot.lane.b32.xlu0 %v3586, 96
    %v3596 = vpop.permute.xlu0 %3595
    %v3597 = vsel %vm136, %v3586, 0
    %v3599 = vsel %vm136, %v3596, 0
    %3601 = vmatprep.subr.mxu0 0.0
    %3602 = vmatpush1.xpose.msra.mxu0 %v3599
    %3603 = vmatprep.subr.mxu0 0.0
    %3604 = vmatpush1.xpose.msra.mxu0 0.0
    %3605 = vmatprep.subr.mxu0 0.0
    %3606 = vmatpush1.xpose.msra.mxu0 0.0
    %3607 = vmatprep.subr.mxu0 0.0
    %3608 = vmatpush1.xpose.msra.mxu0 0.0
    %3609 = vmatprep.subr.mxu0 0.0
    %3610 = vmatpush1.xpose.msra.mxu0 0.0
    %3611 = vmatprep.subr.mxu0 0.0
    %3612 = vmatpush1.xpose.msra.mxu0 0.0
    %3613 = vmatprep.subr.mxu0 0.0
    %3614 = vmatpush1.xpose.msra.mxu0 0.0
    %3615 = vmatprep.subr.mxu0 0.0
    %3616 = vmatpush1.xpose.msra.mxu0 0.0
    %3617 = vmatprep.subr.mxu0 0.0
    %3618 = vmatpush1.xpose.msra.mxu0 0.0
    %3619 = vmatprep.subr.mxu0 0.0
    %3620 = vmatpush1.xpose.msra.mxu0 0.0
    %3621 = vmatprep.subr.mxu0 0.0
    %3622 = vmatpush1.xpose.msra.mxu0 0.0
    %3623 = vmatprep.subr.mxu0 0.0
    %3624 = vmatpush1.xpose.msra.mxu0 0.0
    %3625 = vmatprep.subr.mxu0 0.0
    %3626 = vmatpush1.xpose.msra.mxu0 0.0
    %3627 = vmatprep.subr.mxu0 0.0
    %3628 = vmatpush1.xpose.msra.mxu0 0.0
    %3629 = vmatprep.subr.mxu0 0.0
    %3630 = vmatpush1.xpose.msra.mxu0 0.0
    %3631 = vmatprep.subr.mxu0 0.0
    %3632 = vmatpush1.xpose.msra.mxu0 0.0
    %3633 = vmatprep.subr.mxu0 0.0
    %3634 = vmatpush1.xpose.msra.mxu0 0.0
    %3635 = vmatprep.subr.mxu0 0.0
    %3636 = vmatpush1.xpose.msra.mxu0 0.0
    %3637 = vmatprep.subr.mxu0 0.0
    %3638 = vmatpush1.xpose.msra.mxu0 0.0
    %3639 = vmatprep.subr.mxu0 0.0
    %3640 = vmatpush1.xpose.msra.mxu0 0.0
    %3641 = vmatprep.subr.mxu0 0.0
    %3642 = vmatpush1.xpose.msra.mxu0 0.0
    %3643 = vmatprep.subr.mxu0 0.0
    %3644 = vmatpush1.xpose.msra.mxu0 0.0
    %3645 = vmatprep.subr.mxu0 0.0
    %3646 = vmatpush1.xpose.msra.mxu0 0.0
    %3647 = vmatprep.subr.mxu0 0.0
    %3648 = vmatpush1.xpose.msra.mxu0 0.0
    %3649 = vmatprep.subr.mxu0 0.0
    %3650 = vmatpush1.xpose.msra.mxu0 0.0
    %3651 = vmatprep.subr.mxu0 0.0
    %3652 = vmatpush1.xpose.msra.mxu0 0.0
    %3653 = vmatprep.subr.mxu0 0.0
    %3654 = vmatpush1.xpose.msra.mxu0 0.0
    %3655 = vmatprep.subr.mxu0 0.0
    %3656 = vmatpush1.xpose.msra.mxu0 0.0
    %3657 = vmatprep.subr.mxu0 0.0
    %3658 = vmatpush1.xpose.msra.mxu0 0.0
    %3659 = vmatprep.subr.mxu0 0.0
    %3660 = vmatpush1.xpose.msra.mxu0 0.0
    %3661 = vmatprep.subr.mxu0 0.0
    %3662 = vmatpush1.xpose.msra.mxu0 0.0
    %3663 = vmatprep.subr.mxu0 0.0
    %3664 = vmatpush1.xpose.msra.mxu0 0.0
    %3665 = vmatprep.mubr.f32.mxu0 0.0
    %3666 = vmatmul.mubr.f32.gmra.mrb[0].mxu0 %v3597
    %v3667 = vpop.f32.mrb[0].mxu0
    %v3668 = vadd.f32 %v41, %v3667
    %v3669 = vpop.f32.mrb[0].mxu0
    %3670 = vdwg.mxu0
    %v3671 = vsel %vm136, %v3668, -inf
    %3672 = vmax.xlane.f32.xlu0 %v3671
    %v3673 = vpop.xlane.xlu0 %3672
    %v3674 = vsub.f32 %v3668, %v3673
    %v3675 = vmul.f32 %v3674, 1.442695
    %v3676 = vpow.pop %v3675
    %v3677 = vsel %vm136, %v3676, 0.0
    %3678 = vadd.xlane.f32.xlu0 %v3677
    %v3679 = vpop.xlane.xlu0 %3678
    %v3680 = vrcp.pop %v3679
    %v3681 = vmul.f32 %v3676, %v3680
    %3682 = vrot.lane.b32.xlu0 %v3586, 64
    %v3683 = vpop.permute.xlu0 %3682
    %v3686 = vsel %vm136, %v3681, 0
    %3688 = vmatprep.subr.mxu0 0.0
    %3689 = vmatpush1.msra.mxu0 %v3683
    %3690 = vmatprep.subr.mxu0 0.0
    %3691 = vmatpush1.msra.mxu0 0.0
    %3692 = vmatprep.subr.mxu0 0.0
    %3693 = vmatpush1.msra.mxu0 0.0
    %3694 = vmatprep.subr.mxu0 0.0
    %3695 = vmatpush1.msra.mxu0 0.0
    %3696 = vmatprep.subr.mxu0 0.0
    %3697 = vmatpush1.msra.mxu0 0.0
    %3698 = vmatprep.subr.mxu0 0.0
    %3699 = vmatpush1.msra.mxu0 0.0
    %3700 = vmatprep.subr.mxu0 0.0
    %3701 = vmatpush1.msra.mxu0 0.0
    %3702 = vmatprep.subr.mxu0 0.0
    %3703 = vmatpush1.msra.mxu0 0.0
    %3704 = vmatprep.subr.mxu0 0.0
    %3705 = vmatpush1.msra.mxu0 0.0
    %3706 = vmatprep.subr.mxu0 0.0
    %3707 = vmatpush1.msra.mxu0 0.0
    %3708 = vmatprep.subr.mxu0 0.0
    %3709 = vmatpush1.msra.mxu0 0.0
    %3710 = vmatprep.subr.mxu0 0.0
    %3711 = vmatpush1.msra.mxu0 0.0
    %3712 = vmatprep.subr.mxu0 0.0
    %3713 = vmatpush1.msra.mxu0 0.0
    %3714 = vmatprep.subr.mxu0 0.0
    %3715 = vmatpush1.msra.mxu0 0.0
    %3716 = vmatprep.subr.mxu0 0.0
    %3717 = vmatpush1.msra.mxu0 0.0
    %3718 = vmatprep.subr.mxu0 0.0
    %3719 = vmatpush1.msra.mxu0 0.0
    %3720 = vmatprep.subr.mxu0 0.0
    %3721 = vmatpush1.msra.mxu0 0.0
    %3722 = vmatprep.subr.mxu0 0.0
    %3723 = vmatpush1.msra.mxu0 0.0
    %3724 = vmatprep.subr.mxu0 0.0
    %3725 = vmatpush1.msra.mxu0 0.0
    %3726 = vmatprep.subr.mxu0 0.0
    %3727 = vmatpush1.msra.mxu0 0.0
    %3728 = vmatprep.subr.mxu0 0.0
    %3729 = vmatpush1.msra.mxu0 0.0
    %3730 = vmatprep.subr.mxu0 0.0
    %3731 = vmatpush1.msra.mxu0 0.0
    %3732 = vmatprep.subr.mxu0 0.0
    %3733 = vmatpush1.msra.mxu0 0.0
    %3734 = vmatprep.subr.mxu0 0.0
    %3735 = vmatpush1.msra.mxu0 0.0
    %3736 = vmatprep.subr.mxu0 0.0
    %3737 = vmatpush1.msra.mxu0 0.0
    %3738 = vmatprep.subr.mxu0 0.0
    %3739 = vmatpush1.msra.mxu0 0.0
    %3740 = vmatprep.subr.mxu0 0.0
    %3741 = vmatpush1.msra.mxu0 0.0
    %3742 = vmatprep.subr.mxu0 0.0
    %3743 = vmatpush1.msra.mxu0 0.0
    %3744 = vmatprep.subr.mxu0 0.0
    %3745 = vmatpush1.msra.mxu0 0.0
    %3746 = vmatprep.subr.mxu0 0.0
    %3747 = vmatpush1.msra.mxu0 0.0
    %3748 = vmatprep.subr.mxu0 0.0
    %3749 = vmatpush1.msra.mxu0 0.0
    %3750 = vmatprep.subr.mxu0 0.0
    %3751 = vmatpush1.msra.mxu0 0.0
    %3752 = vmatprep.mubr.f32.mxu0 0.0
    %3753 = vmatmul.mubr.f32.gmra.mrb[0].mxu0 %v3686
    %v3754 = vpop.f32.mrb[0].mxu0
    %v3755 = vadd.f32 0.0, %v3754
    %v3756 = vpop.f32.mrb[0].mxu0
    %3757 = vdwg.mxu0
    %3758 = vrot.lane.b32.xlu0 %v3586, 120
    %v3759 = vpop.permute.xlu0 %3758
    %3760 = vrot.lane.b32.xlu0 %v3586, 88
    %v3761 = vpop.permute.xlu0 %3760
    %v3762 = vsel %vm136, %v3759, 0
    %v3764 = vsel %vm136, %v3761, 0
    %3766 = vmatprep.subr.mxu0 0.0
    %3767 = vmatpush1.xpose.msra.mxu0 %v3764
    %3768 = vmatprep.subr.mxu0 0.0
    %3769 = vmatpush1.xpose.msra.mxu0 0.0
    %3770 = vmatprep.subr.mxu0 0.0
    %3771 = vmatpush1.xpose.msra.mxu0 0.0
    %3772 = vmatprep.subr.mxu0 0.0
    %3773 = vmatpush1.xpose.msra.mxu0 0.0
    %3774 = vmatprep.subr.mxu0 0.0
    %3775 = vmatpush1.xpose.msra.mxu0 0.0
    %3776 = vmatprep.subr.mxu0 0.0
    %3777 = vmatpush1.xpose.msra.mxu0 0.0
    %3778 = vmatprep.subr.mxu0 0.0
    %3779 = vmatpush1.xpose.msra.mxu0 0.0
    %3780 = vmatprep.subr.mxu0 0.0
    %3781 = vmatpush1.xpose.msra.mxu0 0.0
    %3782 = vmatprep.subr.mxu0 0.0
    %3783 = vmatpush1.xpose.msra.mxu0 0.0
    %3784 = vmatprep.subr.mxu0 0.0
    %3785 = vmatpush1.xpose.msra.mxu0 0.0
    %3786 = vmatprep.subr.mxu0 0.0
    %3787 = vmatpush1.xpose.msra.mxu0 0.0
    %3788 = vmatprep.subr.mxu0 0.0
    %3789 = vmatpush1.xpose.msra.mxu0 0.0
    %3790 = vmatprep.subr.mxu0 0.0
    %3791 = vmatpush1.xpose.msra.mxu0 0.0
    %3792 = vmatprep.subr.mxu0 0.0
    %3793 = vmatpush1.xpose.msra.mxu0 0.0
    %3794 = vmatprep.subr.mxu0 0.0
    %3795 = vmatpush1.xpose.msra.mxu0 0.0
    %3796 = vmatprep.subr.mxu0 0.0
    %3797 = vmatpush1.xpose.msra.mxu0 0.0
    %3798 = vmatprep.subr.mxu0 0.0
    %3799 = vmatpush1.xpose.msra.mxu0 0.0
    %3800 = vmatprep.subr.mxu0 0.0
    %3801 = vmatpush1.xpose.msra.mxu0 0.0
    %3802 = vmatprep.subr.mxu0 0.0
    %3803 = vmatpush1.xpose.msra.mxu0 0.0
    %3804 = vmatprep.subr.mxu0 0.0
    %3805 = vmatpush1.xpose.msra.mxu0 0.0
    %3806 = vmatprep.subr.mxu0 0.0
    %3807 = vmatpush1.xpose.msra.mxu0 0.0
    %3808 = vmatprep.subr.mxu0 0.0
    %3809 = vmatpush1.xpose.msra.mxu0 0.0
    %3810 = vmatprep.subr.mxu0 0.0
    %3811 = vmatpush1.xpose.msra.mxu0 0.0
    %3812 = vmatprep.subr.mxu0 0.0
    %3813 = vmatpush1.xpose.msra.mxu0 0.0
    %3814 = vmatprep.subr.mxu0 0.0
    %3815 = vmatpush1.xpose.msra.mxu0 0.0
    %3816 = vmatprep.subr.mxu0 0.0
    %3817 = vmatpush1.xpose.msra.mxu0 0.0
    %3818 = vmatprep.subr.mxu0 0.0
    %3819 = vmatpush1.xpose.msra.mxu0 0.0
    %3820 = vmatprep.subr.mxu0 0.0
    %3821 = vmatpush1.xpose.msra.mxu0 0.0
    %3822 = vmatprep.subr.mxu0 0.0
    %3823 = vmatpush1.xpose.msra.mxu0 0.0
    %3824 = vmatprep.subr.mxu0 0.0
    %3825 = vmatpush1.xpose.msra.mxu0 0.0
    %3826 = vmatprep.subr.mxu0 0.0
    %3827 = vmatpush1.xpose.msra.mxu0 0.0
    %3828 = vmatprep.subr.mxu0 0.0
    %3829 = vmatpush1.xpose.msra.mxu0 0.0
    %3830 = vmatprep.mubr.f32.mxu0 0.0
    %3831 = vmatmul.mubr.f32.gmra.mrb[0].mxu0 %v3762
    %v3832 = vpop.f32.mrb[0].mxu0
    %v3833 = vadd.f32 %v41, %v3832
    %v3834 = vpop.f32.mrb[0].mxu0
    %3835 = vdwg.mxu0
    %v3836 = vsel %vm136, %v3833, -inf
    %3837 = vmax.xlane.f32.xlu0 %v3836
    %v3838 = vpop.xlane.xlu0 %3837
    %v3839 = vsub.f32 %v3833, %v3838
    %v3840 = vmul.f32 %v3839, 1.442695
    %v3841 = vpow.pop %v3840
    %v3842 = vsel %vm136, %v3841, 0.0
    %3843 = vadd.xlane.f32.xlu0 %v3842
    %v3844 = vpop.xlane.xlu0 %3843
    %v3845 = vrcp.pop %v3844
    %v3846 = vmul.f32 %v3841, %v3845
    %3847 = vrot.lane.b32.xlu0 %v3586, 56
    %v3848 = vpop.permute.xlu0 %3847
    %v3851 = vsel %vm136, %v3846, 0
    %3853 = vmatprep.subr.mxu0 0.0
    %3854 = vmatpush1.msra.mxu0 %v3848
    %3855 = vmatprep.subr.mxu0 0.0
    %3856 = vmatpush1.msra.mxu0 0.0
    %3857 = vmatprep.subr.mxu0 0.0
    %3858 = vmatpush1.msra.mxu0 0.0
    %3859 = vmatprep.subr.mxu0 0.0
    %3860 = vmatpush1.msra.mxu0 0.0
    %3861 = vmatprep.subr.mxu0 0.0
    %3862 = vmatpush1.msra.mxu0 0.0
    %3863 = vmatprep.subr.mxu0 0.0
    %3864 = vmatpush1.msra.mxu0 0.0
    %3865 = vmatprep.subr.mxu0 0.0
    %3866 = vmatpush1.msra.mxu0 0.0
    %3867 = vmatprep.subr.mxu0 0.0
    %3868 = vmatpush1.msra.mxu0 0.0
    %3869 = vmatprep.subr.mxu0 0.0
    %3870 = vmatpush1.msra.mxu0 0.0
    %3871 = vmatprep.subr.mxu0 0.0
    %3872 = vmatpush1.msra.mxu0 0.0
    %3873 = vmatprep.subr.mxu0 0.0
    %3874 = vmatpush1.msra.mxu0 0.0
    %3875 = vmatprep.subr.mxu0 0.0
    %3876 = vmatpush1.msra.mxu0 0.0
    %3877 = vmatprep.subr.mxu0 0.0
    %3878 = vmatpush1.msra.mxu0 0.0
    %3879 = vmatprep.subr.mxu0 0.0
    %3880 = vmatpush1.msra.mxu0 0.0
    %3881 = vmatprep.subr.mxu0 0.0
    %3882 = vmatpush1.msra.mxu0 0.0
    %3883 = vmatprep.subr.mxu0 0.0
    %3884 = vmatpush1.msra.mxu0 0.0
    %3885 = vmatprep.subr.mxu0 0.0
    %3886 = vmatpush1.msra.mxu0 0.0
    %3887 = vmatprep.subr.mxu0 0.0
    %3888 = vmatpush1.msra.mxu0 0.0
    %3889 = vmatprep.subr.mxu0 0.0
    %3890 = vmatpush1.msra.mxu0 0.0
    %3891 = vmatprep.subr.mxu0 0.0
    %3892 = vmatpush1.msra.mxu0 0.0
    %3893 = vmatprep.subr.mxu0 0.0
    %3894 = vmatpush1.msra.mxu0 0.0
    %3895 = vmatprep.subr.mxu0 0.0
    %3896 = vmatpush1.msra.mxu0 0.0
    %3897 = vmatprep.subr.mxu0 0.0
    %3898 = vmatpush1.msra.mxu0 0.0
    %3899 = vmatprep.subr.mxu0 0.0
    %3900 = vmatpush1.msra.mxu0 0.0
    %3901 = vmatprep.subr.mxu0 0.0
    %3902 = vmatpush1.msra.mxu0 0.0
    %3903 = vmatprep.subr.mxu0 0.0
    %3904 = vmatpush1.msra.mxu0 0.0
    %3905 = vmatprep.subr.mxu0 0.0
    %3906 = vmatpush1.msra.mxu0 0.0
    %3907 = vmatprep.subr.mxu0 0.0
    %3908 = vmatpush1.msra.mxu0 0.0
    %3909 = vmatprep.subr.mxu0 0.0
    %3910 = vmatpush1.msra.mxu0 0.0
    %3911 = vmatprep.subr.mxu0 0.0
    %3912 = vmatpush1.msra.mxu0 0.0
    %3913 = vmatprep.subr.mxu0 0.0
    %3914 = vmatpush1.msra.mxu0 0.0
    %3915 = vmatprep.subr.mxu0 0.0
    %3916 = vmatpush1.msra.mxu0 0.0
    %3917 = vmatprep.mubr.f32.mxu0 0.0
    %3918 = vmatmul.mubr.f32.gmra.mrb[0].mxu0 %v3851
    %v3919 = vpop.f32.mrb[0].mxu0
    %v3920 = vadd.f32 0.0, %v3919
    %v3921 = vpop.f32.mrb[0].mxu0
    %3922 = vdwg.mxu0
    %3923 = vrot.lane.b32.xlu0 %v3586, 112
    %v3924 = vpop.permute.xlu0 %3923
    %3925 = vrot.lane.b32.xlu0 %v3586, 80
    %v3926 = vpop.permute.xlu0 %3925
    %v3927 = vsel %vm136, %v3924, 0
    %v3929 = vsel %vm136, %v3926, 0
    %3931 = vmatprep.subr.mxu0 0.0
    %3932 = vmatpush1.xpose.msra.mxu0 %v3929
    %3933 = vmatprep.subr.mxu0 0.0
    %3934 = vmatpush1.xpose.msra.mxu0 0.0
    %3935 = vmatprep.subr.mxu0 0.0
    %3936 = vmatpush1.xpose.msra.mxu0 0.0
    %3937 = vmatprep.subr.mxu0 0.0
    %3938 = vmatpush1.xpose.msra.mxu0 0.0
    %3939 = vmatprep.subr.mxu0 0.0
    %3940 = vmatpush1.xpose.msra.mxu0 0.0
    %3941 = vmatprep.subr.mxu0 0.0
    %3942 = vmatpush1.xpose.msra.mxu0 0.0
    %3943 = vmatprep.subr.mxu0 0.0
    %3944 = vmatpush1.xpose.msra.mxu0 0.0
    %3945 = vmatprep.subr.mxu0 0.0
    %3946 = vmatpush1.xpose.msra.mxu0 0.0
    %3947 = vmatprep.subr.mxu0 0.0
    %3948 = vmatpush1.xpose.msra.mxu0 0.0
    %3949 = vmatprep.subr.mxu0 0.0
    %3950 = vmatpush1.xpose.msra.mxu0 0.0
    %3951 = vmatprep.subr.mxu0 0.0
    %3952 = vmatpush1.xpose.msra.mxu0 0.0
    %3953 = vmatprep.subr.mxu0 0.0
    %3954 = vmatpush1.xpose.msra.mxu0 0.0
    %3955 = vmatprep.subr.mxu0 0.0
    %3956 = vmatpush1.xpose.msra.mxu0 0.0
    %3957 = vmatprep.subr.mxu0 0.0
    %3958 = vmatpush1.xpose.msra.mxu0 0.0
    %3959 = vmatprep.subr.mxu0 0.0
    %3960 = vmatpush1.xpose.msra.mxu0 0.0
    %3961 = vmatprep.subr.mxu0 0.0
    %3962 = vmatpush1.xpose.msra.mxu0 0.0
    %3963 = vmatprep.subr.mxu0 0.0
    %3964 = vmatpush1.xpose.msra.mxu0 0.0
    %3965 = vmatprep.subr.mxu0 0.0
    %3966 = vmatpush1.xpose.msra.mxu0 0.0
    %3967 = vmatprep.subr.mxu0 0.0
    %3968 = vmatpush1.xpose.msra.mxu0 0.0
    %3969 = vmatprep.subr.mxu0 0.0
    %3970 = vmatpush1.xpose.msra.mxu0 0.0
    %3971 = vmatprep.subr.mxu0 0.0
    %3972 = vmatpush1.xpose.msra.mxu0 0.0
    %3973 = vmatprep.subr.mxu0 0.0
    %3974 = vmatpush1.xpose.msra.mxu0 0.0
    %3975 = vmatprep.subr.mxu0 0.0
    %3976 = vmatpush1.xpose.msra.mxu0 0.0
    %3977 = vmatprep.subr.mxu0 0.0
    %3978 = vmatpush1.xpose.msra.mxu0 0.0
    %3979 = vmatprep.subr.mxu0 0.0
    %3980 = vmatpush1.xpose.msra.mxu0 0.0
    %3981 = vmatprep.subr.mxu0 0.0
    %3982 = vmatpush1.xpose.msra.mxu0 0.0
    %3983 = vmatprep.subr.mxu0 0.0
    %3984 = vmatpush1.xpose.msra.mxu0 0.0
    %3985 = vmatprep.subr.mxu0 0.0
    %3986 = vmatpush1.xpose.msra.mxu0 0.0
    %3987 = vmatprep.subr.mxu0 0.0
    %3988 = vmatpush1.xpose.msra.mxu0 0.0
    %3989 = vmatprep.subr.mxu0 0.0
    %3990 = vmatpush1.xpose.msra.mxu0 0.0
    %3991 = vmatprep.subr.mxu0 0.0
    %3992 = vmatpush1.xpose.msra.mxu0 0.0
    %3993 = vmatprep.subr.mxu0 0.0
    %3994 = vmatpush1.xpose.msra.mxu0 0.0
    %3995 = vmatprep.mubr.f32.mxu0 0.0
    %3996 = vmatmul.mubr.f32.gmra.mrb[0].mxu0 %v3927
    %v3997 = vpop.f32.mrb[0].mxu0
    %v3998 = vadd.f32 %v41, %v3997
    %v3999 = vpop.f32.mrb[0].mxu0
    %4000 = vdwg.mxu0
    %v4001 = vsel %vm136, %v3998, -inf
    %4002 = vmax.xlane.f32.xlu0 %v4001
    %v4003 = vpop.xlane.xlu0 %4002
    %v4004 = vsub.f32 %v3998, %v4003
    %v4005 = vmul.f32 %v4004, 1.442695
    %v4006 = vpow.pop %v4005
    %v4007 = vsel %vm136, %v4006, 0.0
    %4008 = vadd.xlane.f32.xlu0 %v4007
    %v4009 = vpop.xlane.xlu0 %4008
    %v4010 = vrcp.pop %v4009
    %v4011 = vmul.f32 %v4006, %v4010
    %4012 = vrot.lane.b32.xlu0 %v3586, 48
    %v4013 = vpop.permute.xlu0 %4012
    %v4016 = vsel %vm136, %v4011, 0
    %4018 = vmatprep.subr.mxu0 0.0
    %4019 = vmatpush1.msra.mxu0 %v4013
    %4020 = vmatprep.subr.mxu0 0.0
    %4021 = vmatpush1.msra.mxu0 0.0
    %4022 = vmatprep.subr.mxu0 0.0
    %4023 = vmatpush1.msra.mxu0 0.0
    %4024 = vmatprep.subr.mxu0 0.0
    %4025 = vmatpush1.msra.mxu0 0.0
    %4026 = vmatprep.subr.mxu0 0.0
    %4027 = vmatpush1.msra.mxu0 0.0
    %4028 = vmatprep.subr.mxu0 0.0
    %4029 = vmatpush1.msra.mxu0 0.0
    %4030 = vmatprep.subr.mxu0 0.0
    %4031 = vmatpush1.msra.mxu0 0.0
    %4032 = vmatprep.subr.mxu0 0.0
    %4033 = vmatpush1.msra.mxu0 0.0
    %4034 = vmatprep.subr.mxu0 0.0
    %4035 = vmatpush1.msra.mxu0 0.0
    %4036 = vmatprep.subr.mxu0 0.0
    %4037 = vmatpush1.msra.mxu0 0.0
    %4038 = vmatprep.subr.mxu0 0.0
    %4039 = vmatpush1.msra.mxu0 0.0
    %4040 = vmatprep.subr.mxu0 0.0
    %4041 = vmatpush1.msra.mxu0 0.0
    %4042 = vmatprep.subr.mxu0 0.0
    %4043 = vmatpush1.msra.mxu0 0.0
    %4044 = vmatprep.subr.mxu0 0.0
    %4045 = vmatpush1.msra.mxu0 0.0
    %4046 = vmatprep.subr.mxu0 0.0
    %4047 = vmatpush1.msra.mxu0 0.0
    %4048 = vmatprep.subr.mxu0 0.0
    %4049 = vmatpush1.msra.mxu0 0.0
    %4050 = vmatprep.subr.mxu0 0.0
    %4051 = vmatpush1.msra.mxu0 0.0
    %4052 = vmatprep.subr.mxu0 0.0
    %4053 = vmatpush1.msra.mxu0 0.0
    %4054 = vmatprep.subr.mxu0 0.0
    %4055 = vmatpush1.msra.mxu0 0.0
    %4056 = vmatprep.subr.mxu0 0.0
    %4057 = vmatpush1.msra.mxu0 0.0
    %4058 = vmatprep.subr.mxu0 0.0
    %4059 = vmatpush1.msra.mxu0 0.0
    %4060 = vmatprep.subr.mxu0 0.0
    %4061 = vmatpush1.msra.mxu0 0.0
    %4062 = vmatprep.subr.mxu0 0.0
    %4063 = vmatpush1.msra.mxu0 0.0
    %4064 = vmatprep.subr.mxu0 0.0
    %4065 = vmatpush1.msra.mxu0 0.0
    %4066 = vmatprep.subr.mxu0 0.0
    %4067 = vmatpush1.msra.mxu0 0.0
    %4068 = vmatprep.subr.mxu0 0.0
    %4069 = vmatpush1.msra.mxu0 0.0
    %4070 = vmatprep.subr.mxu0 0.0
    %4071 = vmatpush1.msra.mxu0 0.0
    %4072 = vmatprep.subr.mxu0 0.0
    %4073 = vmatpush1.msra.mxu0 0.0
    %4074 = vmatprep.subr.mxu0 0.0
    %4075 = vmatpush1.msra.mxu0 0.0
    %4076 = vmatprep.subr.mxu0 0.0
    %4077 = vmatpush1.msra.mxu0 0.0
    %4078 = vmatprep.subr.mxu0 0.0
    %4079 = vmatpush1.msra.mxu0 0.0
    %4080 = vmatprep.subr.mxu0 0.0
    %4081 = vmatpush1.msra.mxu0 0.0
    %4082 = vmatprep.mubr.f32.mxu0 0.0
    %4083 = vmatmul.mubr.f32.gmra.mrb[0].mxu0 %v4016
    %v4084 = vpop.f32.mrb[0].mxu0
    %v4085 = vadd.f32 0.0, %v4084
    %v4086 = vpop.f32.mrb[0].mxu0
    %4087 = vdwg.mxu0
    %4088 = vrot.lane.b32.xlu0 %v3586, 104
    %v4089 = vpop.permute.xlu0 %4088
    %4090 = vrot.lane.b32.xlu0 %v3586, 72
    %v4091 = vpop.permute.xlu0 %4090
    %v4092 = vsel %vm136, %v4089, 0
    %v4094 = vsel %vm136, %v4091, 0
    %4096 = vmatprep.subr.mxu0 0.0
    %4097 = vmatpush1.xpose.msra.mxu0 %v4094
    %4098 = vmatprep.subr.mxu0 0.0
    %4099 = vmatpush1.xpose.msra.mxu0 0.0
    %4100 = vmatprep.subr.mxu0 0.0
    %4101 = vmatpush1.xpose.msra.mxu0 0.0
    %4102 = vmatprep.subr.mxu0 0.0
    %4103 = vmatpush1.xpose.msra.mxu0 0.0
    %4104 = vmatprep.subr.mxu0 0.0
    %4105 = vmatpush1.xpose.msra.mxu0 0.0
    %4106 = vmatprep.subr.mxu0 0.0
    %4107 = vmatpush1.xpose.msra.mxu0 0.0
    %4108 = vmatprep.subr.mxu0 0.0
    %4109 = vmatpush1.xpose.msra.mxu0 0.0
    %4110 = vmatprep.subr.mxu0 0.0
    %4111 = vmatpush1.xpose.msra.mxu0 0.0
    %4112 = vmatprep.subr.mxu0 0.0
    %4113 = vmatpush1.xpose.msra.mxu0 0.0
    %4114 = vmatprep.subr.mxu0 0.0
    %4115 = vmatpush1.xpose.msra.mxu0 0.0
    %4116 = vmatprep.subr.mxu0 0.0
    %4117 = vmatpush1.xpose.msra.mxu0 0.0
    %4118 = vmatprep.subr.mxu0 0.0
    %4119 = vmatpush1.xpose.msra.mxu0 0.0
    %4120 = vmatprep.subr.mxu0 0.0
    %4121 = vmatpush1.xpose.msra.mxu0 0.0
    %4122 = vmatprep.subr.mxu0 0.0
    %4123 = vmatpush1.xpose.msra.mxu0 0.0
    %4124 = vmatprep.subr.mxu0 0.0
    %4125 = vmatpush1.xpose.msra.mxu0 0.0
    %4126 = vmatprep.subr.mxu0 0.0
    %4127 = vmatpush1.xpose.msra.mxu0 0.0
    %4128 = vmatprep.subr.mxu0 0.0
    %4129 = vmatpush1.xpose.msra.mxu0 0.0
    %4130 = vmatprep.subr.mxu0 0.0
    %4131 = vmatpush1.xpose.msra.mxu0 0.0
    %4132 = vmatprep.subr.mxu0 0.0
    %4133 = vmatpush1.xpose.msra.mxu0 0.0
    %4134 = vmatprep.subr.mxu0 0.0
    %4135 = vmatpush1.xpose.msra.mxu0 0.0
    %4136 = vmatprep.subr.mxu0 0.0
    %4137 = vmatpush1.xpose.msra.mxu0 0.0
    %4138 = vmatprep.subr.mxu0 0.0
    %4139 = vmatpush1.xpose.msra.mxu0 0.0
    %4140 = vmatprep.subr.mxu0 0.0
    %4141 = vmatpush1.xpose.msra.mxu0 0.0
    %4142 = vmatprep.subr.mxu0 0.0
    %4143 = vmatpush1.xpose.msra.mxu0 0.0
    %4144 = vmatprep.subr.mxu0 0.0
    %4145 = vmatpush1.xpose.msra.mxu0 0.0
    %4146 = vmatprep.subr.mxu0 0.0
    %4147 = vmatpush1.xpose.msra.mxu0 0.0
    %4148 = vmatprep.subr.mxu0 0.0
    %4149 = vmatpush1.xpose.msra.mxu0 0.0
    %4150 = vmatprep.subr.mxu0 0.0
    %4151 = vmatpush1.xpose.msra.mxu0 0.0
    %4152 = vmatprep.subr.mxu0 0.0
    %4153 = vmatpush1.xpose.msra.mxu0 0.0
    %4154 = vmatprep.subr.mxu0 0.0
    %4155 = vmatpush1.xpose.msra.mxu0 0.0
    %4156 = vmatprep.subr.mxu0 0.0
    %4157 = vmatpush1.xpose.msra.mxu0 0.0
    %4158 = vmatprep.subr.mxu0 0.0
    %4159 = vmatpush1.xpose.msra.mxu0 0.0
    %4160 = vmatprep.mubr.f32.mxu0 0.0
    %4161 = vmatmul.mubr.f32.gmra.mrb[0].mxu0 %v4092
    %v4162 = vpop.f32.mrb[0].mxu0
    %v4163 = vadd.f32 %v41, %v4162
    %v4164 = vpop.f32.mrb[0].mxu0
    %4165 = vdwg.mxu0
    %v4166 = vsel %vm136, %v4163, -inf
    %4167 = vmax.xlane.f32.xlu0 %v4166
    %v4168 = vpop.xlane.xlu0 %4167
    %v4169 = vsub.f32 %v4163, %v4168
    %v4170 = vmul.f32 %v4169, 1.442695
    %v4171 = vpow.pop %v4170
    %v4172 = vsel %vm136, %v4171, 0.0
    %4173 = vadd.xlane.f32.xlu0 %v4172
    %v4174 = vpop.xlane.xlu0 %4173
    %v4175 = vrcp.pop %v4174
    %v4176 = vmul.f32 %v4171, %v4175
    %4177 = vrot.lane.b32.xlu0 %v3586, 40
    %v4178 = vpop.permute.xlu0 %4177
    %v4181 = vsel %vm136, %v4176, 0
    %4183 = vmatprep.subr.mxu0 0.0
    %4184 = vmatpush1.msra.mxu0 %v4178
    %4185 = vmatprep.subr.mxu0 0.0
    %4186 = vmatpush1.msra.mxu0 0.0
    %4187 = vmatprep.subr.mxu0 0.0
    %4188 = vmatpush1.msra.mxu0 0.0
    %4189 = vmatprep.subr.mxu0 0.0
    %4190 = vmatpush1.msra.mxu0 0.0
    %4191 = vmatprep.subr.mxu0 0.0
    %4192 = vmatpush1.msra.mxu0 0.0
    %4193 = vmatprep.subr.mxu0 0.0
    %4194 = vmatpush1.msra.mxu0 0.0
    %4195 = vmatprep.subr.mxu0 0.0
    %4196 = vmatpush1.msra.mxu0 0.0
    %4197 = vmatprep.subr.mxu0 0.0
    %4198 = vmatpush1.msra.mxu0 0.0
    %4199 = vmatprep.subr.mxu0 0.0
    %4200 = vmatpush1.msra.mxu0 0.0
    %4201 = vmatprep.subr.mxu0 0.0
    %4202 = vmatpush1.msra.mxu0 0.0
    %4203 = vmatprep.subr.mxu0 0.0
    %4204 = vmatpush1.msra.mxu0 0.0
    %4205 = vmatprep.subr.mxu0 0.0
    %4206 = vmatpush1.msra.mxu0 0.0
    %4207 = vmatprep.subr.mxu0 0.0
    %4208 = vmatpush1.msra.mxu0 0.0
    %4209 = vmatprep.subr.mxu0 0.0
    %4210 = vmatpush1.msra.mxu0 0.0
    %4211 = vmatprep.subr.mxu0 0.0
    %4212 = vmatpush1.msra.mxu0 0.0
    %4213 = vmatprep.subr.mxu0 0.0
    %4214 = vmatpush1.msra.mxu0 0.0
    %4215 = vmatprep.subr.mxu0 0.0
    %4216 = vmatpush1.msra.mxu0 0.0
    %4217 = vmatprep.subr.mxu0 0.0
    %4218 = vmatpush1.msra.mxu0 0.0
    %4219 = vmatprep.subr.mxu0 0.0
    %4220 = vmatpush1.msra.mxu0 0.0
    %4221 = vmatprep.subr.mxu0 0.0
    %4222 = vmatpush1.msra.mxu0 0.0
    %4223 = vmatprep.subr.mxu0 0.0
    %4224 = vmatpush1.msra.mxu0 0.0
    %4225 = vmatprep.subr.mxu0 0.0
    %4226 = vmatpush1.msra.mxu0 0.0
    %4227 = vmatprep.subr.mxu0 0.0
    %4228 = vmatpush1.msra.mxu0 0.0
    %4229 = vmatprep.subr.mxu0 0.0
    %4230 = vmatpush1.msra.mxu0 0.0
    %4231 = vmatprep.subr.mxu0 0.0
    %4232 = vmatpush1.msra.mxu0 0.0
    %4233 = vmatprep.subr.mxu0 0.0
    %4234 = vmatpush1.msra.mxu0 0.0
    %4235 = vmatprep.subr.mxu0 0.0
    %4236 = vmatpush1.msra.mxu0 0.0
    %4237 = vmatprep.subr.mxu0 0.0
    %4238 = vmatpush1.msra.mxu0 0.0
    %4239 = vmatprep.subr.mxu0 0.0
    %4240 = vmatpush1.msra.mxu0 0.0
    %4241 = vmatprep.subr.mxu0 0.0
    %4242 = vmatpush1.msra.mxu0 0.0
    %4243 = vmatprep.subr.mxu0 0.0
    %4244 = vmatpush1.msra.mxu0 0.0
    %4245 = vmatprep.subr.mxu0 0.0
    %4246 = vmatpush1.msra.mxu0 0.0
    %4247 = vmatprep.mubr.f32.mxu0 0.0
    %4248 = vmatmul.mubr.f32.gmra.mrb[0].mxu0 %v4181
    %v4249 = vpop.f32.mrb[0].mxu0
    %v4250 = vadd.f32 0.0, %v4249
    %v4251 = vpop.f32.mrb[0].mxu0
    %4252 = vdwg.mxu0
    %4254 = vrot.lane.b32.xlu0 %v3920, 8
    %v4255 = vpop.permute.xlu0 %4254
    %4258 = vrot.lane.b32.xlu0 %v4085, 16
    %v4259 = vpop.permute.xlu0 %4258
    %4262 = vrot.lane.b32.xlu0 %v4250, 24
    %v4263 = vpop.permute.xlu0 %4262
    %v4265 = vsel %vm136, %v3755, %v4255
    %v4266 = vsel %vm806, %v4265, %v4259
    %v4267 = vsel %vm808, %v4266, %v4263
    %4269 = vrot.lane.b32.xlu0 %v3591, 96
    %v4270 = vpop.permute.xlu0 %4269
    %v4271 = vsel %vm136, %v3591, 0
    %v4273 = vsel %vm136, %v4270, 0
    %4275 = vmatprep.subr.mxu0 0.0
    %4276 = vmatpush1.xpose.msra.mxu0 %v4273
    %4277 = vmatprep.subr.mxu0 0.0
    %4278 = vmatpush1.xpose.msra.mxu0 0.0
    %4279 = vmatprep.subr.mxu0 0.0
    %4280 = vmatpush1.xpose.msra.mxu0 0.0
    %4281 = vmatprep.subr.mxu0 0.0
    %4282 = vmatpush1.xpose.msra.mxu0 0.0
    %4283 = vmatprep.subr.mxu0 0.0
    %4284 = vmatpush1.xpose.msra.mxu0 0.0
    %4285 = vmatprep.subr.mxu0 0.0
    %4286 = vmatpush1.xpose.msra.mxu0 0.0
    %4287 = vmatprep.subr.mxu0 0.0
    %4288 = vmatpush1.xpose.msra.mxu0 0.0
    %4289 = vmatprep.subr.mxu0 0.0
    %4290 = vmatpush1.xpose.msra.mxu0 0.0
    %4291 = vmatprep.subr.mxu0 0.0
    %4292 = vmatpush1.xpose.msra.mxu0 0.0
    %4293 = vmatprep.subr.mxu0 0.0
    %4294 = vmatpush1.xpose.msra.mxu0 0.0
    %4295 = vmatprep.subr.mxu0 0.0
    %4296 = vmatpush1.xpose.msra.mxu0 0.0
    %4297 = vmatprep.subr.mxu0 0.0
    %4298 = vmatpush1.xpose.msra.mxu0 0.0
    %4299 = vmatprep.subr.mxu0 0.0
    %4300 = vmatpush1.xpose.msra.mxu0 0.0
    %4301 = vmatprep.subr.mxu0 0.0
    %4302 = vmatpush1.xpose.msra.mxu0 0.0
    %4303 = vmatprep.subr.mxu0 0.0
    %4304 = vmatpush1.xpose.msra.mxu0 0.0
    %4305 = vmatprep.subr.mxu0 0.0
    %4306 = vmatpush1.xpose.msra.mxu0 0.0
    %4307 = vmatprep.subr.mxu0 0.0
    %4308 = vmatpush1.xpose.msra.mxu0 0.0
    %4309 = vmatprep.subr.mxu0 0.0
    %4310 = vmatpush1.xpose.msra.mxu0 0.0
    %4311 = vmatprep.subr.mxu0 0.0
    %4312 = vmatpush1.xpose.msra.mxu0 0.0
    %4313 = vmatprep.subr.mxu0 0.0
    %4314 = vmatpush1.xpose.msra.mxu0 0.0
    %4315 = vmatprep.subr.mxu0 0.0
    %4316 = vmatpush1.xpose.msra.mxu0 0.0
    %4317 = vmatprep.subr.mxu0 0.0
    %4318 = vmatpush1.xpose.msra.mxu0 0.0
    %4319 = vmatprep.subr.mxu0 0.0
    %4320 = vmatpush1.xpose.msra.mxu0 0.0
    %4321 = vmatprep.subr.mxu0 0.0
    %4322 = vmatpush1.xpose.msra.mxu0 0.0
    %4323 = vmatprep.subr.mxu0 0.0
    %4324 = vmatpush1.xpose.msra.mxu0 0.0
    %4325 = vmatprep.subr.mxu0 0.0
    %4326 = vmatpush1.xpose.msra.mxu0 0.0
    %4327 = vmatprep.subr.mxu0 0.0
    %4328 = vmatpush1.xpose.msra.mxu0 0.0
    %4329 = vmatprep.subr.mxu0 0.0
    %4330 = vmatpush1.xpose.msra.mxu0 0.0
    %4331 = vmatprep.subr.mxu0 0.0
    %4332 = vmatpush1.xpose.msra.mxu0 0.0
    %4333 = vmatprep.subr.mxu0 0.0
    %4334 = vmatpush1.xpose.msra.mxu0 0.0
    %4335 = vmatprep.subr.mxu0 0.0
    %4336 = vmatpush1.xpose.msra.mxu0 0.0
    %4337 = vmatprep.subr.mxu0 0.0
    %4338 = vmatpush1.xpose.msra.mxu0 0.0
    %4339 = vmatprep.mubr.f32.mxu0 0.0
    %4340 = vmatmul.mubr.f32.gmra.mrb[0].mxu0 %v4271
    %v4341 = vpop.f32.mrb[0].mxu0
    %v4342 = vadd.f32 %v41, %v4341
    %v4343 = vpop.f32.mrb[0].mxu0
    %4344 = vdwg.mxu0
    %v4345 = vsel %vm136, %v4342, -inf
    %4346 = vmax.xlane.f32.xlu0 %v4345
    %v4347 = vpop.xlane.xlu0 %4346
    %v4348 = vsub.f32 %v4342, %v4347
    %v4349 = vmul.f32 %v4348, 1.442695
    %v4350 = vpow.pop %v4349
    %v4351 = vsel %vm136, %v4350, 0.0
    %4352 = vadd.xlane.f32.xlu0 %v4351
    %v4353 = vpop.xlane.xlu0 %4352
    %v4354 = vrcp.pop %v4353
    %v4355 = vmul.f32 %v4350, %v4354
    %4356 = vrot.lane.b32.xlu0 %v3591, 64
    %v4357 = vpop.permute.xlu0 %4356
    %v4360 = vsel %vm136, %v4355, 0
    %4362 = vmatprep.subr.mxu0 0.0
    %4363 = vmatpush1.msra.mxu0 %v4357
    %4364 = vmatprep.subr.mxu0 0.0
    %4365 = vmatpush1.msra.mxu0 0.0
    %4366 = vmatprep.subr.mxu0 0.0
    %4367 = vmatpush1.msra.mxu0 0.0
    %4368 = vmatprep.subr.mxu0 0.0
    %4369 = vmatpush1.msra.mxu0 0.0
    %4370 = vmatprep.subr.mxu0 0.0
    %4371 = vmatpush1.msra.mxu0 0.0
    %4372 = vmatprep.subr.mxu0 0.0
    %4373 = vmatpush1.msra.mxu0 0.0
    %4374 = vmatprep.subr.mxu0 0.0
    %4375 = vmatpush1.msra.mxu0 0.0
    %4376 = vmatprep.subr.mxu0 0.0
    %4377 = vmatpush1.msra.mxu0 0.0
    %4378 = vmatprep.subr.mxu0 0.0
    %4379 = vmatpush1.msra.mxu0 0.0
    %4380 = vmatprep.subr.mxu0 0.0
    %4381 = vmatpush1.msra.mxu0 0.0
    %4382 = vmatprep.subr.mxu0 0.0
    %4383 = vmatpush1.msra.mxu0 0.0
    %4384 = vmatprep.subr.mxu0 0.0
    %4385 = vmatpush1.msra.mxu0 0.0
    %4386 = vmatprep.subr.mxu0 0.0
    %4387 = vmatpush1.msra.mxu0 0.0
    %4388 = vmatprep.subr.mxu0 0.0
    %4389 = vmatpush1.msra.mxu0 0.0
    %4390 = vmatprep.subr.mxu0 0.0
    %4391 = vmatpush1.msra.mxu0 0.0
    %4392 = vmatprep.subr.mxu0 0.0
    %4393 = vmatpush1.msra.mxu0 0.0
    %4394 = vmatprep.subr.mxu0 0.0
    %4395 = vmatpush1.msra.mxu0 0.0
    %4396 = vmatprep.subr.mxu0 0.0
    %4397 = vmatpush1.msra.mxu0 0.0
    %4398 = vmatprep.subr.mxu0 0.0
    %4399 = vmatpush1.msra.mxu0 0.0
    %4400 = vmatprep.subr.mxu0 0.0
    %4401 = vmatpush1.msra.mxu0 0.0
    %4402 = vmatprep.subr.mxu0 0.0
    %4403 = vmatpush1.msra.mxu0 0.0
    %4404 = vmatprep.subr.mxu0 0.0
    %4405 = vmatpush1.msra.mxu0 0.0
    %4406 = vmatprep.subr.mxu0 0.0
    %4407 = vmatpush1.msra.mxu0 0.0
    %4408 = vmatprep.subr.mxu0 0.0
    %4409 = vmatpush1.msra.mxu0 0.0
    %4410 = vmatprep.subr.mxu0 0.0
    %4411 = vmatpush1.msra.mxu0 0.0
    %4412 = vmatprep.subr.mxu0 0.0
    %4413 = vmatpush1.msra.mxu0 0.0
    %4414 = vmatprep.subr.mxu0 0.0
    %4415 = vmatpush1.msra.mxu0 0.0
    %4416 = vmatprep.subr.mxu0 0.0
    %4417 = vmatpush1.msra.mxu0 0.0
    %4418 = vmatprep.subr.mxu0 0.0
    %4419 = vmatpush1.msra.mxu0 0.0
    %4420 = vmatprep.subr.mxu0 0.0
    %4421 = vmatpush1.msra.mxu0 0.0
    %4422 = vmatprep.subr.mxu0 0.0
    %4423 = vmatpush1.msra.mxu0 0.0
    %4424 = vmatprep.subr.mxu0 0.0
    %4425 = vmatpush1.msra.mxu0 0.0
    %4426 = vmatprep.mubr.f32.mxu0 0.0
    %4427 = vmatmul.mubr.f32.gmra.mrb[0].mxu0 %v4360
    %v4428 = vpop.f32.mrb[0].mxu0
    %v4429 = vadd.f32 0.0, %v4428
    %v4430 = vpop.f32.mrb[0].mxu0
    %4431 = vdwg.mxu0
    %4432 = vrot.lane.b32.xlu0 %v3591, 120
    %v4433 = vpop.permute.xlu0 %4432
    %4434 = vrot.lane.b32.xlu0 %v3591, 88
    %v4435 = vpop.permute.xlu0 %4434
    %v4436 = vsel %vm136, %v4433, 0
    %v4438 = vsel %vm136, %v4435, 0
    %4440 = vmatprep.subr.mxu0 0.0
    %4441 = vmatpush1.xpose.msra.mxu0 %v4438
    %4442 = vmatprep.subr.mxu0 0.0
    %4443 = vmatpush1.xpose.msra.mxu0 0.0
    %4444 = vmatprep.subr.mxu0 0.0
    %4445 = vmatpush1.xpose.msra.mxu0 0.0
    %4446 = vmatprep.subr.mxu0 0.0
    %4447 = vmatpush1.xpose.msra.mxu0 0.0
    %4448 = vmatprep.subr.mxu0 0.0
    %4449 = vmatpush1.xpose.msra.mxu0 0.0
    %4450 = vmatprep.subr.mxu0 0.0
    %4451 = vmatpush1.xpose.msra.mxu0 0.0
    %4452 = vmatprep.subr.mxu0 0.0
    %4453 = vmatpush1.xpose.msra.mxu0 0.0
    %4454 = vmatprep.subr.mxu0 0.0
    %4455 = vmatpush1.xpose.msra.mxu0 0.0
    %4456 = vmatprep.subr.mxu0 0.0
    %4457 = vmatpush1.xpose.msra.mxu0 0.0
    %4458 = vmatprep.subr.mxu0 0.0
    %4459 = vmatpush1.xpose.msra.mxu0 0.0
    %4460 = vmatprep.subr.mxu0 0.0
    %4461 = vmatpush1.xpose.msra.mxu0 0.0
    %4462 = vmatprep.subr.mxu0 0.0
    %4463 = vmatpush1.xpose.msra.mxu0 0.0
    %4464 = vmatprep.subr.mxu0 0.0
    %4465 = vmatpush1.xpose.msra.mxu0 0.0
    %4466 = vmatprep.subr.mxu0 0.0
    %4467 = vmatpush1.xpose.msra.mxu0 0.0
    %4468 = vmatprep.subr.mxu0 0.0
    %4469 = vmatpush1.xpose.msra.mxu0 0.0
    %4470 = vmatprep.subr.mxu0 0.0
    %4471 = vmatpush1.xpose.msra.mxu0 0.0
    %4472 = vmatprep.subr.mxu0 0.0
    %4473 = vmatpush1.xpose.msra.mxu0 0.0
    %4474 = vmatprep.subr.mxu0 0.0
    %4475 = vmatpush1.xpose.msra.mxu0 0.0
    %4476 = vmatprep.subr.mxu0 0.0
    %4477 = vmatpush1.xpose.msra.mxu0 0.0
    %4478 = vmatprep.subr.mxu0 0.0
    %4479 = vmatpush1.xpose.msra.mxu0 0.0
    %4480 = vmatprep.subr.mxu0 0.0
    %4481 = vmatpush1.xpose.msra.mxu0 0.0
    %4482 = vmatprep.subr.mxu0 0.0
    %4483 = vmatpush1.xpose.msra.mxu0 0.0
    %4484 = vmatprep.subr.mxu0 0.0
    %4485 = vmatpush1.xpose.msra.mxu0 0.0
    %4486 = vmatprep.subr.mxu0 0.0
    %4487 = vmatpush1.xpose.msra.mxu0 0.0
    %4488 = vmatprep.subr.mxu0 0.0
    %4489 = vmatpush1.xpose.msra.mxu0 0.0
    %4490 = vmatprep.subr.mxu0 0.0
    %4491 = vmatpush1.xpose.msra.mxu0 0.0
    %4492 = vmatprep.subr.mxu0 0.0
    %4493 = vmatpush1.xpose.msra.mxu0 0.0
    %4494 = vmatprep.subr.mxu0 0.0
    %4495 = vmatpush1.xpose.msra.mxu0 0.0
    %4496 = vmatprep.subr.mxu0 0.0
    %4497 = vmatpush1.xpose.msra.mxu0 0.0
    %4498 = vmatprep.subr.mxu0 0.0
    %4499 = vmatpush1.xpose.msra.mxu0 0.0
    %4500 = vmatprep.subr.mxu0 0.0
    %4501 = vmatpush1.xpose.msra.mxu0 0.0
    %4502 = vmatprep.subr.mxu0 0.0
    %4503 = vmatpush1.xpose.msra.mxu0 0.0
    %4504 = vmatprep.mubr.f32.mxu0 0.0
    %4505 = vmatmul.mubr.f32.gmra.mrb[0].mxu0 %v4436
    %v4506 = vpop.f32.mrb[0].mxu0
    %v4507 = vadd.f32 %v41, %v4506
    %v4508 = vpop.f32.mrb[0].mxu0
    %4509 = vdwg.mxu0
    %v4510 = vsel %vm136, %v4507, -inf
    %4511 = vmax.xlane.f32.xlu0 %v4510
    %v4512 = vpop.xlane.xlu0 %4511
    %v4513 = vsub.f32 %v4507, %v4512
    %v4514 = vmul.f32 %v4513, 1.442695
    %v4515 = vpow.pop %v4514
    %v4516 = vsel %vm136, %v4515, 0.0
    %4517 = vadd.xlane.f32.xlu0 %v4516
    %v4518 = vpop.xlane.xlu0 %4517
    %v4519 = vrcp.pop %v4518
    %v4520 = vmul.f32 %v4515, %v4519
    %4521 = vrot.lane.b32.xlu0 %v3591, 56
    %v4522 = vpop.permute.xlu0 %4521
    %v4525 = vsel %vm136, %v4520, 0
    %4527 = vmatprep.subr.mxu0 0.0
    %4528 = vmatpush1.msra.mxu0 %v4522
    %4529 = vmatprep.subr.mxu0 0.0
    %4530 = vmatpush1.msra.mxu0 0.0
    %4531 = vmatprep.subr.mxu0 0.0
    %4532 = vmatpush1.msra.mxu0 0.0
    %4533 = vmatprep.subr.mxu0 0.0
    %4534 = vmatpush1.msra.mxu0 0.0
    %4535 = vmatprep.subr.mxu0 0.0
    %4536 = vmatpush1.msra.mxu0 0.0
    %4537 = vmatprep.subr.mxu0 0.0
    %4538 = vmatpush1.msra.mxu0 0.0
    %4539 = vmatprep.subr.mxu0 0.0
    %4540 = vmatpush1.msra.mxu0 0.0
    %4541 = vmatprep.subr.mxu0 0.0
    %4542 = vmatpush1.msra.mxu0 0.0
    %4543 = vmatprep.subr.mxu0 0.0
    %4544 = vmatpush1.msra.mxu0 0.0
    %4545 = vmatprep.subr.mxu0 0.0
    %4546 = vmatpush1.msra.mxu0 0.0
    %4547 = vmatprep.subr.mxu0 0.0
    %4548 = vmatpush1.msra.mxu0 0.0
    %4549 = vmatprep.subr.mxu0 0.0
    %4550 = vmatpush1.msra.mxu0 0.0
    %4551 = vmatprep.subr.mxu0 0.0
    %4552 = vmatpush1.msra.mxu0 0.0
    %4553 = vmatprep.subr.mxu0 0.0
    %4554 = vmatpush1.msra.mxu0 0.0
    %4555 = vmatprep.subr.mxu0 0.0
    %4556 = vmatpush1.msra.mxu0 0.0
    %4557 = vmatprep.subr.mxu0 0.0
    %4558 = vmatpush1.msra.mxu0 0.0
    %4559 = vmatprep.subr.mxu0 0.0
    %4560 = vmatpush1.msra.mxu0 0.0
    %4561 = vmatprep.subr.mxu0 0.0
    %4562 = vmatpush1.msra.mxu0 0.0
    %4563 = vmatprep.subr.mxu0 0.0
    %4564 = vmatpush1.msra.mxu0 0.0
    %4565 = vmatprep.subr.mxu0 0.0
    %4566 = vmatpush1.msra.mxu0 0.0
    %4567 = vmatprep.subr.mxu0 0.0
    %4568 = vmatpush1.msra.mxu0 0.0
    %4569 = vmatprep.subr.mxu0 0.0
    %4570 = vmatpush1.msra.mxu0 0.0
    %4571 = vmatprep.subr.mxu0 0.0
    %4572 = vmatpush1.msra.mxu0 0.0
    %4573 = vmatprep.subr.mxu0 0.0
    %4574 = vmatpush1.msra.mxu0 0.0
    %4575 = vmatprep.subr.mxu0 0.0
    %4576 = vmatpush1.msra.mxu0 0.0
    %4577 = vmatprep.subr.mxu0 0.0
    %4578 = vmatpush1.msra.mxu0 0.0
    %4579 = vmatprep.subr.mxu0 0.0
    %4580 = vmatpush1.msra.mxu0 0.0
    %4581 = vmatprep.subr.mxu0 0.0
    %4582 = vmatpush1.msra.mxu0 0.0
    %4583 = vmatprep.subr.mxu0 0.0
    %4584 = vmatpush1.msra.mxu0 0.0
    %4585 = vmatprep.subr.mxu0 0.0
    %4586 = vmatpush1.msra.mxu0 0.0
    %4587 = vmatprep.subr.mxu0 0.0
    %4588 = vmatpush1.msra.mxu0 0.0
    %4589 = vmatprep.subr.mxu0 0.0
    %4590 = vmatpush1.msra.mxu0 0.0
    %4591 = vmatprep.mubr.f32.mxu0 0.0
    %4592 = vmatmul.mubr.f32.gmra.mrb[0].mxu0 %v4525
    %v4593 = vpop.f32.mrb[0].mxu0
    %v4594 = vadd.f32 0.0, %v4593
    %v4595 = vpop.f32.mrb[0].mxu0
    %4596 = vdwg.mxu0
    %4597 = vrot.lane.b32.xlu0 %v3591, 112
    %v4598 = vpop.permute.xlu0 %4597
    %4599 = vrot.lane.b32.xlu0 %v3591, 80
    %v4600 = vpop.permute.xlu0 %4599
    %v4601 = vsel %vm136, %v4598, 0
    %v4603 = vsel %vm136, %v4600, 0
    %4605 = vmatprep.subr.mxu0 0.0
    %4606 = vmatpush1.xpose.msra.mxu0 %v4603
    %4607 = vmatprep.subr.mxu0 0.0
    %4608 = vmatpush1.xpose.msra.mxu0 0.0
    %4609 = vmatprep.subr.mxu0 0.0
    %4610 = vmatpush1.xpose.msra.mxu0 0.0
    %4611 = vmatprep.subr.mxu0 0.0
    %4612 = vmatpush1.xpose.msra.mxu0 0.0
    %4613 = vmatprep.subr.mxu0 0.0
    %4614 = vmatpush1.xpose.msra.mxu0 0.0
    %4615 = vmatprep.subr.mxu0 0.0
    %4616 = vmatpush1.xpose.msra.mxu0 0.0
    %4617 = vmatprep.subr.mxu0 0.0
    %4618 = vmatpush1.xpose.msra.mxu0 0.0
    %4619 = vmatprep.subr.mxu0 0.0
    %4620 = vmatpush1.xpose.msra.mxu0 0.0
    %4621 = vmatprep.subr.mxu0 0.0
    %4622 = vmatpush1.xpose.msra.mxu0 0.0
    %4623 = vmatprep.subr.mxu0 0.0
    %4624 = vmatpush1.xpose.msra.mxu0 0.0
    %4625 = vmatprep.subr.mxu0 0.0
    %4626 = vmatpush1.xpose.msra.mxu0 0.0
    %4627 = vmatprep.subr.mxu0 0.0
    %4628 = vmatpush1.xpose.msra.mxu0 0.0
    %4629 = vmatprep.subr.mxu0 0.0
    %4630 = vmatpush1.xpose.msra.mxu0 0.0
    %4631 = vmatprep.subr.mxu0 0.0
    %4632 = vmatpush1.xpose.msra.mxu0 0.0
    %4633 = vmatprep.subr.mxu0 0.0
    %4634 = vmatpush1.xpose.msra.mxu0 0.0
    %4635 = vmatprep.subr.mxu0 0.0
    %4636 = vmatpush1.xpose.msra.mxu0 0.0
    %4637 = vmatprep.subr.mxu0 0.0
    %4638 = vmatpush1.xpose.msra.mxu0 0.0
    %4639 = vmatprep.subr.mxu0 0.0
    %4640 = vmatpush1.xpose.msra.mxu0 0.0
    %4641 = vmatprep.subr.mxu0 0.0
    %4642 = vmatpush1.xpose.msra.mxu0 0.0
    %4643 = vmatprep.subr.mxu0 0.0
    %4644 = vmatpush1.xpose.msra.mxu0 0.0
    %4645 = vmatprep.subr.mxu0 0.0
    %4646 = vmatpush1.xpose.msra.mxu0 0.0
    %4647 = vmatprep.subr.mxu0 0.0
    %4648 = vmatpush1.xpose.msra.mxu0 0.0
    %4649 = vmatprep.subr.mxu0 0.0
    %4650 = vmatpush1.xpose.msra.mxu0 0.0
    %4651 = vmatprep.subr.mxu0 0.0
    %4652 = vmatpush1.xpose.msra.mxu0 0.0
    %4653 = vmatprep.subr.mxu0 0.0
    %4654 = vmatpush1.xpose.msra.mxu0 0.0
    %4655 = vmatprep.subr.mxu0 0.0
    %4656 = vmatpush1.xpose.msra.mxu0 0.0
    %4657 = vmatprep.subr.mxu0 0.0
    %4658 = vmatpush1.xpose.msra.mxu0 0.0
    %4659 = vmatprep.subr.mxu0 0.0
    %4660 = vmatpush1.xpose.msra.mxu0 0.0
    %4661 = vmatprep.subr.mxu0 0.0
    %4662 = vmatpush1.xpose.msra.mxu0 0.0
    %4663 = vmatprep.subr.mxu0 0.0
    %4664 = vmatpush1.xpose.msra.mxu0 0.0
    %4665 = vmatprep.subr.mxu0 0.0
    %4666 = vmatpush1.xpose.msra.mxu0 0.0
    %4667 = vmatprep.subr.mxu0 0.0
    %4668 = vmatpush1.xpose.msra.mxu0 0.0
    %4669 = vmatprep.mubr.f32.mxu0 0.0
    %4670 = vmatmul.mubr.f32.gmra.mrb[0].mxu0 %v4601
    %v4671 = vpop.f32.mrb[0].mxu0
    %v4672 = vadd.f32 %v41, %v4671
    %v4673 = vpop.f32.mrb[0].mxu0
    %4674 = vdwg.mxu0
    %v4675 = vsel %vm136, %v4672, -inf
    %4676 = vmax.xlane.f32.xlu0 %v4675
    %v4677 = vpop.xlane.xlu0 %4676
    %v4678 = vsub.f32 %v4672, %v4677
    %v4679 = vmul.f32 %v4678, 1.442695
    %v4680 = vpow.pop %v4679
    %v4681 = vsel %vm136, %v4680, 0.0
    %4682 = vadd.xlane.f32.xlu0 %v4681
    %v4683 = vpop.xlane.xlu0 %4682
    %v4684 = vrcp.pop %v4683
    %v4685 = vmul.f32 %v4680, %v4684
    %4686 = vrot.lane.b32.xlu0 %v3591, 48
    %v4687 = vpop.permute.xlu0 %4686
    %v4690 = vsel %vm136, %v4685, 0
    %4692 = vmatprep.subr.mxu0 0.0
    %4693 = vmatpush1.msra.mxu0 %v4687
    %4694 = vmatprep.subr.mxu0 0.0
    %4695 = vmatpush1.msra.mxu0 0.0
    %4696 = vmatprep.subr.mxu0 0.0
    %4697 = vmatpush1.msra.mxu0 0.0
    %4698 = vmatprep.subr.mxu0 0.0
    %4699 = vmatpush1.msra.mxu0 0.0
    %4700 = vmatprep.subr.mxu0 0.0
    %4701 = vmatpush1.msra.mxu0 0.0
    %4702 = vmatprep.subr.mxu0 0.0
    %4703 = vmatpush1.msra.mxu0 0.0
    %4704 = vmatprep.subr.mxu0 0.0
    %4705 = vmatpush1.msra.mxu0 0.0
    %4706 = vmatprep.subr.mxu0 0.0
    %4707 = vmatpush1.msra.mxu0 0.0
    %4708 = vmatprep.subr.mxu0 0.0
    %4709 = vmatpush1.msra.mxu0 0.0
    %4710 = vmatprep.subr.mxu0 0.0
    %4711 = vmatpush1.msra.mxu0 0.0
    %4712 = vmatprep.subr.mxu0 0.0
    %4713 = vmatpush1.msra.mxu0 0.0
    %4714 = vmatprep.subr.mxu0 0.0
    %4715 = vmatpush1.msra.mxu0 0.0
    %4716 = vmatprep.subr.mxu0 0.0
    %4717 = vmatpush1.msra.mxu0 0.0
    %4718 = vmatprep.subr.mxu0 0.0
    %4719 = vmatpush1.msra.mxu0 0.0
    %4720 = vmatprep.subr.mxu0 0.0
    %4721 = vmatpush1.msra.mxu0 0.0
    %4722 = vmatprep.subr.mxu0 0.0
    %4723 = vmatpush1.msra.mxu0 0.0
    %4724 = vmatprep.subr.mxu0 0.0
    %4725 = vmatpush1.msra.mxu0 0.0
    %4726 = vmatprep.subr.mxu0 0.0
    %4727 = vmatpush1.msra.mxu0 0.0
    %4728 = vmatprep.subr.mxu0 0.0
    %4729 = vmatpush1.msra.mxu0 0.0
    %4730 = vmatprep.subr.mxu0 0.0
    %4731 = vmatpush1.msra.mxu0 0.0
    %4732 = vmatprep.subr.mxu0 0.0
    %4733 = vmatpush1.msra.mxu0 0.0
    %4734 = vmatprep.subr.mxu0 0.0
    %4735 = vmatpush1.msra.mxu0 0.0
    %4736 = vmatprep.subr.mxu0 0.0
    %4737 = vmatpush1.msra.mxu0 0.0
    %4738 = vmatprep.subr.mxu0 0.0
    %4739 = vmatpush1.msra.mxu0 0.0
    %4740 = vmatprep.subr.mxu0 0.0
    %4741 = vmatpush1.msra.mxu0 0.0
    %4742 = vmatprep.subr.mxu0 0.0
    %4743 = vmatpush1.msra.mxu0 0.0
    %4744 = vmatprep.subr.mxu0 0.0
    %4745 = vmatpush1.msra.mxu0 0.0
    %4746 = vmatprep.subr.mxu0 0.0
    %4747 = vmatpush1.msra.mxu0 0.0
    %4748 = vmatprep.subr.mxu0 0.0
    %4749 = vmatpush1.msra.mxu0 0.0
    %4750 = vmatprep.subr.mxu0 0.0
    %4751 = vmatpush1.msra.mxu0 0.0
    %4752 = vmatprep.subr.mxu0 0.0
    %4753 = vmatpush1.msra.mxu0 0.0
    %4754 = vmatprep.subr.mxu0 0.0
    %4755 = vmatpush1.msra.mxu0 0.0
    %4756 = vmatprep.mubr.f32.mxu0 0.0
    %4757 = vmatmul.mubr.f32.gmra.mrb[0].mxu0 %v4690
    %v4758 = vpop.f32.mrb[0].mxu0
    %v4759 = vadd.f32 0.0, %v4758
    %v4760 = vpop.f32.mrb[0].mxu0
    %4761 = vdwg.mxu0
    %4762 = vrot.lane.b32.xlu0 %v3591, 104
    %v4763 = vpop.permute.xlu0 %4762
    %4764 = vrot.lane.b32.xlu0 %v3591, 72
    %v4765 = vpop.permute.xlu0 %4764
    %v4766 = vsel %vm136, %v4763, 0
    %v4768 = vsel %vm136, %v4765, 0
    %4770 = vmatprep.subr.mxu0 0.0
    %4771 = vmatpush1.xpose.msra.mxu0 %v4768
    %4772 = vmatprep.subr.mxu0 0.0
    %4773 = vmatpush1.xpose.msra.mxu0 0.0
    %4774 = vmatprep.subr.mxu0 0.0
    %4775 = vmatpush1.xpose.msra.mxu0 0.0
    %4776 = vmatprep.subr.mxu0 0.0
    %4777 = vmatpush1.xpose.msra.mxu0 0.0
    %4778 = vmatprep.subr.mxu0 0.0
    %4779 = vmatpush1.xpose.msra.mxu0 0.0
    %4780 = vmatprep.subr.mxu0 0.0
    %4781 = vmatpush1.xpose.msra.mxu0 0.0
    %4782 = vmatprep.subr.mxu0 0.0
    %4783 = vmatpush1.xpose.msra.mxu0 0.0
    %4784 = vmatprep.subr.mxu0 0.0
    %4785 = vmatpush1.xpose.msra.mxu0 0.0
    %4786 = vmatprep.subr.mxu0 0.0
    %4787 = vmatpush1.xpose.msra.mxu0 0.0
    %4788 = vmatprep.subr.mxu0 0.0
    %4789 = vmatpush1.xpose.msra.mxu0 0.0
    %4790 = vmatprep.subr.mxu0 0.0
    %4791 = vmatpush1.xpose.msra.mxu0 0.0
    %4792 = vmatprep.subr.mxu0 0.0
    %4793 = vmatpush1.xpose.msra.mxu0 0.0
    %4794 = vmatprep.subr.mxu0 0.0
    %4795 = vmatpush1.xpose.msra.mxu0 0.0
    %4796 = vmatprep.subr.mxu0 0.0
    %4797 = vmatpush1.xpose.msra.mxu0 0.0
    %4798 = vmatprep.subr.mxu0 0.0
    %4799 = vmatpush1.xpose.msra.mxu0 0.0
    %4800 = vmatprep.subr.mxu0 0.0
    %4801 = vmatpush1.xpose.msra.mxu0 0.0
    %4802 = vmatprep.subr.mxu0 0.0
    %4803 = vmatpush1.xpose.msra.mxu0 0.0
    %4804 = vmatprep.subr.mxu0 0.0
    %4805 = vmatpush1.xpose.msra.mxu0 0.0
    %4806 = vmatprep.subr.mxu0 0.0
    %4807 = vmatpush1.xpose.msra.mxu0 0.0
    %4808 = vmatprep.subr.mxu0 0.0
    %4809 = vmatpush1.xpose.msra.mxu0 0.0
    %4810 = vmatprep.subr.mxu0 0.0
    %4811 = vmatpush1.xpose.msra.mxu0 0.0
    %4812 = vmatprep.subr.mxu0 0.0
    %4813 = vmatpush1.xpose.msra.mxu0 0.0
    %4814 = vmatprep.subr.mxu0 0.0
    %4815 = vmatpush1.xpose.msra.mxu0 0.0
    %4816 = vmatprep.subr.mxu0 0.0
    %4817 = vmatpush1.xpose.msra.mxu0 0.0
    %4818 = vmatprep.subr.mxu0 0.0
    %4819 = vmatpush1.xpose.msra.mxu0 0.0
    %4820 = vmatprep.subr.mxu0 0.0
    %4821 = vmatpush1.xpose.msra.mxu0 0.0
    %4822 = vmatprep.subr.mxu0 0.0
    %4823 = vmatpush1.xpose.msra.mxu0 0.0
    %4824 = vmatprep.subr.mxu0 0.0
    %4825 = vmatpush1.xpose.msra.mxu0 0.0
    %4826 = vmatprep.subr.mxu0 0.0
    %4827 = vmatpush1.xpose.msra.mxu0 0.0
    %4828 = vmatprep.subr.mxu0 0.0
    %4829 = vmatpush1.xpose.msra.mxu0 0.0
    %4830 = vmatprep.subr.mxu0 0.0
    %4831 = vmatpush1.xpose.msra.mxu0 0.0
    %4832 = vmatprep.subr.mxu0 0.0
    %4833 = vmatpush1.xpose.msra.mxu0 0.0
    %4834 = vmatprep.mubr.f32.mxu0 0.0
    %4835 = vmatmul.mubr.f32.gmra.mrb[0].mxu0 %v4766
    %v4836 = vpop.f32.mrb[0].mxu0
    %v4837 = vadd.f32 %v41, %v4836
    %v4838 = vpop.f32.mrb[0].mxu0
    %4839 = vdwg.mxu0
    %v4840 = vsel %vm136, %v4837, -inf
    %4841 = vmax.xlane.f32.xlu0 %v4840
    %v4842 = vpop.xlane.xlu0 %4841
    %v4843 = vsub.f32 %v4837, %v4842
    %v4844 = vmul.f32 %v4843, 1.442695
    %v4845 = vpow.pop %v4844
    %v4846 = vsel %vm136, %v4845, 0.0
    %4847 = vadd.xlane.f32.xlu0 %v4846
    %v4848 = vpop.xlane.xlu0 %4847
    %v4849 = vrcp.pop %v4848
    %v4850 = vmul.f32 %v4845, %v4849
    %4851 = vrot.lane.b32.xlu0 %v3591, 40
    %v4852 = vpop.permute.xlu0 %4851
    %v4855 = vsel %vm136, %v4850, 0
    %4857 = vmatprep.subr.mxu0 0.0
    %4858 = vmatpush1.msra.mxu0 %v4852
    %4859 = vmatprep.subr.mxu0 0.0
    %4860 = vmatpush1.msra.mxu0 0.0
    %4861 = vmatprep.subr.mxu0 0.0
    %4862 = vmatpush1.msra.mxu0 0.0
    %4863 = vmatprep.subr.mxu0 0.0
    %4864 = vmatpush1.msra.mxu0 0.0
    %4865 = vmatprep.subr.mxu0 0.0
    %4866 = vmatpush1.msra.mxu0 0.0
    %4867 = vmatprep.subr.mxu0 0.0
    %4868 = vmatpush1.msra.mxu0 0.0
    %4869 = vmatprep.subr.mxu0 0.0
    %4870 = vmatpush1.msra.mxu0 0.0
    %4871 = vmatprep.subr.mxu0 0.0
    %4872 = vmatpush1.msra.mxu0 0.0
    %4873 = vmatprep.subr.mxu0 0.0
    %4874 = vmatpush1.msra.mxu0 0.0
    %4875 = vmatprep.subr.mxu0 0.0
    %4876 = vmatpush1.msra.mxu0 0.0
    %4877 = vmatprep.subr.mxu0 0.0
    %4878 = vmatpush1.msra.mxu0 0.0
    %4879 = vmatprep.subr.mxu0 0.0
    %4880 = vmatpush1.msra.mxu0 0.0
    %4881 = vmatprep.subr.mxu0 0.0
    %4882 = vmatpush1.msra.mxu0 0.0
    %4883 = vmatprep.subr.mxu0 0.0
    %4884 = vmatpush1.msra.mxu0 0.0
    %4885 = vmatprep.subr.mxu0 0.0
    %4886 = vmatpush1.msra.mxu0 0.0
    %4887 = vmatprep.subr.mxu0 0.0
    %4888 = vmatpush1.msra.mxu0 0.0
    %4889 = vmatprep.subr.mxu0 0.0
    %4890 = vmatpush1.msra.mxu0 0.0
    %4891 = vmatprep.subr.mxu0 0.0
    %4892 = vmatpush1.msra.mxu0 0.0
    %4893 = vmatprep.subr.mxu0 0.0
    %4894 = vmatpush1.msra.mxu0 0.0
    %4895 = vmatprep.subr.mxu0 0.0
    %4896 = vmatpush1.msra.mxu0 0.0
    %4897 = vmatprep.subr.mxu0 0.0
    %4898 = vmatpush1.msra.mxu0 0.0
    %4899 = vmatprep.subr.mxu0 0.0
    %4900 = vmatpush1.msra.mxu0 0.0
    %4901 = vmatprep.subr.mxu0 0.0
    %4902 = vmatpush1.msra.mxu0 0.0
    %4903 = vmatprep.subr.mxu0 0.0
    %4904 = vmatpush1.msra.mxu0 0.0
    %4905 = vmatprep.subr.mxu0 0.0
    %4906 = vmatpush1.msra.mxu0 0.0
    %4907 = vmatprep.subr.mxu0 0.0
    %4908 = vmatpush1.msra.mxu0 0.0
    %4909 = vmatprep.subr.mxu0 0.0
    %4910 = vmatpush1.msra.mxu0 0.0
    %4911 = vmatprep.subr.mxu0 0.0
    %4912 = vmatpush1.msra.mxu0 0.0
    %4913 = vmatprep.subr.mxu0 0.0
    %4914 = vmatpush1.msra.mxu0 0.0
    %4915 = vmatprep.subr.mxu0 0.0
    %4916 = vmatpush1.msra.mxu0 0.0
    %4917 = vmatprep.subr.mxu0 0.0
    %4918 = vmatpush1.msra.mxu0 0.0
    %4919 = vmatprep.subr.mxu0 0.0
    %4920 = vmatpush1.msra.mxu0 0.0
    %4921 = vmatprep.mubr.f32.mxu0 0.0
    %4922 = vmatmul.mubr.f32.gmra.mrb[0].mxu0 %v4855
    %v4923 = vpop.f32.mrb[0].mxu0
    %v4924 = vadd.f32 0.0, %v4923
    %v4925 = vpop.f32.mrb[0].mxu0
    %4926 = vdwg.mxu0
    %4928 = vrot.lane.b32.xlu0 %v4594, 8
    %v4929 = vpop.permute.xlu0 %4928
    %4932 = vrot.lane.b32.xlu0 %v4759, 16
    %v4933 = vpop.permute.xlu0 %4932
    %4936 = vrot.lane.b32.xlu0 %v4924, 24
    %v4937 = vpop.permute.xlu0 %4936
    %v4939 = vsel %vm136, %v4429, %v4929
    %v4940 = vsel %vm806, %v4939, %v4933
    %v4941 = vsel %vm808, %v4940, %v4937
    %v4942 = vld [vmem:[#allocation2 + $0x120] sm:$0xff]
    %v4943 = vld [vmem:[#allocation2 + $0x128] sm:$0xff]
    %v4944 = vld [vmem:[#allocation2 + $0x130] sm:$0xff]
    %v4945 = vld [vmem:[#allocation2 + $0x138] sm:$0xff]
    %v4946 = vld [vmem:[%s3 + $0xe] sm:$0x1]
    %v4947 = vlaneseq
    %v4948 = vshrl.u32 %v4947, 7
    %v4949 = vsub.s32 0, %v4948
    %v4950 = vrot.slane %v4946, %v4949
    %v4952 = vsel %vm51, %v4267, 0
    %v4955 = vsel %vm51, %v4941, 0
    %4957 = vmatprep.subr.mxu0 0.0
    %4958 = vmatpush1.msra.mxu0 %v4942
    %4959 = vmatprep.subr.mxu0 0.0
    %4960 = vmatpush1.msra.mxu0 %v4943
    %4961 = vmatprep.subr.mxu0 0.0
    %4962 = vmatpush1.msra.mxu0 %v4944
    %4963 = vmatprep.subr.mxu0 0.0
    %4964 = vmatpush1.msra.mxu0 %v4945
    %4965 = vmatprep.subr.mxu0 0.0
    %4966 = vmatpush1.msra.mxu0 0.0
    %4967 = vmatprep.subr.mxu0 0.0
    %4968 = vmatpush1.msra.mxu0 0.0
    %4969 = vmatprep.subr.mxu0 0.0
    %4970 = vmatpush1.msra.mxu0 0.0
    %4971 = vmatprep.subr.mxu0 0.0
    %4972 = vmatpush1.msra.mxu0 0.0
    %4973 = vmatprep.subr.mxu0 0.0
    %4974 = vmatpush1.msra.mxu0 0.0
    %4975 = vmatprep.subr.mxu0 0.0
    %4976 = vmatpush1.msra.mxu0 0.0
    %4977 = vmatprep.subr.mxu0 0.0
    %4978 = vmatpush1.msra.mxu0 0.0
    %4979 = vmatprep.subr.mxu0 0.0
    %4980 = vmatpush1.msra.mxu0 0.0
    %4981 = vmatprep.subr.mxu0 0.0
    %4982 = vmatpush1.msra.mxu0 0.0
    %4983 = vmatprep.subr.mxu0 0.0
    %4984 = vmatpush1.msra.mxu0 0.0
    %4985 = vmatprep.subr.mxu0 0.0
    %4986 = vmatpush1.msra.mxu0 0.0
    %4987 = vmatprep.subr.mxu0 0.0
    %4988 = vmatpush1.msra.mxu0 0.0
    %4989 = vmatprep.subr.mxu0 0.0
    %4990 = vmatpush1.msra.mxu0 0.0
    %4991 = vmatprep.subr.mxu0 0.0
    %4992 = vmatpush1.msra.mxu0 0.0
    %4993 = vmatprep.subr.mxu0 0.0
    %4994 = vmatpush1.msra.mxu0 0.0
    %4995 = vmatprep.subr.mxu0 0.0
    %4996 = vmatpush1.msra.mxu0 0.0
    %4997 = vmatprep.subr.mxu0 0.0
    %4998 = vmatpush1.msra.mxu0 0.0
    %4999 = vmatprep.subr.mxu0 0.0
    %5000 = vmatpush1.msra.mxu0 0.0
    %5001 = vmatprep.subr.mxu0 0.0
    %5002 = vmatpush1.msra.mxu0 0.0
    %5003 = vmatprep.subr.mxu0 0.0
    %5004 = vmatpush1.msra.mxu0 0.0
    %5005 = vmatprep.subr.mxu0 0.0
    %5006 = vmatpush1.msra.mxu0 0.0
    %5007 = vmatprep.subr.mxu0 0.0
    %5008 = vmatpush1.msra.mxu0 0.0
    %5009 = vmatprep.subr.mxu0 0.0
    %5010 = vmatpush1.msra.mxu0 0.0
    %5011 = vmatprep.subr.mxu0 0.0
    %5012 = vmatpush1.msra.mxu0 0.0
    %5013 = vmatprep.subr.mxu0 0.0
    %5014 = vmatpush1.msra.mxu0 0.0
    %5015 = vmatprep.subr.mxu0 0.0
    %5016 = vmatpush1.msra.mxu0 0.0
    %5017 = vmatprep.subr.mxu0 0.0
    %5018 = vmatpush1.msra.mxu0 0.0
    %5019 = vmatprep.subr.mxu0 0.0
    %5020 = vmatpush1.msra.mxu0 0.0
    %5021 = vmatprep.mubr.f32.mxu0 0.0
    %5022 = vmatmul.mubr.f32.gmra.mrb[0].mxu0 %v4952
    %v5023 = vpop.f32.mrb[0].mxu0
    %v5024 = vadd.f32 %v4950, %v5023
    %v5025 = vpop.f32.mrb[0].mxu0
    %5026 = vmatprep.mubr.f32.mxu0 0.0
    %5027 = vmatmul.mubr.f32.gmra.mrb[0].mxu0 %v4955
    %v5028 = vpop.f32.mrb[0].mxu0
    %v5029 = vadd.f32 %v4950, %v5028
    %v5030 = vpop.f32.mrb[0].mxu0
    %5031 = vdwg.mxu0
    %v5032 = vadd.f32 %v3502, %v5024
    %v5033 = vadd.f32 %v3503, %v5029
    %v5034 = vld [vmem:[%s3 + $0x12] sm:$0x1]
    %v5035 = vld [vmem:[%s3 + $0x13] sm:$0x1]
    %v5036 = vsel %vm51, %v5032, 0.0
    %5037 = vadd.xlane.f32.xlu0 %v5036
    %v5038 = vpop.xlane.xlu0 %5037
    %v5039 = vsel %vm51, %v5033, 0.0
    %5040 = vadd.xlane.f32.xlu0 %v5039
    %v5041 = vpop.xlane.xlu0 %5040
    %v5042 = vmul.f32 %v5038, %v1584
    %v5043 = vmul.f32 %v5041, %v1584
    %v5044 = vsub.f32 %v5032, %v5042
    %v5045 = vsub.f32 %v5033, %v5043
    %v5046 = vmul.f32 %v5044, %v5044
    %v5047 = vmul.f32 %v5045, %v5045
    %v5048 = vsel %vm51, %v5046, 0.0
    %5049 = vadd.xlane.f32.xlu0 %v5048
    %v5050 = vpop.xlane.xlu0 %5049
    %v5051 = vsel %vm51, %v5047, 0.0
    %5052 = vadd.xlane.f32.xlu0 %v5051
    %v5053 = vpop.xlane.xlu0 %5052
    %v5054 = vmul.f32 %v5050, %v1584
    %v5055 = vmul.f32 %v5053, %v1584
    %v5056 = vadd.f32 %v5054, 1e-05
    %v5057 = vadd.f32 %v5055, 1e-05
    %v5058 = vrsqrt.pop %v5056
    %v5059 = vrsqrt.pop %v5057
    %v5060 = vmul.f32 %v5044, %v5058
    %v5061 = vmul.f32 %v5045, %v5059
    %v5062 = vlaneseq
    %v5063 = vshrl.u32 %v5062, 7
    %v5064 = vsub.s32 0, %v5063
    %v5065 = vrot.slane %v5034, %v5064
    %v5066 = vmul.f32 %v5060, %v5065
    %v5067 = vmul.f32 %v5061, %v5065
    %v5068 = vlaneseq
    %v5069 = vshrl.u32 %v5068, 7
    %v5070 = vsub.s32 0, %v5069
    %v5071 = vrot.slane %v5035, %v5070
    %v5072 = vadd.f32 %v5066, %v5071
    %v5073 = vadd.f32 %v5067, %v5071
    %v5074 = vld [vmem:[#allocation2 + $0x140] sm:$0xff]
    %v5075 = vld [vmem:[#allocation2 + $0x148] sm:$0xff]
    %v5076 = vld [vmem:[#allocation2 + $0x150] sm:$0xff]
    %v5077 = vld [vmem:[#allocation2 + $0x158] sm:$0xff]
    %v5078 = vld [vmem:[%s3 + $0xf] sm:$0x1]
    %v5079 = vlaneseq
    %v5080 = vshrl.u32 %v5079, 7
    %v5081 = vsub.s32 0, %v5080
    %v5082 = vrot.slane %v5078, %v5081
    %v5084 = vsel %vm51, %v5072, 0
    %v5087 = vsel %vm51, %v5073, 0
    %5089 = vmatprep.subr.mxu0 0.0
    %5090 = vmatpush1.msra.mxu0 %v5074
    %5091 = vmatprep.subr.mxu0 0.0
    %5092 = vmatpush1.msra.mxu0 %v5075
    %5093 = vmatprep.subr.mxu0 0.0
    %5094 = vmatpush1.msra.mxu0 %v5076
    %5095 = vmatprep.subr.mxu0 0.0
    %5096 = vmatpush1.msra.mxu0 %v5077
    %5097 = vmatprep.subr.mxu0 0.0
    %5098 = vmatpush1.msra.mxu0 0.0
    %5099 = vmatprep.subr.mxu0 0.0
    %5100 = vmatpush1.msra.mxu0 0.0
    %5101 = vmatprep.subr.mxu0 0.0
    %5102 = vmatpush1.msra.mxu0 0.0
    %5103 = vmatprep.subr.mxu0 0.0
    %5104 = vmatpush1.msra.mxu0 0.0
    %5105 = vmatprep.subr.mxu0 0.0
    %5106 = vmatpush1.msra.mxu0 0.0
    %5107 = vmatprep.subr.mxu0 0.0
    %5108 = vmatpush1.msra.mxu0 0.0
    %5109 = vmatprep.subr.mxu0 0.0
    %5110 = vmatpush1.msra.mxu0 0.0
    %5111 = vmatprep.subr.mxu0 0.0
    %5112 = vmatpush1.msra.mxu0 0.0
    %5113 = vmatprep.subr.mxu0 0.0
    %5114 = vmatpush1.msra.mxu0 0.0
    %5115 = vmatprep.subr.mxu0 0.0
    %5116 = vmatpush1.msra.mxu0 0.0
    %5117 = vmatprep.subr.mxu0 0.0
    %5118 = vmatpush1.msra.mxu0 0.0
    %5119 = vmatprep.subr.mxu0 0.0
    %5120 = vmatpush1.msra.mxu0 0.0
    %5121 = vmatprep.subr.mxu0 0.0
    %5122 = vmatpush1.msra.mxu0 0.0
    %5123 = vmatprep.subr.mxu0 0.0
    %5124 = vmatpush1.msra.mxu0 0.0
    %5125 = vmatprep.subr.mxu0 0.0
    %5126 = vmatpush1.msra.mxu0 0.0
    %5127 = vmatprep.subr.mxu0 0.0
    %5128 = vmatpush1.msra.mxu0 0.0
    %5129 = vmatprep.subr.mxu0 0.0
    %5130 = vmatpush1.msra.mxu0 0.0
    %5131 = vmatprep.subr.mxu0 0.0
    %5132 = vmatpush1.msra.mxu0 0.0
    %5133 = vmatprep.subr.mxu0 0.0
    %5134 = vmatpush1.msra.mxu0 0.0
    %5135 = vmatprep.subr.mxu0 0.0
    %5136 = vmatpush1.msra.mxu0 0.0
    %5137 = vmatprep.subr.mxu0 0.0
    %5138 = vmatpush1.msra.mxu0 0.0
    %5139 = vmatprep.subr.mxu0 0.0
    %5140 = vmatpush1.msra.mxu0 0.0
    %5141 = vmatprep.subr.mxu0 0.0
    %5142 = vmatpush1.msra.mxu0 0.0
    %5143 = vmatprep.subr.mxu0 0.0
    %5144 = vmatpush1.msra.mxu0 0.0
    %5145 = vmatprep.subr.mxu0 0.0
    %5146 = vmatpush1.msra.mxu0 0.0
    %5147 = vmatprep.subr.mxu0 0.0
    %5148 = vmatpush1.msra.mxu0 0.0
    %5149 = vmatprep.subr.mxu0 0.0
    %5150 = vmatpush1.msra.mxu0 0.0
    %5151 = vmatprep.subr.mxu0 0.0
    %5152 = vmatpush1.msra.mxu0 0.0
    %5153 = vmatprep.mubr.f32.mxu0 0.0
    %5154 = vmatmul.mubr.f32.gmra.mrb[0].mxu0 %v5084
    %v5155 = vpop.f32.mrb[0].mxu0
    %v5156 = vadd.f32 %v5082, %v5155
    %v5157 = vpop.f32.mrb[0].mxu0
    %5158 = vmatprep.mubr.f32.mxu0 0.0
    %5159 = vmatmul.mubr.f32.gmra.mrb[0].mxu0 %v5087
    %v5160 = vpop.f32.mrb[0].mxu0
    %v5161 = vadd.f32 %v5082, %v5160
    %v5162 = vpop.f32.mrb[0].mxu0
    %5163 = vdwg.mxu0
    %v5164 = vld [vmem:[#allocation2 + $0x160] sm:$0xff]
    %v5165 = vld [vmem:[#allocation2 + $0x168] sm:$0xff]
    %v5166 = vld [vmem:[#allocation2 + $0x170] sm:$0xff]
    %v5167 = vld [vmem:[#allocation2 + $0x178] sm:$0xff]
    %v5168 = vld [vmem:[%s3 + $0x10] sm:$0x1]
    %v5169 = vlaneseq
    %v5170 = vshrl.u32 %v5169, 7
    %v5171 = vsub.s32 0, %v5170
    %v5172 = vrot.slane %v5168, %v5171
    %5173 = vmatprep.subr.mxu0 0.0
    %5174 = vmatpush1.msra.mxu0 %v5164
    %5175 = vmatprep.subr.mxu0 0.0
    %5176 = vmatpush1.msra.mxu0 %v5165
    %5177 = vmatprep.subr.mxu0 0.0
    %5178 = vmatpush1.msra.mxu0 %v5166
    %5179 = vmatprep.subr.mxu0 0.0
    %5180 = vmatpush1.msra.mxu0 %v5167
    %5181 = vmatprep.subr.mxu0 0.0
    %5182 = vmatpush1.msra.mxu0 0.0
    %5183 = vmatprep.subr.mxu0 0.0
    %5184 = vmatpush1.msra.mxu0 0.0
    %5185 = vmatprep.subr.mxu0 0.0
    %5186 = vmatpush1.msra.mxu0 0.0
    %5187 = vmatprep.subr.mxu0 0.0
    %5188 = vmatpush1.msra.mxu0 0.0
    %5189 = vmatprep.subr.mxu0 0.0
    %5190 = vmatpush1.msra.mxu0 0.0
    %5191 = vmatprep.subr.mxu0 0.0
    %5192 = vmatpush1.msra.mxu0 0.0
    %5193 = vmatprep.subr.mxu0 0.0
    %5194 = vmatpush1.msra.mxu0 0.0
    %5195 = vmatprep.subr.mxu0 0.0
    %5196 = vmatpush1.msra.mxu0 0.0
    %5197 = vmatprep.subr.mxu0 0.0
    %5198 = vmatpush1.msra.mxu0 0.0
    %5199 = vmatprep.subr.mxu0 0.0
    %5200 = vmatpush1.msra.mxu0 0.0
    %5201 = vmatprep.subr.mxu0 0.0
    %5202 = vmatpush1.msra.mxu0 0.0
    %5203 = vmatprep.subr.mxu0 0.0
    %5204 = vmatpush1.msra.mxu0 0.0
    %5205 = vmatprep.subr.mxu0 0.0
    %5206 = vmatpush1.msra.mxu0 0.0
    %5207 = vmatprep.subr.mxu0 0.0
    %5208 = vmatpush1.msra.mxu0 0.0
    %5209 = vmatprep.subr.mxu0 0.0
    %5210 = vmatpush1.msra.mxu0 0.0
    %5211 = vmatprep.subr.mxu0 0.0
    %5212 = vmatpush1.msra.mxu0 0.0
    %5213 = vmatprep.subr.mxu0 0.0
    %5214 = vmatpush1.msra.mxu0 0.0
    %5215 = vmatprep.subr.mxu0 0.0
    %5216 = vmatpush1.msra.mxu0 0.0
    %5217 = vmatprep.subr.mxu0 0.0
    %5218 = vmatpush1.msra.mxu0 0.0
    %5219 = vmatprep.subr.mxu0 0.0
    %5220 = vmatpush1.msra.mxu0 0.0
    %5221 = vmatprep.subr.mxu0 0.0
    %5222 = vmatpush1.msra.mxu0 0.0
    %5223 = vmatprep.subr.mxu0 0.0
    %5224 = vmatpush1.msra.mxu0 0.0
    %5225 = vmatprep.subr.mxu0 0.0
    %5226 = vmatpush1.msra.mxu0 0.0
    %5227 = vmatprep.subr.mxu0 0.0
    %5228 = vmatpush1.msra.mxu0 0.0
    %5229 = vmatprep.subr.mxu0 0.0
    %5230 = vmatpush1.msra.mxu0 0.0
    %5231 = vmatprep.subr.mxu0 0.0
    %5232 = vmatpush1.msra.mxu0 0.0
    %5233 = vmatprep.subr.mxu0 0.0
    %5234 = vmatpush1.msra.mxu0 0.0
    %5235 = vmatprep.subr.mxu0 0.0
    %5236 = vmatpush1.msra.mxu0 0.0
    %5237 = vmatprep.mubr.f32.mxu0 0.0
    %5238 = vmatmul.mubr.f32.gmra.mrb[0].mxu0 %v1717
    %v5239 = vpop.f32.mrb[0].mxu0
    %v5240 = vadd.f32 %v5172, %v5239
    %v5241 = vpop.f32.mrb[0].mxu0
    %5242 = vmatprep.mubr.f32.mxu0 0.0
    %5243 = vmatmul.mubr.f32.gmra.mrb[0].mxu0 %v1720
    %v5244 = vpop.f32.mrb[0].mxu0
    %v5245 = vadd.f32 %v5172, %v5244
    %v5246 = vpop.f32.mrb[0].mxu0
    %5247 = vdwg.mxu0
    %v5249 = vsel %vm136, %v5156, 0
    %v5252 = vsel %vm136, %v5240, 0
    %5254 = vmatprep.subr.mxu0 0.0
    %5255 = vmatpush1.xpose.msra.mxu0 %v5252
    %5256 = vmatprep.subr.mxu0 0.0
    %5257 = vmatpush1.xpose.msra.mxu0 0.0
    %5258 = vmatprep.subr.mxu0 0.0
    %5259 = vmatpush1.xpose.msra.mxu0 0.0
    %5260 = vmatprep.subr.mxu0 0.0
    %5261 = vmatpush1.xpose.msra.mxu0 0.0
    %5262 = vmatprep.subr.mxu0 0.0
    %5263 = vmatpush1.xpose.msra.mxu0 0.0
    %5264 = vmatprep.subr.mxu0 0.0
    %5265 = vmatpush1.xpose.msra.mxu0 0.0
    %5266 = vmatprep.subr.mxu0 0.0
    %5267 = vmatpush1.xpose.msra.mxu0 0.0
    %5268 = vmatprep.subr.mxu0 0.0
    %5269 = vmatpush1.xpose.msra.mxu0 0.0
    %5270 = vmatprep.subr.mxu0 0.0
    %5271 = vmatpush1.xpose.msra.mxu0 0.0
    %5272 = vmatprep.subr.mxu0 0.0
    %5273 = vmatpush1.xpose.msra.mxu0 0.0
    %5274 = vmatprep.subr.mxu0 0.0
    %5275 = vmatpush1.xpose.msra.mxu0 0.0
    %5276 = vmatprep.subr.mxu0 0.0
    %5277 = vmatpush1.xpose.msra.mxu0 0.0
    %5278 = vmatprep.subr.mxu0 0.0
    %5279 = vmatpush1.xpose.msra.mxu0 0.0
    %5280 = vmatprep.subr.mxu0 0.0
    %5281 = vmatpush1.xpose.msra.mxu0 0.0
    %5282 = vmatprep.subr.mxu0 0.0
    %5283 = vmatpush1.xpose.msra.mxu0 0.0
    %5284 = vmatprep.subr.mxu0 0.0
    %5285 = vmatpush1.xpose.msra.mxu0 0.0
    %5286 = vmatprep.subr.mxu0 0.0
    %5287 = vmatpush1.xpose.msra.mxu0 0.0
    %5288 = vmatprep.subr.mxu0 0.0
    %5289 = vmatpush1.xpose.msra.mxu0 0.0
    %5290 = vmatprep.subr.mxu0 0.0
    %5291 = vmatpush1.xpose.msra.mxu0 0.0
    %5292 = vmatprep.subr.mxu0 0.0
    %5293 = vmatpush1.xpose.msra.mxu0 0.0
    %5294 = vmatprep.subr.mxu0 0.0
    %5295 = vmatpush1.xpose.msra.mxu0 0.0
    %5296 = vmatprep.subr.mxu0 0.0
    %5297 = vmatpush1.xpose.msra.mxu0 0.0
    %5298 = vmatprep.subr.mxu0 0.0
    %5299 = vmatpush1.xpose.msra.mxu0 0.0
    %5300 = vmatprep.subr.mxu0 0.0
    %5301 = vmatpush1.xpose.msra.mxu0 0.0
    %5302 = vmatprep.subr.mxu0 0.0
    %5303 = vmatpush1.xpose.msra.mxu0 0.0
    %5304 = vmatprep.subr.mxu0 0.0
    %5305 = vmatpush1.xpose.msra.mxu0 0.0
    %5306 = vmatprep.subr.mxu0 0.0
    %5307 = vmatpush1.xpose.msra.mxu0 0.0
    %5308 = vmatprep.subr.mxu0 0.0
    %5309 = vmatpush1.xpose.msra.mxu0 0.0
    %5310 = vmatprep.subr.mxu0 0.0
    %5311 = vmatpush1.xpose.msra.mxu0 0.0
    %5312 = vmatprep.subr.mxu0 0.0
    %5313 = vmatpush1.xpose.msra.mxu0 0.0
    %5314 = vmatprep.subr.mxu0 0.0
    %5315 = vmatpush1.xpose.msra.mxu0 0.0
    %5316 = vmatprep.subr.mxu0 0.0
    %5317 = vmatpush1.xpose.msra.mxu0 0.0
    %5318 = vmatprep.mubr.f32.mxu0 0.0
    %5319 = vmatmul.mubr.f32.gmra.mrb[0].mxu0 %v5249
    %v5320 = vpop.f32.mrb[0].mxu0
    %v5321 = vadd.f32 0.0, %v5320
    %v5322 = vpop.f32.mrb[0].mxu0
    %5323 = vdwg.mxu0
    %v5324 = vsel %vm136, %v5321, -inf
    %5325 = vmax.xlane.f32.xlu0 %v5324
    %v5326 = vpop.xlane.xlu0 %5325
    %v5327 = vsub.f32 %v5321, %v5326
    %v5328 = vmul.f32 %v5327, 1.442695
    %v5329 = vpow.pop %v5328
    %v5330 = vsel %vm136, %v5329, 0.0
    %5331 = vadd.xlane.f32.xlu0 %v5330
    %v5332 = vpop.xlane.xlu0 %5331
    %v5333 = vrcp.pop %v5332
    %v5334 = vmul.f32 %v5329, %v5333
    %5335 = vrot.lane.b32.xlu0 %v5240, 96
    %v5336 = vpop.permute.xlu0 %5335
    %v5339 = vsel %vm136, %v5334, 0
    %5341 = vmatprep.subr.mxu0 0.0
    %5342 = vmatpush1.msra.mxu0 %v5336
    %5343 = vmatprep.subr.mxu0 0.0
    %5344 = vmatpush1.msra.mxu0 0.0
    %5345 = vmatprep.subr.mxu0 0.0
    %5346 = vmatpush1.msra.mxu0 0.0
    %5347 = vmatprep.subr.mxu0 0.0
    %5348 = vmatpush1.msra.mxu0 0.0
    %5349 = vmatprep.subr.mxu0 0.0
    %5350 = vmatpush1.msra.mxu0 0.0
    %5351 = vmatprep.subr.mxu0 0.0
    %5352 = vmatpush1.msra.mxu0 0.0
    %5353 = vmatprep.subr.mxu0 0.0
    %5354 = vmatpush1.msra.mxu0 0.0
    %5355 = vmatprep.subr.mxu0 0.0
    %5356 = vmatpush1.msra.mxu0 0.0
    %5357 = vmatprep.subr.mxu0 0.0
    %5358 = vmatpush1.msra.mxu0 0.0
    %5359 = vmatprep.subr.mxu0 0.0
    %5360 = vmatpush1.msra.mxu0 0.0
    %5361 = vmatprep.subr.mxu0 0.0
    %5362 = vmatpush1.msra.mxu0 0.0
    %5363 = vmatprep.subr.mxu0 0.0
    %5364 = vmatpush1.msra.mxu0 0.0
    %5365 = vmatprep.subr.mxu0 0.0
    %5366 = vmatpush1.msra.mxu0 0.0
    %5367 = vmatprep.subr.mxu0 0.0
    %5368 = vmatpush1.msra.mxu0 0.0
    %5369 = vmatprep.subr.mxu0 0.0
    %5370 = vmatpush1.msra.mxu0 0.0
    %5371 = vmatprep.subr.mxu0 0.0
    %5372 = vmatpush1.msra.mxu0 0.0
    %5373 = vmatprep.subr.mxu0 0.0
    %5374 = vmatpush1.msra.mxu0 0.0
    %5375 = vmatprep.subr.mxu0 0.0
    %5376 = vmatpush1.msra.mxu0 0.0
    %5377 = vmatprep.subr.mxu0 0.0
    %5378 = vmatpush1.msra.mxu0 0.0
    %5379 = vmatprep.subr.mxu0 0.0
    %5380 = vmatpush1.msra.mxu0 0.0
    %5381 = vmatprep.subr.mxu0 0.0
    %5382 = vmatpush1.msra.mxu0 0.0
    %5383 = vmatprep.subr.mxu0 0.0
    %5384 = vmatpush1.msra.mxu0 0.0
    %5385 = vmatprep.subr.mxu0 0.0
    %5386 = vmatpush1.msra.mxu0 0.0
    %5387 = vmatprep.subr.mxu0 0.0
    %5388 = vmatpush1.msra.mxu0 0.0
    %5389 = vmatprep.subr.mxu0 0.0
    %5390 = vmatpush1.msra.mxu0 0.0
    %5391 = vmatprep.subr.mxu0 0.0
    %5392 = vmatpush1.msra.mxu0 0.0
    %5393 = vmatprep.subr.mxu0 0.0
    %5394 = vmatpush1.msra.mxu0 0.0
    %5395 = vmatprep.subr.mxu0 0.0
    %5396 = vmatpush1.msra.mxu0 0.0
    %5397 = vmatprep.subr.mxu0 0.0
    %5398 = vmatpush1.msra.mxu0 0.0
    %5399 = vmatprep.subr.mxu0 0.0
    %5400 = vmatpush1.msra.mxu0 0.0
    %5401 = vmatprep.subr.mxu0 0.0
    %5402 = vmatpush1.msra.mxu0 0.0
    %5403 = vmatprep.subr.mxu0 0.0
    %5404 = vmatpush1.msra.mxu0 0.0
    %5405 = vmatprep.mubr.f32.mxu0 0.0
    %5406 = vmatmul.mubr.f32.gmra.mrb[0].mxu0 %v5339
    %v5407 = vpop.f32.mrb[0].mxu0
    %v5408 = vadd.f32 0.0, %v5407
    %v5409 = vpop.f32.mrb[0].mxu0
    %5410 = vdwg.mxu0
    %5411 = vrot.lane.b32.xlu0 %v5156, 120
    %v5412 = vpop.permute.xlu0 %5411
    %5413 = vrot.lane.b32.xlu0 %v5240, 120
    %v5414 = vpop.permute.xlu0 %5413
    %v5415 = vsel %vm136, %v5412, 0
    %v5417 = vsel %vm136, %v5414, 0
    %5419 = vmatprep.subr.mxu0 0.0
    %5420 = vmatpush1.xpose.msra.mxu0 %v5417
    %5421 = vmatprep.subr.mxu0 0.0
    %5422 = vmatpush1.xpose.msra.mxu0 0.0
    %5423 = vmatprep.subr.mxu0 0.0
    %5424 = vmatpush1.xpose.msra.mxu0 0.0
    %5425 = vmatprep.subr.mxu0 0.0
    %5426 = vmatpush1.xpose.msra.mxu0 0.0
    %5427 = vmatprep.subr.mxu0 0.0
    %5428 = vmatpush1.xpose.msra.mxu0 0.0
    %5429 = vmatprep.subr.mxu0 0.0
    %5430 = vmatpush1.xpose.msra.mxu0 0.0
    %5431 = vmatprep.subr.mxu0 0.0
    %5432 = vmatpush1.xpose.msra.mxu0 0.0
    %5433 = vmatprep.subr.mxu0 0.0
    %5434 = vmatpush1.xpose.msra.mxu0 0.0
    %5435 = vmatprep.subr.mxu0 0.0
    %5436 = vmatpush1.xpose.msra.mxu0 0.0
    %5437 = vmatprep.subr.mxu0 0.0
    %5438 = vmatpush1.xpose.msra.mxu0 0.0
    %5439 = vmatprep.subr.mxu0 0.0
    %5440 = vmatpush1.xpose.msra.mxu0 0.0
    %5441 = vmatprep.subr.mxu0 0.0
    %5442 = vmatpush1.xpose.msra.mxu0 0.0
    %5443 = vmatprep.subr.mxu0 0.0
    %5444 = vmatpush1.xpose.msra.mxu0 0.0
    %5445 = vmatprep.subr.mxu0 0.0
    %5446 = vmatpush1.xpose.msra.mxu0 0.0
    %5447 = vmatprep.subr.mxu0 0.0
    %5448 = vmatpush1.xpose.msra.mxu0 0.0
    %5449 = vmatprep.subr.mxu0 0.0
    %5450 = vmatpush1.xpose.msra.mxu0 0.0
    %5451 = vmatprep.subr.mxu0 0.0
    %5452 = vmatpush1.xpose.msra.mxu0 0.0
    %5453 = vmatprep.subr.mxu0 0.0
    %5454 = vmatpush1.xpose.msra.mxu0 0.0
    %5455 = vmatprep.subr.mxu0 0.0
    %5456 = vmatpush1.xpose.msra.mxu0 0.0
    %5457 = vmatprep.subr.mxu0 0.0
    %5458 = vmatpush1.xpose.msra.mxu0 0.0
    %5459 = vmatprep.subr.mxu0 0.0
    %5460 = vmatpush1.xpose.msra.mxu0 0.0
    %5461 = vmatprep.subr.mxu0 0.0
    %5462 = vmatpush1.xpose.msra.mxu0 0.0
    %5463 = vmatprep.subr.mxu0 0.0
    %5464 = vmatpush1.xpose.msra.mxu0 0.0
    %5465 = vmatprep.subr.mxu0 0.0
    %5466 = vmatpush1.xpose.msra.mxu0 0.0
    %5467 = vmatprep.subr.mxu0 0.0
    %5468 = vmatpush1.xpose.msra.mxu0 0.0
    %5469 = vmatprep.subr.mxu0 0.0
    %5470 = vmatpush1.xpose.msra.mxu0 0.0
    %5471 = vmatprep.subr.mxu0 0.0
    %5472 = vmatpush1.xpose.msra.mxu0 0.0
    %5473 = vmatprep.subr.mxu0 0.0
    %5474 = vmatpush1.xpose.msra.mxu0 0.0
    %5475 = vmatprep.subr.mxu0 0.0
    %5476 = vmatpush1.xpose.msra.mxu0 0.0
    %5477 = vmatprep.subr.mxu0 0.0
    %5478 = vmatpush1.xpose.msra.mxu0 0.0
    %5479 = vmatprep.subr.mxu0 0.0
    %5480 = vmatpush1.xpose.msra.mxu0 0.0
    %5481 = vmatprep.subr.mxu0 0.0
    %5482 = vmatpush1.xpose.msra.mxu0 0.0
    %5483 = vmatprep.mubr.f32.mxu0 0.0
    %5484 = vmatmul.mubr.f32.gmra.mrb[0].mxu0 %v5415
    %v5485 = vpop.f32.mrb[0].mxu0
    %v5486 = vadd.f32 0.0, %v5485
    %v5487 = vpop.f32.mrb[0].mxu0
    %5488 = vdwg.mxu0
    %v5489 = vsel %vm136, %v5486, -inf
    %5490 = vmax.xlane.f32.xlu0 %v5489
    %v5491 = vpop.xlane.xlu0 %5490
    %v5492 = vsub.f32 %v5486, %v5491
    %v5493 = vmul.f32 %v5492, 1.442695
    %v5494 = vpow.pop %v5493
    %v5495 = vsel %vm136, %v5494, 0.0
    %5496 = vadd.xlane.f32.xlu0 %v5495
    %v5497 = vpop.xlane.xlu0 %5496
    %v5498 = vrcp.pop %v5497
    %v5499 = vmul.f32 %v5494, %v5498
    %5500 = vrot.lane.b32.xlu0 %v5240, 88
    %v5501 = vpop.permute.xlu0 %5500
    %v5504 = vsel %vm136, %v5499, 0
    %5506 = vmatprep.subr.mxu0 0.0
    %5507 = vmatpush1.msra.mxu0 %v5501
    %5508 = vmatprep.subr.mxu0 0.0
    %5509 = vmatpush1.msra.mxu0 0.0
    %5510 = vmatprep.subr.mxu0 0.0
    %5511 = vmatpush1.msra.mxu0 0.0
    %5512 = vmatprep.subr.mxu0 0.0
    %5513 = vmatpush1.msra.mxu0 0.0
    %5514 = vmatprep.subr.mxu0 0.0
    %5515 = vmatpush1.msra.mxu0 0.0
    %5516 = vmatprep.subr.mxu0 0.0
    %5517 = vmatpush1.msra.mxu0 0.0
    %5518 = vmatprep.subr.mxu0 0.0
    %5519 = vmatpush1.msra.mxu0 0.0
    %5520 = vmatprep.subr.mxu0 0.0
    %5521 = vmatpush1.msra.mxu0 0.0
    %5522 = vmatprep.subr.mxu0 0.0
    %5523 = vmatpush1.msra.mxu0 0.0
    %5524 = vmatprep.subr.mxu0 0.0
    %5525 = vmatpush1.msra.mxu0 0.0
    %5526 = vmatprep.subr.mxu0 0.0
    %5527 = vmatpush1.msra.mxu0 0.0
    %5528 = vmatprep.subr.mxu0 0.0
    %5529 = vmatpush1.msra.mxu0 0.0
    %5530 = vmatprep.subr.mxu0 0.0
    %5531 = vmatpush1.msra.mxu0 0.0
    %5532 = vmatprep.subr.mxu0 0.0
    %5533 = vmatpush1.msra.mxu0 0.0
    %5534 = vmatprep.subr.mxu0 0.0
    %5535 = vmatpush1.msra.mxu0 0.0
    %5536 = vmatprep.subr.mxu0 0.0
    %5537 = vmatpush1.msra.mxu0 0.0
    %5538 = vmatprep.subr.mxu0 0.0
    %5539 = vmatpush1.msra.mxu0 0.0
    %5540 = vmatprep.subr.mxu0 0.0
    %5541 = vmatpush1.msra.mxu0 0.0
    %5542 = vmatprep.subr.mxu0 0.0
    %5543 = vmatpush1.msra.mxu0 0.0
    %5544 = vmatprep.subr.mxu0 0.0
    %5545 = vmatpush1.msra.mxu0 0.0
    %5546 = vmatprep.subr.mxu0 0.0
    %5547 = vmatpush1.msra.mxu0 0.0
    %5548 = vmatprep.subr.mxu0 0.0
    %5549 = vmatpush1.msra.mxu0 0.0
    %5550 = vmatprep.subr.mxu0 0.0
    %5551 = vmatpush1.msra.mxu0 0.0
    %5552 = vmatprep.subr.mxu0 0.0
    %5553 = vmatpush1.msra.mxu0 0.0
    %5554 = vmatprep.subr.mxu0 0.0
    %5555 = vmatpush1.msra.mxu0 0.0
    %5556 = vmatprep.subr.mxu0 0.0
    %5557 = vmatpush1.msra.mxu0 0.0
    %5558 = vmatprep.subr.mxu0 0.0
    %5559 = vmatpush1.msra.mxu0 0.0
    %5560 = vmatprep.subr.mxu0 0.0
    %5561 = vmatpush1.msra.mxu0 0.0
    %5562 = vmatprep.subr.mxu0 0.0
    %5563 = vmatpush1.msra.mxu0 0.0
    %5564 = vmatprep.subr.mxu0 0.0
    %5565 = vmatpush1.msra.mxu0 0.0
    %5566 = vmatprep.subr.mxu0 0.0
    %5567 = vmatpush1.msra.mxu0 0.0
    %5568 = vmatprep.subr.mxu0 0.0
    %5569 = vmatpush1.msra.mxu0 0.0
    %5570 = vmatprep.mubr.f32.mxu0 0.0
    %5571 = vmatmul.mubr.f32.gmra.mrb[0].mxu0 %v5504
    %v5572 = vpop.f32.mrb[0].mxu0
    %v5573 = vadd.f32 0.0, %v5572
    %v5574 = vpop.f32.mrb[0].mxu0
    %5575 = vdwg.mxu0
    %5576 = vrot.lane.b32.xlu0 %v5156, 112
    %v5577 = vpop.permute.xlu0 %5576
    %5578 = vrot.lane.b32.xlu0 %v5240, 112
    %v5579 = vpop.permute.xlu0 %5578
    %v5580 = vsel %vm136, %v5577, 0
    %v5582 = vsel %vm136, %v5579, 0
    %5584 = vmatprep.subr.mxu0 0.0
    %5585 = vmatpush1.xpose.msra.mxu0 %v5582
    %5586 = vmatprep.subr.mxu0 0.0
    %5587 = vmatpush1.xpose.msra.mxu0 0.0
    %5588 = vmatprep.subr.mxu0 0.0
    %5589 = vmatpush1.xpose.msra.mxu0 0.0
    %5590 = vmatprep.subr.mxu0 0.0
    %5591 = vmatpush1.xpose.msra.mxu0 0.0
    %5592 = vmatprep.subr.mxu0 0.0
    %5593 = vmatpush1.xpose.msra.mxu0 0.0
    %5594 = vmatprep.subr.mxu0 0.0
    %5595 = vmatpush1.xpose.msra.mxu0 0.0
    %5596 = vmatprep.subr.mxu0 0.0
    %5597 = vmatpush1.xpose.msra.mxu0 0.0
    %5598 = vmatprep.subr.mxu0 0.0
    %5599 = vmatpush1.xpose.msra.mxu0 0.0
    %5600 = vmatprep.subr.mxu0 0.0
    %5601 = vmatpush1.xpose.msra.mxu0 0.0
    %5602 = vmatprep.subr.mxu0 0.0
    %5603 = vmatpush1.xpose.msra.mxu0 0.0
    %5604 = vmatprep.subr.mxu0 0.0
    %5605 = vmatpush1.xpose.msra.mxu0 0.0
    %5606 = vmatprep.subr.mxu0 0.0
    %5607 = vmatpush1.xpose.msra.mxu0 0.0
    %5608 = vmatprep.subr.mxu0 0.0
    %5609 = vmatpush1.xpose.msra.mxu0 0.0
    %5610 = vmatprep.subr.mxu0 0.0
    %5611 = vmatpush1.xpose.msra.mxu0 0.0
    %5612 = vmatprep.subr.mxu0 0.0
    %5613 = vmatpush1.xpose.msra.mxu0 0.0
    %5614 = vmatprep.subr.mxu0 0.0
    %5615 = vmatpush1.xpose.msra.mxu0 0.0
    %5616 = vmatprep.subr.mxu0 0.0
    %5617 = vmatpush1.xpose.msra.mxu0 0.0
    %5618 = vmatprep.subr.mxu0 0.0
    %5619 = vmatpush1.xpose.msra.mxu0 0.0
    %5620 = vmatprep.subr.mxu0 0.0
    %5621 = vmatpush1.xpose.msra.mxu0 0.0
    %5622 = vmatprep.subr.mxu0 0.0
    %5623 = vmatpush1.xpose.msra.mxu0 0.0
    %5624 = vmatprep.subr.mxu0 0.0
    %5625 = vmatpush1.xpose.msra.mxu0 0.0
    %5626 = vmatprep.subr.mxu0 0.0
    %5627 = vmatpush1.xpose.msra.mxu0 0.0
    %5628 = vmatprep.subr.mxu0 0.0
    %5629 = vmatpush1.xpose.msra.mxu0 0.0
    %5630 = vmatprep.subr.mxu0 0.0
    %5631 = vmatpush1.xpose.msra.mxu0 0.0
    %5632 = vmatprep.subr.mxu0 0.0
    %5633 = vmatpush1.xpose.msra.mxu0 0.0
    %5634 = vmatprep.subr.mxu0 0.0
    %5635 = vmatpush1.xpose.msra.mxu0 0.0
    %5636 = vmatprep.subr.mxu0 0.0
    %5637 = vmatpush1.xpose.msra.mxu0 0.0
    %5638 = vmatprep.subr.mxu0 0.0
    %5639 = vmatpush1.xpose.msra.mxu0 0.0
    %5640 = vmatprep.subr.mxu0 0.0
    %5641 = vmatpush1.xpose.msra.mxu0 0.0
    %5642 = vmatprep.subr.mxu0 0.0
    %5643 = vmatpush1.xpose.msra.mxu0 0.0
    %5644 = vmatprep.subr.mxu0 0.0
    %5645 = vmatpush1.xpose.msra.mxu0 0.0
    %5646 = vmatprep.subr.mxu0 0.0
    %5647 = vmatpush1.xpose.msra.mxu0 0.0
    %5648 = vmatprep.mubr.f32.mxu0 0.0
    %5649 = vmatmul.mubr.f32.gmra.mrb[0].mxu0 %v5580
    %v5650 = vpop.f32.mrb[0].mxu0
    %v5651 = vadd.f32 0.0, %v5650
    %v5652 = vpop.f32.mrb[0].mxu0
    %5653 = vdwg.mxu0
    %v5654 = vsel %vm136, %v5651, -inf
    %5655 = vmax.xlane.f32.xlu0 %v5654
    %v5656 = vpop.xlane.xlu0 %5655
    %v5657 = vsub.f32 %v5651, %v5656
    %v5658 = vmul.f32 %v5657, 1.442695
    %v5659 = vpow.pop %v5658
    %v5660 = vsel %vm136, %v5659, 0.0
    %5661 = vadd.xlane.f32.xlu0 %v5660
    %v5662 = vpop.xlane.xlu0 %5661
    %v5663 = vrcp.pop %v5662
    %v5664 = vmul.f32 %v5659, %v5663
    %5665 = vrot.lane.b32.xlu0 %v5240, 80
    %v5666 = vpop.permute.xlu0 %5665
    %v5669 = vsel %vm136, %v5664, 0
    %5671 = vmatprep.subr.mxu0 0.0
    %5672 = vmatpush1.msra.mxu0 %v5666
    %5673 = vmatprep.subr.mxu0 0.0
    %5674 = vmatpush1.msra.mxu0 0.0
    %5675 = vmatprep.subr.mxu0 0.0
    %5676 = vmatpush1.msra.mxu0 0.0
    %5677 = vmatprep.subr.mxu0 0.0
    %5678 = vmatpush1.msra.mxu0 0.0
    %5679 = vmatprep.subr.mxu0 0.0
    %5680 = vmatpush1.msra.mxu0 0.0
    %5681 = vmatprep.subr.mxu0 0.0
    %5682 = vmatpush1.msra.mxu0 0.0
    %5683 = vmatprep.subr.mxu0 0.0
    %5684 = vmatpush1.msra.mxu0 0.0
    %5685 = vmatprep.subr.mxu0 0.0
    %5686 = vmatpush1.msra.mxu0 0.0
    %5687 = vmatprep.subr.mxu0 0.0
    %5688 = vmatpush1.msra.mxu0 0.0
    %5689 = vmatprep.subr.mxu0 0.0
    %5690 = vmatpush1.msra.mxu0 0.0
    %5691 = vmatprep.subr.mxu0 0.0
    %5692 = vmatpush1.msra.mxu0 0.0
    %5693 = vmatprep.subr.mxu0 0.0
    %5694 = vmatpush1.msra.mxu0 0.0
    %5695 = vmatprep.subr.mxu0 0.0
    %5696 = vmatpush1.msra.mxu0 0.0
    %5697 = vmatprep.subr.mxu0 0.0
    %5698 = vmatpush1.msra.mxu0 0.0
    %5699 = vmatprep.subr.mxu0 0.0
    %5700 = vmatpush1.msra.mxu0 0.0
    %5701 = vmatprep.subr.mxu0 0.0
    %5702 = vmatpush1.msra.mxu0 0.0
    %5703 = vmatprep.subr.mxu0 0.0
    %5704 = vmatpush1.msra.mxu0 0.0
    %5705 = vmatprep.subr.mxu0 0.0
    %5706 = vmatpush1.msra.mxu0 0.0
    %5707 = vmatprep.subr.mxu0 0.0
    %5708 = vmatpush1.msra.mxu0 0.0
    %5709 = vmatprep.subr.mxu0 0.0
    %5710 = vmatpush1.msra.mxu0 0.0
    %5711 = vmatprep.subr.mxu0 0.0
    %5712 = vmatpush1.msra.mxu0 0.0
    %5713 = vmatprep.subr.mxu0 0.0
    %5714 = vmatpush1.msra.mxu0 0.0
    %5715 = vmatprep.subr.mxu0 0.0
    %5716 = vmatpush1.msra.mxu0 0.0
    %5717 = vmatprep.subr.mxu0 0.0
    %5718 = vmatpush1.msra.mxu0 0.0
    %5719 = vmatprep.subr.mxu0 0.0
    %5720 = vmatpush1.msra.mxu0 0.0
    %5721 = vmatprep.subr.mxu0 0.0
    %5722 = vmatpush1.msra.mxu0 0.0
    %5723 = vmatprep.subr.mxu0 0.0
    %5724 = vmatpush1.msra.mxu0 0.0
    %5725 = vmatprep.subr.mxu0 0.0
    %5726 = vmatpush1.msra.mxu0 0.0
    %5727 = vmatprep.subr.mxu0 0.0
    %5728 = vmatpush1.msra.mxu0 0.0
    %5729 = vmatprep.subr.mxu0 0.0
    %5730 = vmatpush1.msra.mxu0 0.0
    %5731 = vmatprep.subr.mxu0 0.0
    %5732 = vmatpush1.msra.mxu0 0.0
    %5733 = vmatprep.subr.mxu0 0.0
    %5734 = vmatpush1.msra.mxu0 0.0
    %5735 = vmatprep.mubr.f32.mxu0 0.0
    %5736 = vmatmul.mubr.f32.gmra.mrb[0].mxu0 %v5669
    %v5737 = vpop.f32.mrb[0].mxu0
    %v5738 = vadd.f32 0.0, %v5737
    %v5739 = vpop.f32.mrb[0].mxu0
    %5740 = vdwg.mxu0
    %5741 = vrot.lane.b32.xlu0 %v5156, 104
    %v5742 = vpop.permute.xlu0 %5741
    %5743 = vrot.lane.b32.xlu0 %v5240, 104
    %v5744 = vpop.permute.xlu0 %5743
    %v5745 = vsel %vm136, %v5742, 0
    %v5747 = vsel %vm136, %v5744, 0
    %5749 = vmatprep.subr.mxu0 0.0
    %5750 = vmatpush1.xpose.msra.mxu0 %v5747
    %5751 = vmatprep.subr.mxu0 0.0
    %5752 = vmatpush1.xpose.msra.mxu0 0.0
    %5753 = vmatprep.subr.mxu0 0.0
    %5754 = vmatpush1.xpose.msra.mxu0 0.0
    %5755 = vmatprep.subr.mxu0 0.0
    %5756 = vmatpush1.xpose.msra.mxu0 0.0
    %5757 = vmatprep.subr.mxu0 0.0
    %5758 = vmatpush1.xpose.msra.mxu0 0.0
    %5759 = vmatprep.subr.mxu0 0.0
    %5760 = vmatpush1.xpose.msra.mxu0 0.0
    %5761 = vmatprep.subr.mxu0 0.0
    %5762 = vmatpush1.xpose.msra.mxu0 0.0
    %5763 = vmatprep.subr.mxu0 0.0
    %5764 = vmatpush1.xpose.msra.mxu0 0.0
    %5765 = vmatprep.subr.mxu0 0.0
    %5766 = vmatpush1.xpose.msra.mxu0 0.0
    %5767 = vmatprep.subr.mxu0 0.0
    %5768 = vmatpush1.xpose.msra.mxu0 0.0
    %5769 = vmatprep.subr.mxu0 0.0
    %5770 = vmatpush1.xpose.msra.mxu0 0.0
    %5771 = vmatprep.subr.mxu0 0.0
    %5772 = vmatpush1.xpose.msra.mxu0 0.0
    %5773 = vmatprep.subr.mxu0 0.0
    %5774 = vmatpush1.xpose.msra.mxu0 0.0
    %5775 = vmatprep.subr.mxu0 0.0
    %5776 = vmatpush1.xpose.msra.mxu0 0.0
    %5777 = vmatprep.subr.mxu0 0.0
    %5778 = vmatpush1.xpose.msra.mxu0 0.0
    %5779 = vmatprep.subr.mxu0 0.0
    %5780 = vmatpush1.xpose.msra.mxu0 0.0
    %5781 = vmatprep.subr.mxu0 0.0
    %5782 = vmatpush1.xpose.msra.mxu0 0.0
    %5783 = vmatprep.subr.mxu0 0.0
    %5784 = vmatpush1.xpose.msra.mxu0 0.0
    %5785 = vmatprep.subr.mxu0 0.0
    %5786 = vmatpush1.xpose.msra.mxu0 0.0
    %5787 = vmatprep.subr.mxu0 0.0
    %5788 = vmatpush1.xpose.msra.mxu0 0.0
    %5789 = vmatprep.subr.mxu0 0.0
    %5790 = vmatpush1.xpose.msra.mxu0 0.0
    %5791 = vmatprep.subr.mxu0 0.0
    %5792 = vmatpush1.xpose.msra.mxu0 0.0
    %5793 = vmatprep.subr.mxu0 0.0
    %5794 = vmatpush1.xpose.msra.mxu0 0.0
    %5795 = vmatprep.subr.mxu0 0.0
    %5796 = vmatpush1.xpose.msra.mxu0 0.0
    %5797 = vmatprep.subr.mxu0 0.0
    %5798 = vmatpush1.xpose.msra.mxu0 0.0
    %5799 = vmatprep.subr.mxu0 0.0
    %5800 = vmatpush1.xpose.msra.mxu0 0.0
    %5801 = vmatprep.subr.mxu0 0.0
    %5802 = vmatpush1.xpose.msra.mxu0 0.0
    %5803 = vmatprep.subr.mxu0 0.0
    %5804 = vmatpush1.xpose.msra.mxu0 0.0
    %5805 = vmatprep.subr.mxu0 0.0
    %5806 = vmatpush1.xpose.msra.mxu0 0.0
    %5807 = vmatprep.subr.mxu0 0.0
    %5808 = vmatpush1.xpose.msra.mxu0 0.0
    %5809 = vmatprep.subr.mxu0 0.0
    %5810 = vmatpush1.xpose.msra.mxu0 0.0
    %5811 = vmatprep.subr.mxu0 0.0
    %5812 = vmatpush1.xpose.msra.mxu0 0.0
    %5813 = vmatprep.mubr.f32.mxu0 0.0
    %5814 = vmatmul.mubr.f32.gmra.mrb[0].mxu0 %v5745
    %v5815 = vpop.f32.mrb[0].mxu0
    %v5816 = vadd.f32 0.0, %v5815
    %v5817 = vpop.f32.mrb[0].mxu0
    %5818 = vdwg.mxu0
    %v5819 = vsel %vm136, %v5816, -inf
    %5820 = vmax.xlane.f32.xlu0 %v5819
    %v5821 = vpop.xlane.xlu0 %5820
    %v5822 = vsub.f32 %v5816, %v5821
    %v5823 = vmul.f32 %v5822, 1.442695
    %v5824 = vpow.pop %v5823
    %v5825 = vsel %vm136, %v5824, 0.0
    %5826 = vadd.xlane.f32.xlu0 %v5825
    %v5827 = vpop.xlane.xlu0 %5826
    %v5828 = vrcp.pop %v5827
    %v5829 = vmul.f32 %v5824, %v5828
    %5830 = vrot.lane.b32.xlu0 %v5240, 72
    %v5831 = vpop.permute.xlu0 %5830
    %v5834 = vsel %vm136, %v5829, 0
    %5836 = vmatprep.subr.mxu0 0.0
    %5837 = vmatpush1.msra.mxu0 %v5831
    %5838 = vmatprep.subr.mxu0 0.0
    %5839 = vmatpush1.msra.mxu0 0.0
    %5840 = vmatprep.subr.mxu0 0.0
    %5841 = vmatpush1.msra.mxu0 0.0
    %5842 = vmatprep.subr.mxu0 0.0
    %5843 = vmatpush1.msra.mxu0 0.0
    %5844 = vmatprep.subr.mxu0 0.0
    %5845 = vmatpush1.msra.mxu0 0.0
    %5846 = vmatprep.subr.mxu0 0.0
    %5847 = vmatpush1.msra.mxu0 0.0
    %5848 = vmatprep.subr.mxu0 0.0
    %5849 = vmatpush1.msra.mxu0 0.0
    %5850 = vmatprep.subr.mxu0 0.0
    %5851 = vmatpush1.msra.mxu0 0.0
    %5852 = vmatprep.subr.mxu0 0.0
    %5853 = vmatpush1.msra.mxu0 0.0
    %5854 = vmatprep.subr.mxu0 0.0
    %5855 = vmatpush1.msra.mxu0 0.0
    %5856 = vmatprep.subr.mxu0 0.0
    %5857 = vmatpush1.msra.mxu0 0.0
    %5858 = vmatprep.subr.mxu0 0.0
    %5859 = vmatpush1.msra.mxu0 0.0
    %5860 = vmatprep.subr.mxu0 0.0
    %5861 = vmatpush1.msra.mxu0 0.0
    %5862 = vmatprep.subr.mxu0 0.0
    %5863 = vmatpush1.msra.mxu0 0.0
    %5864 = vmatprep.subr.mxu0 0.0
    %5865 = vmatpush1.msra.mxu0 0.0
    %5866 = vmatprep.subr.mxu0 0.0
    %5867 = vmatpush1.msra.mxu0 0.0
    %5868 = vmatprep.subr.mxu0 0.0
    %5869 = vmatpush1.msra.mxu0 0.0
    %5870 = vmatprep.subr.mxu0 0.0
    %5871 = vmatpush1.msra.mxu0 0.0
    %5872 = vmatprep.subr.mxu0 0.0
    %5873 = vmatpush1.msra.mxu0 0.0
    %5874 = vmatprep.subr.mxu0 0.0
    %5875 = vmatpush1.msra.mxu0 0.0
    %5876 = vmatprep.subr.mxu0 0.0
    %5877 = vmatpush1.msra.mxu0 0.0
    %5878 = vmatprep.subr.mxu0 0.0
    %5879 = vmatpush1.msra.mxu0 0.0
    %5880 = vmatprep.subr.mxu0 0.0
    %5881 = vmatpush1.msra.mxu0 0.0
    %5882 = vmatprep.subr.mxu0 0.0
    %5883 = vmatpush1.msra.mxu0 0.0
    %5884 = vmatprep.subr.mxu0 0.0
    %5885 = vmatpush1.msra.mxu0 0.0
    %5886 = vmatprep.subr.mxu0 0.0
    %5887 = vmatpush1.msra.mxu0 0.0
    %5888 = vmatprep.subr.mxu0 0.0
    %5889 = vmatpush1.msra.mxu0 0.0
    %5890 = vmatprep.subr.mxu0 0.0
    %5891 = vmatpush1.msra.mxu0 0.0
    %5892 = vmatprep.subr.mxu0 0.0
    %5893 = vmatpush1.msra.mxu0 0.0
    %5894 = vmatprep.subr.mxu0 0.0
    %5895 = vmatpush1.msra.mxu0 0.0
    %5896 = vmatprep.subr.mxu0 0.0
    %5897 = vmatpush1.msra.mxu0 0.0
    %5898 = vmatprep.subr.mxu0 0.0
    %5899 = vmatpush1.msra.mxu0 0.0
    %5900 = vmatprep.mubr.f32.mxu0 0.0
    %5901 = vmatmul.mubr.f32.gmra.mrb[0].mxu0 %v5834
    %v5902 = vpop.f32.mrb[0].mxu0
    %v5903 = vadd.f32 0.0, %v5902
    %v5904 = vpop.f32.mrb[0].mxu0
    %5905 = vdwg.mxu0
    %5907 = vrot.lane.b32.xlu0 %v5573, 8
    %v5908 = vpop.permute.xlu0 %5907
    %5911 = vrot.lane.b32.xlu0 %v5738, 16
    %v5912 = vpop.permute.xlu0 %5911
    %5915 = vrot.lane.b32.xlu0 %v5903, 24
    %v5916 = vpop.permute.xlu0 %5915
    %v5918 = vsel %vm136, %v5408, %v5908
    %v5919 = vsel %vm806, %v5918, %v5912
    %v5920 = vsel %vm808, %v5919, %v5916
    %v5922 = vsel %vm136, %v5161, 0
    %v5925 = vsel %vm136, %v5245, 0
    %5927 = vmatprep.subr.mxu0 0.0
    %5928 = vmatpush1.xpose.msra.mxu0 %v5925
    %5929 = vmatprep.subr.mxu0 0.0
    %5930 = vmatpush1.xpose.msra.mxu0 0.0
    %5931 = vmatprep.subr.mxu0 0.0
    %5932 = vmatpush1.xpose.msra.mxu0 0.0
    %5933 = vmatprep.subr.mxu0 0.0
    %5934 = vmatpush1.xpose.msra.mxu0 0.0
    %5935 = vmatprep.subr.mxu0 0.0
    %5936 = vmatpush1.xpose.msra.mxu0 0.0
    %5937 = vmatprep.subr.mxu0 0.0
    %5938 = vmatpush1.xpose.msra.mxu0 0.0
    %5939 = vmatprep.subr.mxu0 0.0
    %5940 = vmatpush1.xpose.msra.mxu0 0.0
    %5941 = vmatprep.subr.mxu0 0.0
    %5942 = vmatpush1.xpose.msra.mxu0 0.0
    %5943 = vmatprep.subr.mxu0 0.0
    %5944 = vmatpush1.xpose.msra.mxu0 0.0
    %5945 = vmatprep.subr.mxu0 0.0
    %5946 = vmatpush1.xpose.msra.mxu0 0.0
    %5947 = vmatprep.subr.mxu0 0.0
    %5948 = vmatpush1.xpose.msra.mxu0 0.0
    %5949 = vmatprep.subr.mxu0 0.0
    %5950 = vmatpush1.xpose.msra.mxu0 0.0
    %5951 = vmatprep.subr.mxu0 0.0
    %5952 = vmatpush1.xpose.msra.mxu0 0.0
    %5953 = vmatprep.subr.mxu0 0.0
    %5954 = vmatpush1.xpose.msra.mxu0 0.0
    %5955 = vmatprep.subr.mxu0 0.0
    %5956 = vmatpush1.xpose.msra.mxu0 0.0
    %5957 = vmatprep.subr.mxu0 0.0
    %5958 = vmatpush1.xpose.msra.mxu0 0.0
    %5959 = vmatprep.subr.mxu0 0.0
    %5960 = vmatpush1.xpose.msra.mxu0 0.0
    %5961 = vmatprep.subr.mxu0 0.0
    %5962 = vmatpush1.xpose.msra.mxu0 0.0
    %5963 = vmatprep.subr.mxu0 0.0
    %5964 = vmatpush1.xpose.msra.mxu0 0.0
    %5965 = vmatprep.subr.mxu0 0.0
    %5966 = vmatpush1.xpose.msra.mxu0 0.0
    %5967 = vmatprep.subr.mxu0 0.0
    %5968 = vmatpush1.xpose.msra.mxu0 0.0
    %5969 = vmatprep.subr.mxu0 0.0
    %5970 = vmatpush1.xpose.msra.mxu0 0.0
    %5971 = vmatprep.subr.mxu0 0.0
    %5972 = vmatpush1.xpose.msra.mxu0 0.0
    %5973 = vmatprep.subr.mxu0 0.0
    %5974 = vmatpush1.xpose.msra.mxu0 0.0
    %5975 = vmatprep.subr.mxu0 0.0
    %5976 = vmatpush1.xpose.msra.mxu0 0.0
    %5977 = vmatprep.subr.mxu0 0.0
    %5978 = vmatpush1.xpose.msra.mxu0 0.0
    %5979 = vmatprep.subr.mxu0 0.0
    %5980 = vmatpush1.xpose.msra.mxu0 0.0
    %5981 = vmatprep.subr.mxu0 0.0
    %5982 = vmatpush1.xpose.msra.mxu0 0.0
    %5983 = vmatprep.subr.mxu0 0.0
    %5984 = vmatpush1.xpose.msra.mxu0 0.0
    %5985 = vmatprep.subr.mxu0 0.0
    %5986 = vmatpush1.xpose.msra.mxu0 0.0
    %5987 = vmatprep.subr.mxu0 0.0
    %5988 = vmatpush1.xpose.msra.mxu0 0.0
    %5989 = vmatprep.subr.mxu0 0.0
    %5990 = vmatpush1.xpose.msra.mxu0 0.0
    %5991 = vmatprep.mubr.f32.mxu0 0.0
    %5992 = vmatmul.mubr.f32.gmra.mrb[0].mxu0 %v5922
    %v5993 = vpop.f32.mrb[0].mxu0
    %v5994 = vadd.f32 0.0, %v5993
    %v5995 = vpop.f32.mrb[0].mxu0
    %5996 = vdwg.mxu0
    %v5997 = vsel %vm136, %v5994, -inf
    %5998 = vmax.xlane.f32.xlu0 %v5997
    %v5999 = vpop.xlane.xlu0 %5998
    %v6000 = vsub.f32 %v5994, %v5999
    %v6001 = vmul.f32 %v6000, 1.442695
    %v6002 = vpow.pop %v6001
    %v6003 = vsel %vm136, %v6002, 0.0
    %6004 = vadd.xlane.f32.xlu0 %v6003
    %v6005 = vpop.xlane.xlu0 %6004
    %v6006 = vrcp.pop %v6005
    %v6007 = vmul.f32 %v6002, %v6006
    %6008 = vrot.lane.b32.xlu0 %v5245, 96
    %v6009 = vpop.permute.xlu0 %6008
    %v6012 = vsel %vm136, %v6007, 0
    %6014 = vmatprep.subr.mxu0 0.0
    %6015 = vmatpush1.msra.mxu0 %v6009
    %6016 = vmatprep.subr.mxu0 0.0
    %6017 = vmatpush1.msra.mxu0 0.0
    %6018 = vmatprep.subr.mxu0 0.0
    %6019 = vmatpush1.msra.mxu0 0.0
    %6020 = vmatprep.subr.mxu0 0.0
    %6021 = vmatpush1.msra.mxu0 0.0
    %6022 = vmatprep.subr.mxu0 0.0
    %6023 = vmatpush1.msra.mxu0 0.0
    %6024 = vmatprep.subr.mxu0 0.0
    %6025 = vmatpush1.msra.mxu0 0.0
    %6026 = vmatprep.subr.mxu0 0.0
    %6027 = vmatpush1.msra.mxu0 0.0
    %6028 = vmatprep.subr.mxu0 0.0
    %6029 = vmatpush1.msra.mxu0 0.0
    %6030 = vmatprep.subr.mxu0 0.0
    %6031 = vmatpush1.msra.mxu0 0.0
    %6032 = vmatprep.subr.mxu0 0.0
    %6033 = vmatpush1.msra.mxu0 0.0
    %6034 = vmatprep.subr.mxu0 0.0
    %6035 = vmatpush1.msra.mxu0 0.0
    %6036 = vmatprep.subr.mxu0 0.0
    %6037 = vmatpush1.msra.mxu0 0.0
    %6038 = vmatprep.subr.mxu0 0.0
    %6039 = vmatpush1.msra.mxu0 0.0
    %6040 = vmatprep.subr.mxu0 0.0
    %6041 = vmatpush1.msra.mxu0 0.0
    %6042 = vmatprep.subr.mxu0 0.0
    %6043 = vmatpush1.msra.mxu0 0.0
    %6044 = vmatprep.subr.mxu0 0.0
    %6045 = vmatpush1.msra.mxu0 0.0
    %6046 = vmatprep.subr.mxu0 0.0
    %6047 = vmatpush1.msra.mxu0 0.0
    %6048 = vmatprep.subr.mxu0 0.0
    %6049 = vmatpush1.msra.mxu0 0.0
    %6050 = vmatprep.subr.mxu0 0.0
    %6051 = vmatpush1.msra.mxu0 0.0
    %6052 = vmatprep.subr.mxu0 0.0
    %6053 = vmatpush1.msra.mxu0 0.0
    %6054 = vmatprep.subr.mxu0 0.0
    %6055 = vmatpush1.msra.mxu0 0.0
    %6056 = vmatprep.subr.mxu0 0.0
    %6057 = vmatpush1.msra.mxu0 0.0
    %6058 = vmatprep.subr.mxu0 0.0
    %6059 = vmatpush1.msra.mxu0 0.0
    %6060 = vmatprep.subr.mxu0 0.0
    %6061 = vmatpush1.msra.mxu0 0.0
    %6062 = vmatprep.subr.mxu0 0.0
    %6063 = vmatpush1.msra.mxu0 0.0
    %6064 = vmatprep.subr.mxu0 0.0
    %6065 = vmatpush1.msra.mxu0 0.0
    %6066 = vmatprep.subr.mxu0 0.0
    %6067 = vmatpush1.msra.mxu0 0.0
    %6068 = vmatprep.subr.mxu0 0.0
    %6069 = vmatpush1.msra.mxu0 0.0
    %6070 = vmatprep.subr.mxu0 0.0
    %6071 = vmatpush1.msra.mxu0 0.0
    %6072 = vmatprep.subr.mxu0 0.0
    %6073 = vmatpush1.msra.mxu0 0.0
    %6074 = vmatprep.subr.mxu0 0.0
    %6075 = vmatpush1.msra.mxu0 0.0
    %6076 = vmatprep.subr.mxu0 0.0
    %6077 = vmatpush1.msra.mxu0 0.0
    %6078 = vmatprep.mubr.f32.mxu0 0.0
    %6079 = vmatmul.mubr.f32.gmra.mrb[0].mxu0 %v6012
    %v6080 = vpop.f32.mrb[0].mxu0
    %v6081 = vadd.f32 0.0, %v6080
    %v6082 = vpop.f32.mrb[0].mxu0
    %6083 = vdwg.mxu0
    %6084 = vrot.lane.b32.xlu0 %v5161, 120
    %v6085 = vpop.permute.xlu0 %6084
    %6086 = vrot.lane.b32.xlu0 %v5245, 120
    %v6087 = vpop.permute.xlu0 %6086
    %v6088 = vsel %vm136, %v6085, 0
    %v6090 = vsel %vm136, %v6087, 0
    %6092 = vmatprep.subr.mxu0 0.0
    %6093 = vmatpush1.xpose.msra.mxu0 %v6090
    %6094 = vmatprep.subr.mxu0 0.0
    %6095 = vmatpush1.xpose.msra.mxu0 0.0
    %6096 = vmatprep.subr.mxu0 0.0
    %6097 = vmatpush1.xpose.msra.mxu0 0.0
    %6098 = vmatprep.subr.mxu0 0.0
    %6099 = vmatpush1.xpose.msra.mxu0 0.0
    %6100 = vmatprep.subr.mxu0 0.0
    %6101 = vmatpush1.xpose.msra.mxu0 0.0
    %6102 = vmatprep.subr.mxu0 0.0
    %6103 = vmatpush1.xpose.msra.mxu0 0.0
    %6104 = vmatprep.subr.mxu0 0.0
    %6105 = vmatpush1.xpose.msra.mxu0 0.0
    %6106 = vmatprep.subr.mxu0 0.0
    %6107 = vmatpush1.xpose.msra.mxu0 0.0
    %6108 = vmatprep.subr.mxu0 0.0
    %6109 = vmatpush1.xpose.msra.mxu0 0.0
    %6110 = vmatprep.subr.mxu0 0.0
    %6111 = vmatpush1.xpose.msra.mxu0 0.0
    %6112 = vmatprep.subr.mxu0 0.0
    %6113 = vmatpush1.xpose.msra.mxu0 0.0
    %6114 = vmatprep.subr.mxu0 0.0
    %6115 = vmatpush1.xpose.msra.mxu0 0.0
    %6116 = vmatprep.subr.mxu0 0.0
    %6117 = vmatpush1.xpose.msra.mxu0 0.0
    %6118 = vmatprep.subr.mxu0 0.0
    %6119 = vmatpush1.xpose.msra.mxu0 0.0
    %6120 = vmatprep.subr.mxu0 0.0
    %6121 = vmatpush1.xpose.msra.mxu0 0.0
    %6122 = vmatprep.subr.mxu0 0.0
    %6123 = vmatpush1.xpose.msra.mxu0 0.0
    %6124 = vmatprep.subr.mxu0 0.0
    %6125 = vmatpush1.xpose.msra.mxu0 0.0
    %6126 = vmatprep.subr.mxu0 0.0
    %6127 = vmatpush1.xpose.msra.mxu0 0.0
    %6128 = vmatprep.subr.mxu0 0.0
    %6129 = vmatpush1.xpose.msra.mxu0 0.0
    %6130 = vmatprep.subr.mxu0 0.0
    %6131 = vmatpush1.xpose.msra.mxu0 0.0
    %6132 = vmatprep.subr.mxu0 0.0
    %6133 = vmatpush1.xpose.msra.mxu0 0.0
    %6134 = vmatprep.subr.mxu0 0.0
    %6135 = vmatpush1.xpose.msra.mxu0 0.0
    %6136 = vmatprep.subr.mxu0 0.0
    %6137 = vmatpush1.xpose.msra.mxu0 0.0
    %6138 = vmatprep.subr.mxu0 0.0
    %6139 = vmatpush1.xpose.msra.mxu0 0.0
    %6140 = vmatprep.subr.mxu0 0.0
    %6141 = vmatpush1.xpose.msra.mxu0 0.0
    %6142 = vmatprep.subr.mxu0 0.0
    %6143 = vmatpush1.xpose.msra.mxu0 0.0
    %6144 = vmatprep.subr.mxu0 0.0
    %6145 = vmatpush1.xpose.msra.mxu0 0.0
    %6146 = vmatprep.subr.mxu0 0.0
    %6147 = vmatpush1.xpose.msra.mxu0 0.0
    %6148 = vmatprep.subr.mxu0 0.0
    %6149 = vmatpush1.xpose.msra.mxu0 0.0
    %6150 = vmatprep.subr.mxu0 0.0
    %6151 = vmatpush1.xpose.msra.mxu0 0.0
    %6152 = vmatprep.subr.mxu0 0.0
    %6153 = vmatpush1.xpose.msra.mxu0 0.0
    %6154 = vmatprep.subr.mxu0 0.0
    %6155 = vmatpush1.xpose.msra.mxu0 0.0
    %6156 = vmatprep.mubr.f32.mxu0 0.0
    %6157 = vmatmul.mubr.f32.gmra.mrb[0].mxu0 %v6088
    %v6158 = vpop.f32.mrb[0].mxu0
    %v6159 = vadd.f32 0.0, %v6158
    %v6160 = vpop.f32.mrb[0].mxu0
    %6161 = vdwg.mxu0
    %v6162 = vsel %vm136, %v6159, -inf
    %6163 = vmax.xlane.f32.xlu0 %v6162
    %v6164 = vpop.xlane.xlu0 %6163
    %v6165 = vsub.f32 %v6159, %v6164
    %v6166 = vmul.f32 %v6165, 1.442695
    %v6167 = vpow.pop %v6166
    %v6168 = vsel %vm136, %v6167, 0.0
    %6169 = vadd.xlane.f32.xlu0 %v6168
    %v6170 = vpop.xlane.xlu0 %6169
    %v6171 = vrcp.pop %v6170
    %v6172 = vmul.f32 %v6167, %v6171
    %6173 = vrot.lane.b32.xlu0 %v5245, 88
    %v6174 = vpop.permute.xlu0 %6173
    %v6177 = vsel %vm136, %v6172, 0
    %6179 = vmatprep.subr.mxu0 0.0
    %6180 = vmatpush1.msra.mxu0 %v6174
    %6181 = vmatprep.subr.mxu0 0.0
    %6182 = vmatpush1.msra.mxu0 0.0
    %6183 = vmatprep.subr.mxu0 0.0
    %6184 = vmatpush1.msra.mxu0 0.0
    %6185 = vmatprep.subr.mxu0 0.0
    %6186 = vmatpush1.msra.mxu0 0.0
    %6187 = vmatprep.subr.mxu0 0.0
    %6188 = vmatpush1.msra.mxu0 0.0
    %6189 = vmatprep.subr.mxu0 0.0
    %6190 = vmatpush1.msra.mxu0 0.0
    %6191 = vmatprep.subr.mxu0 0.0
    %6192 = vmatpush1.msra.mxu0 0.0
    %6193 = vmatprep.subr.mxu0 0.0
    %6194 = vmatpush1.msra.mxu0 0.0
    %6195 = vmatprep.subr.mxu0 0.0
    %6196 = vmatpush1.msra.mxu0 0.0
    %6197 = vmatprep.subr.mxu0 0.0
    %6198 = vmatpush1.msra.mxu0 0.0
    %6199 = vmatprep.subr.mxu0 0.0
    %6200 = vmatpush1.msra.mxu0 0.0
    %6201 = vmatprep.subr.mxu0 0.0
    %6202 = vmatpush1.msra.mxu0 0.0
    %6203 = vmatprep.subr.mxu0 0.0
    %6204 = vmatpush1.msra.mxu0 0.0
    %6205 = vmatprep.subr.mxu0 0.0
    %6206 = vmatpush1.msra.mxu0 0.0
    %6207 = vmatprep.subr.mxu0 0.0
    %6208 = vmatpush1.msra.mxu0 0.0
    %6209 = vmatprep.subr.mxu0 0.0
    %6210 = vmatpush1.msra.mxu0 0.0
    %6211 = vmatprep.subr.mxu0 0.0
    %6212 = vmatpush1.msra.mxu0 0.0
    %6213 = vmatprep.subr.mxu0 0.0
    %6214 = vmatpush1.msra.mxu0 0.0
    %6215 = vmatprep.subr.mxu0 0.0
    %6216 = vmatpush1.msra.mxu0 0.0
    %6217 = vmatprep.subr.mxu0 0.0
    %6218 = vmatpush1.msra.mxu0 0.0
    %6219 = vmatprep.subr.mxu0 0.0
    %6220 = vmatpush1.msra.mxu0 0.0
    %6221 = vmatprep.subr.mxu0 0.0
    %6222 = vmatpush1.msra.mxu0 0.0
    %6223 = vmatprep.subr.mxu0 0.0
    %6224 = vmatpush1.msra.mxu0 0.0
    %6225 = vmatprep.subr.mxu0 0.0
    %6226 = vmatpush1.msra.mxu0 0.0
    %6227 = vmatprep.subr.mxu0 0.0
    %6228 = vmatpush1.msra.mxu0 0.0
    %6229 = vmatprep.subr.mxu0 0.0
    %6230 = vmatpush1.msra.mxu0 0.0
    %6231 = vmatprep.subr.mxu0 0.0
    %6232 = vmatpush1.msra.mxu0 0.0
    %6233 = vmatprep.subr.mxu0 0.0
    %6234 = vmatpush1.msra.mxu0 0.0
    %6235 = vmatprep.subr.mxu0 0.0
    %6236 = vmatpush1.msra.mxu0 0.0
    %6237 = vmatprep.subr.mxu0 0.0
    %6238 = vmatpush1.msra.mxu0 0.0
    %6239 = vmatprep.subr.mxu0 0.0
    %6240 = vmatpush1.msra.mxu0 0.0
    %6241 = vmatprep.subr.mxu0 0.0
    %6242 = vmatpush1.msra.mxu0 0.0
    %6243 = vmatprep.mubr.f32.mxu0 0.0
    %6244 = vmatmul.mubr.f32.gmra.mrb[0].mxu0 %v6177
    %v6245 = vpop.f32.mrb[0].mxu0
    %v6246 = vadd.f32 0.0, %v6245
    %v6247 = vpop.f32.mrb[0].mxu0
    %6248 = vdwg.mxu0
    %6249 = vrot.lane.b32.xlu0 %v5161, 112
    %v6250 = vpop.permute.xlu0 %6249
    %6251 = vrot.lane.b32.xlu0 %v5245, 112
    %v6252 = vpop.permute.xlu0 %6251
    %v6253 = vsel %vm136, %v6250, 0
    %v6255 = vsel %vm136, %v6252, 0
    %6257 = vmatprep.subr.mxu0 0.0
    %6258 = vmatpush1.xpose.msra.mxu0 %v6255
    %6259 = vmatprep.subr.mxu0 0.0
    %6260 = vmatpush1.xpose.msra.mxu0 0.0
    %6261 = vmatprep.subr.mxu0 0.0
    %6262 = vmatpush1.xpose.msra.mxu0 0.0
    %6263 = vmatprep.subr.mxu0 0.0
    %6264 = vmatpush1.xpose.msra.mxu0 0.0
    %6265 = vmatprep.subr.mxu0 0.0
    %6266 = vmatpush1.xpose.msra.mxu0 0.0
    %6267 = vmatprep.subr.mxu0 0.0
    %6268 = vmatpush1.xpose.msra.mxu0 0.0
    %6269 = vmatprep.subr.mxu0 0.0
    %6270 = vmatpush1.xpose.msra.mxu0 0.0
    %6271 = vmatprep.subr.mxu0 0.0
    %6272 = vmatpush1.xpose.msra.mxu0 0.0
    %6273 = vmatprep.subr.mxu0 0.0
    %6274 = vmatpush1.xpose.msra.mxu0 0.0
    %6275 = vmatprep.subr.mxu0 0.0
    %6276 = vmatpush1.xpose.msra.mxu0 0.0
    %6277 = vmatprep.subr.mxu0 0.0
    %6278 = vmatpush1.xpose.msra.mxu0 0.0
    %6279 = vmatprep.subr.mxu0 0.0
    %6280 = vmatpush1.xpose.msra.mxu0 0.0
    %6281 = vmatprep.subr.mxu0 0.0
    %6282 = vmatpush1.xpose.msra.mxu0 0.0
    %6283 = vmatprep.subr.mxu0 0.0
    %6284 = vmatpush1.xpose.msra.mxu0 0.0
    %6285 = vmatprep.subr.mxu0 0.0
    %6286 = vmatpush1.xpose.msra.mxu0 0.0
    %6287 = vmatprep.subr.mxu0 0.0
    %6288 = vmatpush1.xpose.msra.mxu0 0.0
    %6289 = vmatprep.subr.mxu0 0.0
    %6290 = vmatpush1.xpose.msra.mxu0 0.0
    %6291 = vmatprep.subr.mxu0 0.0
    %6292 = vmatpush1.xpose.msra.mxu0 0.0
    %6293 = vmatprep.subr.mxu0 0.0
    %6294 = vmatpush1.xpose.msra.mxu0 0.0
    %6295 = vmatprep.subr.mxu0 0.0
    %6296 = vmatpush1.xpose.msra.mxu0 0.0
    %6297 = vmatprep.subr.mxu0 0.0
    %6298 = vmatpush1.xpose.msra.mxu0 0.0
    %6299 = vmatprep.subr.mxu0 0.0
    %6300 = vmatpush1.xpose.msra.mxu0 0.0
    %6301 = vmatprep.subr.mxu0 0.0
    %6302 = vmatpush1.xpose.msra.mxu0 0.0
    %6303 = vmatprep.subr.mxu0 0.0
    %6304 = vmatpush1.xpose.msra.mxu0 0.0
    %6305 = vmatprep.subr.mxu0 0.0
    %6306 = vmatpush1.xpose.msra.mxu0 0.0
    %6307 = vmatprep.subr.mxu0 0.0
    %6308 = vmatpush1.xpose.msra.mxu0 0.0
    %6309 = vmatprep.subr.mxu0 0.0
    %6310 = vmatpush1.xpose.msra.mxu0 0.0
    %6311 = vmatprep.subr.mxu0 0.0
    %6312 = vmatpush1.xpose.msra.mxu0 0.0
    %6313 = vmatprep.subr.mxu0 0.0
    %6314 = vmatpush1.xpose.msra.mxu0 0.0
    %6315 = vmatprep.subr.mxu0 0.0
    %6316 = vmatpush1.xpose.msra.mxu0 0.0
    %6317 = vmatprep.subr.mxu0 0.0
    %6318 = vmatpush1.xpose.msra.mxu0 0.0
    %6319 = vmatprep.subr.mxu0 0.0
    %6320 = vmatpush1.xpose.msra.mxu0 0.0
    %6321 = vmatprep.mubr.f32.mxu0 0.0
    %6322 = vmatmul.mubr.f32.gmra.mrb[0].mxu0 %v6253
    %v6323 = vpop.f32.mrb[0].mxu0
    %v6324 = vadd.f32 0.0, %v6323
    %v6325 = vpop.f32.mrb[0].mxu0
    %6326 = vdwg.mxu0
    %v6327 = vsel %vm136, %v6324, -inf
    %6328 = vmax.xlane.f32.xlu0 %v6327
    %v6329 = vpop.xlane.xlu0 %6328
    %v6330 = vsub.f32 %v6324, %v6329
    %v6331 = vmul.f32 %v6330, 1.442695
    %v6332 = vpow.pop %v6331
    %v6333 = vsel %vm136, %v6332, 0.0
    %6334 = vadd.xlane.f32.xlu0 %v6333
    %v6335 = vpop.xlane.xlu0 %6334
    %v6336 = vrcp.pop %v6335
    %v6337 = vmul.f32 %v6332, %v6336
    %6338 = vrot.lane.b32.xlu0 %v5245, 80
    %v6339 = vpop.permute.xlu0 %6338
    %v6342 = vsel %vm136, %v6337, 0
    %6344 = vmatprep.subr.mxu0 0.0
    %6345 = vmatpush1.msra.mxu0 %v6339
    %6346 = vmatprep.subr.mxu0 0.0
    %6347 = vmatpush1.msra.mxu0 0.0
    %6348 = vmatprep.subr.mxu0 0.0
    %6349 = vmatpush1.msra.mxu0 0.0
    %6350 = vmatprep.subr.mxu0 0.0
    %6351 = vmatpush1.msra.mxu0 0.0
    %6352 = vmatprep.subr.mxu0 0.0
    %6353 = vmatpush1.msra.mxu0 0.0
    %6354 = vmatprep.subr.mxu0 0.0
    %6355 = vmatpush1.msra.mxu0 0.0
    %6356 = vmatprep.subr.mxu0 0.0
    %6357 = vmatpush1.msra.mxu0 0.0
    %6358 = vmatprep.subr.mxu0 0.0
    %6359 = vmatpush1.msra.mxu0 0.0
    %6360 = vmatprep.subr.mxu0 0.0
    %6361 = vmatpush1.msra.mxu0 0.0
    %6362 = vmatprep.subr.mxu0 0.0
    %6363 = vmatpush1.msra.mxu0 0.0
    %6364 = vmatprep.subr.mxu0 0.0
    %6365 = vmatpush1.msra.mxu0 0.0
    %6366 = vmatprep.subr.mxu0 0.0
    %6367 = vmatpush1.msra.mxu0 0.0
    %6368 = vmatprep.subr.mxu0 0.0
    %6369 = vmatpush1.msra.mxu0 0.0
    %6370 = vmatprep.subr.mxu0 0.0
    %6371 = vmatpush1.msra.mxu0 0.0
    %6372 = vmatprep.subr.mxu0 0.0
    %6373 = vmatpush1.msra.mxu0 0.0
    %6374 = vmatprep.subr.mxu0 0.0
    %6375 = vmatpush1.msra.mxu0 0.0
    %6376 = vmatprep.subr.mxu0 0.0
    %6377 = vmatpush1.msra.mxu0 0.0
    %6378 = vmatprep.subr.mxu0 0.0
    %6379 = vmatpush1.msra.mxu0 0.0
    %6380 = vmatprep.subr.mxu0 0.0
    %6381 = vmatpush1.msra.mxu0 0.0
    %6382 = vmatprep.subr.mxu0 0.0
    %6383 = vmatpush1.msra.mxu0 0.0
    %6384 = vmatprep.subr.mxu0 0.0
    %6385 = vmatpush1.msra.mxu0 0.0
    %6386 = vmatprep.subr.mxu0 0.0
    %6387 = vmatpush1.msra.mxu0 0.0
    %6388 = vmatprep.subr.mxu0 0.0
    %6389 = vmatpush1.msra.mxu0 0.0
    %6390 = vmatprep.subr.mxu0 0.0
    %6391 = vmatpush1.msra.mxu0 0.0
    %6392 = vmatprep.subr.mxu0 0.0
    %6393 = vmatpush1.msra.mxu0 0.0
    %6394 = vmatprep.subr.mxu0 0.0
    %6395 = vmatpush1.msra.mxu0 0.0
    %6396 = vmatprep.subr.mxu0 0.0
    %6397 = vmatpush1.msra.mxu0 0.0
    %6398 = vmatprep.subr.mxu0 0.0
    %6399 = vmatpush1.msra.mxu0 0.0
    %6400 = vmatprep.subr.mxu0 0.0
    %6401 = vmatpush1.msra.mxu0 0.0
    %6402 = vmatprep.subr.mxu0 0.0
    %6403 = vmatpush1.msra.mxu0 0.0
    %6404 = vmatprep.subr.mxu0 0.0
    %6405 = vmatpush1.msra.mxu0 0.0
    %6406 = vmatprep.subr.mxu0 0.0
    %6407 = vmatpush1.msra.mxu0 0.0
    %6408 = vmatprep.mubr.f32.mxu0 0.0
    %6409 = vmatmul.mubr.f32.gmra.mrb[0].mxu0 %v6342
    %v6410 = vpop.f32.mrb[0].mxu0
    %v6411 = vadd.f32 0.0, %v6410
    %v6412 = vpop.f32.mrb[0].mxu0
    %6413 = vdwg.mxu0
    %6414 = vrot.lane.b32.xlu0 %v5161, 104
    %v6415 = vpop.permute.xlu0 %6414
    %6416 = vrot.lane.b32.xlu0 %v5245, 104
    %v6417 = vpop.permute.xlu0 %6416
    %v6418 = vsel %vm136, %v6415, 0
    %v6420 = vsel %vm136, %v6417, 0
    %6422 = vmatprep.subr.mxu0 0.0
    %6423 = vmatpush1.xpose.msra.mxu0 %v6420
    %6424 = vmatprep.subr.mxu0 0.0
    %6425 = vmatpush1.xpose.msra.mxu0 0.0
    %6426 = vmatprep.subr.mxu0 0.0
    %6427 = vmatpush1.xpose.msra.mxu0 0.0
    %6428 = vmatprep.subr.mxu0 0.0
    %6429 = vmatpush1.xpose.msra.mxu0 0.0
    %6430 = vmatprep.subr.mxu0 0.0
    %6431 = vmatpush1.xpose.msra.mxu0 0.0
    %6432 = vmatprep.subr.mxu0 0.0
    %6433 = vmatpush1.xpose.msra.mxu0 0.0
    %6434 = vmatprep.subr.mxu0 0.0
    %6435 = vmatpush1.xpose.msra.mxu0 0.0
    %6436 = vmatprep.subr.mxu0 0.0
    %6437 = vmatpush1.xpose.msra.mxu0 0.0
    %6438 = vmatprep.subr.mxu0 0.0
    %6439 = vmatpush1.xpose.msra.mxu0 0.0
    %6440 = vmatprep.subr.mxu0 0.0
    %6441 = vmatpush1.xpose.msra.mxu0 0.0
    %6442 = vmatprep.subr.mxu0 0.0
    %6443 = vmatpush1.xpose.msra.mxu0 0.0
    %6444 = vmatprep.subr.mxu0 0.0
    %6445 = vmatpush1.xpose.msra.mxu0 0.0
    %6446 = vmatprep.subr.mxu0 0.0
    %6447 = vmatpush1.xpose.msra.mxu0 0.0
    %6448 = vmatprep.subr.mxu0 0.0
    %6449 = vmatpush1.xpose.msra.mxu0 0.0
    %6450 = vmatprep.subr.mxu0 0.0
    %6451 = vmatpush1.xpose.msra.mxu0 0.0
    %6452 = vmatprep.subr.mxu0 0.0
    %6453 = vmatpush1.xpose.msra.mxu0 0.0
    %6454 = vmatprep.subr.mxu0 0.0
    %6455 = vmatpush1.xpose.msra.mxu0 0.0
    %6456 = vmatprep.subr.mxu0 0.0
    %6457 = vmatpush1.xpose.msra.mxu0 0.0
    %6458 = vmatprep.subr.mxu0 0.0
    %6459 = vmatpush1.xpose.msra.mxu0 0.0
    %6460 = vmatprep.subr.mxu0 0.0
    %6461 = vmatpush1.xpose.msra.mxu0 0.0
    %6462 = vmatprep.subr.mxu0 0.0
    %6463 = vmatpush1.xpose.msra.mxu0 0.0
    %6464 = vmatprep.subr.mxu0 0.0
    %6465 = vmatpush1.xpose.msra.mxu0 0.0
    %6466 = vmatprep.subr.mxu0 0.0
    %6467 = vmatpush1.xpose.msra.mxu0 0.0
    %6468 = vmatprep.subr.mxu0 0.0
    %6469 = vmatpush1.xpose.msra.mxu0 0.0
    %6470 = vmatprep.subr.mxu0 0.0
    %6471 = vmatpush1.xpose.msra.mxu0 0.0
    %6472 = vmatprep.subr.mxu0 0.0
    %6473 = vmatpush1.xpose.msra.mxu0 0.0
    %6474 = vmatprep.subr.mxu0 0.0
    %6475 = vmatpush1.xpose.msra.mxu0 0.0
    %6476 = vmatprep.subr.mxu0 0.0
    %6477 = vmatpush1.xpose.msra.mxu0 0.0
    %6478 = vmatprep.subr.mxu0 0.0
    %6479 = vmatpush1.xpose.msra.mxu0 0.0
    %6480 = vmatprep.subr.mxu0 0.0
    %6481 = vmatpush1.xpose.msra.mxu0 0.0
    %6482 = vmatprep.subr.mxu0 0.0
    %6483 = vmatpush1.xpose.msra.mxu0 0.0
    %6484 = vmatprep.subr.mxu0 0.0
    %6485 = vmatpush1.xpose.msra.mxu0 0.0
    %6486 = vmatprep.mubr.f32.mxu0 0.0
    %6487 = vmatmul.mubr.f32.gmra.mrb[0].mxu0 %v6418
    %v6488 = vpop.f32.mrb[0].mxu0
    %v6489 = vadd.f32 0.0, %v6488
    %v6490 = vpop.f32.mrb[0].mxu0
    %6491 = vdwg.mxu0
    %v6492 = vsel %vm136, %v6489, -inf
    %6493 = vmax.xlane.f32.xlu0 %v6492
    %v6494 = vpop.xlane.xlu0 %6493
    %v6495 = vsub.f32 %v6489, %v6494
    %v6496 = vmul.f32 %v6495, 1.442695
    %v6497 = vpow.pop %v6496
    %v6498 = vsel %vm136, %v6497, 0.0
    %6499 = vadd.xlane.f32.xlu0 %v6498
    %v6500 = vpop.xlane.xlu0 %6499
    %v6501 = vrcp.pop %v6500
    %v6502 = vmul.f32 %v6497, %v6501
    %6503 = vrot.lane.b32.xlu0 %v5245, 72
    %v6504 = vpop.permute.xlu0 %6503
    %v6507 = vsel %vm136, %v6502, 0
    %6509 = vmatprep.subr.mxu0 0.0
    %6510 = vmatpush1.msra.mxu0 %v6504
    %6511 = vmatprep.subr.mxu0 0.0
    %6512 = vmatpush1.msra.mxu0 0.0
    %6513 = vmatprep.subr.mxu0 0.0
    %6514 = vmatpush1.msra.mxu0 0.0
    %6515 = vmatprep.subr.mxu0 0.0
    %6516 = vmatpush1.msra.mxu0 0.0
    %6517 = vmatprep.subr.mxu0 0.0
    %6518 = vmatpush1.msra.mxu0 0.0
    %6519 = vmatprep.subr.mxu0 0.0
    %6520 = vmatpush1.msra.mxu0 0.0
    %6521 = vmatprep.subr.mxu0 0.0
    %6522 = vmatpush1.msra.mxu0 0.0
    %6523 = vmatprep.subr.mxu0 0.0
    %6524 = vmatpush1.msra.mxu0 0.0
    %6525 = vmatprep.subr.mxu0 0.0
    %6526 = vmatpush1.msra.mxu0 0.0
    %6527 = vmatprep.subr.mxu0 0.0
    %6528 = vmatpush1.msra.mxu0 0.0
    %6529 = vmatprep.subr.mxu0 0.0
    %6530 = vmatpush1.msra.mxu0 0.0
    %6531 = vmatprep.subr.mxu0 0.0
    %6532 = vmatpush1.msra.mxu0 0.0
    %6533 = vmatprep.subr.mxu0 0.0
    %6534 = vmatpush1.msra.mxu0 0.0
    %6535 = vmatprep.subr.mxu0 0.0
    %6536 = vmatpush1.msra.mxu0 0.0
    %6537 = vmatprep.subr.mxu0 0.0
    %6538 = vmatpush1.msra.mxu0 0.0
    %6539 = vmatprep.subr.mxu0 0.0
    %6540 = vmatpush1.msra.mxu0 0.0
    %6541 = vmatprep.subr.mxu0 0.0
    %6542 = vmatpush1.msra.mxu0 0.0
    %6543 = vmatprep.subr.mxu0 0.0
    %6544 = vmatpush1.msra.mxu0 0.0
    %6545 = vmatprep.subr.mxu0 0.0
    %6546 = vmatpush1.msra.mxu0 0.0
    %6547 = vmatprep.subr.mxu0 0.0
    %6548 = vmatpush1.msra.mxu0 0.0
    %6549 = vmatprep.subr.mxu0 0.0
    %6550 = vmatpush1.msra.mxu0 0.0
    %6551 = vmatprep.subr.mxu0 0.0
    %6552 = vmatpush1.msra.mxu0 0.0
    %6553 = vmatprep.subr.mxu0 0.0
    %6554 = vmatpush1.msra.mxu0 0.0
    %6555 = vmatprep.subr.mxu0 0.0
    %6556 = vmatpush1.msra.mxu0 0.0
    %6557 = vmatprep.subr.mxu0 0.0
    %6558 = vmatpush1.msra.mxu0 0.0
    %6559 = vmatprep.subr.mxu0 0.0
    %6560 = vmatpush1.msra.mxu0 0.0
    %6561 = vmatprep.subr.mxu0 0.0
    %6562 = vmatpush1.msra.mxu0 0.0
    %6563 = vmatprep.subr.mxu0 0.0
    %6564 = vmatpush1.msra.mxu0 0.0
    %6565 = vmatprep.subr.mxu0 0.0
    %6566 = vmatpush1.msra.mxu0 0.0
    %6567 = vmatprep.subr.mxu0 0.0
    %6568 = vmatpush1.msra.mxu0 0.0
    %6569 = vmatprep.subr.mxu0 0.0
    %6570 = vmatpush1.msra.mxu0 0.0
    %6571 = vmatprep.subr.mxu0 0.0
    %6572 = vmatpush1.msra.mxu0 0.0
    %6573 = vmatprep.mubr.f32.mxu0 0.0
    %6574 = vmatmul.mubr.f32.gmra.mrb[0].mxu0 %v6507
    %v6575 = vpop.f32.mrb[0].mxu0
    %v6576 = vadd.f32 0.0, %v6575
    %v6577 = vpop.f32.mrb[0].mxu0
    %6578 = vdwg.mxu0
    %6580 = vrot.lane.b32.xlu0 %v6246, 8
    %v6581 = vpop.permute.xlu0 %6580
    %6584 = vrot.lane.b32.xlu0 %v6411, 16
    %v6585 = vpop.permute.xlu0 %6584
    %6588 = vrot.lane.b32.xlu0 %v6576, 24
    %v6589 = vpop.permute.xlu0 %6588
    %v6591 = vsel %vm136, %v6081, %v6581
    %v6592 = vsel %vm806, %v6591, %v6585
    %v6593 = vsel %vm808, %v6592, %v6589
    %v6594 = vld [vmem:[#allocation2 + $0x180] sm:$0xff]
    %v6595 = vld [vmem:[#allocation2 + $0x188] sm:$0xff]
    %v6596 = vld [vmem:[#allocation2 + $0x190] sm:$0xff]
    %v6597 = vld [vmem:[#allocation2 + $0x198] sm:$0xff]
    %v6598 = vld [vmem:[%s3 + $0x11] sm:$0x1]
    %v6599 = vlaneseq
    %v6600 = vshrl.u32 %v6599, 7
    %v6601 = vsub.s32 0, %v6600
    %v6602 = vrot.slane %v6598, %v6601
    %v6604 = vsel %vm51, %v5920, 0
    %v6607 = vsel %vm51, %v6593, 0
    %6609 = vmatprep.subr.mxu0 0.0
    %6610 = vmatpush1.msra.mxu0 %v6594
    %6611 = vmatprep.subr.mxu0 0.0
    %6612 = vmatpush1.msra.mxu0 %v6595
    %6613 = vmatprep.subr.mxu0 0.0
    %6614 = vmatpush1.msra.mxu0 %v6596
    %6615 = vmatprep.subr.mxu0 0.0
    %6616 = vmatpush1.msra.mxu0 %v6597
    %6617 = vmatprep.subr.mxu0 0.0
    %6618 = vmatpush1.msra.mxu0 0.0
    %6619 = vmatprep.subr.mxu0 0.0
    %6620 = vmatpush1.msra.mxu0 0.0
    %6621 = vmatprep.subr.mxu0 0.0
    %6622 = vmatpush1.msra.mxu0 0.0
    %6623 = vmatprep.subr.mxu0 0.0
    %6624 = vmatpush1.msra.mxu0 0.0
    %6625 = vmatprep.subr.mxu0 0.0
    %6626 = vmatpush1.msra.mxu0 0.0
    %6627 = vmatprep.subr.mxu0 0.0
    %6628 = vmatpush1.msra.mxu0 0.0
    %6629 = vmatprep.subr.mxu0 0.0
    %6630 = vmatpush1.msra.mxu0 0.0
    %6631 = vmatprep.subr.mxu0 0.0
    %6632 = vmatpush1.msra.mxu0 0.0
    %6633 = vmatprep.subr.mxu0 0.0
    %6634 = vmatpush1.msra.mxu0 0.0
    %6635 = vmatprep.subr.mxu0 0.0
    %6636 = vmatpush1.msra.mxu0 0.0
    %6637 = vmatprep.subr.mxu0 0.0
    %6638 = vmatpush1.msra.mxu0 0.0
    %6639 = vmatprep.subr.mxu0 0.0
    %6640 = vmatpush1.msra.mxu0 0.0
    %6641 = vmatprep.subr.mxu0 0.0
    %6642 = vmatpush1.msra.mxu0 0.0
    %6643 = vmatprep.subr.mxu0 0.0
    %6644 = vmatpush1.msra.mxu0 0.0
    %6645 = vmatprep.subr.mxu0 0.0
    %6646 = vmatpush1.msra.mxu0 0.0
    %6647 = vmatprep.subr.mxu0 0.0
    %6648 = vmatpush1.msra.mxu0 0.0
    %6649 = vmatprep.subr.mxu0 0.0
    %6650 = vmatpush1.msra.mxu0 0.0
    %6651 = vmatprep.subr.mxu0 0.0
    %6652 = vmatpush1.msra.mxu0 0.0
    %6653 = vmatprep.subr.mxu0 0.0
    %6654 = vmatpush1.msra.mxu0 0.0
    %6655 = vmatprep.subr.mxu0 0.0
    %6656 = vmatpush1.msra.mxu0 0.0
    %6657 = vmatprep.subr.mxu0 0.0
    %6658 = vmatpush1.msra.mxu0 0.0
    %6659 = vmatprep.subr.mxu0 0.0
    %6660 = vmatpush1.msra.mxu0 0.0
    %6661 = vmatprep.subr.mxu0 0.0
    %6662 = vmatpush1.msra.mxu0 0.0
    %6663 = vmatprep.subr.mxu0 0.0
    %6664 = vmatpush1.msra.mxu0 0.0
    %6665 = vmatprep.subr.mxu0 0.0
    %6666 = vmatpush1.msra.mxu0 0.0
    %6667 = vmatprep.subr.mxu0 0.0
    %6668 = vmatpush1.msra.mxu0 0.0
    %6669 = vmatprep.subr.mxu0 0.0
    %6670 = vmatpush1.msra.mxu0 0.0
    %6671 = vmatprep.subr.mxu0 0.0
    %6672 = vmatpush1.msra.mxu0 0.0
    %6673 = vmatprep.mubr.f32.mxu0 0.0
    %6674 = vmatmul.mubr.f32.gmra.mrb[0].mxu0 %v6604
    %v6675 = vpop.f32.mrb[0].mxu0
    %v6676 = vadd.f32 %v6602, %v6675
    %v6677 = vpop.f32.mrb[0].mxu0
    %6678 = vmatprep.mubr.f32.mxu0 0.0
    %6679 = vmatmul.mubr.f32.gmra.mrb[0].mxu0 %v6607
    %v6680 = vpop.f32.mrb[0].mxu0
    %v6681 = vadd.f32 %v6602, %v6680
    %v6682 = vpop.f32.mrb[0].mxu0
    %6683 = vdwg.mxu0
    %v6684 = vadd.f32 %v5072, %v6676
    %v6685 = vadd.f32 %v5073, %v6681
    %v6686 = vld [vmem:[%s3 + $0x14] sm:$0x1]
    %v6687 = vld [vmem:[%s3 + $0x15] sm:$0x1]
    %v6688 = vsel %vm51, %v6684, 0.0
    %6689 = vadd.xlane.f32.xlu0 %v6688
    %v6690 = vpop.xlane.xlu0 %6689
    %v6691 = vsel %vm51, %v6685, 0.0
    %6692 = vadd.xlane.f32.xlu0 %v6691
    %v6693 = vpop.xlane.xlu0 %6692
    %v6694 = vmul.f32 %v6690, %v1584
    %v6695 = vmul.f32 %v6693, %v1584
    %v6696 = vsub.f32 %v6684, %v6694
    %v6697 = vsub.f32 %v6685, %v6695
    %v6698 = vmul.f32 %v6696, %v6696
    %v6699 = vmul.f32 %v6697, %v6697
    %v6700 = vsel %vm51, %v6698, 0.0
    %6701 = vadd.xlane.f32.xlu0 %v6700
    %v6702 = vpop.xlane.xlu0 %6701
    %v6703 = vsel %vm51, %v6699, 0.0
    %6704 = vadd.xlane.f32.xlu0 %v6703
    %v6705 = vpop.xlane.xlu0 %6704
    %v6706 = vmul.f32 %v6702, %v1584
    %v6707 = vmul.f32 %v6705, %v1584
    %v6708 = vadd.f32 %v6706, 1e-05
    %v6709 = vadd.f32 %v6707, 1e-05
    %v6710 = vrsqrt.pop %v6708
    %v6711 = vrsqrt.pop %v6709
    %v6712 = vmul.f32 %v6696, %v6710
    %v6713 = vmul.f32 %v6697, %v6711
    %v6714 = vlaneseq
    %v6715 = vshrl.u32 %v6714, 7
    %v6716 = vsub.s32 0, %v6715
    %v6717 = vrot.slane %v6686, %v6716
    %v6718 = vmul.f32 %v6712, %v6717
    %v6719 = vmul.f32 %v6713, %v6717
    %v6720 = vlaneseq
    %v6721 = vshrl.u32 %v6720, 7
    %v6722 = vsub.s32 0, %v6721
    %v6723 = vrot.slane %v6687, %v6722
    %v6724 = vadd.f32 %v6718, %v6723
    %v6725 = vadd.f32 %v6719, %v6723
    %v6726 = vld [vmem:[#allocation2 + $0x1a0] sm:$0xff]
    %v6727 = vld [vmem:[#allocation2 + $0x1a8] sm:$0xff]
    %v6728 = vld [vmem:[#allocation2 + $0x1b0] sm:$0xff]
    %v6729 = vld [vmem:[#allocation2 + $0x1b8] sm:$0xff]
    %v6730 = vld [vmem:[%s3 + $0x18] sm:$0x1]
    %v6731 = vlaneseq
    %v6732 = vshrl.u32 %v6731, 7
    %v6733 = vsub.s32 0, %v6732
    %v6734 = vrot.slane %v6730, %v6733
    %v6736 = vsel %vm51, %v6724, 0
    %v6739 = vsel %vm51, %v6725, 0
    %6741 = vmatprep.subr.mxu0 0.0
    %6742 = vmatpush1.msra.mxu0 %v6726
    %6743 = vmatprep.subr.mxu0 0.0
    %6744 = vmatpush1.msra.mxu0 %v6727
    %6745 = vmatprep.subr.mxu0 0.0
    %6746 = vmatpush1.msra.mxu0 %v6728
    %6747 = vmatprep.subr.mxu0 0.0
    %6748 = vmatpush1.msra.mxu0 %v6729
    %6749 = vmatprep.subr.mxu0 0.0
    %6750 = vmatpush1.msra.mxu0 0.0
    %6751 = vmatprep.subr.mxu0 0.0
    %6752 = vmatpush1.msra.mxu0 0.0
    %6753 = vmatprep.subr.mxu0 0.0
    %6754 = vmatpush1.msra.mxu0 0.0
    %6755 = vmatprep.subr.mxu0 0.0
    %6756 = vmatpush1.msra.mxu0 0.0
    %6757 = vmatprep.subr.mxu0 0.0
    %6758 = vmatpush1.msra.mxu0 0.0
    %6759 = vmatprep.subr.mxu0 0.0
    %6760 = vmatpush1.msra.mxu0 0.0
    %6761 = vmatprep.subr.mxu0 0.0
    %6762 = vmatpush1.msra.mxu0 0.0
    %6763 = vmatprep.subr.mxu0 0.0
    %6764 = vmatpush1.msra.mxu0 0.0
    %6765 = vmatprep.subr.mxu0 0.0
    %6766 = vmatpush1.msra.mxu0 0.0
    %6767 = vmatprep.subr.mxu0 0.0
    %6768 = vmatpush1.msra.mxu0 0.0
    %6769 = vmatprep.subr.mxu0 0.0
    %6770 = vmatpush1.msra.mxu0 0.0
    %6771 = vmatprep.subr.mxu0 0.0
    %6772 = vmatpush1.msra.mxu0 0.0
    %6773 = vmatprep.subr.mxu0 0.0
    %6774 = vmatpush1.msra.mxu0 0.0
    %6775 = vmatprep.subr.mxu0 0.0
    %6776 = vmatpush1.msra.mxu0 0.0
    %6777 = vmatprep.subr.mxu0 0.0
    %6778 = vmatpush1.msra.mxu0 0.0
    %6779 = vmatprep.subr.mxu0 0.0
    %6780 = vmatpush1.msra.mxu0 0.0
    %6781 = vmatprep.subr.mxu0 0.0
    %6782 = vmatpush1.msra.mxu0 0.0
    %6783 = vmatprep.subr.mxu0 0.0
    %6784 = vmatpush1.msra.mxu0 0.0
    %6785 = vmatprep.subr.mxu0 0.0
    %6786 = vmatpush1.msra.mxu0 0.0
    %6787 = vmatprep.subr.mxu0 0.0
    %6788 = vmatpush1.msra.mxu0 0.0
    %6789 = vmatprep.subr.mxu0 0.0
    %6790 = vmatpush1.msra.mxu0 0.0
    %6791 = vmatprep.subr.mxu0 0.0
    %6792 = vmatpush1.msra.mxu0 0.0
    %6793 = vmatprep.subr.mxu0 0.0
    %6794 = vmatpush1.msra.mxu0 0.0
    %6795 = vmatprep.subr.mxu0 0.0
    %6796 = vmatpush1.msra.mxu0 0.0
    %6797 = vmatprep.subr.mxu0 0.0
    %6798 = vmatpush1.msra.mxu0 0.0
    %6799 = vmatprep.subr.mxu0 0.0
    %6800 = vmatpush1.msra.mxu0 0.0
    %6801 = vmatprep.subr.mxu0 0.0
    %6802 = vmatpush1.msra.mxu0 0.0
    %6803 = vmatprep.subr.mxu0 0.0
    %6804 = vmatpush1.msra.mxu0 0.0
    %6805 = vmatprep.mubr.f32.mxu0 0.0
    %6806 = vmatmul.mubr.f32.gmra.mrb[0].mxu0 %v6736
    %v6807 = vpop.f32.mrb[0].mxu0
    %v6808 = vadd.f32 %v6734, %v6807
    %v6809 = vpop.f32.mrb[0].mxu0
    %6810 = vmatprep.mubr.f32.mxu0 0.0
    %6811 = vmatmul.mubr.f32.gmra.mrb[0].mxu0 %v6739
    %v6812 = vpop.f32.mrb[0].mxu0
    %v6813 = vadd.f32 %v6734, %v6812
    %v6814 = vpop.f32.mrb[0].mxu0
    %6815 = vdwg.mxu0
    %v6816 = vmax.f32 %v6808, 0.0
    %v6817 = vmax.f32 %v6813, 0.0
    %v6818 = vld [vmem:[#allocation2 + $0x1c0] sm:$0xff]
    %v6819 = vld [vmem:[#allocation2 + $0x1c8] sm:$0xff]
    %v6820 = vld [vmem:[#allocation2 + $0x1d0] sm:$0xff]
    %v6821 = vld [vmem:[#allocation2 + $0x1d8] sm:$0xff]
    %v6822 = vld [vmem:[#allocation2 + $0x1e0] sm:$0xff]
    %v6823 = vld [vmem:[#allocation2 + $0x1e8] sm:$0xff]
    %v6824 = vld [vmem:[#allocation2 + $0x1f0] sm:$0xff]
    %v6825 = vld [vmem:[#allocation2 + $0x1f8] sm:$0xff]
    %v6826 = vld [vmem:[%s3 + $0x19] sm:$0x1]
    %v6827 = vlaneseq
    %v6828 = vshrl.u32 %v6827, 7
    %v6829 = vsub.s32 0, %v6828
    %v6830 = vrot.slane %v6826, %v6829
    %v6832 = vsel %vm3380, %v6816, 0
    %v6835 = vsel %vm3380, %v6817, 0
    %6837 = vmatprep.subr.mxu0 0.0
    %6838 = vmatpush1.msra.mxu0 %v6818
    %6839 = vmatprep.subr.mxu0 0.0
    %6840 = vmatpush1.msra.mxu0 %v6819
    %6841 = vmatprep.subr.mxu0 0.0
    %6842 = vmatpush1.msra.mxu0 %v6820
    %6843 = vmatprep.subr.mxu0 0.0
    %6844 = vmatpush1.msra.mxu0 %v6821
    %6845 = vmatprep.subr.mxu0 0.0
    %6846 = vmatpush1.msra.mxu0 %v6822
    %6847 = vmatprep.subr.mxu0 0.0
    %6848 = vmatpush1.msra.mxu0 %v6823
    %6849 = vmatprep.subr.mxu0 0.0
    %6850 = vmatpush1.msra.mxu0 %v6824
    %6851 = vmatprep.subr.mxu0 0.0
    %6852 = vmatpush1.msra.mxu0 %v6825
    %6853 = vmatprep.subr.mxu0 0.0
    %6854 = vmatpush1.msra.mxu0 0.0
    %6855 = vmatprep.subr.mxu0 0.0
    %6856 = vmatpush1.msra.mxu0 0.0
    %6857 = vmatprep.subr.mxu0 0.0
    %6858 = vmatpush1.msra.mxu0 0.0
    %6859 = vmatprep.subr.mxu0 0.0
    %6860 = vmatpush1.msra.mxu0 0.0
    %6861 = vmatprep.subr.mxu0 0.0
    %6862 = vmatpush1.msra.mxu0 0.0
    %6863 = vmatprep.subr.mxu0 0.0
    %6864 = vmatpush1.msra.mxu0 0.0
    %6865 = vmatprep.subr.mxu0 0.0
    %6866 = vmatpush1.msra.mxu0 0.0
    %6867 = vmatprep.subr.mxu0 0.0
    %6868 = vmatpush1.msra.mxu0 0.0
    %6869 = vmatprep.subr.mxu0 0.0
    %6870 = vmatpush1.msra.mxu0 0.0
    %6871 = vmatprep.subr.mxu0 0.0
    %6872 = vmatpush1.msra.mxu0 0.0
    %6873 = vmatprep.subr.mxu0 0.0
    %6874 = vmatpush1.msra.mxu0 0.0
    %6875 = vmatprep.subr.mxu0 0.0
    %6876 = vmatpush1.msra.mxu0 0.0
    %6877 = vmatprep.subr.mxu0 0.0
    %6878 = vmatpush1.msra.mxu0 0.0
    %6879 = vmatprep.subr.mxu0 0.0
    %6880 = vmatpush1.msra.mxu0 0.0
    %6881 = vmatprep.subr.mxu0 0.0
    %6882 = vmatpush1.msra.mxu0 0.0
    %6883 = vmatprep.subr.mxu0 0.0
    %6884 = vmatpush1.msra.mxu0 0.0
    %6885 = vmatprep.subr.mxu0 0.0
    %6886 = vmatpush1.msra.mxu0 0.0
    %6887 = vmatprep.subr.mxu0 0.0
    %6888 = vmatpush1.msra.mxu0 0.0
    %6889 = vmatprep.subr.mxu0 0.0
    %6890 = vmatpush1.msra.mxu0 0.0
    %6891 = vmatprep.subr.mxu0 0.0
    %6892 = vmatpush1.msra.mxu0 0.0
    %6893 = vmatprep.subr.mxu0 0.0
    %6894 = vmatpush1.msra.mxu0 0.0
    %6895 = vmatprep.subr.mxu0 0.0
    %6896 = vmatpush1.msra.mxu0 0.0
    %6897 = vmatprep.subr.mxu0 0.0
    %6898 = vmatpush1.msra.mxu0 0.0
    %6899 = vmatprep.subr.mxu0 0.0
    %6900 = vmatpush1.msra.mxu0 0.0
    %6901 = vmatprep.mubr.f32.mxu0 0.0
    %6902 = vmatmul.mubr.f32.gmra.mrb[0].mxu0 %v6832
    %v6903 = vpop.f32.mrb[0].mxu0
    %v6904 = vadd.f32 %v6830, %v6903
    %v6905 = vpop.f32.mrb[0].mxu0
    %6906 = vmatprep.mubr.f32.mxu0 0.0
    %6907 = vmatmul.mubr.f32.gmra.mrb[0].mxu0 %v6835
    %v6908 = vpop.f32.mrb[0].mxu0
    %v6909 = vadd.f32 %v6830, %v6908
    %v6910 = vpop.f32.mrb[0].mxu0
    %6911 = vdwg.mxu0
    %v6912 = vadd.f32 %v6724, %v6904
    %v6913 = vadd.f32 %v6725, %v6909
    %v6914 = vld [vmem:[%s3 + $0x16] sm:$0x1]
    %v6915 = vld [vmem:[%s3 + $0x17] sm:$0x1]
    %v6916 = vsel %vm51, %v6912, 0.0
    %6917 = vadd.xlane.f32.xlu0 %v6916
    %v6918 = vpop.xlane.xlu0 %6917
    %v6919 = vsel %vm51, %v6913, 0.0
    %6920 = vadd.xlane.f32.xlu0 %v6919
    %v6921 = vpop.xlane.xlu0 %6920
    %v6922 = vmul.f32 %v6918, %v1584
    %v6923 = vmul.f32 %v6921, %v1584
    %v6924 = vsub.f32 %v6912, %v6922
    %v6925 = vsub.f32 %v6913, %v6923
    %v6926 = vmul.f32 %v6924, %v6924
    %v6927 = vmul.f32 %v6925, %v6925
    %v6928 = vsel %vm51, %v6926, 0.0
    %6929 = vadd.xlane.f32.xlu0 %v6928
    %v6930 = vpop.xlane.xlu0 %6929
    %v6931 = vsel %vm51, %v6927, 0.0
    %6932 = vadd.xlane.f32.xlu0 %v6931
    %v6933 = vpop.xlane.xlu0 %6932
    %v6934 = vmul.f32 %v6930, %v1584
    %v6935 = vmul.f32 %v6933, %v1584
    %v6936 = vadd.f32 %v6934, 1e-05
    %v6937 = vadd.f32 %v6935, 1e-05
    %v6938 = vrsqrt.pop %v6936
    %v6939 = vrsqrt.pop %v6937
    %v6940 = vmul.f32 %v6924, %v6938
    %v6941 = vmul.f32 %v6925, %v6939
    %v6942 = vlaneseq
    %v6943 = vshrl.u32 %v6942, 7
    %v6944 = vsub.s32 0, %v6943
    %v6945 = vrot.slane %v6914, %v6944
    %v6946 = vmul.f32 %v6940, %v6945
    %v6947 = vmul.f32 %v6941, %v6945
    %v6948 = vlaneseq
    %v6949 = vshrl.u32 %v6948, 7
    %v6950 = vsub.s32 0, %v6949
    %v6951 = vrot.slane %v6915, %v6950
    %v6952 = vadd.f32 %v6946, %v6951
    %v6953 = vadd.f32 %v6947, %v6951
    %v6954 = vld [vmem:[#allocation2 + $0x200] sm:$0xff]
    %v6955 = vld [vmem:[#allocation2 + $0x208] sm:$0xff]
    %v6956 = vld [vmem:[#allocation2 + $0x210] sm:$0xff]
    %v6957 = vld [vmem:[#allocation2 + $0x218] sm:$0xff]
    %v6958 = vld [vmem:[%s3 + $0x1a] sm:$0x1]
    %v6959 = vlaneseq
    %v6960 = vshrl.u32 %v6959, 7
    %v6961 = vsub.s32 0, %v6960
    %v6962 = vrot.slane %v6958, %v6961
    %v6964 = vsel %vm51, %v6952, 0
    %v6967 = vsel %vm51, %v6953, 0
    %6969 = vmatprep.subr.mxu0 0.0
    %6970 = vmatpush1.msra.mxu0 %v6954
    %6971 = vmatprep.subr.mxu0 0.0
    %6972 = vmatpush1.msra.mxu0 %v6955
    %6973 = vmatprep.subr.mxu0 0.0
    %6974 = vmatpush1.msra.mxu0 %v6956
    %6975 = vmatprep.subr.mxu0 0.0
    %6976 = vmatpush1.msra.mxu0 %v6957
    %6977 = vmatprep.subr.mxu0 0.0
    %6978 = vmatpush1.msra.mxu0 0.0
    %6979 = vmatprep.subr.mxu0 0.0
    %6980 = vmatpush1.msra.mxu0 0.0
    %6981 = vmatprep.subr.mxu0 0.0
    %6982 = vmatpush1.msra.mxu0 0.0
    %6983 = vmatprep.subr.mxu0 0.0
    %6984 = vmatpush1.msra.mxu0 0.0
    %6985 = vmatprep.subr.mxu0 0.0
    %6986 = vmatpush1.msra.mxu0 0.0
    %6987 = vmatprep.subr.mxu0 0.0
    %6988 = vmatpush1.msra.mxu0 0.0
    %6989 = vmatprep.subr.mxu0 0.0
    %6990 = vmatpush1.msra.mxu0 0.0
    %6991 = vmatprep.subr.mxu0 0.0
    %6992 = vmatpush1.msra.mxu0 0.0
    %6993 = vmatprep.subr.mxu0 0.0
    %6994 = vmatpush1.msra.mxu0 0.0
    %6995 = vmatprep.subr.mxu0 0.0
    %6996 = vmatpush1.msra.mxu0 0.0
    %6997 = vmatprep.subr.mxu0 0.0
    %6998 = vmatpush1.msra.mxu0 0.0
    %6999 = vmatprep.subr.mxu0 0.0
    %7000 = vmatpush1.msra.mxu0 0.0
    %7001 = vmatprep.subr.mxu0 0.0
    %7002 = vmatpush1.msra.mxu0 0.0
    %7003 = vmatprep.subr.mxu0 0.0
    %7004 = vmatpush1.msra.mxu0 0.0
    %7005 = vmatprep.subr.mxu0 0.0
    %7006 = vmatpush1.msra.mxu0 0.0
    %7007 = vmatprep.subr.mxu0 0.0
    %7008 = vmatpush1.msra.mxu0 0.0
    %7009 = vmatprep.subr.mxu0 0.0
    %7010 = vmatpush1.msra.mxu0 0.0
    %7011 = vmatprep.subr.mxu0 0.0
    %7012 = vmatpush1.msra.mxu0 0.0
    %7013 = vmatprep.subr.mxu0 0.0
    %7014 = vmatpush1.msra.mxu0 0.0
    %7015 = vmatprep.subr.mxu0 0.0
    %7016 = vmatpush1.msra.mxu0 0.0
    %7017 = vmatprep.subr.mxu0 0.0
    %7018 = vmatpush1.msra.mxu0 0.0
    %7019 = vmatprep.subr.mxu0 0.0
    %7020 = vmatpush1.msra.mxu0 0.0
    %7021 = vmatprep.subr.mxu0 0.0
    %7022 = vmatpush1.msra.mxu0 0.0
    %7023 = vmatprep.subr.mxu0 0.0
    %7024 = vmatpush1.msra.mxu0 0.0
    %7025 = vmatprep.subr.mxu0 0.0
    %7026 = vmatpush1.msra.mxu0 0.0
    %7027 = vmatprep.subr.mxu0 0.0
    %7028 = vmatpush1.msra.mxu0 0.0
    %7029 = vmatprep.subr.mxu0 0.0
    %7030 = vmatpush1.msra.mxu0 0.0
    %7031 = vmatprep.subr.mxu0 0.0
    %7032 = vmatpush1.msra.mxu0 0.0
    %7033 = vmatprep.mubr.f32.mxu0 0.0
    %7034 = vmatmul.mubr.f32.gmra.mrb[0].mxu0 %v6964
    %v7035 = vpop.f32.mrb[0].mxu0
    %v7036 = vadd.f32 %v6962, %v7035
    %v7037 = vpop.f32.mrb[0].mxu0
    %7038 = vmatprep.mubr.f32.mxu0 0.0
    %7039 = vmatmul.mubr.f32.gmra.mrb[0].mxu0 %v6967
    %v7040 = vpop.f32.mrb[0].mxu0
    %v7041 = vadd.f32 %v6962, %v7040
    %v7042 = vpop.f32.mrb[0].mxu0
    %7043 = vdwg.mxu0
    %7044 = vst [vmem:[#allocation5] sm:$0xff] %v7036
    %7045 = vst [vmem:[#allocation5 + $0x8] sm:$0xff] %v7041
    // Predicated region
    $region22: #{decoder_forward.1} parent=1 // pred_check
      _
    $region23: #{decoder_forward.1} parent=1 // pred_check_branch
      %7047 = sbr.rel (0) target = $region25
    $region24: #{decoder_forward.1} parent=1 // pred_region
      %s7049 = ssub.s32 256, 256
      %7050 = vsyncadd [#allocation4], %s7049
      %s7051 = sshll.u32 [#allocation5], 4
      %s7052 = int_to_ptr.vmem [resolvable:$true] %s7051
      %7057 = dma.vmem_to_hbm [thread:$0]  %s7052, 256, %s4, [#allocation4], 128, 128, 8
    $region25: #{decoder_forward.1} parent=1 // pred_fallthru
      _
    // Predicated region
    $region26: #{decoder_forward.1} parent=1 // pred_check
      _
    $region27: #{decoder_forward.1} parent=1 // pred_check_branch
      %7059 = sbr.rel (0) target = $region29
    $region28: #{decoder_forward.1} parent=1 // pred_region
      %7060 = dma.done [#allocation4], 256
    $region29: #{decoder_forward.1} parent=1 // pred_fallthru
      _
    %7061 = vsyncpa [#allocation3], 1
    %7062 = vsyncpa [#allocation4], 1

</llo_original>
